<compile_context>
chip_gen: v7x
topology: tpu7x:2x2x1
jax: 0.10.0
libtpu: 0.0.40
codegen_flags: <defaults>
</compile_context>

<pallas_src>
import numpy as np
import jax
import jax.numpy as jnp
from jax.experimental import pallas as pl
from jax.experimental.pallas import tpu as pltpu


DEFAULT_BTILE = 16   # images packed along the lane axis per grid step

# Per-stage geometry: (cin, cout, conv H, conv W, padded per-image width,
#                      pool k, pool s, pooled H, pooled W)
#   stage 1: 1->4, 28x36, Wp=38, pool 3/2 -> 13x17
#   stage 2: 4->8, 13x17, Wp=19, pool 3/2 -> 6x8
#   stage 3: 8->4, 6x8,   Wp=10, pool 2/2 -> 3x4


def net_kernel(x_ref,
               w1_ref, bc1_ref, w2_ref, bc2_ref, w3_ref, bc3_ref,
               rsel1_ref, csel1_ref, rsel2_ref, csel2_ref,
               g_ref, seg_ref, lb_ref,
               out_ref):
    """One grid step runs T lane-packed images through the whole network."""

    def conv_relu(pin, w_ref, bc_ref):
        # pin: (cin*(H+2), T*Wp) channel-stacked, zero-bordered input.
        # w_ref: (3, cout*H, cin*(H+2)) banded weight matrix per lane shift dx.
        # The whole cin x dy contraction runs on the MXU; only 3 lane-shifted
        # slices of the input are materialized.
        wa = pin.shape[-1] - 2
        acc = jnp.dot(w_ref[0], pin[:, 0:wa],
                      preferred_element_type=jnp.float32)
        acc = acc + jnp.dot(w_ref[1], pin[:, 1:1 + wa],
                            preferred_element_type=jnp.float32)
        acc = acc + jnp.dot(w_ref[2], pin[:, 2:2 + wa],
                            preferred_element_type=jnp.float32)
        # BN-folded bias, broadcast along lanes, then ReLU.
        return jnp.maximum(acc + bc_ref[...], 0.0)

    def row_max(a, pk):
        h = a.shape[0] - pk + 1
        m = a[0:h, :]
        for dy in range(1, pk):
            m = jnp.maximum(m, a[dy:dy + h, :])
        return m

    def col_max(a, pk):
        w = a.shape[1] - pk + 1
        m = a[:, 0:w]
        for dx in range(1, pk):
            m = jnp.maximum(m, a[:, dx:dx + w])
        return m

    # ---- stage 1: (1, 28, 36) -> (4, 13, 17), channel-stacked, lane-packed --
    r1 = conv_relu(x_ref[0], w1_ref, bc1_ref)                     # (112, T*38-2)
    t1 = jnp.dot(rsel1_ref[...], row_max(r1, 3),
                 preferred_element_type=jnp.float32)              # (60, T*38-2)
    p1 = jnp.dot(col_max(t1, 3), csel1_ref[...],
                 preferred_element_type=jnp.float32)              # (60, T*19)

    # ---- stage 2: (4, 13, 17) -> (8, 6, 8) ----------------------------------
    r2 = conv_relu(p1, w2_ref, bc2_ref)                           # (104, T*19-2)
    t2 = jnp.dot(rsel2_ref[...], row_max(r2, 3),
                 preferred_element_type=jnp.float32)              # (64, T*19-2)
    p2 = jnp.dot(col_max(t2, 3), csel2_ref[...],
                 preferred_element_type=jnp.float32)              # (64, T*10)

    # ---- stage 3: (8, 6, 8) -> pooled (4, 3, 4), folded into Linear(48, 2) --
    r3 = conv_relu(p2, w3_ref, bc3_ref)                           # (24, T*10-2)
    m3 = col_max(row_max(r3, 2), 2)                               # (23, T*10-3)
    z0 = jnp.sum(g_ref[0] * m3, axis=0, keepdims=True)            # class 0
    z1 = jnp.sum(g_ref[1] * m3, axis=0, keepdims=True)            # class 1
    z = jnp.concatenate([z0, z1], axis=0)                         # (2, T*10-3)
    out_ref[0] = jnp.dot(z, seg_ref[...],
                         preferred_element_type=jnp.float32) + lb_ref[...]


# ------------------------- host-side constant builders -----------------------

def _fold_bn(w, b, scale, shift):
    """Fold inference-mode BN into the conv weights and bias."""
    w = np.asarray(w, np.float32)
    b = np.asarray(b, np.float32)
    scale = np.asarray(scale, np.float32)
    shift = np.asarray(shift, np.float32)
    return w * scale[:, None, None, None], b * scale + shift


def _conv_mats(wf, bf, cin, cout, H):
    """Banded matrices W[dx]: (cout*H, cin*(H+2)) so that
    conv_out_stacked = sum_dx W[dx] @ padded_stacked_input[:, dx:dx+WA]."""
    Hp = H + 2
    W = np.zeros((3, cout * H, cin * Hp), np.float32)
    for dx in range(3):
        for co in range(cout):
            for ci in range(cin):
                for dy in range(3):
                    for y in range(H):
                        W[dx, co * H + y, ci * Hp + y + dy] = wf[co, ci, dy, dx]
    bc = np.zeros((cout * H, 1), np.float32)
    for co in range(cout):
        bc[co * H:(co + 1) * H, 0] = bf[co]
    return jnp.asarray(W), jnp.asarray(bc)


def _rsel(cout, Hconv, Hout, stride, pk):
    """Row select + scatter (with zero-row borders) for the stacked layout."""
    R = np.zeros((cout * (Hout + 2), cout * Hconv - pk + 1), np.float32)
    for co in range(cout):
        for p in range(Hout):
            R[co * (Hout + 2) + 1 + p, co * Hconv + stride * p] = 1.0
    return jnp.asarray(R)


def _csel(T, Wp_in, pk, Wout, Wp_out, stride):
    """Column select + scatter (with zero-column borders) per image segment."""
    Wm = T * Wp_in - pk - 1
    S = np.zeros((Wm, T * Wp_out), np.float32)
    for b in range(T):
        for q in range(Wout):
            S[b * Wp_in + stride * q, b * Wp_out + 1 + q] = 1.0
    return jnp.asarray(S)


def _g_seg_lb(T, lw, lb):
    """Linear layer folded over the stage-3 dense-max map (flatten c*12+p*4+q)."""
    wm3 = T * 10 - 3
    lw_np = np.asarray(lw, np.float32)
    G = np.zeros((2, 23, wm3), np.float32)       # 23 = 4*6 - 1 dense-max rows
    for k in range(2):
        for c in range(4):
            for p in range(3):
                for q in range(4):
                    v = lw_np[k, c * 12 + p * 4 + q]
                    for b in range(T):
                        G[k, c * 6 + 2 * p, b * 10 + 2 * q] = v
    seg = np.zeros((wm3, T), np.float32)         # per-image lane-segment sum
    for L in range(wm3):
        seg[L, L // 10] = 1.0
    lbmat = np.tile(np.asarray(lb, np.float32).reshape(2, 1), (1, T))
    return jnp.asarray(G), jnp.asarray(seg), jnp.asarray(lbmat)


# --------------------------------- wrapper ------------------------------------

def net_forward(x, params, btile=DEFAULT_BTILE):
    (w1, b1, s1, t1, w2, b2, s2, t2, w3, b3, s3, t3, lw, lb) = params
    B = x.shape[0]
    T = max(1, int(btile))
    Bp = ((B + T - 1) // T) * T          # pad batch to a multiple of the tile
    n = Bp // T

    # Layout plumbing (wrapper side): zero-pad each image and pack T images
    # along the lane axis -> (n, 30, T*38); the kernel never repacks or zeroes.
    xi = x[:, 0, :, :]
    xp = jnp.pad(xi, ((0, Bp - B), (1, 1), (1, 1)))               # (Bp, 30, 38)
    xp = xp.reshape(n, T, 30, 38).transpose(0, 2, 1, 3).reshape(n, 30, T * 38)

    # Host-built constants (BN folded, conv as banded matmuls, 0/1 selectors).
    w1f, b1f = _fold_bn(w1, b1, s1, t1)
    w2f, b2f = _fold_bn(w2, b2, s2, t2)
    w3f, b3f = _fold_bn(w3, b3, s3, t3)
    W1, bc1 = _conv_mats(w1f, b1f, 1, 4, 28)      # (3,112,30), (112,1)
    W2, bc2 = _conv_mats(w2f, b2f, 4, 8, 13)      # (3,104,60), (104,1)
    W3, bc3 = _conv_mats(w3f, b3f, 8, 4, 6)       # (3, 24,64), (24,1)
    rsel1 = _rsel(4, 28, 13, 2, 3)                # (60, 110)
    csel1 = _csel(T, 38, 3, 17, 19, 2)            # (T*38-4, T*19)
    rsel2 = _rsel(8, 13, 6, 2, 3)                 # (64, 102)
    csel2 = _csel(T, 19, 3, 8, 10, 2)             # (T*19-4, T*10)
    G, seg, lbmat = _g_seg_lb(T, lw, lb)          # (2,23,T*10-3), (T*10-3,T), (2,T)

    cmap2 = lambda i: (0, 0)
    cmap3 = lambda i: (0, 0, 0)

    out = pl.pallas_call(
        net_kernel,
        out_shape=jax.ShapeDtypeStruct((n, 2, T), jnp.float32),
        grid_spec=pltpu.PrefetchScalarGridSpec(
            num_scalar_prefetch=0,
            grid=(n,),
            in_specs=[
                pl.BlockSpec((1, 30, T * 38), lambda i: (i, 0, 0)),  # packed input
                pl.BlockSpec(W1.shape, cmap3),
                pl.BlockSpec(bc1.shape, cmap2),
                pl.BlockSpec(W2.shape, cmap3),
                pl.BlockSpec(bc2.shape, cmap2),
                pl.BlockSpec(W3.shape, cmap3),
                pl.BlockSpec(bc3.shape, cmap2),
                pl.BlockSpec(rsel1.shape, cmap2),
                pl.BlockSpec(csel1.shape, cmap2),
                pl.BlockSpec(rsel2.shape, cmap2),
                pl.BlockSpec(csel2.shape, cmap2),
                pl.BlockSpec(G.shape, cmap3),
                pl.BlockSpec(seg.shape, cmap2),
                pl.BlockSpec(lbmat.shape, cmap2),
            ],
            out_specs=pl.BlockSpec((1, 2, T), lambda i: (i, 0, 0)),
        ),
        compiler_params=pltpu.CompilerParams(
            dimension_semantics=("parallel",)),
    )(xp, W1, bc1, W2, bc2, W3, bc3,
      rsel1, csel1, rsel2, csel2, G, seg, lbmat)

    logits = out.transpose(0, 2, 1).reshape(Bp, 2)
    return logits[:B]


# ------------------------------ pure-JAX reference ----------------------------

def reference_forward(x, params):
    (w1, b1, s1, t1, w2, b2, s2, t2, w3, b3, s3, t3, lw, lb) = params
    hi = jax.lax.Precision.HIGHEST

    def block(y, w, b, sc, sh, pk, ps):
        y = jax.lax.conv_general_dilated(
            y, w, window_strides=(1, 1), padding=((1, 1), (1, 1)),
            dimension_numbers=("NCHW", "OIHW", "NCHW"), precision=hi)
        y = y + b[None, :, None, None]
        y = y * sc[None, :, None, None] + sh[None, :, None, None]
        y = jnp.maximum(y, 0.0)
        y = jax.lax.reduce_window(y, -jnp.inf, jax.lax.max,
                                  (1, 1, pk, pk), (1, 1, ps, ps), "VALID")
        return y

    y = block(x, w1, b1, s1, t1, 3, 2)
    y = block(y, w2, b2, s2, t2, 3, 2)
    y = block(y, w3, b3, s3, t3, 2, 2)
    flat = y.reshape(y.shape[0], -1)
    return jnp.dot(flat, lw.T, precision=hi) + lb


if __name__ == "__main__":
    key = jax.random.PRNGKey(0)
    keys = jax.random.split(key, 24)

    def nrm(k, shape, scale):
        return scale * jax.random.normal(k, shape, jnp.float32)

    def bn_fold(kg, kb, km, kv, c):
        gamma = 1.0 + 0.1 * jax.random.normal(kg, (c,), jnp.float32)
        beta = 0.1 * jax.random.normal(kb, (c,), jnp.float32)
        rmean = 0.1 * jax.random.normal(km, (c,), jnp.float32)
        rvar = 1.0 + 0.2 * jax.random.uniform(kv, (c,), jnp.float32)
        scale = gamma / jnp.sqrt(rvar + 1e-5)   # eps matches torch BatchNorm2d
        shift = beta - rmean * scale
        return scale, shift

    w1 = nrm(keys[0], (4, 1, 3, 3), 0.3); b1 = nrm(keys[1], (4,), 0.1)
    s1, t1 = bn_fold(keys[2], keys[3], keys[4], keys[5], 4)
    w2 = nrm(keys[6], (8, 4, 3, 3), 0.15); b2 = nrm(keys[7], (8,), 0.1)
    s2, t2 = bn_fold(keys[8], keys[9], keys[10], keys[11], 8)
    w3 = nrm(keys[12], (4, 8, 3, 3), 0.1); b3 = nrm(keys[13], (4,), 0.1)
    s3, t3 = bn_fold(keys[14], keys[15], keys[16], keys[17], 4)
    lw = nrm(keys[18], (2, 48), 0.1); lb = nrm(keys[19], (2,), 0.1)
    params = (w1, b1, s1, t1, w2, b2, s2, t2, w3, b3, s3, t3, lw, lb)

    # input: NCHW, (B=2, C=1, H=28, W=36); after the cnn stack: 4*3*4 = 48 feats
    x = jax.random.normal(keys[20], (2, 1, 28, 36), jnp.float32)

    out = jax.block_until_ready(net_forward(x, params))

    ref = reference_forward(x, params)
    rel_err = jnp.max(jnp.abs(out - ref)) / (jnp.max(jnp.abs(ref)) + 1e-6)
    if not bool(rel_err < 2e-2):
        raise AssertionError(f"kernel/reference mismatch: rel err {rel_err}")
    print("KERNEL_OK")
</pallas_src>

<mosaic_0001>
module attributes {stable_mosaic.version = 11 : i64} {
  func.func @net_kernel(%arg0: i32, %arg1: memref<1x30x608xf32, #tpu.memory_space<vmem>>, %arg2: memref<3x112x30xf32, #tpu.memory_space<vmem>>, %arg3: memref<112x1xf32, #tpu.memory_space<vmem>>, %arg4: memref<3x104x60xf32, #tpu.memory_space<vmem>>, %arg5: memref<104x1xf32, #tpu.memory_space<vmem>>, %arg6: memref<3x24x64xf32, #tpu.memory_space<vmem>>, %arg7: memref<24x1xf32, #tpu.memory_space<vmem>>, %arg8: memref<60x110xf32, #tpu.memory_space<vmem>>, %arg9: memref<604x304xf32, #tpu.memory_space<vmem>>, %arg10: memref<64x102xf32, #tpu.memory_space<vmem>>, %arg11: memref<300x160xf32, #tpu.memory_space<vmem>>, %arg12: memref<2x23x157xf32, #tpu.memory_space<vmem>>, %arg13: memref<157x16xf32, #tpu.memory_space<vmem>>, %arg14: memref<2x16xf32, #tpu.memory_space<vmem>>, %arg15: memref<1x2x16xf32, #tpu.memory_space<vmem>>) attributes {dimension_semantics = [#tpu.dimension_semantics<parallel>], iteration_bounds = array<i64: 1>, scalar_prefetch = 0 : i64, scratch_operands = 0 : i64, tpu.core_type = #tpu.core_type<tc>, window_params = [{transform_indices = @transform_0, window_bounds = array<i64: 1, 30, 608>}, {pipeline_mode = #tpu.pipeline_mode<synchronous>, transform_indices = @transform_1, window_bounds = array<i64: 3, 112, 30>}, {pipeline_mode = #tpu.pipeline_mode<synchronous>, transform_indices = @transform_2, window_bounds = array<i64: 112, 1>}, {pipeline_mode = #tpu.pipeline_mode<synchronous>, transform_indices = @transform_3, window_bounds = array<i64: 3, 104, 60>}, {pipeline_mode = #tpu.pipeline_mode<synchronous>, transform_indices = @transform_4, window_bounds = array<i64: 104, 1>}, {pipeline_mode = #tpu.pipeline_mode<synchronous>, transform_indices = @transform_5, window_bounds = array<i64: 3, 24, 64>}, {pipeline_mode = #tpu.pipeline_mode<synchronous>, transform_indices = @transform_6, window_bounds = array<i64: 24, 1>}, {pipeline_mode = #tpu.pipeline_mode<synchronous>, transform_indices = @transform_7, window_bounds = array<i64: 60, 110>}, {pipeline_mode = #tpu.pipeline_mode<synchronous>, transform_indices = @transform_8, window_bounds = array<i64: 604, 304>}, {pipeline_mode = #tpu.pipeline_mode<synchronous>, transform_indices = @transform_9, window_bounds = array<i64: 64, 102>}, {pipeline_mode = #tpu.pipeline_mode<synchronous>, transform_indices = @transform_10, window_bounds = array<i64: 300, 160>}, {pipeline_mode = #tpu.pipeline_mode<synchronous>, transform_indices = @transform_11, window_bounds = array<i64: 2, 23, 157>}, {pipeline_mode = #tpu.pipeline_mode<synchronous>, transform_indices = @transform_12, window_bounds = array<i64: 157, 16>}, {pipeline_mode = #tpu.pipeline_mode<synchronous>, transform_indices = @transform_13, window_bounds = array<i64: 2, 16>}, {transform_indices = @transform_14, window_bounds = array<i64: 1, 2, 16>}]} {
    %c0 = arith.constant 0 : index
    %c0_0 = arith.constant 0 : index
    %c0_1 = arith.constant 0 : index
    %0 = vector.load %arg1[%c0, %c0_0, %c0_1] : memref<1x30x608xf32, #tpu.memory_space<vmem>>, vector<1x30x608xf32>
    %1 = vector.shape_cast %0 : vector<1x30x608xf32> to vector<30x608xf32>
    %c0_2 = arith.constant 0 : index
    %c0_3 = arith.constant 0 : index
    %c0_4 = arith.constant 0 : index
    %2 = vector.load %arg2[%c0_2, %c0_3, %c0_4] : memref<3x112x30xf32, #tpu.memory_space<vmem>>, vector<1x112x30xf32>
    %3 = vector.shape_cast %2 : vector<1x112x30xf32> to vector<112x30xf32>
    %4 = vector.extract_strided_slice %1 {offsets = [0, 0], sizes = [30, 606], strides = [1, 1]} : vector<30x608xf32> to vector<30x606xf32>
    %cst = arith.constant dense<0.000000e+00> : vector<112x606xf32>
    %5 = tpu.matmul %3, %4, %cst {dimension_numbers = #tpu.dot_dimension_numbers<[1], [0], [0], [1], [0, 0, 1, 1], [], []>} : vector<112x30xf32>, vector<30x606xf32>, vector<112x606xf32> -> vector<112x606xf32>
    %c1 = arith.constant 1 : index
    %c0_5 = arith.constant 0 : index
    %c0_6 = arith.constant 0 : index
    %6 = vector.load %arg2[%c1, %c0_5, %c0_6] : memref<3x112x30xf32, #tpu.memory_space<vmem>>, vector<1x112x30xf32>
    %7 = vector.shape_cast %6 : vector<1x112x30xf32> to vector<112x30xf32>
    %8 = vector.extract_strided_slice %1 {offsets = [0, 1], sizes = [30, 606], strides = [1, 1]} : vector<30x608xf32> to vector<30x606xf32>
    %cst_7 = arith.constant dense<0.000000e+00> : vector<112x606xf32>
    %9 = tpu.matmul %7, %8, %cst_7 {dimension_numbers = #tpu.dot_dimension_numbers<[1], [0], [0], [1], [0, 0, 1, 1], [], []>} : vector<112x30xf32>, vector<30x606xf32>, vector<112x606xf32> -> vector<112x606xf32>
    %10 = arith.addf %5, %9 : vector<112x606xf32>
    %c2 = arith.constant 2 : index
    %c0_8 = arith.constant 0 : index
    %c0_9 = arith.constant 0 : index
    %11 = vector.load %arg2[%c2, %c0_8, %c0_9] : memref<3x112x30xf32, #tpu.memory_space<vmem>>, vector<1x112x30xf32>
    %12 = vector.shape_cast %11 : vector<1x112x30xf32> to vector<112x30xf32>
    %13 = vector.extract_strided_slice %1 {offsets = [0, 2], sizes = [30, 606], strides = [1, 1]} : vector<30x608xf32> to vector<30x606xf32>
    %cst_10 = arith.constant dense<0.000000e+00> : vector<112x606xf32>
    %14 = tpu.matmul %12, %13, %cst_10 {dimension_numbers = #tpu.dot_dimension_numbers<[1], [0], [0], [1], [0, 0, 1, 1], [], []>} : vector<112x30xf32>, vector<30x606xf32>, vector<112x606xf32> -> vector<112x606xf32>
    %15 = arith.addf %10, %14 : vector<112x606xf32>
    %c0_11 = arith.constant 0 : index
    %c0_12 = arith.constant 0 : index
    %16 = vector.load %arg3[%c0_11, %c0_12] : memref<112x1xf32, #tpu.memory_space<vmem>>, vector<112x1xf32>
    %17 = vector.broadcast %16 : vector<112x1xf32> to vector<112x606xf32>
    %18 = arith.addf %15, %17 : vector<112x606xf32>
    %cst_13 = arith.constant 0.000000e+00 : f32
    %19 = vector.broadcast %cst_13 : f32 to vector<112x606xf32>
    %20 = arith.maximumf %18, %19 : vector<112x606xf32>
    %c0_14 = arith.constant 0 : index
    %c0_15 = arith.constant 0 : index
    %21 = vector.load %arg8[%c0_14, %c0_15] : memref<60x110xf32, #tpu.memory_space<vmem>>, vector<60x110xf32>
    %22 = vector.extract_strided_slice %20 {offsets = [0, 0], sizes = [110, 606], strides = [1, 1]} : vector<112x606xf32> to vector<110x606xf32>
    %23 = vector.extract_strided_slice %20 {offsets = [1, 0], sizes = [110, 606], strides = [1, 1]} : vector<112x606xf32> to vector<110x606xf32>
    %24 = arith.maximumf %22, %23 : vector<110x606xf32>
    %25 = vector.extract_strided_slice %20 {offsets = [2, 0], sizes = [110, 606], strides = [1, 1]} : vector<112x606xf32> to vector<110x606xf32>
    %26 = arith.maximumf %24, %25 : vector<110x606xf32>
    %cst_16 = arith.constant dense<0.000000e+00> : vector<60x606xf32>
    %27 = tpu.matmul %21, %26, %cst_16 {dimension_numbers = #tpu.dot_dimension_numbers<[1], [0], [0], [1], [0, 0, 1, 1], [], []>} : vector<60x110xf32>, vector<110x606xf32>, vector<60x606xf32> -> vector<60x606xf32>
    %28 = vector.extract_strided_slice %27 {offsets = [0, 0], sizes = [60, 604], strides = [1, 1]} : vector<60x606xf32> to vector<60x604xf32>
    %29 = vector.extract_strided_slice %27 {offsets = [0, 1], sizes = [60, 604], strides = [1, 1]} : vector<60x606xf32> to vector<60x604xf32>
    %30 = arith.maximumf %28, %29 : vector<60x604xf32>
    %31 = vector.extract_strided_slice %27 {offsets = [0, 2], sizes = [60, 604], strides = [1, 1]} : vector<60x606xf32> to vector<60x604xf32>
    %32 = arith.maximumf %30, %31 : vector<60x604xf32>
    %c0_17 = arith.constant 0 : index
    %c0_18 = arith.constant 0 : index
    %33 = vector.load %arg9[%c0_17, %c0_18] : memref<604x304xf32, #tpu.memory_space<vmem>>, vector<604x304xf32>
    %cst_19 = arith.constant dense<0.000000e+00> : vector<60x304xf32>
    %34 = tpu.matmul %32, %33, %cst_19 {dimension_numbers = #tpu.dot_dimension_numbers<[1], [0], [0], [1], [0, 0, 1, 1], [], []>} : vector<60x604xf32>, vector<604x304xf32>, vector<60x304xf32> -> vector<60x304xf32>
    %c0_20 = arith.constant 0 : index
    %c0_21 = arith.constant 0 : index
    %c0_22 = arith.constant 0 : index
    %35 = vector.load %arg4[%c0_20, %c0_21, %c0_22] : memref<3x104x60xf32, #tpu.memory_space<vmem>>, vector<1x104x60xf32>
    %36 = vector.shape_cast %35 : vector<1x104x60xf32> to vector<104x60xf32>
    %37 = vector.extract_strided_slice %34 {offsets = [0, 0], sizes = [60, 302], strides = [1, 1]} : vector<60x304xf32> to vector<60x302xf32>
    %cst_23 = arith.constant dense<0.000000e+00> : vector<104x302xf32>
    %38 = tpu.matmul %36, %37, %cst_23 {dimension_numbers = #tpu.dot_dimension_numbers<[1], [0], [0], [1], [0, 0, 1, 1], [], []>} : vector<104x60xf32>, vector<60x302xf32>, vector<104x302xf32> -> vector<104x302xf32>
    %c1_24 = arith.constant 1 : index
    %c0_25 = arith.constant 0 : index
    %c0_26 = arith.constant 0 : index
    %39 = vector.load %arg4[%c1_24, %c0_25, %c0_26] : memref<3x104x60xf32, #tpu.memory_space<vmem>>, vector<1x104x60xf32>
    %40 = vector.shape_cast %39 : vector<1x104x60xf32> to vector<104x60xf32>
    %41 = vector.extract_strided_slice %34 {offsets = [0, 1], sizes = [60, 302], strides = [1, 1]} : vector<60x304xf32> to vector<60x302xf32>
    %cst_27 = arith.constant dense<0.000000e+00> : vector<104x302xf32>
    %42 = tpu.matmul %40, %41, %cst_27 {dimension_numbers = #tpu.dot_dimension_numbers<[1], [0], [0], [1], [0, 0, 1, 1], [], []>} : vector<104x60xf32>, vector<60x302xf32>, vector<104x302xf32> -> vector<104x302xf32>
    %43 = arith.addf %38, %42 : vector<104x302xf32>
    %c2_28 = arith.constant 2 : index
    %c0_29 = arith.constant 0 : index
    %c0_30 = arith.constant 0 : index
    %44 = vector.load %arg4[%c2_28, %c0_29, %c0_30] : memref<3x104x60xf32, #tpu.memory_space<vmem>>, vector<1x104x60xf32>
    %45 = vector.shape_cast %44 : vector<1x104x60xf32> to vector<104x60xf32>
    %46 = vector.extract_strided_slice %34 {offsets = [0, 2], sizes = [60, 302], strides = [1, 1]} : vector<60x304xf32> to vector<60x302xf32>
    %cst_31 = arith.constant dense<0.000000e+00> : vector<104x302xf32>
    %47 = tpu.matmul %45, %46, %cst_31 {dimension_numbers = #tpu.dot_dimension_numbers<[1], [0], [0], [1], [0, 0, 1, 1], [], []>} : vector<104x60xf32>, vector<60x302xf32>, vector<104x302xf32> -> vector<104x302xf32>
    %48 = arith.addf %43, %47 : vector<104x302xf32>
    %c0_32 = arith.constant 0 : index
    %c0_33 = arith.constant 0 : index
    %49 = vector.load %arg5[%c0_32, %c0_33] : memref<104x1xf32, #tpu.memory_space<vmem>>, vector<104x1xf32>
    %50 = vector.broadcast %49 : vector<104x1xf32> to vector<104x302xf32>
    %51 = arith.addf %48, %50 : vector<104x302xf32>
    %cst_34 = arith.constant 0.000000e+00 : f32
    %52 = vector.broadcast %cst_34 : f32 to vector<104x302xf32>
    %53 = arith.maximumf %51, %52 : vector<104x302xf32>
    %c0_35 = arith.constant 0 : index
    %c0_36 = arith.constant 0 : index
    %54 = vector.load %arg10[%c0_35, %c0_36] : memref<64x102xf32, #tpu.memory_space<vmem>>, vector<64x102xf32>
    %55 = vector.extract_strided_slice %53 {offsets = [0, 0], sizes = [102, 302], strides = [1, 1]} : vector<104x302xf32> to vector<102x302xf32>
    %56 = vector.extract_strided_slice %53 {offsets = [1, 0], sizes = [102, 302], strides = [1, 1]} : vector<104x302xf32> to vector<102x302xf32>
    %57 = arith.maximumf %55, %56 : vector<102x302xf32>
    %58 = vector.extract_strided_slice %53 {offsets = [2, 0], sizes = [102, 302], strides = [1, 1]} : vector<104x302xf32> to vector<102x302xf32>
    %59 = arith.maximumf %57, %58 : vector<102x302xf32>
    %cst_37 = arith.constant dense<0.000000e+00> : vector<64x302xf32>
    %60 = tpu.matmul %54, %59, %cst_37 {dimension_numbers = #tpu.dot_dimension_numbers<[1], [0], [0], [1], [0, 0, 1, 1], [], []>} : vector<64x102xf32>, vector<102x302xf32>, vector<64x302xf32> -> vector<64x302xf32>
    %61 = vector.extract_strided_slice %60 {offsets = [0, 0], sizes = [64, 300], strides = [1, 1]} : vector<64x302xf32> to vector<64x300xf32>
    %62 = vector.extract_strided_slice %60 {offsets = [0, 1], sizes = [64, 300], strides = [1, 1]} : vector<64x302xf32> to vector<64x300xf32>
    %63 = arith.maximumf %61, %62 : vector<64x300xf32>
    %64 = vector.extract_strided_slice %60 {offsets = [0, 2], sizes = [64, 300], strides = [1, 1]} : vector<64x302xf32> to vector<64x300xf32>
    %65 = arith.maximumf %63, %64 : vector<64x300xf32>
    %c0_38 = arith.constant 0 : index
    %c0_39 = arith.constant 0 : index
    %66 = vector.load %arg11[%c0_38, %c0_39] : memref<300x160xf32, #tpu.memory_space<vmem>>, vector<300x160xf32>
    %cst_40 = arith.constant dense<0.000000e+00> : vector<64x160xf32>
    %67 = tpu.matmul %65, %66, %cst_40 {dimension_numbers = #tpu.dot_dimension_numbers<[1], [0], [0], [1], [0, 0, 1, 1], [], []>} : vector<64x300xf32>, vector<300x160xf32>, vector<64x160xf32> -> vector<64x160xf32>
    %c0_41 = arith.constant 0 : index
    %c0_42 = arith.constant 0 : index
    %c0_43 = arith.constant 0 : index
    %68 = vector.load %arg6[%c0_41, %c0_42, %c0_43] : memref<3x24x64xf32, #tpu.memory_space<vmem>>, vector<1x24x64xf32>
    %69 = vector.shape_cast %68 : vector<1x24x64xf32> to vector<24x64xf32>
    %70 = vector.extract_strided_slice %67 {offsets = [0, 0], sizes = [64, 158], strides = [1, 1]} : vector<64x160xf32> to vector<64x158xf32>
    %cst_44 = arith.constant dense<0.000000e+00> : vector<24x158xf32>
    %71 = tpu.matmul %69, %70, %cst_44 {dimension_numbers = #tpu.dot_dimension_numbers<[1], [0], [0], [1], [0, 0, 1, 1], [], []>} : vector<24x64xf32>, vector<64x158xf32>, vector<24x158xf32> -> vector<24x158xf32>
    %c1_45 = arith.constant 1 : index
    %c0_46 = arith.constant 0 : index
    %c0_47 = arith.constant 0 : index
    %72 = vector.load %arg6[%c1_45, %c0_46, %c0_47] : memref<3x24x64xf32, #tpu.memory_space<vmem>>, vector<1x24x64xf32>
    %73 = vector.shape_cast %72 : vector<1x24x64xf32> to vector<24x64xf32>
    %74 = vector.extract_strided_slice %67 {offsets = [0, 1], sizes = [64, 158], strides = [1, 1]} : vector<64x160xf32> to vector<64x158xf32>
    %cst_48 = arith.constant dense<0.000000e+00> : vector<24x158xf32>
    %75 = tpu.matmul %73, %74, %cst_48 {dimension_numbers = #tpu.dot_dimension_numbers<[1], [0], [0], [1], [0, 0, 1, 1], [], []>} : vector<24x64xf32>, vector<64x158xf32>, vector<24x158xf32> -> vector<24x158xf32>
    %76 = arith.addf %71, %75 : vector<24x158xf32>
    %c2_49 = arith.constant 2 : index
    %c0_50 = arith.constant 0 : index
    %c0_51 = arith.constant 0 : index
    %77 = vector.load %arg6[%c2_49, %c0_50, %c0_51] : memref<3x24x64xf32, #tpu.memory_space<vmem>>, vector<1x24x64xf32>
    %78 = vector.shape_cast %77 : vector<1x24x64xf32> to vector<24x64xf32>
    %79 = vector.extract_strided_slice %67 {offsets = [0, 2], sizes = [64, 158], strides = [1, 1]} : vector<64x160xf32> to vector<64x158xf32>
    %cst_52 = arith.constant dense<0.000000e+00> : vector<24x158xf32>
    %80 = tpu.matmul %78, %79, %cst_52 {dimension_numbers = #tpu.dot_dimension_numbers<[1], [0], [0], [1], [0, 0, 1, 1], [], []>} : vector<24x64xf32>, vector<64x158xf32>, vector<24x158xf32> -> vector<24x158xf32>
    %81 = arith.addf %76, %80 : vector<24x158xf32>
    %c0_53 = arith.constant 0 : index
    %c0_54 = arith.constant 0 : index
    %82 = vector.load %arg7[%c0_53, %c0_54] : memref<24x1xf32, #tpu.memory_space<vmem>>, vector<24x1xf32>
    %83 = vector.broadcast %82 : vector<24x1xf32> to vector<24x158xf32>
    %84 = arith.addf %81, %83 : vector<24x158xf32>
    %cst_55 = arith.constant 0.000000e+00 : f32
    %85 = vector.broadcast %cst_55 : f32 to vector<24x158xf32>
    %86 = arith.maximumf %84, %85 : vector<24x158xf32>
    %87 = vector.extract_strided_slice %86 {offsets = [0, 0], sizes = [23, 158], strides = [1, 1]} : vector<24x158xf32> to vector<23x158xf32>
    %88 = vector.extract_strided_slice %86 {offsets = [1, 0], sizes = [23, 158], strides = [1, 1]} : vector<24x158xf32> to vector<23x158xf32>
    %89 = arith.maximumf %87, %88 : vector<23x158xf32>
    %90 = vector.extract_strided_slice %89 {offsets = [0, 0], sizes = [23, 157], strides = [1, 1]} : vector<23x158xf32> to vector<23x157xf32>
    %91 = vector.extract_strided_slice %89 {offsets = [0, 1], sizes = [23, 157], strides = [1, 1]} : vector<23x158xf32> to vector<23x157xf32>
    %92 = arith.maximumf %90, %91 : vector<23x157xf32>
    %c0_56 = arith.constant 0 : index
    %c0_57 = arith.constant 0 : index
    %c0_58 = arith.constant 0 : index
    %93 = vector.load %arg12[%c0_56, %c0_57, %c0_58] : memref<2x23x157xf32, #tpu.memory_space<vmem>>, vector<1x23x157xf32>
    %94 = vector.shape_cast %93 : vector<1x23x157xf32> to vector<23x157xf32>
    %95 = arith.mulf %94, %92 : vector<23x157xf32>
    %cst_59 = arith.constant dense<0.000000e+00> : vector<157xf32>
    %96 = vector.multi_reduction <add>, %95, %cst_59 [0] : vector<23x157xf32> to vector<157xf32>
    %97 = vector.shape_cast %96 : vector<157xf32> to vector<1x157xf32>
    %c1_60 = arith.constant 1 : index
    %c0_61 = arith.constant 0 : index
    %c0_62 = arith.constant 0 : index
    %98 = vector.load %arg12[%c1_60, %c0_61, %c0_62] : memref<2x23x157xf32, #tpu.memory_space<vmem>>, vector<1x23x157xf32>
    %99 = vector.shape_cast %98 : vector<1x23x157xf32> to vector<23x157xf32>
    %100 = arith.mulf %99, %92 : vector<23x157xf32>
    %cst_63 = arith.constant dense<0.000000e+00> : vector<157xf32>
    %101 = vector.multi_reduction <add>, %100, %cst_63 [0] : vector<23x157xf32> to vector<157xf32>
    %102 = vector.shape_cast %101 : vector<157xf32> to vector<1x157xf32>
    %103 = tpu.concatenate %97, %102 in 0 : vector<1x157xf32>, vector<1x157xf32> -> vector<2x157xf32>
    %c0_64 = arith.constant 0 : index
    %c0_65 = arith.constant 0 : index
    %104 = vector.load %arg13[%c0_64, %c0_65] : memref<157x16xf32, #tpu.memory_space<vmem>>, vector<157x16xf32>
    %cst_66 = arith.constant dense<0.000000e+00> : vector<2x16xf32>
    %105 = tpu.matmul %103, %104, %cst_66 {dimension_numbers = #tpu.dot_dimension_numbers<[1], [0], [0], [1], [0, 0, 1, 1], [], []>} : vector<2x157xf32>, vector<157x16xf32>, vector<2x16xf32> -> vector<2x16xf32>
    %c0_67 = arith.constant 0 : index
    %c0_68 = arith.constant 0 : index
    %106 = vector.load %arg14[%c0_67, %c0_68] : memref<2x16xf32, #tpu.memory_space<vmem>>, vector<2x16xf32>
    %107 = arith.addf %105, %106 : vector<2x16xf32>
    %c0_69 = arith.constant 0 : index
    %c0_70 = arith.constant 0 : index
    %c0_71 = arith.constant 0 : index
    %108 = vector.load %arg15[%c0_69, %c0_70, %c0_71] : memref<1x2x16xf32, #tpu.memory_space<vmem>>, vector<1x2x16xf32>
    %109 = vector.shape_cast %108 : vector<1x2x16xf32> to vector<2x16xf32>
    %110 = vector.shape_cast %107 : vector<2x16xf32> to vector<1x2x16xf32>
    tpu.vector_store %arg15[%c0_69, %c0_70, %c0_71], %110 {strides = array<i32>} : memref<1x2x16xf32, #tpu.memory_space<vmem>>, vector<1x2x16xf32>,
    return
  }
  func.func @transform_0(%arg0: i32) -> (i32, i32, i32) {
    %c0_i32 = arith.constant 0 : i32
    %c0_i32_0 = arith.constant 0 : i32
    %c0_i32_1 = arith.constant 0 : i32
    return %arg0, %c0_i32, %c0_i32_0 : i32, i32, i32
  }
  func.func @transform_1(%arg0: i32) -> (i32, i32, i32) {
    %c0_i32 = arith.constant 0 : i32
    %c0_i32_0 = arith.constant 0 : i32
    %c0_i32_1 = arith.constant 0 : i32
    %c0_i32_2 = arith.constant 0 : i32
    return %c0_i32, %c0_i32_0, %c0_i32_1 : i32, i32, i32
  }
  func.func @transform_2(%arg0: i32) -> (i32, i32) {
    %c0_i32 = arith.constant 0 : i32
    %c0_i32_0 = arith.constant 0 : i32
    %c0_i32_1 = arith.constant 0 : i32
    return %c0_i32, %c0_i32_0 : i32, i32
  }
  func.func @transform_3(%arg0: i32) -> (i32, i32, i32) {
    %c0_i32 = arith.constant 0 : i32
    %c0_i32_0 = arith.constant 0 : i32
    %c0_i32_1 = arith.constant 0 : i32
    %c0_i32_2 = arith.constant 0 : i32
    return %c0_i32, %c0_i32_0, %c0_i32_1 : i32, i32, i32
  }
  func.func @transform_4(%arg0: i32) -> (i32, i32) {
    %c0_i32 = arith.constant 0 : i32
    %c0_i32_0 = arith.constant 0 : i32
    %c0_i32_1 = arith.constant 0 : i32
    return %c0_i32, %c0_i32_0 : i32, i32
  }
  func.func @transform_5(%arg0: i32) -> (i32, i32, i32) {
    %c0_i32 = arith.constant 0 : i32
    %c0_i32_0 = arith.constant 0 : i32
    %c0_i32_1 = arith.constant 0 : i32
    %c0_i32_2 = arith.constant 0 : i32
    return %c0_i32, %c0_i32_0, %c0_i32_1 : i32, i32, i32
  }
  func.func @transform_6(%arg0: i32) -> (i32, i32) {
    %c0_i32 = arith.constant 0 : i32
    %c0_i32_0 = arith.constant 0 : i32
    %c0_i32_1 = arith.constant 0 : i32
    return %c0_i32, %c0_i32_0 : i32, i32
  }
  func.func @transform_7(%arg0: i32) -> (i32, i32) {
    %c0_i32 = arith.constant 0 : i32
    %c0_i32_0 = arith.constant 0 : i32
    %c0_i32_1 = arith.constant 0 : i32
    return %c0_i32, %c0_i32_0 : i32, i32
  }
  func.func @transform_8(%arg0: i32) -> (i32, i32) {
    %c0_i32 = arith.constant 0 : i32
    %c0_i32_0 = arith.constant 0 : i32
    %c0_i32_1 = arith.constant 0 : i32
    return %c0_i32, %c0_i32_0 : i32, i32
  }
  func.func @transform_9(%arg0: i32) -> (i32, i32) {
    %c0_i32 = arith.constant 0 : i32
    %c0_i32_0 = arith.constant 0 : i32
    %c0_i32_1 = arith.constant 0 : i32
    return %c0_i32, %c0_i32_0 : i32, i32
  }
  func.func @transform_10(%arg0: i32) -> (i32, i32) {
    %c0_i32 = arith.constant 0 : i32
    %c0_i32_0 = arith.constant 0 : i32
    %c0_i32_1 = arith.constant 0 : i32
    return %c0_i32, %c0_i32_0 : i32, i32
  }
  func.func @transform_11(%arg0: i32) -> (i32, i32, i32) {
    %c0_i32 = arith.constant 0 : i32
    %c0_i32_0 = arith.constant 0 : i32
    %c0_i32_1 = arith.constant 0 : i32
    %c0_i32_2 = arith.constant 0 : i32
    return %c0_i32, %c0_i32_0, %c0_i32_1 : i32, i32, i32
  }
  func.func @transform_12(%arg0: i32) -> (i32, i32) {
    %c0_i32 = arith.constant 0 : i32
    %c0_i32_0 = arith.constant 0 : i32
    %c0_i32_1 = arith.constant 0 : i32
    return %c0_i32, %c0_i32_0 : i32, i32
  }
  func.func @transform_13(%arg0: i32) -> (i32, i32) {
    %c0_i32 = arith.constant 0 : i32
    %c0_i32_0 = arith.constant 0 : i32
    %c0_i32_1 = arith.constant 0 : i32
    return %c0_i32, %c0_i32_0 : i32, i32
  }
  func.func @transform_14(%arg0: i32) -> (i32, i32, i32) {
    %c0_i32 = arith.constant 0 : i32
    %c0_i32_0 = arith.constant 0 : i32
    %c0_i32_1 = arith.constant 0 : i32
    return %arg0, %c0_i32, %c0_i32_0 : i32, i32, i32
  }
}

</mosaic_0001>

<llo_original>
// kernel: tpu_custom_call.1
$region0: #{tpu_custom_call.1}
  #allocation0 [shape = 'u32[]', space=smem, size = 0x4, offset = 0x4, fixed_abs, tag = 'smem constant byte address 0x4 - core index']
  #allocation1 [shape = 'u32[144,128]{1,0:T(1,128)}', space=vmem, size = 0x12000, scoped, tag = 'internal scratch']
  %s0 = inlined_call_operand.vmem [shape: f32[1,30,608], index: 0, kind: input, shape index: {}]
  %s1 = inlined_call_operand.vmem [shape: f32[3,112,30], index: 1, kind: input, shape index: {}]
  %s2 = inlined_call_operand.vmem [shape: f32[112,1], index: 2, kind: input, shape index: {}]
  %s3 = inlined_call_operand.vmem [shape: f32[3,104,60], index: 3, kind: input, shape index: {}]
  %s4 = inlined_call_operand.vmem [shape: f32[104,1], index: 4, kind: input, shape index: {}]
  %s5 = inlined_call_operand.vmem [shape: f32[3,24,64], index: 5, kind: input, shape index: {}]
  %s6 = inlined_call_operand.vmem [shape: f32[24,1], index: 6, kind: input, shape index: {}]
  %s7 = inlined_call_operand.vmem [shape: f32[60,110], index: 7, kind: input, shape index: {}]
  %s8 = inlined_call_operand.vmem [shape: f32[604,304], index: 8, kind: input, shape index: {}]
  %s9 = inlined_call_operand.vmem [shape: f32[64,102], index: 9, kind: input, shape index: {}]
  %s10 = inlined_call_operand.vmem [shape: f32[300,160], index: 10, kind: input, shape index: {}]
  %s11 = inlined_call_operand.vmem [shape: f32[2,23,157], index: 11, kind: input, shape index: {}]
  %s12 = inlined_call_operand.vmem [shape: f32[157,16], index: 12, kind: input, shape index: {}]
  %s13 = inlined_call_operand.vmem [shape: f32[2,16], index: 13, kind: input, shape index: {}]
  %s14 = inlined_call_operand.hbm [shape: f32[1,2,16], index: 14, kind: output, shape index: {}]
  %s15 = sld [smem:[#allocation0]]
  $region66: #{tpu_custom_call.1} parent=0
    _
  %s17 = ssub.s32 1, %s15
  %s18 = scalar_select 0, %s17, %s15
  $region1: #{tpu_custom_call.1} parent=0
    #allocation2 [shape = 'u8[1024]{0}', space=vmem, size = 0x400, scoped, tag = 'output window, operand 0, single buffered']
    #allocation3 [shape = 's32[1]{0}', space=sflag, size = 0x4, scoped, tag = 'scoped memory for tpu_custom_call.1']
    %19 = vsyncpa [#allocation3], 0
    // Predicated region
    $region2: #{tpu_custom_call.1} parent=1 // pred_check
      _
    $region3: #{tpu_custom_call.1} parent=1 // pred_check_branch
      %21 = sbr.rel (0) target = $region5
    $region4: #{tpu_custom_call.1} parent=1 // pred_region
      _
    $region5: #{tpu_custom_call.1} parent=1 // pred_fallthru
      _
    // Predicated region
    $region6: #{tpu_custom_call.1} parent=1 // pred_check
      _
    $region7: #{tpu_custom_call.1} parent=1 // pred_check_branch
      %23 = sbr.rel (0) target = $region9
    $region8: #{tpu_custom_call.1} parent=1 // pred_region
      _
    $region9: #{tpu_custom_call.1} parent=1 // pred_fallthru
      _
    // Predicated region
    $region10: #{tpu_custom_call.1} parent=1 // pred_check
      _
    $region11: #{tpu_custom_call.1} parent=1 // pred_check_branch
      %25 = sbr.rel (0) target = $region13
    $region12: #{tpu_custom_call.1} parent=1 // pred_region
      _
    $region13: #{tpu_custom_call.1} parent=1 // pred_fallthru
      _
    // Predicated region
    $region14: #{tpu_custom_call.1} parent=1 // pred_check
      _
    $region15: #{tpu_custom_call.1} parent=1 // pred_check_branch
      %27 = sbr.rel (0) target = $region17
    $region16: #{tpu_custom_call.1} parent=1 // pred_region
      _
    $region17: #{tpu_custom_call.1} parent=1 // pred_fallthru
      _
    // Predicated region
    $region18: #{tpu_custom_call.1} parent=1 // pred_check
      _
    $region19: #{tpu_custom_call.1} parent=1 // pred_check_branch
      %29 = sbr.rel (0) target = $region21
    $region20: #{tpu_custom_call.1} parent=1 // pred_region
      _
    $region21: #{tpu_custom_call.1} parent=1 // pred_fallthru
      _
    // Predicated region
    $region22: #{tpu_custom_call.1} parent=1 // pred_check
      _
    $region23: #{tpu_custom_call.1} parent=1 // pred_check_branch
      %31 = sbr.rel (0) target = $region25
    $region24: #{tpu_custom_call.1} parent=1 // pred_region
      _
    $region25: #{tpu_custom_call.1} parent=1 // pred_fallthru
      _
    // Predicated region
    $region26: #{tpu_custom_call.1} parent=1 // pred_check
      _
    $region27: #{tpu_custom_call.1} parent=1 // pred_check_branch
      %33 = sbr.rel (0) target = $region29
    $region28: #{tpu_custom_call.1} parent=1 // pred_region
      _
    $region29: #{tpu_custom_call.1} parent=1 // pred_fallthru
      _
    // Predicated region
    $region30: #{tpu_custom_call.1} parent=1 // pred_check
      _
    $region31: #{tpu_custom_call.1} parent=1 // pred_check_branch
      %35 = sbr.rel (0) target = $region33
    $region32: #{tpu_custom_call.1} parent=1 // pred_region
      _
    $region33: #{tpu_custom_call.1} parent=1 // pred_fallthru
      _
    // Predicated region
    $region34: #{tpu_custom_call.1} parent=1 // pred_check
      _
    $region35: #{tpu_custom_call.1} parent=1 // pred_check_branch
      %37 = sbr.rel (0) target = $region37
    $region36: #{tpu_custom_call.1} parent=1 // pred_region
      _
    $region37: #{tpu_custom_call.1} parent=1 // pred_fallthru
      _
    // Predicated region
    $region38: #{tpu_custom_call.1} parent=1 // pred_check
      _
    $region39: #{tpu_custom_call.1} parent=1 // pred_check_branch
      %39 = sbr.rel (0) target = $region41
    $region40: #{tpu_custom_call.1} parent=1 // pred_region
      _
    $region41: #{tpu_custom_call.1} parent=1 // pred_fallthru
      _
    // Predicated region
    $region42: #{tpu_custom_call.1} parent=1 // pred_check
      _
    $region43: #{tpu_custom_call.1} parent=1 // pred_check_branch
      %41 = sbr.rel (0) target = $region45
    $region44: #{tpu_custom_call.1} parent=1 // pred_region
      _
    $region45: #{tpu_custom_call.1} parent=1 // pred_fallthru
      _
    // Predicated region
    $region46: #{tpu_custom_call.1} parent=1 // pred_check
      _
    $region47: #{tpu_custom_call.1} parent=1 // pred_check_branch
      %43 = sbr.rel (0) target = $region49
    $region48: #{tpu_custom_call.1} parent=1 // pred_region
      _
    $region49: #{tpu_custom_call.1} parent=1 // pred_fallthru
      _
    // Predicated region
    $region50: #{tpu_custom_call.1} parent=1 // pred_check
      _
    $region51: #{tpu_custom_call.1} parent=1 // pred_check_branch
      %45 = sbr.rel (0) target = $region53
    $region52: #{tpu_custom_call.1} parent=1 // pred_region
      _
    $region53: #{tpu_custom_call.1} parent=1 // pred_fallthru
      _
    // Predicated region
    $region54: #{tpu_custom_call.1} parent=1 // pred_check
      _
    $region55: #{tpu_custom_call.1} parent=1 // pred_check_branch
      %47 = sbr.rel (0) target = $region57
    $region56: #{tpu_custom_call.1} parent=1 // pred_region
      _
    $region57: #{tpu_custom_call.1} parent=1 // pred_fallthru
      _
    %v48 = vld [vmem:[%s0] sm:$0xff]
    %v49 = vld [vmem:[%s0 + $0x8] sm:$0xff]
    %v50 = vld [vmem:[%s0 + $0x10] sm:$0xff]
    %v51 = vld [vmem:[%s0 + $0x18] sm:$0xff]
    %v52 = vld [vmem:[%s0 + $0x20] sm:$0xff]
    %v53 = vld [vmem:[%s0 + $0x28] sm:$0xff]
    %v54 = vld [vmem:[%s0 + $0x30] sm:$0xff]
    %v55 = vld [vmem:[%s0 + $0x38] sm:$0xff]
    %v56 = vld [vmem:[%s0 + $0x40] sm:$0xff]
    %v57 = vld [vmem:[%s0 + $0x48] sm:$0xff]
    %v58 = vld [vmem:[%s0 + $0x50] sm:$0xff]
    %v59 = vld [vmem:[%s0 + $0x58] sm:$0xff]
    %v60 = vld [vmem:[%s0 + $0x60] sm:$0xff]
    %v61 = vld [vmem:[%s0 + $0x68] sm:$0xff]
    %v62 = vld [vmem:[%s0 + $0x70] sm:$0xff]
    %v63 = vld [vmem:[%s0 + $0x78] sm:$0x3f]
    %v64 = vld [vmem:[%s0 + $0x80] sm:$0x3f]
    %v65 = vld [vmem:[%s0 + $0x88] sm:$0x3f]
    %v66 = vld [vmem:[%s0 + $0x90] sm:$0x3f]
    %v67 = vld [vmem:[%s0 + $0x98] sm:$0x3f]
    %v68 = vld [vmem:[%s1] sm:$0xff]
    %v69 = vld [vmem:[%s1 + $0x8] sm:$0xff]
    %v70 = vld [vmem:[%s1 + $0x10] sm:$0xff]
    %v71 = vld [vmem:[%s1 + $0x18] sm:$0xff]
    %v72 = vld [vmem:[%s1 + $0x20] sm:$0xff]
    %v73 = vld [vmem:[%s1 + $0x28] sm:$0xff]
    %v74 = vld [vmem:[%s1 + $0x30] sm:$0xff]
    %v75 = vld [vmem:[%s1 + $0x38] sm:$0xff]
    %v76 = vld [vmem:[%s1 + $0x40] sm:$0xff]
    %v77 = vld [vmem:[%s1 + $0x48] sm:$0xff]
    %v78 = vld [vmem:[%s1 + $0x50] sm:$0xff]
    %v79 = vld [vmem:[%s1 + $0x58] sm:$0xff]
    %v80 = vld [vmem:[%s1 + $0x60] sm:$0xff]
    %v81 = vld [vmem:[%s1 + $0x68] sm:$0xff]
    %s82 = scalar_lea.vmem %s1, 112
    %v83 = vld [vmem:[%s82] sm:$0xff]
    %v84 = vld [vmem:[%s82 + $0x8] sm:$0xff]
    %v85 = vld [vmem:[%s82 + $0x10] sm:$0xff]
    %v86 = vld [vmem:[%s82 + $0x18] sm:$0xff]
    %v87 = vld [vmem:[%s82 + $0x20] sm:$0xff]
    %v88 = vld [vmem:[%s82 + $0x28] sm:$0xff]
    %v89 = vld [vmem:[%s82 + $0x30] sm:$0xff]
    %v90 = vld [vmem:[%s82 + $0x38] sm:$0xff]
    %v91 = vld [vmem:[%s82 + $0x40] sm:$0xff]
    %v92 = vld [vmem:[%s82 + $0x48] sm:$0xff]
    %v93 = vld [vmem:[%s82 + $0x50] sm:$0xff]
    %v94 = vld [vmem:[%s82 + $0x58] sm:$0xff]
    %v95 = vld [vmem:[%s82 + $0x60] sm:$0xff]
    %v96 = vld [vmem:[%s82 + $0x68] sm:$0xff]
    %117 = vrot.lane.b32.xlu0 %v48, 127
    %v118 = vpop.permute.xlu0 %117
    %119 = vrot.lane.b32.xlu0 %v49, 127
    %v120 = vpop.permute.xlu0 %119
    %121 = vrot.lane.b32.xlu0 %v50, 127
    %v122 = vpop.permute.xlu0 %121
    %123 = vrot.lane.b32.xlu0 %v51, 127
    %v124 = vpop.permute.xlu0 %123
    %125 = vrot.lane.b32.xlu0 %v52, 127
    %v126 = vpop.permute.xlu0 %125
    %127 = vrot.lane.b32.xlu0 %v53, 127
    %v128 = vpop.permute.xlu0 %127
    %129 = vrot.lane.b32.xlu0 %v54, 127
    %v130 = vpop.permute.xlu0 %129
    %131 = vrot.lane.b32.xlu0 %v55, 127
    %v132 = vpop.permute.xlu0 %131
    %133 = vrot.lane.b32.xlu0 %v56, 127
    %v134 = vpop.permute.xlu0 %133
    %135 = vrot.lane.b32.xlu0 %v57, 127
    %v136 = vpop.permute.xlu0 %135
    %137 = vrot.lane.b32.xlu0 %v58, 127
    %v138 = vpop.permute.xlu0 %137
    %139 = vrot.lane.b32.xlu0 %v59, 127
    %v140 = vpop.permute.xlu0 %139
    %141 = vrot.lane.b32.xlu0 %v60, 127
    %v142 = vpop.permute.xlu0 %141
    %143 = vrot.lane.b32.xlu0 %v61, 127
    %v144 = vpop.permute.xlu0 %143
    %145 = vrot.lane.b32.xlu0 %v62, 127
    %v146 = vpop.permute.xlu0 %145
    %147 = vrot.lane.b32.xlu0 %v63, 127
    %v148 = vpop.permute.xlu0 %147
    %149 = vrot.lane.b32.xlu0 %v64, 127
    %v150 = vpop.permute.xlu0 %149
    %151 = vrot.lane.b32.xlu0 %v65, 127
    %v152 = vpop.permute.xlu0 %151
    %153 = vrot.lane.b32.xlu0 %v66, 127
    %v154 = vpop.permute.xlu0 %153
    %155 = vrot.lane.b32.xlu0 %v67, 127
    %v156 = vpop.permute.xlu0 %155
    %vm157 = vcmask 1039360
    %v158 = vsel %vm157, %v118, %v120
    %v159 = vsel %vm157, %v120, %v122
    %v160 = vsel %vm157, %v122, %v124
    %v161 = vsel %vm157, %v124, %v126
    %v162 = vsel %vm157, %v128, %v130
    %v163 = vsel %vm157, %v130, %v132
    %v164 = vsel %vm157, %v132, %v134
    %v165 = vsel %vm157, %v134, %v136
    %v166 = vsel %vm157, %v138, %v140
    %v167 = vsel %vm157, %v140, %v142
    %v168 = vsel %vm157, %v142, %v144
    %v169 = vsel %vm157, %v144, %v146
    %v170 = vsel %vm157, %v148, %v150
    %v171 = vsel %vm157, %v150, %v152
    %v172 = vsel %vm157, %v152, %v154
    %v173 = vsel %vm157, %v154, %v156
    %vm189 = vcmask 244736
    %v191 = vsel %vm189, %v83, 0
    %v194 = vsel %vm189, %v84, 0
    %v197 = vsel %vm189, %v85, 0
    %v200 = vsel %vm189, %v86, 0
    %v203 = vsel %vm189, %v87, 0
    %v206 = vsel %vm189, %v88, 0
    %v209 = vsel %vm189, %v89, 0
    %v212 = vsel %vm189, %v90, 0
    %v215 = vsel %vm189, %v91, 0
    %v218 = vsel %vm189, %v92, 0
    %v221 = vsel %vm189, %v93, 0
    %v224 = vsel %vm189, %v94, 0
    %v227 = vsel %vm189, %v95, 0
    %v230 = vsel %vm189, %v96, 0
    %vm232 = vcmask 1045504
    %v233 = vsel %vm232, %v170, 0
    %v235 = vsel %vm232, %v171, 0
    %v237 = vsel %vm232, %v172, 0
    %v239 = vsel %vm232, %v173, 0
    %v241 = vsel %vm232, %v156, 0
    %243 = vmatprep.subr.mxu0 %v159
    %244 = vmatpush1.msra.mxu0 %v158
    %245 = vmatprep.subr.mxu0 %v163
    %246 = vmatpush1.msra.mxu0 %v162
    %247 = vmatprep.subr.mxu0 %v167
    %248 = vmatpush1.msra.mxu0 %v166
    %249 = vmatprep.subr.mxu0 %v235
    %250 = vmatpush1.msra.mxu0 %v233
    %251 = vmatprep.subr.mxu0 0.0
    %252 = vmatpush1.msra.mxu0 0.0
    %253 = vmatprep.subr.mxu0 0.0
    %254 = vmatpush1.msra.mxu0 0.0
    %255 = vmatprep.subr.mxu0 0.0
    %256 = vmatpush1.msra.mxu0 0.0
    %257 = vmatprep.subr.mxu0 0.0
    %258 = vmatpush1.msra.mxu0 0.0
    %259 = vmatprep.subr.mxu0 0.0
    %260 = vmatpush1.msra.mxu0 0.0
    %261 = vmatprep.subr.mxu0 0.0
    %262 = vmatpush1.msra.mxu0 0.0
    %263 = vmatprep.subr.mxu0 0.0
    %264 = vmatpush1.msra.mxu0 0.0
    %265 = vmatprep.subr.mxu0 0.0
    %266 = vmatpush1.msra.mxu0 0.0
    %267 = vmatprep.subr.mxu0 0.0
    %268 = vmatpush1.msra.mxu0 0.0
    %269 = vmatprep.subr.mxu0 0.0
    %270 = vmatpush1.msra.mxu0 0.0
    %271 = vmatprep.subr.mxu0 0.0
    %272 = vmatpush1.msra.mxu0 0.0
    %273 = vmatprep.subr.mxu0 0.0
    %274 = vmatpush1.msra.mxu0 0.0
    %275 = vmatprep.subr.mxu0 0.0
    %276 = vmatpush1.msra.mxu0 0.0
    %277 = vmatprep.subr.mxu0 0.0
    %278 = vmatpush1.msra.mxu0 0.0
    %279 = vmatprep.subr.mxu0 0.0
    %280 = vmatpush1.msra.mxu0 0.0
    %281 = vmatprep.subr.mxu0 0.0
    %282 = vmatpush1.msra.mxu0 0.0
    %283 = vmatprep.subr.mxu0 0.0
    %284 = vmatpush1.msra.mxu0 0.0
    %285 = vmatprep.subr.mxu0 0.0
    %286 = vmatpush1.msra.mxu0 0.0
    %287 = vmatprep.subr.mxu0 0.0
    %288 = vmatpush1.msra.mxu0 0.0
    %289 = vmatprep.subr.mxu0 0.0
    %290 = vmatpush1.msra.mxu0 0.0
    %291 = vmatprep.subr.mxu0 0.0
    %292 = vmatpush1.msra.mxu0 0.0
    %293 = vmatprep.subr.mxu0 0.0
    %294 = vmatpush1.msra.mxu0 0.0
    %295 = vmatprep.subr.mxu0 0.0
    %296 = vmatpush1.msra.mxu0 0.0
    %297 = vmatprep.subr.mxu0 0.0
    %298 = vmatpush1.msra.mxu0 0.0
    %299 = vmatprep.subr.mxu0 0.0
    %300 = vmatpush1.msra.mxu0 0.0
    %301 = vmatprep.subr.mxu0 0.0
    %302 = vmatpush1.msra.mxu0 0.0
    %303 = vmatprep.subr.mxu0 0.0
    %304 = vmatpush1.msra.mxu0 0.0
    %305 = vmatprep.subr.mxu0 0.0
    %306 = vmatpush1.msra.mxu0 0.0
    %307 = vmatprep.mubr.f32.mxu0 0.0
    %308 = vmatmul.mubr.f32.gmra.mrb[0].mxu0 %v191
    %v309 = vpop.f32.mrb[0].mxu0
    %v310 = vadd.f32 0.0, %v309
    %v311 = vpop.f32.mrb[0].mxu0
    %v312 = vadd.f32 0.0, %v311
    %313 = vmatprep.mubr.f32.mxu0 0.0
    %314 = vmatmul.mubr.f32.gmra.mrb[0].mxu0 %v194
    %v315 = vpop.f32.mrb[0].mxu0
    %v316 = vadd.f32 0.0, %v315
    %v317 = vpop.f32.mrb[0].mxu0
    %v318 = vadd.f32 0.0, %v317
    %319 = vmatprep.mubr.f32.mxu0 0.0
    %320 = vmatmul.mubr.f32.gmra.mrb[0].mxu0 %v197
    %v321 = vpop.f32.mrb[0].mxu0
    %v322 = vadd.f32 0.0, %v321
    %v323 = vpop.f32.mrb[0].mxu0
    %v324 = vadd.f32 0.0, %v323
    %325 = vmatprep.mubr.f32.mxu0 0.0
    %326 = vmatmul.mubr.f32.gmra.mrb[0].mxu0 %v200
    %v327 = vpop.f32.mrb[0].mxu0
    %v328 = vadd.f32 0.0, %v327
    %v329 = vpop.f32.mrb[0].mxu0
    %v330 = vadd.f32 0.0, %v329
    %331 = vmatprep.mubr.f32.mxu0 0.0
    %332 = vmatmul.mubr.f32.gmra.mrb[0].mxu0 %v203
    %v333 = vpop.f32.mrb[0].mxu0
    %v334 = vadd.f32 0.0, %v333
    %v335 = vpop.f32.mrb[0].mxu0
    %v336 = vadd.f32 0.0, %v335
    %337 = vmatprep.mubr.f32.mxu0 0.0
    %338 = vmatmul.mubr.f32.gmra.mrb[0].mxu0 %v206
    %v339 = vpop.f32.mrb[0].mxu0
    %v340 = vadd.f32 0.0, %v339
    %v341 = vpop.f32.mrb[0].mxu0
    %v342 = vadd.f32 0.0, %v341
    %343 = vmatprep.mubr.f32.mxu0 0.0
    %344 = vmatmul.mubr.f32.gmra.mrb[0].mxu0 %v209
    %v345 = vpop.f32.mrb[0].mxu0
    %v346 = vadd.f32 0.0, %v345
    %v347 = vpop.f32.mrb[0].mxu0
    %v348 = vadd.f32 0.0, %v347
    %349 = vmatprep.mubr.f32.mxu0 0.0
    %350 = vmatmul.mubr.f32.gmra.mrb[0].mxu0 %v212
    %v351 = vpop.f32.mrb[0].mxu0
    %v352 = vadd.f32 0.0, %v351
    %v353 = vpop.f32.mrb[0].mxu0
    %v354 = vadd.f32 0.0, %v353
    %355 = vmatprep.mubr.f32.mxu0 0.0
    %356 = vmatmul.mubr.f32.gmra.mrb[0].mxu0 %v215
    %v357 = vpop.f32.mrb[0].mxu0
    %v358 = vadd.f32 0.0, %v357
    %v359 = vpop.f32.mrb[0].mxu0
    %v360 = vadd.f32 0.0, %v359
    %361 = vmatprep.mubr.f32.mxu0 0.0
    %362 = vmatmul.mubr.f32.gmra.mrb[0].mxu0 %v218
    %v363 = vpop.f32.mrb[0].mxu0
    %v364 = vadd.f32 0.0, %v363
    %v365 = vpop.f32.mrb[0].mxu0
    %v366 = vadd.f32 0.0, %v365
    %367 = vmatprep.mubr.f32.mxu0 0.0
    %368 = vmatmul.mubr.f32.gmra.mrb[0].mxu0 %v221
    %v369 = vpop.f32.mrb[0].mxu0
    %v370 = vadd.f32 0.0, %v369
    %v371 = vpop.f32.mrb[0].mxu0
    %v372 = vadd.f32 0.0, %v371
    %373 = vmatprep.mubr.f32.mxu0 0.0
    %374 = vmatmul.mubr.f32.gmra.mrb[0].mxu0 %v224
    %v375 = vpop.f32.mrb[0].mxu0
    %v376 = vadd.f32 0.0, %v375
    %v377 = vpop.f32.mrb[0].mxu0
    %v378 = vadd.f32 0.0, %v377
    %379 = vmatprep.mubr.f32.mxu0 0.0
    %380 = vmatmul.mubr.f32.gmra.mrb[0].mxu0 %v227
    %v381 = vpop.f32.mrb[0].mxu0
    %v382 = vadd.f32 0.0, %v381
    %v383 = vpop.f32.mrb[0].mxu0
    %v384 = vadd.f32 0.0, %v383
    %385 = vmatprep.mubr.f32.mxu0 0.0
    %386 = vmatmul.mubr.f32.gmra.mrb[0].mxu0 %v230
    %v387 = vpop.f32.mrb[0].mxu0
    %v388 = vadd.f32 0.0, %v387
    %v389 = vpop.f32.mrb[0].mxu0
    %v390 = vadd.f32 0.0, %v389
    %391 = vdwg.mxu0
    %392 = vmatprep.subr.mxu0 %v161
    %393 = vmatpush1.msra.mxu0 %v160
    %394 = vmatprep.subr.mxu0 %v165
    %395 = vmatpush1.msra.mxu0 %v164
    %396 = vmatprep.subr.mxu0 %v169
    %397 = vmatpush1.msra.mxu0 %v168
    %398 = vmatprep.subr.mxu0 %v239
    %399 = vmatpush1.msra.mxu0 %v237
    %400 = vmatprep.subr.mxu0 0.0
    %401 = vmatpush1.msra.mxu0 0.0
    %402 = vmatprep.subr.mxu0 0.0
    %403 = vmatpush1.msra.mxu0 0.0
    %404 = vmatprep.subr.mxu0 0.0
    %405 = vmatpush1.msra.mxu0 0.0
    %406 = vmatprep.subr.mxu0 0.0
    %407 = vmatpush1.msra.mxu0 0.0
    %408 = vmatprep.subr.mxu0 0.0
    %409 = vmatpush1.msra.mxu0 0.0
    %410 = vmatprep.subr.mxu0 0.0
    %411 = vmatpush1.msra.mxu0 0.0
    %412 = vmatprep.subr.mxu0 0.0
    %413 = vmatpush1.msra.mxu0 0.0
    %414 = vmatprep.subr.mxu0 0.0
    %415 = vmatpush1.msra.mxu0 0.0
    %416 = vmatprep.subr.mxu0 0.0
    %417 = vmatpush1.msra.mxu0 0.0
    %418 = vmatprep.subr.mxu0 0.0
    %419 = vmatpush1.msra.mxu0 0.0
    %420 = vmatprep.subr.mxu0 0.0
    %421 = vmatpush1.msra.mxu0 0.0
    %422 = vmatprep.subr.mxu0 0.0
    %423 = vmatpush1.msra.mxu0 0.0
    %424 = vmatprep.subr.mxu0 0.0
    %425 = vmatpush1.msra.mxu0 0.0
    %426 = vmatprep.subr.mxu0 0.0
    %427 = vmatpush1.msra.mxu0 0.0
    %428 = vmatprep.subr.mxu0 0.0
    %429 = vmatpush1.msra.mxu0 0.0
    %430 = vmatprep.subr.mxu0 0.0
    %431 = vmatpush1.msra.mxu0 0.0
    %432 = vmatprep.subr.mxu0 0.0
    %433 = vmatpush1.msra.mxu0 0.0
    %434 = vmatprep.subr.mxu0 0.0
    %435 = vmatpush1.msra.mxu0 0.0
    %436 = vmatprep.subr.mxu0 0.0
    %437 = vmatpush1.msra.mxu0 0.0
    %438 = vmatprep.subr.mxu0 0.0
    %439 = vmatpush1.msra.mxu0 0.0
    %440 = vmatprep.subr.mxu0 0.0
    %441 = vmatpush1.msra.mxu0 0.0
    %442 = vmatprep.subr.mxu0 0.0
    %443 = vmatpush1.msra.mxu0 0.0
    %444 = vmatprep.subr.mxu0 0.0
    %445 = vmatpush1.msra.mxu0 0.0
    %446 = vmatprep.subr.mxu0 0.0
    %447 = vmatpush1.msra.mxu0 0.0
    %448 = vmatprep.subr.mxu0 0.0
    %449 = vmatpush1.msra.mxu0 0.0
    %450 = vmatprep.subr.mxu0 0.0
    %451 = vmatpush1.msra.mxu0 0.0
    %452 = vmatprep.subr.mxu0 0.0
    %453 = vmatpush1.msra.mxu0 0.0
    %454 = vmatprep.subr.mxu0 0.0
    %455 = vmatpush1.msra.mxu0 0.0
    %456 = vmatprep.mubr.f32.mxu0 0.0
    %457 = vmatmul.mubr.f32.gmra.mrb[0].mxu0 %v191
    %v458 = vpop.f32.mrb[0].mxu0
    %v459 = vadd.f32 0.0, %v458
    %v460 = vpop.f32.mrb[0].mxu0
    %v461 = vadd.f32 0.0, %v460
    %462 = vmatprep.mubr.f32.mxu0 0.0
    %463 = vmatmul.mubr.f32.gmra.mrb[0].mxu0 %v194
    %v464 = vpop.f32.mrb[0].mxu0
    %v465 = vadd.f32 0.0, %v464
    %v466 = vpop.f32.mrb[0].mxu0
    %v467 = vadd.f32 0.0, %v466
    %468 = vmatprep.mubr.f32.mxu0 0.0
    %469 = vmatmul.mubr.f32.gmra.mrb[0].mxu0 %v197
    %v470 = vpop.f32.mrb[0].mxu0
    %v471 = vadd.f32 0.0, %v470
    %v472 = vpop.f32.mrb[0].mxu0
    %v473 = vadd.f32 0.0, %v472
    %474 = vmatprep.mubr.f32.mxu0 0.0
    %475 = vmatmul.mubr.f32.gmra.mrb[0].mxu0 %v200
    %v476 = vpop.f32.mrb[0].mxu0
    %v477 = vadd.f32 0.0, %v476
    %v478 = vpop.f32.mrb[0].mxu0
    %v479 = vadd.f32 0.0, %v478
    %480 = vmatprep.mubr.f32.mxu0 0.0
    %481 = vmatmul.mubr.f32.gmra.mrb[0].mxu0 %v203
    %v482 = vpop.f32.mrb[0].mxu0
    %v483 = vadd.f32 0.0, %v482
    %v484 = vpop.f32.mrb[0].mxu0
    %v485 = vadd.f32 0.0, %v484
    %486 = vmatprep.mubr.f32.mxu0 0.0
    %487 = vmatmul.mubr.f32.gmra.mrb[0].mxu0 %v206
    %v488 = vpop.f32.mrb[0].mxu0
    %v489 = vadd.f32 0.0, %v488
    %v490 = vpop.f32.mrb[0].mxu0
    %v491 = vadd.f32 0.0, %v490
    %492 = vmatprep.mubr.f32.mxu0 0.0
    %493 = vmatmul.mubr.f32.gmra.mrb[0].mxu0 %v209
    %v494 = vpop.f32.mrb[0].mxu0
    %v495 = vadd.f32 0.0, %v494
    %v496 = vpop.f32.mrb[0].mxu0
    %v497 = vadd.f32 0.0, %v496
    %498 = vmatprep.mubr.f32.mxu0 0.0
    %499 = vmatmul.mubr.f32.gmra.mrb[0].mxu0 %v212
    %v500 = vpop.f32.mrb[0].mxu0
    %v501 = vadd.f32 0.0, %v500
    %v502 = vpop.f32.mrb[0].mxu0
    %v503 = vadd.f32 0.0, %v502
    %504 = vmatprep.mubr.f32.mxu0 0.0
    %505 = vmatmul.mubr.f32.gmra.mrb[0].mxu0 %v215
    %v506 = vpop.f32.mrb[0].mxu0
    %v507 = vadd.f32 0.0, %v506
    %v508 = vpop.f32.mrb[0].mxu0
    %v509 = vadd.f32 0.0, %v508
    %510 = vmatprep.mubr.f32.mxu0 0.0
    %511 = vmatmul.mubr.f32.gmra.mrb[0].mxu0 %v218
    %v512 = vpop.f32.mrb[0].mxu0
    %v513 = vadd.f32 0.0, %v512
    %v514 = vpop.f32.mrb[0].mxu0
    %v515 = vadd.f32 0.0, %v514
    %516 = vmatprep.mubr.f32.mxu0 0.0
    %517 = vmatmul.mubr.f32.gmra.mrb[0].mxu0 %v221
    %v518 = vpop.f32.mrb[0].mxu0
    %v519 = vadd.f32 0.0, %v518
    %v520 = vpop.f32.mrb[0].mxu0
    %v521 = vadd.f32 0.0, %v520
    %522 = vmatprep.mubr.f32.mxu0 0.0
    %523 = vmatmul.mubr.f32.gmra.mrb[0].mxu0 %v224
    %v524 = vpop.f32.mrb[0].mxu0
    %v525 = vadd.f32 0.0, %v524
    %v526 = vpop.f32.mrb[0].mxu0
    %v527 = vadd.f32 0.0, %v526
    %528 = vmatprep.mubr.f32.mxu0 0.0
    %529 = vmatmul.mubr.f32.gmra.mrb[0].mxu0 %v227
    %v530 = vpop.f32.mrb[0].mxu0
    %v531 = vadd.f32 0.0, %v530
    %v532 = vpop.f32.mrb[0].mxu0
    %v533 = vadd.f32 0.0, %v532
    %534 = vmatprep.mubr.f32.mxu0 0.0
    %535 = vmatmul.mubr.f32.gmra.mrb[0].mxu0 %v230
    %v536 = vpop.f32.mrb[0].mxu0
    %v537 = vadd.f32 0.0, %v536
    %v538 = vpop.f32.mrb[0].mxu0
    %v539 = vadd.f32 0.0, %v538
    %540 = vdwg.mxu0
    %541 = vmatprep.subr.mxu0 0.0
    %542 = vmatpush1.msra.mxu0 %v126
    %543 = vmatprep.subr.mxu0 0.0
    %544 = vmatpush1.msra.mxu0 %v136
    %545 = vmatprep.subr.mxu0 0.0
    %546 = vmatpush1.msra.mxu0 %v146
    %547 = vmatprep.subr.mxu0 0.0
    %548 = vmatpush1.msra.mxu0 %v241
    %549 = vmatprep.subr.mxu0 0.0
    %550 = vmatpush1.msra.mxu0 0.0
    %551 = vmatprep.subr.mxu0 0.0
    %552 = vmatpush1.msra.mxu0 0.0
    %553 = vmatprep.subr.mxu0 0.0
    %554 = vmatpush1.msra.mxu0 0.0
    %555 = vmatprep.subr.mxu0 0.0
    %556 = vmatpush1.msra.mxu0 0.0
    %557 = vmatprep.subr.mxu0 0.0
    %558 = vmatpush1.msra.mxu0 0.0
    %559 = vmatprep.subr.mxu0 0.0
    %560 = vmatpush1.msra.mxu0 0.0
    %561 = vmatprep.subr.mxu0 0.0
    %562 = vmatpush1.msra.mxu0 0.0
    %563 = vmatprep.subr.mxu0 0.0
    %564 = vmatpush1.msra.mxu0 0.0
    %565 = vmatprep.subr.mxu0 0.0
    %566 = vmatpush1.msra.mxu0 0.0
    %567 = vmatprep.subr.mxu0 0.0
    %568 = vmatpush1.msra.mxu0 0.0
    %569 = vmatprep.subr.mxu0 0.0
    %570 = vmatpush1.msra.mxu0 0.0
    %571 = vmatprep.subr.mxu0 0.0
    %572 = vmatpush1.msra.mxu0 0.0
    %573 = vmatprep.subr.mxu0 0.0
    %574 = vmatpush1.msra.mxu0 0.0
    %575 = vmatprep.subr.mxu0 0.0
    %576 = vmatpush1.msra.mxu0 0.0
    %577 = vmatprep.subr.mxu0 0.0
    %578 = vmatpush1.msra.mxu0 0.0
    %579 = vmatprep.subr.mxu0 0.0
    %580 = vmatpush1.msra.mxu0 0.0
    %581 = vmatprep.subr.mxu0 0.0
    %582 = vmatpush1.msra.mxu0 0.0
    %583 = vmatprep.subr.mxu0 0.0
    %584 = vmatpush1.msra.mxu0 0.0
    %585 = vmatprep.subr.mxu0 0.0
    %586 = vmatpush1.msra.mxu0 0.0
    %587 = vmatprep.subr.mxu0 0.0
    %588 = vmatpush1.msra.mxu0 0.0
    %589 = vmatprep.subr.mxu0 0.0
    %590 = vmatpush1.msra.mxu0 0.0
    %591 = vmatprep.subr.mxu0 0.0
    %592 = vmatpush1.msra.mxu0 0.0
    %593 = vmatprep.subr.mxu0 0.0
    %594 = vmatpush1.msra.mxu0 0.0
    %595 = vmatprep.subr.mxu0 0.0
    %596 = vmatpush1.msra.mxu0 0.0
    %597 = vmatprep.subr.mxu0 0.0
    %598 = vmatpush1.msra.mxu0 0.0
    %599 = vmatprep.subr.mxu0 0.0
    %600 = vmatpush1.msra.mxu0 0.0
    %601 = vmatprep.subr.mxu0 0.0
    %602 = vmatpush1.msra.mxu0 0.0
    %603 = vmatprep.subr.mxu0 0.0
    %604 = vmatpush1.msra.mxu0 0.0
    %605 = vmatprep.mubr.f32.mxu0 0.0
    %606 = vmatmul.mubr.f32.gmra.mrb[0].mxu0 %v191
    %v607 = vpop.f32.mrb[0].mxu0
    %v608 = vadd.f32 0.0, %v607
    %v609 = vpop.f32.mrb[0].mxu0
    %610 = vmatprep.mubr.f32.mxu0 0.0
    %611 = vmatmul.mubr.f32.gmra.mrb[0].mxu0 %v194
    %v612 = vpop.f32.mrb[0].mxu0
    %v613 = vadd.f32 0.0, %v612
    %v614 = vpop.f32.mrb[0].mxu0
    %615 = vmatprep.mubr.f32.mxu0 0.0
    %616 = vmatmul.mubr.f32.gmra.mrb[0].mxu0 %v197
    %v617 = vpop.f32.mrb[0].mxu0
    %v618 = vadd.f32 0.0, %v617
    %v619 = vpop.f32.mrb[0].mxu0
    %620 = vmatprep.mubr.f32.mxu0 0.0
    %621 = vmatmul.mubr.f32.gmra.mrb[0].mxu0 %v200
    %v622 = vpop.f32.mrb[0].mxu0
    %v623 = vadd.f32 0.0, %v622
    %v624 = vpop.f32.mrb[0].mxu0
    %625 = vmatprep.mubr.f32.mxu0 0.0
    %626 = vmatmul.mubr.f32.gmra.mrb[0].mxu0 %v203
    %v627 = vpop.f32.mrb[0].mxu0
    %v628 = vadd.f32 0.0, %v627
    %v629 = vpop.f32.mrb[0].mxu0
    %630 = vmatprep.mubr.f32.mxu0 0.0
    %631 = vmatmul.mubr.f32.gmra.mrb[0].mxu0 %v206
    %v632 = vpop.f32.mrb[0].mxu0
    %v633 = vadd.f32 0.0, %v632
    %v634 = vpop.f32.mrb[0].mxu0
    %635 = vmatprep.mubr.f32.mxu0 0.0
    %636 = vmatmul.mubr.f32.gmra.mrb[0].mxu0 %v209
    %v637 = vpop.f32.mrb[0].mxu0
    %v638 = vadd.f32 0.0, %v637
    %v639 = vpop.f32.mrb[0].mxu0
    %640 = vmatprep.mubr.f32.mxu0 0.0
    %641 = vmatmul.mubr.f32.gmra.mrb[0].mxu0 %v212
    %v642 = vpop.f32.mrb[0].mxu0
    %v643 = vadd.f32 0.0, %v642
    %v644 = vpop.f32.mrb[0].mxu0
    %645 = vmatprep.mubr.f32.mxu0 0.0
    %646 = vmatmul.mubr.f32.gmra.mrb[0].mxu0 %v215
    %v647 = vpop.f32.mrb[0].mxu0
    %v648 = vadd.f32 0.0, %v647
    %v649 = vpop.f32.mrb[0].mxu0
    %650 = vmatprep.mubr.f32.mxu0 0.0
    %651 = vmatmul.mubr.f32.gmra.mrb[0].mxu0 %v218
    %v652 = vpop.f32.mrb[0].mxu0
    %v653 = vadd.f32 0.0, %v652
    %v654 = vpop.f32.mrb[0].mxu0
    %655 = vmatprep.mubr.f32.mxu0 0.0
    %656 = vmatmul.mubr.f32.gmra.mrb[0].mxu0 %v221
    %v657 = vpop.f32.mrb[0].mxu0
    %v658 = vadd.f32 0.0, %v657
    %v659 = vpop.f32.mrb[0].mxu0
    %660 = vmatprep.mubr.f32.mxu0 0.0
    %661 = vmatmul.mubr.f32.gmra.mrb[0].mxu0 %v224
    %v662 = vpop.f32.mrb[0].mxu0
    %v663 = vadd.f32 0.0, %v662
    %v664 = vpop.f32.mrb[0].mxu0
    %665 = vmatprep.mubr.f32.mxu0 0.0
    %666 = vmatmul.mubr.f32.gmra.mrb[0].mxu0 %v227
    %v667 = vpop.f32.mrb[0].mxu0
    %v668 = vadd.f32 0.0, %v667
    %v669 = vpop.f32.mrb[0].mxu0
    %670 = vmatprep.mubr.f32.mxu0 0.0
    %671 = vmatmul.mubr.f32.gmra.mrb[0].mxu0 %v230
    %v672 = vpop.f32.mrb[0].mxu0
    %v673 = vadd.f32 0.0, %v672
    %v674 = vpop.f32.mrb[0].mxu0
    %675 = vdwg.mxu0
    %v677 = vsel %vm189, %v68, 0
    %v680 = vsel %vm189, %v69, 0
    %v683 = vsel %vm189, %v70, 0
    %v686 = vsel %vm189, %v71, 0
    %v689 = vsel %vm189, %v72, 0
    %v692 = vsel %vm189, %v73, 0
    %v695 = vsel %vm189, %v74, 0
    %v698 = vsel %vm189, %v75, 0
    %v701 = vsel %vm189, %v76, 0
    %v704 = vsel %vm189, %v77, 0
    %v707 = vsel %vm189, %v78, 0
    %v710 = vsel %vm189, %v79, 0
    %v713 = vsel %vm189, %v80, 0
    %v716 = vsel %vm189, %v81, 0
    %v718 = vsel %vm232, %v63, 0
    %v720 = vsel %vm232, %v64, 0
    %v722 = vsel %vm232, %v65, 0
    %v724 = vsel %vm232, %v66, 0
    %v726 = vsel %vm232, %v67, 0
    %728 = vmatprep.subr.mxu0 %v49
    %729 = vmatpush1.msra.mxu0 %v48
    %730 = vmatprep.subr.mxu0 %v54
    %731 = vmatpush1.msra.mxu0 %v53
    %732 = vmatprep.subr.mxu0 %v59
    %733 = vmatpush1.msra.mxu0 %v58
    %734 = vmatprep.subr.mxu0 %v720
    %735 = vmatpush1.msra.mxu0 %v718
    %736 = vmatprep.subr.mxu0 0.0
    %737 = vmatpush1.msra.mxu0 0.0
    %738 = vmatprep.subr.mxu0 0.0
    %739 = vmatpush1.msra.mxu0 0.0
    %740 = vmatprep.subr.mxu0 0.0
    %741 = vmatpush1.msra.mxu0 0.0
    %742 = vmatprep.subr.mxu0 0.0
    %743 = vmatpush1.msra.mxu0 0.0
    %744 = vmatprep.subr.mxu0 0.0
    %745 = vmatpush1.msra.mxu0 0.0
    %746 = vmatprep.subr.mxu0 0.0
    %747 = vmatpush1.msra.mxu0 0.0
    %748 = vmatprep.subr.mxu0 0.0
    %749 = vmatpush1.msra.mxu0 0.0
    %750 = vmatprep.subr.mxu0 0.0
    %751 = vmatpush1.msra.mxu0 0.0
    %752 = vmatprep.subr.mxu0 0.0
    %753 = vmatpush1.msra.mxu0 0.0
    %754 = vmatprep.subr.mxu0 0.0
    %755 = vmatpush1.msra.mxu0 0.0
    %756 = vmatprep.subr.mxu0 0.0
    %757 = vmatpush1.msra.mxu0 0.0
    %758 = vmatprep.subr.mxu0 0.0
    %759 = vmatpush1.msra.mxu0 0.0
    %760 = vmatprep.subr.mxu0 0.0
    %761 = vmatpush1.msra.mxu0 0.0
    %762 = vmatprep.subr.mxu0 0.0
    %763 = vmatpush1.msra.mxu0 0.0
    %764 = vmatprep.subr.mxu0 0.0
    %765 = vmatpush1.msra.mxu0 0.0
    %766 = vmatprep.subr.mxu0 0.0
    %767 = vmatpush1.msra.mxu0 0.0
    %768 = vmatprep.subr.mxu0 0.0
    %769 = vmatpush1.msra.mxu0 0.0
    %770 = vmatprep.subr.mxu0 0.0
    %771 = vmatpush1.msra.mxu0 0.0
    %772 = vmatprep.subr.mxu0 0.0
    %773 = vmatpush1.msra.mxu0 0.0
    %774 = vmatprep.subr.mxu0 0.0
    %775 = vmatpush1.msra.mxu0 0.0
    %776 = vmatprep.subr.mxu0 0.0
    %777 = vmatpush1.msra.mxu0 0.0
    %778 = vmatprep.subr.mxu0 0.0
    %779 = vmatpush1.msra.mxu0 0.0
    %780 = vmatprep.subr.mxu0 0.0
    %781 = vmatpush1.msra.mxu0 0.0
    %782 = vmatprep.subr.mxu0 0.0
    %783 = vmatpush1.msra.mxu0 0.0
    %784 = vmatprep.subr.mxu0 0.0
    %785 = vmatpush1.msra.mxu0 0.0
    %786 = vmatprep.subr.mxu0 0.0
    %787 = vmatpush1.msra.mxu0 0.0
    %788 = vmatprep.subr.mxu0 0.0
    %789 = vmatpush1.msra.mxu0 0.0
    %790 = vmatprep.subr.mxu0 0.0
    %791 = vmatpush1.msra.mxu0 0.0
    %792 = vmatprep.mubr.f32.mxu0 0.0
    %793 = vmatmul.mubr.f32.gmra.mrb[0].mxu0 %v677
    %v794 = vpop.f32.mrb[0].mxu0
    %v795 = vadd.f32 %v310, %v794
    %v796 = vpop.f32.mrb[0].mxu0
    %v797 = vadd.f32 %v312, %v796
    %798 = vmatprep.mubr.f32.mxu0 0.0
    %799 = vmatmul.mubr.f32.gmra.mrb[0].mxu0 %v680
    %v800 = vpop.f32.mrb[0].mxu0
    %v801 = vadd.f32 %v316, %v800
    %v802 = vpop.f32.mrb[0].mxu0
    %v803 = vadd.f32 %v318, %v802
    %804 = vmatprep.mubr.f32.mxu0 0.0
    %805 = vmatmul.mubr.f32.gmra.mrb[0].mxu0 %v683
    %v806 = vpop.f32.mrb[0].mxu0
    %v807 = vadd.f32 %v322, %v806
    %v808 = vpop.f32.mrb[0].mxu0
    %v809 = vadd.f32 %v324, %v808
    %810 = vmatprep.mubr.f32.mxu0 0.0
    %811 = vmatmul.mubr.f32.gmra.mrb[0].mxu0 %v686
    %v812 = vpop.f32.mrb[0].mxu0
    %v813 = vadd.f32 %v328, %v812
    %v814 = vpop.f32.mrb[0].mxu0
    %v815 = vadd.f32 %v330, %v814
    %816 = vmatprep.mubr.f32.mxu0 0.0
    %817 = vmatmul.mubr.f32.gmra.mrb[0].mxu0 %v689
    %v818 = vpop.f32.mrb[0].mxu0
    %v819 = vadd.f32 %v334, %v818
    %v820 = vpop.f32.mrb[0].mxu0
    %v821 = vadd.f32 %v336, %v820
    %822 = vmatprep.mubr.f32.mxu0 0.0
    %823 = vmatmul.mubr.f32.gmra.mrb[0].mxu0 %v692
    %v824 = vpop.f32.mrb[0].mxu0
    %v825 = vadd.f32 %v340, %v824
    %v826 = vpop.f32.mrb[0].mxu0
    %v827 = vadd.f32 %v342, %v826
    %828 = vmatprep.mubr.f32.mxu0 0.0
    %829 = vmatmul.mubr.f32.gmra.mrb[0].mxu0 %v695
    %v830 = vpop.f32.mrb[0].mxu0
    %v831 = vadd.f32 %v346, %v830
    %v832 = vpop.f32.mrb[0].mxu0
    %v833 = vadd.f32 %v348, %v832
    %834 = vmatprep.mubr.f32.mxu0 0.0
    %835 = vmatmul.mubr.f32.gmra.mrb[0].mxu0 %v698
    %v836 = vpop.f32.mrb[0].mxu0
    %v837 = vadd.f32 %v352, %v836
    %v838 = vpop.f32.mrb[0].mxu0
    %v839 = vadd.f32 %v354, %v838
    %840 = vmatprep.mubr.f32.mxu0 0.0
    %841 = vmatmul.mubr.f32.gmra.mrb[0].mxu0 %v701
    %v842 = vpop.f32.mrb[0].mxu0
    %v843 = vadd.f32 %v358, %v842
    %v844 = vpop.f32.mrb[0].mxu0
    %v845 = vadd.f32 %v360, %v844
    %846 = vmatprep.mubr.f32.mxu0 0.0
    %847 = vmatmul.mubr.f32.gmra.mrb[0].mxu0 %v704
    %v848 = vpop.f32.mrb[0].mxu0
    %v849 = vadd.f32 %v364, %v848
    %v850 = vpop.f32.mrb[0].mxu0
    %v851 = vadd.f32 %v366, %v850
    %852 = vmatprep.mubr.f32.mxu0 0.0
    %853 = vmatmul.mubr.f32.gmra.mrb[0].mxu0 %v707
    %v854 = vpop.f32.mrb[0].mxu0
    %v855 = vadd.f32 %v370, %v854
    %v856 = vpop.f32.mrb[0].mxu0
    %v857 = vadd.f32 %v372, %v856
    %858 = vmatprep.mubr.f32.mxu0 0.0
    %859 = vmatmul.mubr.f32.gmra.mrb[0].mxu0 %v710
    %v860 = vpop.f32.mrb[0].mxu0
    %v861 = vadd.f32 %v376, %v860
    %v862 = vpop.f32.mrb[0].mxu0
    %v863 = vadd.f32 %v378, %v862
    %864 = vmatprep.mubr.f32.mxu0 0.0
    %865 = vmatmul.mubr.f32.gmra.mrb[0].mxu0 %v713
    %v866 = vpop.f32.mrb[0].mxu0
    %v867 = vadd.f32 %v382, %v866
    %v868 = vpop.f32.mrb[0].mxu0
    %v869 = vadd.f32 %v384, %v868
    %870 = vmatprep.mubr.f32.mxu0 0.0
    %871 = vmatmul.mubr.f32.gmra.mrb[0].mxu0 %v716
    %v872 = vpop.f32.mrb[0].mxu0
    %v873 = vadd.f32 %v388, %v872
    %v874 = vpop.f32.mrb[0].mxu0
    %v875 = vadd.f32 %v390, %v874
    %876 = vdwg.mxu0
    %877 = vmatprep.subr.mxu0 %v51
    %878 = vmatpush1.msra.mxu0 %v50
    %879 = vmatprep.subr.mxu0 %v56
    %880 = vmatpush1.msra.mxu0 %v55
    %881 = vmatprep.subr.mxu0 %v61
    %882 = vmatpush1.msra.mxu0 %v60
    %883 = vmatprep.subr.mxu0 %v724
    %884 = vmatpush1.msra.mxu0 %v722
    %885 = vmatprep.subr.mxu0 0.0
    %886 = vmatpush1.msra.mxu0 0.0
    %887 = vmatprep.subr.mxu0 0.0
    %888 = vmatpush1.msra.mxu0 0.0
    %889 = vmatprep.subr.mxu0 0.0
    %890 = vmatpush1.msra.mxu0 0.0
    %891 = vmatprep.subr.mxu0 0.0
    %892 = vmatpush1.msra.mxu0 0.0
    %893 = vmatprep.subr.mxu0 0.0
    %894 = vmatpush1.msra.mxu0 0.0
    %895 = vmatprep.subr.mxu0 0.0
    %896 = vmatpush1.msra.mxu0 0.0
    %897 = vmatprep.subr.mxu0 0.0
    %898 = vmatpush1.msra.mxu0 0.0
    %899 = vmatprep.subr.mxu0 0.0
    %900 = vmatpush1.msra.mxu0 0.0
    %901 = vmatprep.subr.mxu0 0.0
    %902 = vmatpush1.msra.mxu0 0.0
    %903 = vmatprep.subr.mxu0 0.0
    %904 = vmatpush1.msra.mxu0 0.0
    %905 = vmatprep.subr.mxu0 0.0
    %906 = vmatpush1.msra.mxu0 0.0
    %907 = vmatprep.subr.mxu0 0.0
    %908 = vmatpush1.msra.mxu0 0.0
    %909 = vmatprep.subr.mxu0 0.0
    %910 = vmatpush1.msra.mxu0 0.0
    %911 = vmatprep.subr.mxu0 0.0
    %912 = vmatpush1.msra.mxu0 0.0
    %913 = vmatprep.subr.mxu0 0.0
    %914 = vmatpush1.msra.mxu0 0.0
    %915 = vmatprep.subr.mxu0 0.0
    %916 = vmatpush1.msra.mxu0 0.0
    %917 = vmatprep.subr.mxu0 0.0
    %918 = vmatpush1.msra.mxu0 0.0
    %919 = vmatprep.subr.mxu0 0.0
    %920 = vmatpush1.msra.mxu0 0.0
    %921 = vmatprep.subr.mxu0 0.0
    %922 = vmatpush1.msra.mxu0 0.0
    %923 = vmatprep.subr.mxu0 0.0
    %924 = vmatpush1.msra.mxu0 0.0
    %925 = vmatprep.subr.mxu0 0.0
    %926 = vmatpush1.msra.mxu0 0.0
    %927 = vmatprep.subr.mxu0 0.0
    %928 = vmatpush1.msra.mxu0 0.0
    %929 = vmatprep.subr.mxu0 0.0
    %930 = vmatpush1.msra.mxu0 0.0
    %931 = vmatprep.subr.mxu0 0.0
    %932 = vmatpush1.msra.mxu0 0.0
    %933 = vmatprep.subr.mxu0 0.0
    %934 = vmatpush1.msra.mxu0 0.0
    %935 = vmatprep.subr.mxu0 0.0
    %936 = vmatpush1.msra.mxu0 0.0
    %937 = vmatprep.subr.mxu0 0.0
    %938 = vmatpush1.msra.mxu0 0.0
    %939 = vmatprep.subr.mxu0 0.0
    %940 = vmatpush1.msra.mxu0 0.0
    %941 = vmatprep.mubr.f32.mxu0 0.0
    %942 = vmatmul.mubr.f32.gmra.mrb[0].mxu0 %v677
    %v943 = vpop.f32.mrb[0].mxu0
    %v944 = vadd.f32 %v459, %v943
    %v945 = vpop.f32.mrb[0].mxu0
    %v946 = vadd.f32 %v461, %v945
    %947 = vmatprep.mubr.f32.mxu0 0.0
    %948 = vmatmul.mubr.f32.gmra.mrb[0].mxu0 %v680
    %v949 = vpop.f32.mrb[0].mxu0
    %v950 = vadd.f32 %v465, %v949
    %v951 = vpop.f32.mrb[0].mxu0
    %v952 = vadd.f32 %v467, %v951
    %953 = vmatprep.mubr.f32.mxu0 0.0
    %954 = vmatmul.mubr.f32.gmra.mrb[0].mxu0 %v683
    %v955 = vpop.f32.mrb[0].mxu0
    %v956 = vadd.f32 %v471, %v955
    %v957 = vpop.f32.mrb[0].mxu0
    %v958 = vadd.f32 %v473, %v957
    %959 = vmatprep.mubr.f32.mxu0 0.0
    %960 = vmatmul.mubr.f32.gmra.mrb[0].mxu0 %v686
    %v961 = vpop.f32.mrb[0].mxu0
    %v962 = vadd.f32 %v477, %v961
    %v963 = vpop.f32.mrb[0].mxu0
    %v964 = vadd.f32 %v479, %v963
    %965 = vmatprep.mubr.f32.mxu0 0.0
    %966 = vmatmul.mubr.f32.gmra.mrb[0].mxu0 %v689
    %v967 = vpop.f32.mrb[0].mxu0
    %v968 = vadd.f32 %v483, %v967
    %v969 = vpop.f32.mrb[0].mxu0
    %v970 = vadd.f32 %v485, %v969
    %971 = vmatprep.mubr.f32.mxu0 0.0
    %972 = vmatmul.mubr.f32.gmra.mrb[0].mxu0 %v692
    %v973 = vpop.f32.mrb[0].mxu0
    %v974 = vadd.f32 %v489, %v973
    %v975 = vpop.f32.mrb[0].mxu0
    %v976 = vadd.f32 %v491, %v975
    %977 = vmatprep.mubr.f32.mxu0 0.0
    %978 = vmatmul.mubr.f32.gmra.mrb[0].mxu0 %v695
    %v979 = vpop.f32.mrb[0].mxu0
    %v980 = vadd.f32 %v495, %v979
    %v981 = vpop.f32.mrb[0].mxu0
    %v982 = vadd.f32 %v497, %v981
    %983 = vmatprep.mubr.f32.mxu0 0.0
    %984 = vmatmul.mubr.f32.gmra.mrb[0].mxu0 %v698
    %v985 = vpop.f32.mrb[0].mxu0
    %v986 = vadd.f32 %v501, %v985
    %v987 = vpop.f32.mrb[0].mxu0
    %v988 = vadd.f32 %v503, %v987
    %989 = vmatprep.mubr.f32.mxu0 0.0
    %990 = vmatmul.mubr.f32.gmra.mrb[0].mxu0 %v701
    %v991 = vpop.f32.mrb[0].mxu0
    %v992 = vadd.f32 %v507, %v991
    %v993 = vpop.f32.mrb[0].mxu0
    %v994 = vadd.f32 %v509, %v993
    %995 = vmatprep.mubr.f32.mxu0 0.0
    %996 = vmatmul.mubr.f32.gmra.mrb[0].mxu0 %v704
    %v997 = vpop.f32.mrb[0].mxu0
    %v998 = vadd.f32 %v513, %v997
    %v999 = vpop.f32.mrb[0].mxu0
    %v1000 = vadd.f32 %v515, %v999
    %1001 = vmatprep.mubr.f32.mxu0 0.0
    %1002 = vmatmul.mubr.f32.gmra.mrb[0].mxu0 %v707
    %v1003 = vpop.f32.mrb[0].mxu0
    %v1004 = vadd.f32 %v519, %v1003
    %v1005 = vpop.f32.mrb[0].mxu0
    %v1006 = vadd.f32 %v521, %v1005
    %1007 = vmatprep.mubr.f32.mxu0 0.0
    %1008 = vmatmul.mubr.f32.gmra.mrb[0].mxu0 %v710
    %v1009 = vpop.f32.mrb[0].mxu0
    %v1010 = vadd.f32 %v525, %v1009
    %v1011 = vpop.f32.mrb[0].mxu0
    %v1012 = vadd.f32 %v527, %v1011
    %1013 = vmatprep.mubr.f32.mxu0 0.0
    %1014 = vmatmul.mubr.f32.gmra.mrb[0].mxu0 %v713
    %v1015 = vpop.f32.mrb[0].mxu0
    %v1016 = vadd.f32 %v531, %v1015
    %v1017 = vpop.f32.mrb[0].mxu0
    %v1018 = vadd.f32 %v533, %v1017
    %1019 = vmatprep.mubr.f32.mxu0 0.0
    %1020 = vmatmul.mubr.f32.gmra.mrb[0].mxu0 %v716
    %v1021 = vpop.f32.mrb[0].mxu0
    %v1022 = vadd.f32 %v537, %v1021
    %v1023 = vpop.f32.mrb[0].mxu0
    %v1024 = vadd.f32 %v539, %v1023
    %1025 = vdwg.mxu0
    %1026 = vmatprep.subr.mxu0 0.0
    %1027 = vmatpush1.msra.mxu0 %v52
    %1028 = vmatprep.subr.mxu0 0.0
    %1029 = vmatpush1.msra.mxu0 %v57
    %1030 = vmatprep.subr.mxu0 0.0
    %1031 = vmatpush1.msra.mxu0 %v62
    %1032 = vmatprep.subr.mxu0 0.0
    %1033 = vmatpush1.msra.mxu0 %v726
    %1034 = vmatprep.subr.mxu0 0.0
    %1035 = vmatpush1.msra.mxu0 0.0
    %1036 = vmatprep.subr.mxu0 0.0
    %1037 = vmatpush1.msra.mxu0 0.0
    %1038 = vmatprep.subr.mxu0 0.0
    %1039 = vmatpush1.msra.mxu0 0.0
    %1040 = vmatprep.subr.mxu0 0.0
    %1041 = vmatpush1.msra.mxu0 0.0
    %1042 = vmatprep.subr.mxu0 0.0
    %1043 = vmatpush1.msra.mxu0 0.0
    %1044 = vmatprep.subr.mxu0 0.0
    %1045 = vmatpush1.msra.mxu0 0.0
    %1046 = vmatprep.subr.mxu0 0.0
    %1047 = vmatpush1.msra.mxu0 0.0
    %1048 = vmatprep.subr.mxu0 0.0
    %1049 = vmatpush1.msra.mxu0 0.0
    %1050 = vmatprep.subr.mxu0 0.0
    %1051 = vmatpush1.msra.mxu0 0.0
    %1052 = vmatprep.subr.mxu0 0.0
    %1053 = vmatpush1.msra.mxu0 0.0
    %1054 = vmatprep.subr.mxu0 0.0
    %1055 = vmatpush1.msra.mxu0 0.0
    %1056 = vmatprep.subr.mxu0 0.0
    %1057 = vmatpush1.msra.mxu0 0.0
    %1058 = vmatprep.subr.mxu0 0.0
    %1059 = vmatpush1.msra.mxu0 0.0
    %1060 = vmatprep.subr.mxu0 0.0
    %1061 = vmatpush1.msra.mxu0 0.0
    %1062 = vmatprep.subr.mxu0 0.0
    %1063 = vmatpush1.msra.mxu0 0.0
    %1064 = vmatprep.subr.mxu0 0.0
    %1065 = vmatpush1.msra.mxu0 0.0
    %1066 = vmatprep.subr.mxu0 0.0
    %1067 = vmatpush1.msra.mxu0 0.0
    %1068 = vmatprep.subr.mxu0 0.0
    %1069 = vmatpush1.msra.mxu0 0.0
    %1070 = vmatprep.subr.mxu0 0.0
    %1071 = vmatpush1.msra.mxu0 0.0
    %1072 = vmatprep.subr.mxu0 0.0
    %1073 = vmatpush1.msra.mxu0 0.0
    %1074 = vmatprep.subr.mxu0 0.0
    %1075 = vmatpush1.msra.mxu0 0.0
    %1076 = vmatprep.subr.mxu0 0.0
    %1077 = vmatpush1.msra.mxu0 0.0
    %1078 = vmatprep.subr.mxu0 0.0
    %1079 = vmatpush1.msra.mxu0 0.0
    %1080 = vmatprep.subr.mxu0 0.0
    %1081 = vmatpush1.msra.mxu0 0.0
    %1082 = vmatprep.subr.mxu0 0.0
    %1083 = vmatpush1.msra.mxu0 0.0
    %1084 = vmatprep.subr.mxu0 0.0
    %1085 = vmatpush1.msra.mxu0 0.0
    %1086 = vmatprep.subr.mxu0 0.0
    %1087 = vmatpush1.msra.mxu0 0.0
    %1088 = vmatprep.subr.mxu0 0.0
    %1089 = vmatpush1.msra.mxu0 0.0
    %1090 = vmatprep.mubr.f32.mxu0 0.0
    %1091 = vmatmul.mubr.f32.gmra.mrb[0].mxu0 %v677
    %v1092 = vpop.f32.mrb[0].mxu0
    %v1093 = vadd.f32 %v608, %v1092
    %v1094 = vpop.f32.mrb[0].mxu0
    %1095 = vmatprep.mubr.f32.mxu0 0.0
    %1096 = vmatmul.mubr.f32.gmra.mrb[0].mxu0 %v680
    %v1097 = vpop.f32.mrb[0].mxu0
    %v1098 = vadd.f32 %v613, %v1097
    %v1099 = vpop.f32.mrb[0].mxu0
    %1100 = vmatprep.mubr.f32.mxu0 0.0
    %1101 = vmatmul.mubr.f32.gmra.mrb[0].mxu0 %v683
    %v1102 = vpop.f32.mrb[0].mxu0
    %v1103 = vadd.f32 %v618, %v1102
    %v1104 = vpop.f32.mrb[0].mxu0
    %1105 = vmatprep.mubr.f32.mxu0 0.0
    %1106 = vmatmul.mubr.f32.gmra.mrb[0].mxu0 %v686
    %v1107 = vpop.f32.mrb[0].mxu0
    %v1108 = vadd.f32 %v623, %v1107
    %v1109 = vpop.f32.mrb[0].mxu0
    %1110 = vmatprep.mubr.f32.mxu0 0.0
    %1111 = vmatmul.mubr.f32.gmra.mrb[0].mxu0 %v689
    %v1112 = vpop.f32.mrb[0].mxu0
    %v1113 = vadd.f32 %v628, %v1112
    %v1114 = vpop.f32.mrb[0].mxu0
    %1115 = vmatprep.mubr.f32.mxu0 0.0
    %1116 = vmatmul.mubr.f32.gmra.mrb[0].mxu0 %v692
    %v1117 = vpop.f32.mrb[0].mxu0
    %v1118 = vadd.f32 %v633, %v1117
    %v1119 = vpop.f32.mrb[0].mxu0
    %1120 = vmatprep.mubr.f32.mxu0 0.0
    %1121 = vmatmul.mubr.f32.gmra.mrb[0].mxu0 %v695
    %v1122 = vpop.f32.mrb[0].mxu0
    %v1123 = vadd.f32 %v638, %v1122
    %v1124 = vpop.f32.mrb[0].mxu0
    %1125 = vmatprep.mubr.f32.mxu0 0.0
    %1126 = vmatmul.mubr.f32.gmra.mrb[0].mxu0 %v698
    %v1127 = vpop.f32.mrb[0].mxu0
    %v1128 = vadd.f32 %v643, %v1127
    %v1129 = vpop.f32.mrb[0].mxu0
    %1130 = vmatprep.mubr.f32.mxu0 0.0
    %1131 = vmatmul.mubr.f32.gmra.mrb[0].mxu0 %v701
    %v1132 = vpop.f32.mrb[0].mxu0
    %v1133 = vadd.f32 %v648, %v1132
    %v1134 = vpop.f32.mrb[0].mxu0
    %1135 = vmatprep.mubr.f32.mxu0 0.0
    %1136 = vmatmul.mubr.f32.gmra.mrb[0].mxu0 %v704
    %v1137 = vpop.f32.mrb[0].mxu0
    %v1138 = vadd.f32 %v653, %v1137
    %v1139 = vpop.f32.mrb[0].mxu0
    %1140 = vmatprep.mubr.f32.mxu0 0.0
    %1141 = vmatmul.mubr.f32.gmra.mrb[0].mxu0 %v707
    %v1142 = vpop.f32.mrb[0].mxu0
    %v1143 = vadd.f32 %v658, %v1142
    %v1144 = vpop.f32.mrb[0].mxu0
    %1145 = vmatprep.mubr.f32.mxu0 0.0
    %1146 = vmatmul.mubr.f32.gmra.mrb[0].mxu0 %v710
    %v1147 = vpop.f32.mrb[0].mxu0
    %v1148 = vadd.f32 %v663, %v1147
    %v1149 = vpop.f32.mrb[0].mxu0
    %1150 = vmatprep.mubr.f32.mxu0 0.0
    %1151 = vmatmul.mubr.f32.gmra.mrb[0].mxu0 %v713
    %v1152 = vpop.f32.mrb[0].mxu0
    %v1153 = vadd.f32 %v668, %v1152
    %v1154 = vpop.f32.mrb[0].mxu0
    %1155 = vmatprep.mubr.f32.mxu0 0.0
    %1156 = vmatmul.mubr.f32.gmra.mrb[0].mxu0 %v716
    %v1157 = vpop.f32.mrb[0].mxu0
    %v1158 = vadd.f32 %v673, %v1157
    %v1159 = vpop.f32.mrb[0].mxu0
    %1160 = vdwg.mxu0
    %s1161 = scalar_lea.vmem %s1, 224
    %v1162 = vld [vmem:[%s1161] sm:$0xff]
    %v1163 = vld [vmem:[%s1161 + $0x8] sm:$0xff]
    %v1164 = vld [vmem:[%s1161 + $0x10] sm:$0xff]
    %v1165 = vld [vmem:[%s1161 + $0x18] sm:$0xff]
    %v1166 = vld [vmem:[%s1161 + $0x20] sm:$0xff]
    %v1167 = vld [vmem:[%s1161 + $0x28] sm:$0xff]
    %v1168 = vld [vmem:[%s1161 + $0x30] sm:$0xff]
    %v1169 = vld [vmem:[%s1161 + $0x38] sm:$0xff]
    %v1170 = vld [vmem:[%s1161 + $0x40] sm:$0xff]
    %v1171 = vld [vmem:[%s1161 + $0x48] sm:$0xff]
    %v1172 = vld [vmem:[%s1161 + $0x50] sm:$0xff]
    %v1173 = vld [vmem:[%s1161 + $0x58] sm:$0xff]
    %v1174 = vld [vmem:[%s1161 + $0x60] sm:$0xff]
    %v1175 = vld [vmem:[%s1161 + $0x68] sm:$0xff]
    %1176 = vrot.lane.b32.xlu0 %v48, 126
    %v1177 = vpop.permute.xlu0 %1176
    %1178 = vrot.lane.b32.xlu0 %v49, 126
    %v1179 = vpop.permute.xlu0 %1178
    %1180 = vrot.lane.b32.xlu0 %v50, 126
    %v1181 = vpop.permute.xlu0 %1180
    %1182 = vrot.lane.b32.xlu0 %v51, 126
    %v1183 = vpop.permute.xlu0 %1182
    %1184 = vrot.lane.b32.xlu0 %v52, 126
    %v1185 = vpop.permute.xlu0 %1184
    %1186 = vrot.lane.b32.xlu0 %v53, 126
    %v1187 = vpop.permute.xlu0 %1186
    %1188 = vrot.lane.b32.xlu0 %v54, 126
    %v1189 = vpop.permute.xlu0 %1188
    %1190 = vrot.lane.b32.xlu0 %v55, 126
    %v1191 = vpop.permute.xlu0 %1190
    %1192 = vrot.lane.b32.xlu0 %v56, 126
    %v1193 = vpop.permute.xlu0 %1192
    %1194 = vrot.lane.b32.xlu0 %v57, 126
    %v1195 = vpop.permute.xlu0 %1194
    %1196 = vrot.lane.b32.xlu0 %v58, 126
    %v1197 = vpop.permute.xlu0 %1196
    %1198 = vrot.lane.b32.xlu0 %v59, 126
    %v1199 = vpop.permute.xlu0 %1198
    %1200 = vrot.lane.b32.xlu0 %v60, 126
    %v1201 = vpop.permute.xlu0 %1200
    %1202 = vrot.lane.b32.xlu0 %v61, 126
    %v1203 = vpop.permute.xlu0 %1202
    %1204 = vrot.lane.b32.xlu0 %v62, 126
    %v1205 = vpop.permute.xlu0 %1204
    %1206 = vrot.lane.b32.xlu0 %v63, 126
    %v1207 = vpop.permute.xlu0 %1206
    %1208 = vrot.lane.b32.xlu0 %v64, 126
    %v1209 = vpop.permute.xlu0 %1208
    %1210 = vrot.lane.b32.xlu0 %v65, 126
    %v1211 = vpop.permute.xlu0 %1210
    %1212 = vrot.lane.b32.xlu0 %v66, 126
    %v1213 = vpop.permute.xlu0 %1212
    %1214 = vrot.lane.b32.xlu0 %v67, 126
    %v1215 = vpop.permute.xlu0 %1214
    %vm1216 = vcmask 1031168
    %v1217 = vsel %vm1216, %v1177, %v1179
    %v1218 = vsel %vm1216, %v1179, %v1181
    %v1219 = vsel %vm1216, %v1181, %v1183
    %v1220 = vsel %vm1216, %v1183, %v1185
    %v1221 = vsel %vm1216, %v1187, %v1189
    %v1222 = vsel %vm1216, %v1189, %v1191
    %v1223 = vsel %vm1216, %v1191, %v1193
    %v1224 = vsel %vm1216, %v1193, %v1195
    %v1225 = vsel %vm1216, %v1197, %v1199
    %v1226 = vsel %vm1216, %v1199, %v1201
    %v1227 = vsel %vm1216, %v1201, %v1203
    %v1228 = vsel %vm1216, %v1203, %v1205
    %v1229 = vsel %vm1216, %v1207, %v1209
    %v1230 = vsel %vm1216, %v1209, %v1211
    %v1231 = vsel %vm1216, %v1211, %v1213
    %v1232 = vsel %vm1216, %v1213, %v1215
    %v1249 = vsel %vm189, %v1162, 0
    %v1252 = vsel %vm189, %v1163, 0
    %v1255 = vsel %vm189, %v1164, 0
    %v1258 = vsel %vm189, %v1165, 0
    %v1261 = vsel %vm189, %v1166, 0
    %v1264 = vsel %vm189, %v1167, 0
    %v1267 = vsel %vm189, %v1168, 0
    %v1270 = vsel %vm189, %v1169, 0
    %v1273 = vsel %vm189, %v1170, 0
    %v1276 = vsel %vm189, %v1171, 0
    %v1279 = vsel %vm189, %v1172, 0
    %v1282 = vsel %vm189, %v1173, 0
    %v1285 = vsel %vm189, %v1174, 0
    %v1288 = vsel %vm189, %v1175, 0
    %v1290 = vsel %vm232, %v1229, 0
    %v1292 = vsel %vm232, %v1230, 0
    %v1294 = vsel %vm232, %v1231, 0
    %v1296 = vsel %vm232, %v1232, 0
    %v1298 = vsel %vm232, %v1215, 0
    %1300 = vmatprep.subr.mxu0 %v1218
    %1301 = vmatpush1.msra.mxu0 %v1217
    %1302 = vmatprep.subr.mxu0 %v1222
    %1303 = vmatpush1.msra.mxu0 %v1221
    %1304 = vmatprep.subr.mxu0 %v1226
    %1305 = vmatpush1.msra.mxu0 %v1225
    %1306 = vmatprep.subr.mxu0 %v1292
    %1307 = vmatpush1.msra.mxu0 %v1290
    %1308 = vmatprep.subr.mxu0 0.0
    %1309 = vmatpush1.msra.mxu0 0.0
    %1310 = vmatprep.subr.mxu0 0.0
    %1311 = vmatpush1.msra.mxu0 0.0
    %1312 = vmatprep.subr.mxu0 0.0
    %1313 = vmatpush1.msra.mxu0 0.0
    %1314 = vmatprep.subr.mxu0 0.0
    %1315 = vmatpush1.msra.mxu0 0.0
    %1316 = vmatprep.subr.mxu0 0.0
    %1317 = vmatpush1.msra.mxu0 0.0
    %1318 = vmatprep.subr.mxu0 0.0
    %1319 = vmatpush1.msra.mxu0 0.0
    %1320 = vmatprep.subr.mxu0 0.0
    %1321 = vmatpush1.msra.mxu0 0.0
    %1322 = vmatprep.subr.mxu0 0.0
    %1323 = vmatpush1.msra.mxu0 0.0
    %1324 = vmatprep.subr.mxu0 0.0
    %1325 = vmatpush1.msra.mxu0 0.0
    %1326 = vmatprep.subr.mxu0 0.0
    %1327 = vmatpush1.msra.mxu0 0.0
    %1328 = vmatprep.subr.mxu0 0.0
    %1329 = vmatpush1.msra.mxu0 0.0
    %1330 = vmatprep.subr.mxu0 0.0
    %1331 = vmatpush1.msra.mxu0 0.0
    %1332 = vmatprep.subr.mxu0 0.0
    %1333 = vmatpush1.msra.mxu0 0.0
    %1334 = vmatprep.subr.mxu0 0.0
    %1335 = vmatpush1.msra.mxu0 0.0
    %1336 = vmatprep.subr.mxu0 0.0
    %1337 = vmatpush1.msra.mxu0 0.0
    %1338 = vmatprep.subr.mxu0 0.0
    %1339 = vmatpush1.msra.mxu0 0.0
    %1340 = vmatprep.subr.mxu0 0.0
    %1341 = vmatpush1.msra.mxu0 0.0
    %1342 = vmatprep.subr.mxu0 0.0
    %1343 = vmatpush1.msra.mxu0 0.0
    %1344 = vmatprep.subr.mxu0 0.0
    %1345 = vmatpush1.msra.mxu0 0.0
    %1346 = vmatprep.subr.mxu0 0.0
    %1347 = vmatpush1.msra.mxu0 0.0
    %1348 = vmatprep.subr.mxu0 0.0
    %1349 = vmatpush1.msra.mxu0 0.0
    %1350 = vmatprep.subr.mxu0 0.0
    %1351 = vmatpush1.msra.mxu0 0.0
    %1352 = vmatprep.subr.mxu0 0.0
    %1353 = vmatpush1.msra.mxu0 0.0
    %1354 = vmatprep.subr.mxu0 0.0
    %1355 = vmatpush1.msra.mxu0 0.0
    %1356 = vmatprep.subr.mxu0 0.0
    %1357 = vmatpush1.msra.mxu0 0.0
    %1358 = vmatprep.subr.mxu0 0.0
    %1359 = vmatpush1.msra.mxu0 0.0
    %1360 = vmatprep.subr.mxu0 0.0
    %1361 = vmatpush1.msra.mxu0 0.0
    %1362 = vmatprep.subr.mxu0 0.0
    %1363 = vmatpush1.msra.mxu0 0.0
    %1364 = vmatprep.mubr.f32.mxu0 0.0
    %1365 = vmatmul.mubr.f32.gmra.mrb[0].mxu0 %v1249
    %v1366 = vpop.f32.mrb[0].mxu0
    %v1367 = vadd.f32 0.0, %v1366
    %v1368 = vpop.f32.mrb[0].mxu0
    %v1369 = vadd.f32 0.0, %v1368
    %1370 = vmatprep.mubr.f32.mxu0 0.0
    %1371 = vmatmul.mubr.f32.gmra.mrb[0].mxu0 %v1252
    %v1372 = vpop.f32.mrb[0].mxu0
    %v1373 = vadd.f32 0.0, %v1372
    %v1374 = vpop.f32.mrb[0].mxu0
    %v1375 = vadd.f32 0.0, %v1374
    %1376 = vmatprep.mubr.f32.mxu0 0.0
    %1377 = vmatmul.mubr.f32.gmra.mrb[0].mxu0 %v1255
    %v1378 = vpop.f32.mrb[0].mxu0
    %v1379 = vadd.f32 0.0, %v1378
    %v1380 = vpop.f32.mrb[0].mxu0
    %v1381 = vadd.f32 0.0, %v1380
    %1382 = vmatprep.mubr.f32.mxu0 0.0
    %1383 = vmatmul.mubr.f32.gmra.mrb[0].mxu0 %v1258
    %v1384 = vpop.f32.mrb[0].mxu0
    %v1385 = vadd.f32 0.0, %v1384
    %v1386 = vpop.f32.mrb[0].mxu0
    %v1387 = vadd.f32 0.0, %v1386
    %1388 = vmatprep.mubr.f32.mxu0 0.0
    %1389 = vmatmul.mubr.f32.gmra.mrb[0].mxu0 %v1261
    %v1390 = vpop.f32.mrb[0].mxu0
    %v1391 = vadd.f32 0.0, %v1390
    %v1392 = vpop.f32.mrb[0].mxu0
    %v1393 = vadd.f32 0.0, %v1392
    %1394 = vmatprep.mubr.f32.mxu0 0.0
    %1395 = vmatmul.mubr.f32.gmra.mrb[0].mxu0 %v1264
    %v1396 = vpop.f32.mrb[0].mxu0
    %v1397 = vadd.f32 0.0, %v1396
    %v1398 = vpop.f32.mrb[0].mxu0
    %v1399 = vadd.f32 0.0, %v1398
    %1400 = vmatprep.mubr.f32.mxu0 0.0
    %1401 = vmatmul.mubr.f32.gmra.mrb[0].mxu0 %v1267
    %v1402 = vpop.f32.mrb[0].mxu0
    %v1403 = vadd.f32 0.0, %v1402
    %v1404 = vpop.f32.mrb[0].mxu0
    %v1405 = vadd.f32 0.0, %v1404
    %1406 = vmatprep.mubr.f32.mxu0 0.0
    %1407 = vmatmul.mubr.f32.gmra.mrb[0].mxu0 %v1270
    %v1408 = vpop.f32.mrb[0].mxu0
    %v1409 = vadd.f32 0.0, %v1408
    %v1410 = vpop.f32.mrb[0].mxu0
    %v1411 = vadd.f32 0.0, %v1410
    %1412 = vmatprep.mubr.f32.mxu0 0.0
    %1413 = vmatmul.mubr.f32.gmra.mrb[0].mxu0 %v1273
    %v1414 = vpop.f32.mrb[0].mxu0
    %v1415 = vadd.f32 0.0, %v1414
    %v1416 = vpop.f32.mrb[0].mxu0
    %v1417 = vadd.f32 0.0, %v1416
    %1418 = vmatprep.mubr.f32.mxu0 0.0
    %1419 = vmatmul.mubr.f32.gmra.mrb[0].mxu0 %v1276
    %v1420 = vpop.f32.mrb[0].mxu0
    %v1421 = vadd.f32 0.0, %v1420
    %v1422 = vpop.f32.mrb[0].mxu0
    %v1423 = vadd.f32 0.0, %v1422
    %1424 = vmatprep.mubr.f32.mxu0 0.0
    %1425 = vmatmul.mubr.f32.gmra.mrb[0].mxu0 %v1279
    %v1426 = vpop.f32.mrb[0].mxu0
    %v1427 = vadd.f32 0.0, %v1426
    %v1428 = vpop.f32.mrb[0].mxu0
    %v1429 = vadd.f32 0.0, %v1428
    %1430 = vmatprep.mubr.f32.mxu0 0.0
    %1431 = vmatmul.mubr.f32.gmra.mrb[0].mxu0 %v1282
    %v1432 = vpop.f32.mrb[0].mxu0
    %v1433 = vadd.f32 0.0, %v1432
    %v1434 = vpop.f32.mrb[0].mxu0
    %v1435 = vadd.f32 0.0, %v1434
    %1436 = vmatprep.mubr.f32.mxu0 0.0
    %1437 = vmatmul.mubr.f32.gmra.mrb[0].mxu0 %v1285
    %v1438 = vpop.f32.mrb[0].mxu0
    %v1439 = vadd.f32 0.0, %v1438
    %v1440 = vpop.f32.mrb[0].mxu0
    %v1441 = vadd.f32 0.0, %v1440
    %1442 = vmatprep.mubr.f32.mxu0 0.0
    %1443 = vmatmul.mubr.f32.gmra.mrb[0].mxu0 %v1288
    %v1444 = vpop.f32.mrb[0].mxu0
    %v1445 = vadd.f32 0.0, %v1444
    %v1446 = vpop.f32.mrb[0].mxu0
    %v1447 = vadd.f32 0.0, %v1446
    %1448 = vdwg.mxu0
    %1449 = vmatprep.subr.mxu0 %v1220
    %1450 = vmatpush1.msra.mxu0 %v1219
    %1451 = vmatprep.subr.mxu0 %v1224
    %1452 = vmatpush1.msra.mxu0 %v1223
    %1453 = vmatprep.subr.mxu0 %v1228
    %1454 = vmatpush1.msra.mxu0 %v1227
    %1455 = vmatprep.subr.mxu0 %v1296
    %1456 = vmatpush1.msra.mxu0 %v1294
    %1457 = vmatprep.subr.mxu0 0.0
    %1458 = vmatpush1.msra.mxu0 0.0
    %1459 = vmatprep.subr.mxu0 0.0
    %1460 = vmatpush1.msra.mxu0 0.0
    %1461 = vmatprep.subr.mxu0 0.0
    %1462 = vmatpush1.msra.mxu0 0.0
    %1463 = vmatprep.subr.mxu0 0.0
    %1464 = vmatpush1.msra.mxu0 0.0
    %1465 = vmatprep.subr.mxu0 0.0
    %1466 = vmatpush1.msra.mxu0 0.0
    %1467 = vmatprep.subr.mxu0 0.0
    %1468 = vmatpush1.msra.mxu0 0.0
    %1469 = vmatprep.subr.mxu0 0.0
    %1470 = vmatpush1.msra.mxu0 0.0
    %1471 = vmatprep.subr.mxu0 0.0
    %1472 = vmatpush1.msra.mxu0 0.0
    %1473 = vmatprep.subr.mxu0 0.0
    %1474 = vmatpush1.msra.mxu0 0.0
    %1475 = vmatprep.subr.mxu0 0.0
    %1476 = vmatpush1.msra.mxu0 0.0
    %1477 = vmatprep.subr.mxu0 0.0
    %1478 = vmatpush1.msra.mxu0 0.0
    %1479 = vmatprep.subr.mxu0 0.0
    %1480 = vmatpush1.msra.mxu0 0.0
    %1481 = vmatprep.subr.mxu0 0.0
    %1482 = vmatpush1.msra.mxu0 0.0
    %1483 = vmatprep.subr.mxu0 0.0
    %1484 = vmatpush1.msra.mxu0 0.0
    %1485 = vmatprep.subr.mxu0 0.0
    %1486 = vmatpush1.msra.mxu0 0.0
    %1487 = vmatprep.subr.mxu0 0.0
    %1488 = vmatpush1.msra.mxu0 0.0
    %1489 = vmatprep.subr.mxu0 0.0
    %1490 = vmatpush1.msra.mxu0 0.0
    %1491 = vmatprep.subr.mxu0 0.0
    %1492 = vmatpush1.msra.mxu0 0.0
    %1493 = vmatprep.subr.mxu0 0.0
    %1494 = vmatpush1.msra.mxu0 0.0
    %1495 = vmatprep.subr.mxu0 0.0
    %1496 = vmatpush1.msra.mxu0 0.0
    %1497 = vmatprep.subr.mxu0 0.0
    %1498 = vmatpush1.msra.mxu0 0.0
    %1499 = vmatprep.subr.mxu0 0.0
    %1500 = vmatpush1.msra.mxu0 0.0
    %1501 = vmatprep.subr.mxu0 0.0
    %1502 = vmatpush1.msra.mxu0 0.0
    %1503 = vmatprep.subr.mxu0 0.0
    %1504 = vmatpush1.msra.mxu0 0.0
    %1505 = vmatprep.subr.mxu0 0.0
    %1506 = vmatpush1.msra.mxu0 0.0
    %1507 = vmatprep.subr.mxu0 0.0
    %1508 = vmatpush1.msra.mxu0 0.0
    %1509 = vmatprep.subr.mxu0 0.0
    %1510 = vmatpush1.msra.mxu0 0.0
    %1511 = vmatprep.subr.mxu0 0.0
    %1512 = vmatpush1.msra.mxu0 0.0
    %1513 = vmatprep.mubr.f32.mxu0 0.0
    %1514 = vmatmul.mubr.f32.gmra.mrb[0].mxu0 %v1249
    %v1515 = vpop.f32.mrb[0].mxu0
    %v1516 = vadd.f32 0.0, %v1515
    %v1517 = vpop.f32.mrb[0].mxu0
    %v1518 = vadd.f32 0.0, %v1517
    %1519 = vmatprep.mubr.f32.mxu0 0.0
    %1520 = vmatmul.mubr.f32.gmra.mrb[0].mxu0 %v1252
    %v1521 = vpop.f32.mrb[0].mxu0
    %v1522 = vadd.f32 0.0, %v1521
    %v1523 = vpop.f32.mrb[0].mxu0
    %v1524 = vadd.f32 0.0, %v1523
    %1525 = vmatprep.mubr.f32.mxu0 0.0
    %1526 = vmatmul.mubr.f32.gmra.mrb[0].mxu0 %v1255
    %v1527 = vpop.f32.mrb[0].mxu0
    %v1528 = vadd.f32 0.0, %v1527
    %v1529 = vpop.f32.mrb[0].mxu0
    %v1530 = vadd.f32 0.0, %v1529
    %1531 = vmatprep.mubr.f32.mxu0 0.0
    %1532 = vmatmul.mubr.f32.gmra.mrb[0].mxu0 %v1258
    %v1533 = vpop.f32.mrb[0].mxu0
    %v1534 = vadd.f32 0.0, %v1533
    %v1535 = vpop.f32.mrb[0].mxu0
    %v1536 = vadd.f32 0.0, %v1535
    %1537 = vmatprep.mubr.f32.mxu0 0.0
    %1538 = vmatmul.mubr.f32.gmra.mrb[0].mxu0 %v1261
    %v1539 = vpop.f32.mrb[0].mxu0
    %v1540 = vadd.f32 0.0, %v1539
    %v1541 = vpop.f32.mrb[0].mxu0
    %v1542 = vadd.f32 0.0, %v1541
    %1543 = vmatprep.mubr.f32.mxu0 0.0
    %1544 = vmatmul.mubr.f32.gmra.mrb[0].mxu0 %v1264
    %v1545 = vpop.f32.mrb[0].mxu0
    %v1546 = vadd.f32 0.0, %v1545
    %v1547 = vpop.f32.mrb[0].mxu0
    %v1548 = vadd.f32 0.0, %v1547
    %1549 = vmatprep.mubr.f32.mxu0 0.0
    %1550 = vmatmul.mubr.f32.gmra.mrb[0].mxu0 %v1267
    %v1551 = vpop.f32.mrb[0].mxu0
    %v1552 = vadd.f32 0.0, %v1551
    %v1553 = vpop.f32.mrb[0].mxu0
    %v1554 = vadd.f32 0.0, %v1553
    %1555 = vmatprep.mubr.f32.mxu0 0.0
    %1556 = vmatmul.mubr.f32.gmra.mrb[0].mxu0 %v1270
    %v1557 = vpop.f32.mrb[0].mxu0
    %v1558 = vadd.f32 0.0, %v1557
    %v1559 = vpop.f32.mrb[0].mxu0
    %v1560 = vadd.f32 0.0, %v1559
    %1561 = vmatprep.mubr.f32.mxu0 0.0
    %1562 = vmatmul.mubr.f32.gmra.mrb[0].mxu0 %v1273
    %v1563 = vpop.f32.mrb[0].mxu0
    %v1564 = vadd.f32 0.0, %v1563
    %v1565 = vpop.f32.mrb[0].mxu0
    %v1566 = vadd.f32 0.0, %v1565
    %1567 = vmatprep.mubr.f32.mxu0 0.0
    %1568 = vmatmul.mubr.f32.gmra.mrb[0].mxu0 %v1276
    %v1569 = vpop.f32.mrb[0].mxu0
    %v1570 = vadd.f32 0.0, %v1569
    %v1571 = vpop.f32.mrb[0].mxu0
    %v1572 = vadd.f32 0.0, %v1571
    %1573 = vmatprep.mubr.f32.mxu0 0.0
    %1574 = vmatmul.mubr.f32.gmra.mrb[0].mxu0 %v1279
    %v1575 = vpop.f32.mrb[0].mxu0
    %v1576 = vadd.f32 0.0, %v1575
    %v1577 = vpop.f32.mrb[0].mxu0
    %v1578 = vadd.f32 0.0, %v1577
    %1579 = vmatprep.mubr.f32.mxu0 0.0
    %1580 = vmatmul.mubr.f32.gmra.mrb[0].mxu0 %v1282
    %v1581 = vpop.f32.mrb[0].mxu0
    %v1582 = vadd.f32 0.0, %v1581
    %v1583 = vpop.f32.mrb[0].mxu0
    %v1584 = vadd.f32 0.0, %v1583
    %1585 = vmatprep.mubr.f32.mxu0 0.0
    %1586 = vmatmul.mubr.f32.gmra.mrb[0].mxu0 %v1285
    %v1587 = vpop.f32.mrb[0].mxu0
    %v1588 = vadd.f32 0.0, %v1587
    %v1589 = vpop.f32.mrb[0].mxu0
    %v1590 = vadd.f32 0.0, %v1589
    %1591 = vmatprep.mubr.f32.mxu0 0.0
    %1592 = vmatmul.mubr.f32.gmra.mrb[0].mxu0 %v1288
    %v1593 = vpop.f32.mrb[0].mxu0
    %v1594 = vadd.f32 0.0, %v1593
    %v1595 = vpop.f32.mrb[0].mxu0
    %v1596 = vadd.f32 0.0, %v1595
    %1597 = vdwg.mxu0
    %1598 = vmatprep.subr.mxu0 0.0
    %1599 = vmatpush1.msra.mxu0 %v1185
    %1600 = vmatprep.subr.mxu0 0.0
    %1601 = vmatpush1.msra.mxu0 %v1195
    %1602 = vmatprep.subr.mxu0 0.0
    %1603 = vmatpush1.msra.mxu0 %v1205
    %1604 = vmatprep.subr.mxu0 0.0
    %1605 = vmatpush1.msra.mxu0 %v1298
    %1606 = vmatprep.subr.mxu0 0.0
    %1607 = vmatpush1.msra.mxu0 0.0
    %1608 = vmatprep.subr.mxu0 0.0
    %1609 = vmatpush1.msra.mxu0 0.0
    %1610 = vmatprep.subr.mxu0 0.0
    %1611 = vmatpush1.msra.mxu0 0.0
    %1612 = vmatprep.subr.mxu0 0.0
    %1613 = vmatpush1.msra.mxu0 0.0
    %1614 = vmatprep.subr.mxu0 0.0
    %1615 = vmatpush1.msra.mxu0 0.0
    %1616 = vmatprep.subr.mxu0 0.0
    %1617 = vmatpush1.msra.mxu0 0.0
    %1618 = vmatprep.subr.mxu0 0.0
    %1619 = vmatpush1.msra.mxu0 0.0
    %1620 = vmatprep.subr.mxu0 0.0
    %1621 = vmatpush1.msra.mxu0 0.0
    %1622 = vmatprep.subr.mxu0 0.0
    %1623 = vmatpush1.msra.mxu0 0.0
    %1624 = vmatprep.subr.mxu0 0.0
    %1625 = vmatpush1.msra.mxu0 0.0
    %1626 = vmatprep.subr.mxu0 0.0
    %1627 = vmatpush1.msra.mxu0 0.0
    %1628 = vmatprep.subr.mxu0 0.0
    %1629 = vmatpush1.msra.mxu0 0.0
    %1630 = vmatprep.subr.mxu0 0.0
    %1631 = vmatpush1.msra.mxu0 0.0
    %1632 = vmatprep.subr.mxu0 0.0
    %1633 = vmatpush1.msra.mxu0 0.0
    %1634 = vmatprep.subr.mxu0 0.0
    %1635 = vmatpush1.msra.mxu0 0.0
    %1636 = vmatprep.subr.mxu0 0.0
    %1637 = vmatpush1.msra.mxu0 0.0
    %1638 = vmatprep.subr.mxu0 0.0
    %1639 = vmatpush1.msra.mxu0 0.0
    %1640 = vmatprep.subr.mxu0 0.0
    %1641 = vmatpush1.msra.mxu0 0.0
    %1642 = vmatprep.subr.mxu0 0.0
    %1643 = vmatpush1.msra.mxu0 0.0
    %1644 = vmatprep.subr.mxu0 0.0
    %1645 = vmatpush1.msra.mxu0 0.0
    %1646 = vmatprep.subr.mxu0 0.0
    %1647 = vmatpush1.msra.mxu0 0.0
    %1648 = vmatprep.subr.mxu0 0.0
    %1649 = vmatpush1.msra.mxu0 0.0
    %1650 = vmatprep.subr.mxu0 0.0
    %1651 = vmatpush1.msra.mxu0 0.0
    %1652 = vmatprep.subr.mxu0 0.0
    %1653 = vmatpush1.msra.mxu0 0.0
    %1654 = vmatprep.subr.mxu0 0.0
    %1655 = vmatpush1.msra.mxu0 0.0
    %1656 = vmatprep.subr.mxu0 0.0
    %1657 = vmatpush1.msra.mxu0 0.0
    %1658 = vmatprep.subr.mxu0 0.0
    %1659 = vmatpush1.msra.mxu0 0.0
    %1660 = vmatprep.subr.mxu0 0.0
    %1661 = vmatpush1.msra.mxu0 0.0
    %1662 = vmatprep.mubr.f32.mxu0 0.0
    %1663 = vmatmul.mubr.f32.gmra.mrb[0].mxu0 %v1249
    %v1664 = vpop.f32.mrb[0].mxu0
    %v1665 = vadd.f32 0.0, %v1664
    %v1666 = vpop.f32.mrb[0].mxu0
    %1667 = vmatprep.mubr.f32.mxu0 0.0
    %1668 = vmatmul.mubr.f32.gmra.mrb[0].mxu0 %v1252
    %v1669 = vpop.f32.mrb[0].mxu0
    %v1670 = vadd.f32 0.0, %v1669
    %v1671 = vpop.f32.mrb[0].mxu0
    %1672 = vmatprep.mubr.f32.mxu0 0.0
    %1673 = vmatmul.mubr.f32.gmra.mrb[0].mxu0 %v1255
    %v1674 = vpop.f32.mrb[0].mxu0
    %v1675 = vadd.f32 0.0, %v1674
    %v1676 = vpop.f32.mrb[0].mxu0
    %1677 = vmatprep.mubr.f32.mxu0 0.0
    %1678 = vmatmul.mubr.f32.gmra.mrb[0].mxu0 %v1258
    %v1679 = vpop.f32.mrb[0].mxu0
    %v1680 = vadd.f32 0.0, %v1679
    %v1681 = vpop.f32.mrb[0].mxu0
    %1682 = vmatprep.mubr.f32.mxu0 0.0
    %1683 = vmatmul.mubr.f32.gmra.mrb[0].mxu0 %v1261
    %v1684 = vpop.f32.mrb[0].mxu0
    %v1685 = vadd.f32 0.0, %v1684
    %v1686 = vpop.f32.mrb[0].mxu0
    %1687 = vmatprep.mubr.f32.mxu0 0.0
    %1688 = vmatmul.mubr.f32.gmra.mrb[0].mxu0 %v1264
    %v1689 = vpop.f32.mrb[0].mxu0
    %v1690 = vadd.f32 0.0, %v1689
    %v1691 = vpop.f32.mrb[0].mxu0
    %1692 = vmatprep.mubr.f32.mxu0 0.0
    %1693 = vmatmul.mubr.f32.gmra.mrb[0].mxu0 %v1267
    %v1694 = vpop.f32.mrb[0].mxu0
    %v1695 = vadd.f32 0.0, %v1694
    %v1696 = vpop.f32.mrb[0].mxu0
    %1697 = vmatprep.mubr.f32.mxu0 0.0
    %1698 = vmatmul.mubr.f32.gmra.mrb[0].mxu0 %v1270
    %v1699 = vpop.f32.mrb[0].mxu0
    %v1700 = vadd.f32 0.0, %v1699
    %v1701 = vpop.f32.mrb[0].mxu0
    %1702 = vmatprep.mubr.f32.mxu0 0.0
    %1703 = vmatmul.mubr.f32.gmra.mrb[0].mxu0 %v1273
    %v1704 = vpop.f32.mrb[0].mxu0
    %v1705 = vadd.f32 0.0, %v1704
    %v1706 = vpop.f32.mrb[0].mxu0
    %1707 = vmatprep.mubr.f32.mxu0 0.0
    %1708 = vmatmul.mubr.f32.gmra.mrb[0].mxu0 %v1276
    %v1709 = vpop.f32.mrb[0].mxu0
    %v1710 = vadd.f32 0.0, %v1709
    %v1711 = vpop.f32.mrb[0].mxu0
    %1712 = vmatprep.mubr.f32.mxu0 0.0
    %1713 = vmatmul.mubr.f32.gmra.mrb[0].mxu0 %v1279
    %v1714 = vpop.f32.mrb[0].mxu0
    %v1715 = vadd.f32 0.0, %v1714
    %v1716 = vpop.f32.mrb[0].mxu0
    %1717 = vmatprep.mubr.f32.mxu0 0.0
    %1718 = vmatmul.mubr.f32.gmra.mrb[0].mxu0 %v1282
    %v1719 = vpop.f32.mrb[0].mxu0
    %v1720 = vadd.f32 0.0, %v1719
    %v1721 = vpop.f32.mrb[0].mxu0
    %1722 = vmatprep.mubr.f32.mxu0 0.0
    %1723 = vmatmul.mubr.f32.gmra.mrb[0].mxu0 %v1285
    %v1724 = vpop.f32.mrb[0].mxu0
    %v1725 = vadd.f32 0.0, %v1724
    %v1726 = vpop.f32.mrb[0].mxu0
    %1727 = vmatprep.mubr.f32.mxu0 0.0
    %1728 = vmatmul.mubr.f32.gmra.mrb[0].mxu0 %v1288
    %v1729 = vpop.f32.mrb[0].mxu0
    %v1730 = vadd.f32 0.0, %v1729
    %v1731 = vpop.f32.mrb[0].mxu0
    %1732 = vdwg.mxu0
    %v1733 = vadd.f32 %v795, %v1367
    %v1734 = vadd.f32 %v797, %v1369
    %v1735 = vadd.f32 %v944, %v1516
    %v1736 = vadd.f32 %v946, %v1518
    %v1737 = vadd.f32 %v1093, %v1665
    %v1738 = vadd.f32 %v801, %v1373
    %v1739 = vadd.f32 %v803, %v1375
    %v1740 = vadd.f32 %v950, %v1522
    %v1741 = vadd.f32 %v952, %v1524
    %v1742 = vadd.f32 %v1098, %v1670
    %v1743 = vadd.f32 %v807, %v1379
    %v1744 = vadd.f32 %v809, %v1381
    %v1745 = vadd.f32 %v956, %v1528
    %v1746 = vadd.f32 %v958, %v1530
    %v1747 = vadd.f32 %v1103, %v1675
    %v1748 = vadd.f32 %v813, %v1385
    %v1749 = vadd.f32 %v815, %v1387
    %v1750 = vadd.f32 %v962, %v1534
    %v1751 = vadd.f32 %v964, %v1536
    %v1752 = vadd.f32 %v1108, %v1680
    %v1753 = vadd.f32 %v819, %v1391
    %v1754 = vadd.f32 %v821, %v1393
    %v1755 = vadd.f32 %v968, %v1540
    %v1756 = vadd.f32 %v970, %v1542
    %v1757 = vadd.f32 %v1113, %v1685
    %v1758 = vadd.f32 %v825, %v1397
    %v1759 = vadd.f32 %v827, %v1399
    %v1760 = vadd.f32 %v974, %v1546
    %v1761 = vadd.f32 %v976, %v1548
    %v1762 = vadd.f32 %v1118, %v1690
    %v1763 = vadd.f32 %v831, %v1403
    %v1764 = vadd.f32 %v833, %v1405
    %v1765 = vadd.f32 %v980, %v1552
    %v1766 = vadd.f32 %v982, %v1554
    %v1767 = vadd.f32 %v1123, %v1695
    %v1768 = vadd.f32 %v837, %v1409
    %v1769 = vadd.f32 %v839, %v1411
    %v1770 = vadd.f32 %v986, %v1558
    %v1771 = vadd.f32 %v988, %v1560
    %v1772 = vadd.f32 %v1128, %v1700
    %v1773 = vadd.f32 %v843, %v1415
    %v1774 = vadd.f32 %v845, %v1417
    %v1775 = vadd.f32 %v992, %v1564
    %v1776 = vadd.f32 %v994, %v1566
    %v1777 = vadd.f32 %v1133, %v1705
    %v1778 = vadd.f32 %v849, %v1421
    %v1779 = vadd.f32 %v851, %v1423
    %v1780 = vadd.f32 %v998, %v1570
    %v1781 = vadd.f32 %v1000, %v1572
    %v1782 = vadd.f32 %v1138, %v1710
    %v1783 = vadd.f32 %v855, %v1427
    %v1784 = vadd.f32 %v857, %v1429
    %v1785 = vadd.f32 %v1004, %v1576
    %v1786 = vadd.f32 %v1006, %v1578
    %v1787 = vadd.f32 %v1143, %v1715
    %v1788 = vadd.f32 %v861, %v1433
    %v1789 = vadd.f32 %v863, %v1435
    %v1790 = vadd.f32 %v1010, %v1582
    %v1791 = vadd.f32 %v1012, %v1584
    %v1792 = vadd.f32 %v1148, %v1720
    %v1793 = vadd.f32 %v867, %v1439
    %v1794 = vadd.f32 %v869, %v1441
    %v1795 = vadd.f32 %v1016, %v1588
    %v1796 = vadd.f32 %v1018, %v1590
    %v1797 = vadd.f32 %v1153, %v1725
    %v1798 = vadd.f32 %v873, %v1445
    %v1799 = vadd.f32 %v875, %v1447
    %v1800 = vadd.f32 %v1022, %v1594
    %v1801 = vadd.f32 %v1024, %v1596
    %v1802 = vadd.f32 %v1158, %v1730
    %v1803 = vld [vmem:[%s2] sm:$0xff]
    %v1804 = vld [vmem:[%s2 + $0x8] sm:$0xff]
    %v1805 = vld [vmem:[%s2 + $0x10] sm:$0xff]
    %v1806 = vld [vmem:[%s2 + $0x18] sm:$0xff]
    %v1807 = vld [vmem:[%s2 + $0x20] sm:$0xff]
    %v1808 = vld [vmem:[%s2 + $0x28] sm:$0xff]
    %v1809 = vld [vmem:[%s2 + $0x30] sm:$0xff]
    %v1810 = vld [vmem:[%s2 + $0x38] sm:$0xff]
    %v1811 = vld [vmem:[%s2 + $0x40] sm:$0xff]
    %v1812 = vld [vmem:[%s2 + $0x48] sm:$0xff]
    %v1813 = vld [vmem:[%s2 + $0x50] sm:$0xff]
    %v1814 = vld [vmem:[%s2 + $0x58] sm:$0xff]
    %v1815 = vld [vmem:[%s2 + $0x60] sm:$0xff]
    %v1816 = vld [vmem:[%s2 + $0x68] sm:$0xff]
    %1818 = vset.pattern.permute.xlu0 0
    %1819 = vperm.xlu0 %1818, %v1803
    %v1820 = vpop.permute.xlu0 %1819
    %1823 = vset.pattern.permute.xlu0 0
    %1824 = vperm.xlu0 %1823, %v1804
    %v1825 = vpop.permute.xlu0 %1824
    %1828 = vset.pattern.permute.xlu0 0
    %1829 = vperm.xlu0 %1828, %v1805
    %v1830 = vpop.permute.xlu0 %1829
    %1833 = vset.pattern.permute.xlu0 0
    %1834 = vperm.xlu0 %1833, %v1806
    %v1835 = vpop.permute.xlu0 %1834
    %1838 = vset.pattern.permute.xlu0 0
    %1839 = vperm.xlu0 %1838, %v1807
    %v1840 = vpop.permute.xlu0 %1839
    %1843 = vset.pattern.permute.xlu0 0
    %1844 = vperm.xlu0 %1843, %v1808
    %v1845 = vpop.permute.xlu0 %1844
    %1848 = vset.pattern.permute.xlu0 0
    %1849 = vperm.xlu0 %1848, %v1809
    %v1850 = vpop.permute.xlu0 %1849
    %1853 = vset.pattern.permute.xlu0 0
    %1854 = vperm.xlu0 %1853, %v1810
    %v1855 = vpop.permute.xlu0 %1854
    %1858 = vset.pattern.permute.xlu0 0
    %1859 = vperm.xlu0 %1858, %v1811
    %v1860 = vpop.permute.xlu0 %1859
    %1863 = vset.pattern.permute.xlu0 0
    %1864 = vperm.xlu0 %1863, %v1812
    %v1865 = vpop.permute.xlu0 %1864
    %1868 = vset.pattern.permute.xlu0 0
    %1869 = vperm.xlu0 %1868, %v1813
    %v1870 = vpop.permute.xlu0 %1869
    %1873 = vset.pattern.permute.xlu0 0
    %1874 = vperm.xlu0 %1873, %v1814
    %v1875 = vpop.permute.xlu0 %1874
    %1878 = vset.pattern.permute.xlu0 0
    %1879 = vperm.xlu0 %1878, %v1815
    %v1880 = vpop.permute.xlu0 %1879
    %1883 = vset.pattern.permute.xlu0 0
    %1884 = vperm.xlu0 %1883, %v1816
    %v1885 = vpop.permute.xlu0 %1884
    %v1887 = vadd.f32 %v1733, %v1820
    %v1888 = vadd.f32 %v1734, %v1820
    %v1889 = vadd.f32 %v1735, %v1820
    %v1890 = vadd.f32 %v1736, %v1820
    %v1891 = vadd.f32 %v1737, %v1820
    %v1892 = vadd.f32 %v1738, %v1825
    %v1893 = vadd.f32 %v1739, %v1825
    %v1894 = vadd.f32 %v1740, %v1825
    %v1895 = vadd.f32 %v1741, %v1825
    %v1896 = vadd.f32 %v1742, %v1825
    %v1897 = vadd.f32 %v1743, %v1830
    %v1898 = vadd.f32 %v1744, %v1830
    %v1899 = vadd.f32 %v1745, %v1830
    %v1900 = vadd.f32 %v1746, %v1830
    %v1901 = vadd.f32 %v1747, %v1830
    %v1902 = vadd.f32 %v1748, %v1835
    %v1903 = vadd.f32 %v1749, %v1835
    %v1904 = vadd.f32 %v1750, %v1835
    %v1905 = vadd.f32 %v1751, %v1835
    %v1906 = vadd.f32 %v1752, %v1835
    %v1907 = vadd.f32 %v1753, %v1840
    %v1908 = vadd.f32 %v1754, %v1840
    %v1909 = vadd.f32 %v1755, %v1840
    %v1910 = vadd.f32 %v1756, %v1840
    %v1911 = vadd.f32 %v1757, %v1840
    %v1912 = vadd.f32 %v1758, %v1845
    %v1913 = vadd.f32 %v1759, %v1845
    %v1914 = vadd.f32 %v1760, %v1845
    %v1915 = vadd.f32 %v1761, %v1845
    %v1916 = vadd.f32 %v1762, %v1845
    %v1917 = vadd.f32 %v1763, %v1850
    %v1918 = vadd.f32 %v1764, %v1850
    %v1919 = vadd.f32 %v1765, %v1850
    %v1920 = vadd.f32 %v1766, %v1850
    %v1921 = vadd.f32 %v1767, %v1850
    %v1922 = vadd.f32 %v1768, %v1855
    %v1923 = vadd.f32 %v1769, %v1855
    %v1924 = vadd.f32 %v1770, %v1855
    %v1925 = vadd.f32 %v1771, %v1855
    %v1926 = vadd.f32 %v1772, %v1855
    %v1927 = vadd.f32 %v1773, %v1860
    %v1928 = vadd.f32 %v1774, %v1860
    %v1929 = vadd.f32 %v1775, %v1860
    %v1930 = vadd.f32 %v1776, %v1860
    %v1931 = vadd.f32 %v1777, %v1860
    %v1932 = vadd.f32 %v1778, %v1865
    %v1933 = vadd.f32 %v1779, %v1865
    %v1934 = vadd.f32 %v1780, %v1865
    %v1935 = vadd.f32 %v1781, %v1865
    %v1936 = vadd.f32 %v1782, %v1865
    %v1937 = vadd.f32 %v1783, %v1870
    %v1938 = vadd.f32 %v1784, %v1870
    %v1939 = vadd.f32 %v1785, %v1870
    %v1940 = vadd.f32 %v1786, %v1870
    %v1941 = vadd.f32 %v1787, %v1870
    %v1942 = vadd.f32 %v1788, %v1875
    %v1943 = vadd.f32 %v1789, %v1875
    %v1944 = vadd.f32 %v1790, %v1875
    %v1945 = vadd.f32 %v1791, %v1875
    %v1946 = vadd.f32 %v1792, %v1875
    %v1947 = vadd.f32 %v1793, %v1880
    %v1948 = vadd.f32 %v1794, %v1880
    %v1949 = vadd.f32 %v1795, %v1880
    %v1950 = vadd.f32 %v1796, %v1880
    %v1951 = vadd.f32 %v1797, %v1880
    %v1952 = vadd.f32 %v1798, %v1885
    %v1953 = vadd.f32 %v1799, %v1885
    %v1954 = vadd.f32 %v1800, %v1885
    %v1955 = vadd.f32 %v1801, %v1885
    %v1956 = vadd.f32 %v1802, %v1885
    %v1957 = vmax.f32 %v1887, 0.0
    %v1958 = vmax.f32 %v1888, 0.0
    %v1959 = vmax.f32 %v1889, 0.0
    %v1960 = vmax.f32 %v1890, 0.0
    %v1961 = vmax.f32 %v1891, 0.0
    %v1962 = vmax.f32 %v1892, 0.0
    %v1963 = vmax.f32 %v1893, 0.0
    %v1964 = vmax.f32 %v1894, 0.0
    %v1965 = vmax.f32 %v1895, 0.0
    %v1966 = vmax.f32 %v1896, 0.0
    %v1967 = vmax.f32 %v1897, 0.0
    %v1968 = vmax.f32 %v1898, 0.0
    %v1969 = vmax.f32 %v1899, 0.0
    %v1970 = vmax.f32 %v1900, 0.0
    %v1971 = vmax.f32 %v1901, 0.0
    %v1972 = vmax.f32 %v1902, 0.0
    %v1973 = vmax.f32 %v1903, 0.0
    %v1974 = vmax.f32 %v1904, 0.0
    %v1975 = vmax.f32 %v1905, 0.0
    %v1976 = vmax.f32 %v1906, 0.0
    %v1977 = vmax.f32 %v1907, 0.0
    %v1978 = vmax.f32 %v1908, 0.0
    %v1979 = vmax.f32 %v1909, 0.0
    %v1980 = vmax.f32 %v1910, 0.0
    %v1981 = vmax.f32 %v1911, 0.0
    %v1982 = vmax.f32 %v1912, 0.0
    %v1983 = vmax.f32 %v1913, 0.0
    %v1984 = vmax.f32 %v1914, 0.0
    %v1985 = vmax.f32 %v1915, 0.0
    %v1986 = vmax.f32 %v1916, 0.0
    %v1987 = vmax.f32 %v1917, 0.0
    %v1988 = vmax.f32 %v1918, 0.0
    %v1989 = vmax.f32 %v1919, 0.0
    %v1990 = vmax.f32 %v1920, 0.0
    %v1991 = vmax.f32 %v1921, 0.0
    %v1992 = vmax.f32 %v1922, 0.0
    %v1993 = vmax.f32 %v1923, 0.0
    %v1994 = vmax.f32 %v1924, 0.0
    %v1995 = vmax.f32 %v1925, 0.0
    %v1996 = vmax.f32 %v1926, 0.0
    %v1997 = vmax.f32 %v1927, 0.0
    %v1998 = vmax.f32 %v1928, 0.0
    %v1999 = vmax.f32 %v1929, 0.0
    %v2000 = vmax.f32 %v1930, 0.0
    %v2001 = vmax.f32 %v1931, 0.0
    %v2002 = vmax.f32 %v1932, 0.0
    %v2003 = vmax.f32 %v1933, 0.0
    %v2004 = vmax.f32 %v1934, 0.0
    %v2005 = vmax.f32 %v1935, 0.0
    %v2006 = vmax.f32 %v1936, 0.0
    %v2007 = vmax.f32 %v1937, 0.0
    %v2008 = vmax.f32 %v1938, 0.0
    %v2009 = vmax.f32 %v1939, 0.0
    %v2010 = vmax.f32 %v1940, 0.0
    %v2011 = vmax.f32 %v1941, 0.0
    %v2012 = vmax.f32 %v1942, 0.0
    %v2013 = vmax.f32 %v1943, 0.0
    %v2014 = vmax.f32 %v1944, 0.0
    %v2015 = vmax.f32 %v1945, 0.0
    %v2016 = vmax.f32 %v1946, 0.0
    %v2017 = vmax.f32 %v1947, 0.0
    %v2018 = vmax.f32 %v1948, 0.0
    %v2019 = vmax.f32 %v1949, 0.0
    %v2020 = vmax.f32 %v1950, 0.0
    %v2021 = vmax.f32 %v1951, 0.0
    %v2022 = vmax.f32 %v1952, 0.0
    %v2023 = vmax.f32 %v1953, 0.0
    %v2024 = vmax.f32 %v1954, 0.0
    %v2025 = vmax.f32 %v1955, 0.0
    %v2026 = vmax.f32 %v1956, 0.0
    %v2027 = vld [vmem:[%s7] sm:$0xff]
    %v2028 = vld [vmem:[%s7 + $0x8] sm:$0xff]
    %v2029 = vld [vmem:[%s7 + $0x10] sm:$0xff]
    %v2030 = vld [vmem:[%s7 + $0x18] sm:$0xff]
    %v2031 = vld [vmem:[%s7 + $0x20] sm:$0xff]
    %v2032 = vld [vmem:[%s7 + $0x28] sm:$0xff]
    %v2033 = vld [vmem:[%s7 + $0x30] sm:$0xff]
    %v2034 = vld [vmem:[%s7 + $0x38] sm:$0xf]
    %vm2105 = vcmask 1046528
    %v2106 = vrot.slane %v1957, 1
    %v2107 = vrot.slane %v1962, 1
    %v2108 = vsel %vm2105, %v2106, %v2107
    %v2109 = vrot.slane %v1958, 1
    %v2110 = vrot.slane %v1963, 1
    %v2111 = vsel %vm2105, %v2109, %v2110
    %v2112 = vrot.slane %v1959, 1
    %v2113 = vrot.slane %v1964, 1
    %v2114 = vsel %vm2105, %v2112, %v2113
    %v2115 = vrot.slane %v1960, 1
    %v2116 = vrot.slane %v1965, 1
    %v2117 = vsel %vm2105, %v2115, %v2116
    %v2118 = vrot.slane %v1961, 1
    %v2119 = vrot.slane %v1966, 1
    %v2120 = vsel %vm2105, %v2118, %v2119
    %v2121 = vrot.slane %v1967, 1
    %v2122 = vsel %vm2105, %v2107, %v2121
    %v2123 = vrot.slane %v1968, 1
    %v2124 = vsel %vm2105, %v2110, %v2123
    %v2125 = vrot.slane %v1969, 1
    %v2126 = vsel %vm2105, %v2113, %v2125
    %v2127 = vrot.slane %v1970, 1
    %v2128 = vsel %vm2105, %v2116, %v2127
    %v2129 = vrot.slane %v1971, 1
    %v2130 = vsel %vm2105, %v2119, %v2129
    %v2131 = vrot.slane %v1972, 1
    %v2132 = vsel %vm2105, %v2121, %v2131
    %v2133 = vrot.slane %v1973, 1
    %v2134 = vsel %vm2105, %v2123, %v2133
    %v2135 = vrot.slane %v1974, 1
    %v2136 = vsel %vm2105, %v2125, %v2135
    %v2137 = vrot.slane %v1975, 1
    %v2138 = vsel %vm2105, %v2127, %v2137
    %v2139 = vrot.slane %v1976, 1
    %v2140 = vsel %vm2105, %v2129, %v2139
    %v2141 = vrot.slane %v1977, 1
    %v2142 = vsel %vm2105, %v2131, %v2141
    %v2143 = vrot.slane %v1978, 1
    %v2144 = vsel %vm2105, %v2133, %v2143
    %v2145 = vrot.slane %v1979, 1
    %v2146 = vsel %vm2105, %v2135, %v2145
    %v2147 = vrot.slane %v1980, 1
    %v2148 = vsel %vm2105, %v2137, %v2147
    %v2149 = vrot.slane %v1981, 1
    %v2150 = vsel %vm2105, %v2139, %v2149
    %v2151 = vrot.slane %v1982, 1
    %v2152 = vsel %vm2105, %v2141, %v2151
    %v2153 = vrot.slane %v1983, 1
    %v2154 = vsel %vm2105, %v2143, %v2153
    %v2155 = vrot.slane %v1984, 1
    %v2156 = vsel %vm2105, %v2145, %v2155
    %v2157 = vrot.slane %v1985, 1
    %v2158 = vsel %vm2105, %v2147, %v2157
    %v2159 = vrot.slane %v1986, 1
    %v2160 = vsel %vm2105, %v2149, %v2159
    %v2161 = vrot.slane %v1987, 1
    %v2162 = vsel %vm2105, %v2151, %v2161
    %v2163 = vrot.slane %v1988, 1
    %v2164 = vsel %vm2105, %v2153, %v2163
    %v2165 = vrot.slane %v1989, 1
    %v2166 = vsel %vm2105, %v2155, %v2165
    %v2167 = vrot.slane %v1990, 1
    %v2168 = vsel %vm2105, %v2157, %v2167
    %v2169 = vrot.slane %v1991, 1
    %v2170 = vsel %vm2105, %v2159, %v2169
    %v2171 = vrot.slane %v1992, 1
    %v2172 = vsel %vm2105, %v2161, %v2171
    %v2173 = vrot.slane %v1993, 1
    %v2174 = vsel %vm2105, %v2163, %v2173
    %v2175 = vrot.slane %v1994, 1
    %v2176 = vsel %vm2105, %v2165, %v2175
    %v2177 = vrot.slane %v1995, 1
    %v2178 = vsel %vm2105, %v2167, %v2177
    %v2179 = vrot.slane %v1996, 1
    %v2180 = vsel %vm2105, %v2169, %v2179
    %v2181 = vrot.slane %v1997, 1
    %v2182 = vsel %vm2105, %v2171, %v2181
    %v2183 = vrot.slane %v1998, 1
    %v2184 = vsel %vm2105, %v2173, %v2183
    %v2185 = vrot.slane %v1999, 1
    %v2186 = vsel %vm2105, %v2175, %v2185
    %v2187 = vrot.slane %v2000, 1
    %v2188 = vsel %vm2105, %v2177, %v2187
    %v2189 = vrot.slane %v2001, 1
    %v2190 = vsel %vm2105, %v2179, %v2189
    %v2191 = vrot.slane %v2002, 1
    %v2192 = vsel %vm2105, %v2181, %v2191
    %v2193 = vrot.slane %v2003, 1
    %v2194 = vsel %vm2105, %v2183, %v2193
    %v2195 = vrot.slane %v2004, 1
    %v2196 = vsel %vm2105, %v2185, %v2195
    %v2197 = vrot.slane %v2005, 1
    %v2198 = vsel %vm2105, %v2187, %v2197
    %v2199 = vrot.slane %v2006, 1
    %v2200 = vsel %vm2105, %v2189, %v2199
    %v2201 = vrot.slane %v2007, 1
    %v2202 = vsel %vm2105, %v2191, %v2201
    %v2203 = vrot.slane %v2008, 1
    %v2204 = vsel %vm2105, %v2193, %v2203
    %v2205 = vrot.slane %v2009, 1
    %v2206 = vsel %vm2105, %v2195, %v2205
    %v2207 = vrot.slane %v2010, 1
    %v2208 = vsel %vm2105, %v2197, %v2207
    %v2209 = vrot.slane %v2011, 1
    %v2210 = vsel %vm2105, %v2199, %v2209
    %v2211 = vrot.slane %v2012, 1
    %v2212 = vsel %vm2105, %v2201, %v2211
    %v2213 = vrot.slane %v2013, 1
    %v2214 = vsel %vm2105, %v2203, %v2213
    %v2215 = vrot.slane %v2014, 1
    %v2216 = vsel %vm2105, %v2205, %v2215
    %v2217 = vrot.slane %v2015, 1
    %v2218 = vsel %vm2105, %v2207, %v2217
    %v2219 = vrot.slane %v2016, 1
    %v2220 = vsel %vm2105, %v2209, %v2219
    %v2221 = vrot.slane %v2017, 1
    %v2222 = vsel %vm2105, %v2211, %v2221
    %v2223 = vrot.slane %v2018, 1
    %v2224 = vsel %vm2105, %v2213, %v2223
    %v2225 = vrot.slane %v2019, 1
    %v2226 = vsel %vm2105, %v2215, %v2225
    %v2227 = vrot.slane %v2020, 1
    %v2228 = vsel %vm2105, %v2217, %v2227
    %v2229 = vrot.slane %v2021, 1
    %v2230 = vsel %vm2105, %v2219, %v2229
    %v2231 = vrot.slane %v2022, 1
    %v2232 = vsel %vm2105, %v2221, %v2231
    %v2233 = vrot.slane %v2023, 1
    %v2234 = vsel %vm2105, %v2223, %v2233
    %v2235 = vrot.slane %v2024, 1
    %v2236 = vsel %vm2105, %v2225, %v2235
    %v2237 = vrot.slane %v2025, 1
    %v2238 = vsel %vm2105, %v2227, %v2237
    %v2239 = vrot.slane %v2026, 1
    %v2240 = vsel %vm2105, %v2229, %v2239
    %v2311 = vmax.f32 %v1957, %v2108
    %v2312 = vmax.f32 %v1958, %v2111
    %v2313 = vmax.f32 %v1959, %v2114
    %v2314 = vmax.f32 %v1960, %v2117
    %v2315 = vmax.f32 %v1961, %v2120
    %v2316 = vmax.f32 %v1962, %v2122
    %v2317 = vmax.f32 %v1963, %v2124
    %v2318 = vmax.f32 %v1964, %v2126
    %v2319 = vmax.f32 %v1965, %v2128
    %v2320 = vmax.f32 %v1966, %v2130
    %v2321 = vmax.f32 %v1967, %v2132
    %v2322 = vmax.f32 %v1968, %v2134
    %v2323 = vmax.f32 %v1969, %v2136
    %v2324 = vmax.f32 %v1970, %v2138
    %v2325 = vmax.f32 %v1971, %v2140
    %v2326 = vmax.f32 %v1972, %v2142
    %v2327 = vmax.f32 %v1973, %v2144
    %v2328 = vmax.f32 %v1974, %v2146
    %v2329 = vmax.f32 %v1975, %v2148
    %v2330 = vmax.f32 %v1976, %v2150
    %v2331 = vmax.f32 %v1977, %v2152
    %v2332 = vmax.f32 %v1978, %v2154
    %v2333 = vmax.f32 %v1979, %v2156
    %v2334 = vmax.f32 %v1980, %v2158
    %v2335 = vmax.f32 %v1981, %v2160
    %v2336 = vmax.f32 %v1982, %v2162
    %v2337 = vmax.f32 %v1983, %v2164
    %v2338 = vmax.f32 %v1984, %v2166
    %v2339 = vmax.f32 %v1985, %v2168
    %v2340 = vmax.f32 %v1986, %v2170
    %v2341 = vmax.f32 %v1987, %v2172
    %v2342 = vmax.f32 %v1988, %v2174
    %v2343 = vmax.f32 %v1989, %v2176
    %v2344 = vmax.f32 %v1990, %v2178
    %v2345 = vmax.f32 %v1991, %v2180
    %v2346 = vmax.f32 %v1992, %v2182
    %v2347 = vmax.f32 %v1993, %v2184
    %v2348 = vmax.f32 %v1994, %v2186
    %v2349 = vmax.f32 %v1995, %v2188
    %v2350 = vmax.f32 %v1996, %v2190
    %v2351 = vmax.f32 %v1997, %v2192
    %v2352 = vmax.f32 %v1998, %v2194
    %v2353 = vmax.f32 %v1999, %v2196
    %v2354 = vmax.f32 %v2000, %v2198
    %v2355 = vmax.f32 %v2001, %v2200
    %v2356 = vmax.f32 %v2002, %v2202
    %v2357 = vmax.f32 %v2003, %v2204
    %v2358 = vmax.f32 %v2004, %v2206
    %v2359 = vmax.f32 %v2005, %v2208
    %v2360 = vmax.f32 %v2006, %v2210
    %v2361 = vmax.f32 %v2007, %v2212
    %v2362 = vmax.f32 %v2008, %v2214
    %v2363 = vmax.f32 %v2009, %v2216
    %v2364 = vmax.f32 %v2010, %v2218
    %v2365 = vmax.f32 %v2011, %v2220
    %v2366 = vmax.f32 %v2012, %v2222
    %v2367 = vmax.f32 %v2013, %v2224
    %v2368 = vmax.f32 %v2014, %v2226
    %v2369 = vmax.f32 %v2015, %v2228
    %v2370 = vmax.f32 %v2016, %v2230
    %v2371 = vmax.f32 %v2017, %v2232
    %v2372 = vmax.f32 %v2018, %v2234
    %v2373 = vmax.f32 %v2019, %v2236
    %v2374 = vmax.f32 %v2020, %v2238
    %v2375 = vmax.f32 %v2021, %v2240
    %v2376 = vmax.f32 %v2022, %v2231
    %v2377 = vmax.f32 %v2023, %v2233
    %v2378 = vmax.f32 %v2024, %v2235
    %v2379 = vmax.f32 %v2025, %v2237
    %v2380 = vmax.f32 %v2026, %v2239
    %v2381 = vrot.slane %v1957, 2
    %v2382 = vrot.slane %v1962, 2
    %v2383 = vsel %vm232, %v2381, %v2382
    %v2384 = vrot.slane %v1958, 2
    %v2385 = vrot.slane %v1963, 2
    %v2386 = vsel %vm232, %v2384, %v2385
    %v2387 = vrot.slane %v1959, 2
    %v2388 = vrot.slane %v1964, 2
    %v2389 = vsel %vm232, %v2387, %v2388
    %v2390 = vrot.slane %v1960, 2
    %v2391 = vrot.slane %v1965, 2
    %v2392 = vsel %vm232, %v2390, %v2391
    %v2393 = vrot.slane %v1961, 2
    %v2394 = vrot.slane %v1966, 2
    %v2395 = vsel %vm232, %v2393, %v2394
    %v2396 = vrot.slane %v1967, 2
    %v2397 = vsel %vm232, %v2382, %v2396
    %v2398 = vrot.slane %v1968, 2
    %v2399 = vsel %vm232, %v2385, %v2398
    %v2400 = vrot.slane %v1969, 2
    %v2401 = vsel %vm232, %v2388, %v2400
    %v2402 = vrot.slane %v1970, 2
    %v2403 = vsel %vm232, %v2391, %v2402
    %v2404 = vrot.slane %v1971, 2
    %v2405 = vsel %vm232, %v2394, %v2404
    %v2406 = vrot.slane %v1972, 2
    %v2407 = vsel %vm232, %v2396, %v2406
    %v2408 = vrot.slane %v1973, 2
    %v2409 = vsel %vm232, %v2398, %v2408
    %v2410 = vrot.slane %v1974, 2
    %v2411 = vsel %vm232, %v2400, %v2410
    %v2412 = vrot.slane %v1975, 2
    %v2413 = vsel %vm232, %v2402, %v2412
    %v2414 = vrot.slane %v1976, 2
    %v2415 = vsel %vm232, %v2404, %v2414
    %v2416 = vrot.slane %v1977, 2
    %v2417 = vsel %vm232, %v2406, %v2416
    %v2418 = vrot.slane %v1978, 2
    %v2419 = vsel %vm232, %v2408, %v2418
    %v2420 = vrot.slane %v1979, 2
    %v2421 = vsel %vm232, %v2410, %v2420
    %v2422 = vrot.slane %v1980, 2
    %v2423 = vsel %vm232, %v2412, %v2422
    %v2424 = vrot.slane %v1981, 2
    %v2425 = vsel %vm232, %v2414, %v2424
    %v2426 = vrot.slane %v1982, 2
    %v2427 = vsel %vm232, %v2416, %v2426
    %v2428 = vrot.slane %v1983, 2
    %v2429 = vsel %vm232, %v2418, %v2428
    %v2430 = vrot.slane %v1984, 2
    %v2431 = vsel %vm232, %v2420, %v2430
    %v2432 = vrot.slane %v1985, 2
    %v2433 = vsel %vm232, %v2422, %v2432
    %v2434 = vrot.slane %v1986, 2
    %v2435 = vsel %vm232, %v2424, %v2434
    %v2436 = vrot.slane %v1987, 2
    %v2437 = vsel %vm232, %v2426, %v2436
    %v2438 = vrot.slane %v1988, 2
    %v2439 = vsel %vm232, %v2428, %v2438
    %v2440 = vrot.slane %v1989, 2
    %v2441 = vsel %vm232, %v2430, %v2440
    %v2442 = vrot.slane %v1990, 2
    %v2443 = vsel %vm232, %v2432, %v2442
    %v2444 = vrot.slane %v1991, 2
    %v2445 = vsel %vm232, %v2434, %v2444
    %v2446 = vrot.slane %v1992, 2
    %v2447 = vsel %vm232, %v2436, %v2446
    %v2448 = vrot.slane %v1993, 2
    %v2449 = vsel %vm232, %v2438, %v2448
    %v2450 = vrot.slane %v1994, 2
    %v2451 = vsel %vm232, %v2440, %v2450
    %v2452 = vrot.slane %v1995, 2
    %v2453 = vsel %vm232, %v2442, %v2452
    %v2454 = vrot.slane %v1996, 2
    %v2455 = vsel %vm232, %v2444, %v2454
    %v2456 = vrot.slane %v1997, 2
    %v2457 = vsel %vm232, %v2446, %v2456
    %v2458 = vrot.slane %v1998, 2
    %v2459 = vsel %vm232, %v2448, %v2458
    %v2460 = vrot.slane %v1999, 2
    %v2461 = vsel %vm232, %v2450, %v2460
    %v2462 = vrot.slane %v2000, 2
    %v2463 = vsel %vm232, %v2452, %v2462
    %v2464 = vrot.slane %v2001, 2
    %v2465 = vsel %vm232, %v2454, %v2464
    %v2466 = vrot.slane %v2002, 2
    %v2467 = vsel %vm232, %v2456, %v2466
    %v2468 = vrot.slane %v2003, 2
    %v2469 = vsel %vm232, %v2458, %v2468
    %v2470 = vrot.slane %v2004, 2
    %v2471 = vsel %vm232, %v2460, %v2470
    %v2472 = vrot.slane %v2005, 2
    %v2473 = vsel %vm232, %v2462, %v2472
    %v2474 = vrot.slane %v2006, 2
    %v2475 = vsel %vm232, %v2464, %v2474
    %v2476 = vrot.slane %v2007, 2
    %v2477 = vsel %vm232, %v2466, %v2476
    %v2478 = vrot.slane %v2008, 2
    %v2479 = vsel %vm232, %v2468, %v2478
    %v2480 = vrot.slane %v2009, 2
    %v2481 = vsel %vm232, %v2470, %v2480
    %v2482 = vrot.slane %v2010, 2
    %v2483 = vsel %vm232, %v2472, %v2482
    %v2484 = vrot.slane %v2011, 2
    %v2485 = vsel %vm232, %v2474, %v2484
    %v2486 = vrot.slane %v2012, 2
    %v2487 = vsel %vm232, %v2476, %v2486
    %v2488 = vrot.slane %v2013, 2
    %v2489 = vsel %vm232, %v2478, %v2488
    %v2490 = vrot.slane %v2014, 2
    %v2491 = vsel %vm232, %v2480, %v2490
    %v2492 = vrot.slane %v2015, 2
    %v2493 = vsel %vm232, %v2482, %v2492
    %v2494 = vrot.slane %v2016, 2
    %v2495 = vsel %vm232, %v2484, %v2494
    %v2496 = vrot.slane %v2017, 2
    %v2497 = vsel %vm232, %v2486, %v2496
    %v2498 = vrot.slane %v2018, 2
    %v2499 = vsel %vm232, %v2488, %v2498
    %v2500 = vrot.slane %v2019, 2
    %v2501 = vsel %vm232, %v2490, %v2500
    %v2502 = vrot.slane %v2020, 2
    %v2503 = vsel %vm232, %v2492, %v2502
    %v2504 = vrot.slane %v2021, 2
    %v2505 = vsel %vm232, %v2494, %v2504
    %v2506 = vrot.slane %v2022, 2
    %v2507 = vsel %vm232, %v2496, %v2506
    %v2508 = vrot.slane %v2023, 2
    %v2509 = vsel %vm232, %v2498, %v2508
    %v2510 = vrot.slane %v2024, 2
    %v2511 = vsel %vm232, %v2500, %v2510
    %v2512 = vrot.slane %v2025, 2
    %v2513 = vsel %vm232, %v2502, %v2512
    %v2514 = vrot.slane %v2026, 2
    %v2515 = vsel %vm232, %v2504, %v2514
    %v2586 = vmax.f32 %v2311, %v2383
    %v2587 = vmax.f32 %v2312, %v2386
    %v2588 = vmax.f32 %v2313, %v2389
    %v2589 = vmax.f32 %v2314, %v2392
    %v2590 = vmax.f32 %v2315, %v2395
    %v2591 = vmax.f32 %v2316, %v2397
    %v2592 = vmax.f32 %v2317, %v2399
    %v2593 = vmax.f32 %v2318, %v2401
    %v2594 = vmax.f32 %v2319, %v2403
    %v2595 = vmax.f32 %v2320, %v2405
    %v2596 = vmax.f32 %v2321, %v2407
    %v2597 = vmax.f32 %v2322, %v2409
    %v2598 = vmax.f32 %v2323, %v2411
    %v2599 = vmax.f32 %v2324, %v2413
    %v2600 = vmax.f32 %v2325, %v2415
    %v2601 = vmax.f32 %v2326, %v2417
    %v2602 = vmax.f32 %v2327, %v2419
    %v2603 = vmax.f32 %v2328, %v2421
    %v2604 = vmax.f32 %v2329, %v2423
    %v2605 = vmax.f32 %v2330, %v2425
    %v2606 = vmax.f32 %v2331, %v2427
    %v2607 = vmax.f32 %v2332, %v2429
    %v2608 = vmax.f32 %v2333, %v2431
    %v2609 = vmax.f32 %v2334, %v2433
    %v2610 = vmax.f32 %v2335, %v2435
    %v2611 = vmax.f32 %v2336, %v2437
    %v2612 = vmax.f32 %v2337, %v2439
    %v2613 = vmax.f32 %v2338, %v2441
    %v2614 = vmax.f32 %v2339, %v2443
    %v2615 = vmax.f32 %v2340, %v2445
    %v2616 = vmax.f32 %v2341, %v2447
    %v2617 = vmax.f32 %v2342, %v2449
    %v2618 = vmax.f32 %v2343, %v2451
    %v2619 = vmax.f32 %v2344, %v2453
    %v2620 = vmax.f32 %v2345, %v2455
    %v2621 = vmax.f32 %v2346, %v2457
    %v2622 = vmax.f32 %v2347, %v2459
    %v2623 = vmax.f32 %v2348, %v2461
    %v2624 = vmax.f32 %v2349, %v2463
    %v2625 = vmax.f32 %v2350, %v2465
    %v2626 = vmax.f32 %v2351, %v2467
    %v2627 = vmax.f32 %v2352, %v2469
    %v2628 = vmax.f32 %v2353, %v2471
    %v2629 = vmax.f32 %v2354, %v2473
    %v2630 = vmax.f32 %v2355, %v2475
    %v2631 = vmax.f32 %v2356, %v2477
    %v2632 = vmax.f32 %v2357, %v2479
    %v2633 = vmax.f32 %v2358, %v2481
    %v2634 = vmax.f32 %v2359, %v2483
    %v2635 = vmax.f32 %v2360, %v2485
    %v2636 = vmax.f32 %v2361, %v2487
    %v2637 = vmax.f32 %v2362, %v2489
    %v2638 = vmax.f32 %v2363, %v2491
    %v2639 = vmax.f32 %v2364, %v2493
    %v2640 = vmax.f32 %v2365, %v2495
    %v2641 = vmax.f32 %v2366, %v2497
    %v2642 = vmax.f32 %v2367, %v2499
    %v2643 = vmax.f32 %v2368, %v2501
    %v2644 = vmax.f32 %v2369, %v2503
    %v2645 = vmax.f32 %v2370, %v2505
    %v2646 = vmax.f32 %v2371, %v2507
    %v2647 = vmax.f32 %v2372, %v2509
    %v2648 = vmax.f32 %v2373, %v2511
    %v2649 = vmax.f32 %v2374, %v2513
    %v2650 = vmax.f32 %v2375, %v2515
    %v2651 = vmax.f32 %v2376, %v2506
    %v2652 = vmax.f32 %v2377, %v2508
    %v2653 = vmax.f32 %v2378, %v2510
    %v2654 = vmax.f32 %v2379, %v2512
    %v2655 = vmax.f32 %v2380, %v2514
    %vm2656 = vcmask 900096
    %v2658 = vsel %vm2656, %v2027, 0
    %v2661 = vsel %vm2656, %v2028, 0
    %v2664 = vsel %vm2656, %v2029, 0
    %v2667 = vsel %vm2656, %v2030, 0
    %v2670 = vsel %vm2656, %v2031, 0
    %v2673 = vsel %vm2656, %v2032, 0
    %v2676 = vsel %vm2656, %v2033, 0
    %v2679 = vsel %vm2656, %v2034, 0
    %v2682 = vsel %vm232, %v2651, 0
    %v2685 = vsel %vm232, %v2652, 0
    %v2688 = vsel %vm232, %v2653, 0
    %v2691 = vsel %vm232, %v2654, 0
    %v2694 = vsel %vm232, %v2655, 0
    %2696 = vmatprep.subr.mxu0 %v2587
    %2697 = vmatpush1.msra.mxu0 %v2586
    %2698 = vmatprep.subr.mxu0 %v2592
    %2699 = vmatpush1.msra.mxu0 %v2591
    %2700 = vmatprep.subr.mxu0 %v2597
    %2701 = vmatpush1.msra.mxu0 %v2596
    %2702 = vmatprep.subr.mxu0 %v2602
    %2703 = vmatpush1.msra.mxu0 %v2601
    %2704 = vmatprep.subr.mxu0 %v2607
    %2705 = vmatpush1.msra.mxu0 %v2606
    %2706 = vmatprep.subr.mxu0 %v2612
    %2707 = vmatpush1.msra.mxu0 %v2611
    %2708 = vmatprep.subr.mxu0 %v2617
    %2709 = vmatpush1.msra.mxu0 %v2616
    %2710 = vmatprep.subr.mxu0 %v2622
    %2711 = vmatpush1.msra.mxu0 %v2621
    %2712 = vmatprep.subr.mxu0 %v2627
    %2713 = vmatpush1.msra.mxu0 %v2626
    %2714 = vmatprep.subr.mxu0 %v2632
    %2715 = vmatpush1.msra.mxu0 %v2631
    %2716 = vmatprep.subr.mxu0 %v2637
    %2717 = vmatpush1.msra.mxu0 %v2636
    %2718 = vmatprep.subr.mxu0 %v2642
    %2719 = vmatpush1.msra.mxu0 %v2641
    %2720 = vmatprep.subr.mxu0 %v2647
    %2721 = vmatpush1.msra.mxu0 %v2646
    %2722 = vmatprep.subr.mxu0 %v2685
    %2723 = vmatpush1.msra.mxu0 %v2682
    %2724 = vmatprep.subr.mxu0 0.0
    %2725 = vmatpush1.msra.mxu0 0.0
    %2726 = vmatprep.subr.mxu0 0.0
    %2727 = vmatpush1.msra.mxu0 0.0
    %2728 = vmatprep.subr.mxu0 0.0
    %2729 = vmatpush1.msra.mxu0 0.0
    %2730 = vmatprep.subr.mxu0 0.0
    %2731 = vmatpush1.msra.mxu0 0.0
    %2732 = vmatprep.subr.mxu0 0.0
    %2733 = vmatpush1.msra.mxu0 0.0
    %2734 = vmatprep.subr.mxu0 0.0
    %2735 = vmatpush1.msra.mxu0 0.0
    %2736 = vmatprep.subr.mxu0 0.0
    %2737 = vmatpush1.msra.mxu0 0.0
    %2738 = vmatprep.subr.mxu0 0.0
    %2739 = vmatpush1.msra.mxu0 0.0
    %2740 = vmatprep.subr.mxu0 0.0
    %2741 = vmatpush1.msra.mxu0 0.0
    %2742 = vmatprep.subr.mxu0 0.0
    %2743 = vmatpush1.msra.mxu0 0.0
    %2744 = vmatprep.subr.mxu0 0.0
    %2745 = vmatpush1.msra.mxu0 0.0
    %2746 = vmatprep.subr.mxu0 0.0
    %2747 = vmatpush1.msra.mxu0 0.0
    %2748 = vmatprep.subr.mxu0 0.0
    %2749 = vmatpush1.msra.mxu0 0.0
    %2750 = vmatprep.subr.mxu0 0.0
    %2751 = vmatpush1.msra.mxu0 0.0
    %2752 = vmatprep.subr.mxu0 0.0
    %2753 = vmatpush1.msra.mxu0 0.0
    %2754 = vmatprep.subr.mxu0 0.0
    %2755 = vmatpush1.msra.mxu0 0.0
    %2756 = vmatprep.subr.mxu0 0.0
    %2757 = vmatpush1.msra.mxu0 0.0
    %2758 = vmatprep.subr.mxu0 0.0
    %2759 = vmatpush1.msra.mxu0 0.0
    %2760 = vmatprep.mubr.f32.mxu0 0.0
    %2761 = vmatmul.mubr.f32.gmra.mrb[0].mxu0 %v2658
    %v2762 = vpop.f32.mrb[0].mxu0
    %v2763 = vadd.f32 0.0, %v2762
    %v2764 = vpop.f32.mrb[0].mxu0
    %v2765 = vadd.f32 0.0, %v2764
    %2766 = vmatprep.mubr.f32.mxu0 0.0
    %2767 = vmatmul.mubr.f32.gmra.mrb[0].mxu0 %v2661
    %v2768 = vpop.f32.mrb[0].mxu0
    %v2769 = vadd.f32 0.0, %v2768
    %v2770 = vpop.f32.mrb[0].mxu0
    %v2771 = vadd.f32 0.0, %v2770
    %2772 = vmatprep.mubr.f32.mxu0 0.0
    %2773 = vmatmul.mubr.f32.gmra.mrb[0].mxu0 %v2664
    %v2774 = vpop.f32.mrb[0].mxu0
    %v2775 = vadd.f32 0.0, %v2774
    %v2776 = vpop.f32.mrb[0].mxu0
    %v2777 = vadd.f32 0.0, %v2776
    %2778 = vmatprep.mubr.f32.mxu0 0.0
    %2779 = vmatmul.mubr.f32.gmra.mrb[0].mxu0 %v2667
    %v2780 = vpop.f32.mrb[0].mxu0
    %v2781 = vadd.f32 0.0, %v2780
    %v2782 = vpop.f32.mrb[0].mxu0
    %v2783 = vadd.f32 0.0, %v2782
    %2784 = vmatprep.mubr.f32.mxu0 0.0
    %2785 = vmatmul.mubr.f32.gmra.mrb[0].mxu0 %v2670
    %v2786 = vpop.f32.mrb[0].mxu0
    %v2787 = vadd.f32 0.0, %v2786
    %v2788 = vpop.f32.mrb[0].mxu0
    %v2789 = vadd.f32 0.0, %v2788
    %2790 = vmatprep.mubr.f32.mxu0 0.0
    %2791 = vmatmul.mubr.f32.gmra.mrb[0].mxu0 %v2673
    %v2792 = vpop.f32.mrb[0].mxu0
    %v2793 = vadd.f32 0.0, %v2792
    %v2794 = vpop.f32.mrb[0].mxu0
    %v2795 = vadd.f32 0.0, %v2794
    %2796 = vmatprep.mubr.f32.mxu0 0.0
    %2797 = vmatmul.mubr.f32.gmra.mrb[0].mxu0 %v2676
    %v2798 = vpop.f32.mrb[0].mxu0
    %v2799 = vadd.f32 0.0, %v2798
    %v2800 = vpop.f32.mrb[0].mxu0
    %v2801 = vadd.f32 0.0, %v2800
    %2802 = vmatprep.mubr.f32.mxu0 0.0
    %2803 = vmatmul.mubr.f32.gmra.mrb[0].mxu0 %v2679
    %v2804 = vpop.f32.mrb[0].mxu0
    %v2805 = vadd.f32 0.0, %v2804
    %v2806 = vpop.f32.mrb[0].mxu0
    %v2807 = vadd.f32 0.0, %v2806
    %2808 = vdwg.mxu0
    %2809 = vmatprep.subr.mxu0 %v2589
    %2810 = vmatpush1.msra.mxu0 %v2588
    %2811 = vmatprep.subr.mxu0 %v2594
    %2812 = vmatpush1.msra.mxu0 %v2593
    %2813 = vmatprep.subr.mxu0 %v2599
    %2814 = vmatpush1.msra.mxu0 %v2598
    %2815 = vmatprep.subr.mxu0 %v2604
    %2816 = vmatpush1.msra.mxu0 %v2603
    %2817 = vmatprep.subr.mxu0 %v2609
    %2818 = vmatpush1.msra.mxu0 %v2608
    %2819 = vmatprep.subr.mxu0 %v2614
    %2820 = vmatpush1.msra.mxu0 %v2613
    %2821 = vmatprep.subr.mxu0 %v2619
    %2822 = vmatpush1.msra.mxu0 %v2618
    %2823 = vmatprep.subr.mxu0 %v2624
    %2824 = vmatpush1.msra.mxu0 %v2623
    %2825 = vmatprep.subr.mxu0 %v2629
    %2826 = vmatpush1.msra.mxu0 %v2628
    %2827 = vmatprep.subr.mxu0 %v2634
    %2828 = vmatpush1.msra.mxu0 %v2633
    %2829 = vmatprep.subr.mxu0 %v2639
    %2830 = vmatpush1.msra.mxu0 %v2638
    %2831 = vmatprep.subr.mxu0 %v2644
    %2832 = vmatpush1.msra.mxu0 %v2643
    %2833 = vmatprep.subr.mxu0 %v2649
    %2834 = vmatpush1.msra.mxu0 %v2648
    %2835 = vmatprep.subr.mxu0 %v2691
    %2836 = vmatpush1.msra.mxu0 %v2688
    %2837 = vmatprep.subr.mxu0 0.0
    %2838 = vmatpush1.msra.mxu0 0.0
    %2839 = vmatprep.subr.mxu0 0.0
    %2840 = vmatpush1.msra.mxu0 0.0
    %2841 = vmatprep.subr.mxu0 0.0
    %2842 = vmatpush1.msra.mxu0 0.0
    %2843 = vmatprep.subr.mxu0 0.0
    %2844 = vmatpush1.msra.mxu0 0.0
    %2845 = vmatprep.subr.mxu0 0.0
    %2846 = vmatpush1.msra.mxu0 0.0
    %2847 = vmatprep.subr.mxu0 0.0
    %2848 = vmatpush1.msra.mxu0 0.0
    %2849 = vmatprep.subr.mxu0 0.0
    %2850 = vmatpush1.msra.mxu0 0.0
    %2851 = vmatprep.subr.mxu0 0.0
    %2852 = vmatpush1.msra.mxu0 0.0
    %2853 = vmatprep.subr.mxu0 0.0
    %2854 = vmatpush1.msra.mxu0 0.0
    %2855 = vmatprep.subr.mxu0 0.0
    %2856 = vmatpush1.msra.mxu0 0.0
    %2857 = vmatprep.subr.mxu0 0.0
    %2858 = vmatpush1.msra.mxu0 0.0
    %2859 = vmatprep.subr.mxu0 0.0
    %2860 = vmatpush1.msra.mxu0 0.0
    %2861 = vmatprep.subr.mxu0 0.0
    %2862 = vmatpush1.msra.mxu0 0.0
    %2863 = vmatprep.subr.mxu0 0.0
    %2864 = vmatpush1.msra.mxu0 0.0
    %2865 = vmatprep.subr.mxu0 0.0
    %2866 = vmatpush1.msra.mxu0 0.0
    %2867 = vmatprep.subr.mxu0 0.0
    %2868 = vmatpush1.msra.mxu0 0.0
    %2869 = vmatprep.subr.mxu0 0.0
    %2870 = vmatpush1.msra.mxu0 0.0
    %2871 = vmatprep.subr.mxu0 0.0
    %2872 = vmatpush1.msra.mxu0 0.0
    %2873 = vmatprep.mubr.f32.mxu0 0.0
    %2874 = vmatmul.mubr.f32.gmra.mrb[0].mxu0 %v2658
    %v2875 = vpop.f32.mrb[0].mxu0
    %v2876 = vadd.f32 0.0, %v2875
    %v2877 = vpop.f32.mrb[0].mxu0
    %v2878 = vadd.f32 0.0, %v2877
    %2879 = vmatprep.mubr.f32.mxu0 0.0
    %2880 = vmatmul.mubr.f32.gmra.mrb[0].mxu0 %v2661
    %v2881 = vpop.f32.mrb[0].mxu0
    %v2882 = vadd.f32 0.0, %v2881
    %v2883 = vpop.f32.mrb[0].mxu0
    %v2884 = vadd.f32 0.0, %v2883
    %2885 = vmatprep.mubr.f32.mxu0 0.0
    %2886 = vmatmul.mubr.f32.gmra.mrb[0].mxu0 %v2664
    %v2887 = vpop.f32.mrb[0].mxu0
    %v2888 = vadd.f32 0.0, %v2887
    %v2889 = vpop.f32.mrb[0].mxu0
    %v2890 = vadd.f32 0.0, %v2889
    %2891 = vmatprep.mubr.f32.mxu0 0.0
    %2892 = vmatmul.mubr.f32.gmra.mrb[0].mxu0 %v2667
    %v2893 = vpop.f32.mrb[0].mxu0
    %v2894 = vadd.f32 0.0, %v2893
    %v2895 = vpop.f32.mrb[0].mxu0
    %v2896 = vadd.f32 0.0, %v2895
    %2897 = vmatprep.mubr.f32.mxu0 0.0
    %2898 = vmatmul.mubr.f32.gmra.mrb[0].mxu0 %v2670
    %v2899 = vpop.f32.mrb[0].mxu0
    %v2900 = vadd.f32 0.0, %v2899
    %v2901 = vpop.f32.mrb[0].mxu0
    %v2902 = vadd.f32 0.0, %v2901
    %2903 = vmatprep.mubr.f32.mxu0 0.0
    %2904 = vmatmul.mubr.f32.gmra.mrb[0].mxu0 %v2673
    %v2905 = vpop.f32.mrb[0].mxu0
    %v2906 = vadd.f32 0.0, %v2905
    %v2907 = vpop.f32.mrb[0].mxu0
    %v2908 = vadd.f32 0.0, %v2907
    %2909 = vmatprep.mubr.f32.mxu0 0.0
    %2910 = vmatmul.mubr.f32.gmra.mrb[0].mxu0 %v2676
    %v2911 = vpop.f32.mrb[0].mxu0
    %v2912 = vadd.f32 0.0, %v2911
    %v2913 = vpop.f32.mrb[0].mxu0
    %v2914 = vadd.f32 0.0, %v2913
    %2915 = vmatprep.mubr.f32.mxu0 0.0
    %2916 = vmatmul.mubr.f32.gmra.mrb[0].mxu0 %v2679
    %v2917 = vpop.f32.mrb[0].mxu0
    %v2918 = vadd.f32 0.0, %v2917
    %v2919 = vpop.f32.mrb[0].mxu0
    %v2920 = vadd.f32 0.0, %v2919
    %2921 = vdwg.mxu0
    %2922 = vmatprep.subr.mxu0 0.0
    %2923 = vmatpush1.msra.mxu0 %v2590
    %2924 = vmatprep.subr.mxu0 0.0
    %2925 = vmatpush1.msra.mxu0 %v2595
    %2926 = vmatprep.subr.mxu0 0.0
    %2927 = vmatpush1.msra.mxu0 %v2600
    %2928 = vmatprep.subr.mxu0 0.0
    %2929 = vmatpush1.msra.mxu0 %v2605
    %2930 = vmatprep.subr.mxu0 0.0
    %2931 = vmatpush1.msra.mxu0 %v2610
    %2932 = vmatprep.subr.mxu0 0.0
    %2933 = vmatpush1.msra.mxu0 %v2615
    %2934 = vmatprep.subr.mxu0 0.0
    %2935 = vmatpush1.msra.mxu0 %v2620
    %2936 = vmatprep.subr.mxu0 0.0
    %2937 = vmatpush1.msra.mxu0 %v2625
    %2938 = vmatprep.subr.mxu0 0.0
    %2939 = vmatpush1.msra.mxu0 %v2630
    %2940 = vmatprep.subr.mxu0 0.0
    %2941 = vmatpush1.msra.mxu0 %v2635
    %2942 = vmatprep.subr.mxu0 0.0
    %2943 = vmatpush1.msra.mxu0 %v2640
    %2944 = vmatprep.subr.mxu0 0.0
    %2945 = vmatpush1.msra.mxu0 %v2645
    %2946 = vmatprep.subr.mxu0 0.0
    %2947 = vmatpush1.msra.mxu0 %v2650
    %2948 = vmatprep.subr.mxu0 0.0
    %2949 = vmatpush1.msra.mxu0 %v2694
    %2950 = vmatprep.subr.mxu0 0.0
    %2951 = vmatpush1.msra.mxu0 0.0
    %2952 = vmatprep.subr.mxu0 0.0
    %2953 = vmatpush1.msra.mxu0 0.0
    %2954 = vmatprep.subr.mxu0 0.0
    %2955 = vmatpush1.msra.mxu0 0.0
    %2956 = vmatprep.subr.mxu0 0.0
    %2957 = vmatpush1.msra.mxu0 0.0
    %2958 = vmatprep.subr.mxu0 0.0
    %2959 = vmatpush1.msra.mxu0 0.0
    %2960 = vmatprep.subr.mxu0 0.0
    %2961 = vmatpush1.msra.mxu0 0.0
    %2962 = vmatprep.subr.mxu0 0.0
    %2963 = vmatpush1.msra.mxu0 0.0
    %2964 = vmatprep.subr.mxu0 0.0
    %2965 = vmatpush1.msra.mxu0 0.0
    %2966 = vmatprep.subr.mxu0 0.0
    %2967 = vmatpush1.msra.mxu0 0.0
    %2968 = vmatprep.subr.mxu0 0.0
    %2969 = vmatpush1.msra.mxu0 0.0
    %2970 = vmatprep.subr.mxu0 0.0
    %2971 = vmatpush1.msra.mxu0 0.0
    %2972 = vmatprep.subr.mxu0 0.0
    %2973 = vmatpush1.msra.mxu0 0.0
    %2974 = vmatprep.subr.mxu0 0.0
    %2975 = vmatpush1.msra.mxu0 0.0
    %2976 = vmatprep.subr.mxu0 0.0
    %2977 = vmatpush1.msra.mxu0 0.0
    %2978 = vmatprep.subr.mxu0 0.0
    %2979 = vmatpush1.msra.mxu0 0.0
    %2980 = vmatprep.subr.mxu0 0.0
    %2981 = vmatpush1.msra.mxu0 0.0
    %2982 = vmatprep.subr.mxu0 0.0
    %2983 = vmatpush1.msra.mxu0 0.0
    %2984 = vmatprep.subr.mxu0 0.0
    %2985 = vmatpush1.msra.mxu0 0.0
    %2986 = vmatprep.mubr.f32.mxu0 0.0
    %2987 = vmatmul.mubr.f32.gmra.mrb[0].mxu0 %v2658
    %v2988 = vpop.f32.mrb[0].mxu0
    %v2989 = vadd.f32 0.0, %v2988
    %v2990 = vpop.f32.mrb[0].mxu0
    %2991 = vmatprep.mubr.f32.mxu0 0.0
    %2992 = vmatmul.mubr.f32.gmra.mrb[0].mxu0 %v2661
    %v2993 = vpop.f32.mrb[0].mxu0
    %v2994 = vadd.f32 0.0, %v2993
    %v2995 = vpop.f32.mrb[0].mxu0
    %2996 = vmatprep.mubr.f32.mxu0 0.0
    %2997 = vmatmul.mubr.f32.gmra.mrb[0].mxu0 %v2664
    %v2998 = vpop.f32.mrb[0].mxu0
    %v2999 = vadd.f32 0.0, %v2998
    %v3000 = vpop.f32.mrb[0].mxu0
    %3001 = vmatprep.mubr.f32.mxu0 0.0
    %3002 = vmatmul.mubr.f32.gmra.mrb[0].mxu0 %v2667
    %v3003 = vpop.f32.mrb[0].mxu0
    %v3004 = vadd.f32 0.0, %v3003
    %v3005 = vpop.f32.mrb[0].mxu0
    %3006 = vmatprep.mubr.f32.mxu0 0.0
    %3007 = vmatmul.mubr.f32.gmra.mrb[0].mxu0 %v2670
    %v3008 = vpop.f32.mrb[0].mxu0
    %v3009 = vadd.f32 0.0, %v3008
    %v3010 = vpop.f32.mrb[0].mxu0
    %3011 = vmatprep.mubr.f32.mxu0 0.0
    %3012 = vmatmul.mubr.f32.gmra.mrb[0].mxu0 %v2673
    %v3013 = vpop.f32.mrb[0].mxu0
    %v3014 = vadd.f32 0.0, %v3013
    %v3015 = vpop.f32.mrb[0].mxu0
    %3016 = vmatprep.mubr.f32.mxu0 0.0
    %3017 = vmatmul.mubr.f32.gmra.mrb[0].mxu0 %v2676
    %v3018 = vpop.f32.mrb[0].mxu0
    %v3019 = vadd.f32 0.0, %v3018
    %v3020 = vpop.f32.mrb[0].mxu0
    %3021 = vmatprep.mubr.f32.mxu0 0.0
    %3022 = vmatmul.mubr.f32.gmra.mrb[0].mxu0 %v2679
    %v3023 = vpop.f32.mrb[0].mxu0
    %v3024 = vadd.f32 0.0, %v3023
    %v3025 = vpop.f32.mrb[0].mxu0
    %3026 = vdwg.mxu0
    %3067 = vrot.lane.b32.xlu0 %v2763, 127
    %v3068 = vpop.permute.xlu0 %3067
    %3069 = vrot.lane.b32.xlu0 %v2765, 127
    %v3070 = vpop.permute.xlu0 %3069
    %3071 = vrot.lane.b32.xlu0 %v2876, 127
    %v3072 = vpop.permute.xlu0 %3071
    %3073 = vrot.lane.b32.xlu0 %v2878, 127
    %v3074 = vpop.permute.xlu0 %3073
    %3075 = vrot.lane.b32.xlu0 %v2989, 127
    %v3076 = vpop.permute.xlu0 %3075
    %3077 = vrot.lane.b32.xlu0 %v2769, 127
    %v3078 = vpop.permute.xlu0 %3077
    %3079 = vrot.lane.b32.xlu0 %v2771, 127
    %v3080 = vpop.permute.xlu0 %3079
    %3081 = vrot.lane.b32.xlu0 %v2882, 127
    %v3082 = vpop.permute.xlu0 %3081
    %3083 = vrot.lane.b32.xlu0 %v2884, 127
    %v3084 = vpop.permute.xlu0 %3083
    %3085 = vrot.lane.b32.xlu0 %v2994, 127
    %v3086 = vpop.permute.xlu0 %3085
    %3087 = vrot.lane.b32.xlu0 %v2775, 127
    %v3088 = vpop.permute.xlu0 %3087
    %3089 = vrot.lane.b32.xlu0 %v2777, 127
    %v3090 = vpop.permute.xlu0 %3089
    %3091 = vrot.lane.b32.xlu0 %v2888, 127
    %v3092 = vpop.permute.xlu0 %3091
    %3093 = vrot.lane.b32.xlu0 %v2890, 127
    %v3094 = vpop.permute.xlu0 %3093
    %3095 = vrot.lane.b32.xlu0 %v2999, 127
    %v3096 = vpop.permute.xlu0 %3095
    %3097 = vrot.lane.b32.xlu0 %v2781, 127
    %v3098 = vpop.permute.xlu0 %3097
    %3099 = vrot.lane.b32.xlu0 %v2783, 127
    %v3100 = vpop.permute.xlu0 %3099
    %3101 = vrot.lane.b32.xlu0 %v2894, 127
    %v3102 = vpop.permute.xlu0 %3101
    %3103 = vrot.lane.b32.xlu0 %v2896, 127
    %v3104 = vpop.permute.xlu0 %3103
    %3105 = vrot.lane.b32.xlu0 %v3004, 127
    %v3106 = vpop.permute.xlu0 %3105
    %3107 = vrot.lane.b32.xlu0 %v2787, 127
    %v3108 = vpop.permute.xlu0 %3107
    %3109 = vrot.lane.b32.xlu0 %v2789, 127
    %v3110 = vpop.permute.xlu0 %3109
    %3111 = vrot.lane.b32.xlu0 %v2900, 127
    %v3112 = vpop.permute.xlu0 %3111
    %3113 = vrot.lane.b32.xlu0 %v2902, 127
    %v3114 = vpop.permute.xlu0 %3113
    %3115 = vrot.lane.b32.xlu0 %v3009, 127
    %v3116 = vpop.permute.xlu0 %3115
    %3117 = vrot.lane.b32.xlu0 %v2793, 127
    %v3118 = vpop.permute.xlu0 %3117
    %3119 = vrot.lane.b32.xlu0 %v2795, 127
    %v3120 = vpop.permute.xlu0 %3119
    %3121 = vrot.lane.b32.xlu0 %v2906, 127
    %v3122 = vpop.permute.xlu0 %3121
    %3123 = vrot.lane.b32.xlu0 %v2908, 127
    %v3124 = vpop.permute.xlu0 %3123
    %3125 = vrot.lane.b32.xlu0 %v3014, 127
    %v3126 = vpop.permute.xlu0 %3125
    %3127 = vrot.lane.b32.xlu0 %v2799, 127
    %v3128 = vpop.permute.xlu0 %3127
    %3129 = vrot.lane.b32.xlu0 %v2801, 127
    %v3130 = vpop.permute.xlu0 %3129
    %3131 = vrot.lane.b32.xlu0 %v2912, 127
    %v3132 = vpop.permute.xlu0 %3131
    %3133 = vrot.lane.b32.xlu0 %v2914, 127
    %v3134 = vpop.permute.xlu0 %3133
    %3135 = vrot.lane.b32.xlu0 %v3019, 127
    %v3136 = vpop.permute.xlu0 %3135
    %3137 = vrot.lane.b32.xlu0 %v2805, 127
    %v3138 = vpop.permute.xlu0 %3137
    %3139 = vrot.lane.b32.xlu0 %v2807, 127
    %v3140 = vpop.permute.xlu0 %3139
    %3141 = vrot.lane.b32.xlu0 %v2918, 127
    %v3142 = vpop.permute.xlu0 %3141
    %3143 = vrot.lane.b32.xlu0 %v2920, 127
    %v3144 = vpop.permute.xlu0 %3143
    %3145 = vrot.lane.b32.xlu0 %v3024, 127
    %v3146 = vpop.permute.xlu0 %3145
    %v3147 = vsel %vm157, %v3068, %v3070
    %v3148 = vsel %vm157, %v3070, %v3072
    %v3149 = vsel %vm157, %v3072, %v3074
    %v3150 = vsel %vm157, %v3074, %v3076
    %v3151 = vsel %vm157, %v3078, %v3080
    %v3152 = vsel %vm157, %v3080, %v3082
    %v3153 = vsel %vm157, %v3082, %v3084
    %v3154 = vsel %vm157, %v3084, %v3086
    %v3155 = vsel %vm157, %v3088, %v3090
    %v3156 = vsel %vm157, %v3090, %v3092
    %v3157 = vsel %vm157, %v3092, %v3094
    %v3158 = vsel %vm157, %v3094, %v3096
    %v3159 = vsel %vm157, %v3098, %v3100
    %v3160 = vsel %vm157, %v3100, %v3102
    %v3161 = vsel %vm157, %v3102, %v3104
    %v3162 = vsel %vm157, %v3104, %v3106
    %v3163 = vsel %vm157, %v3108, %v3110
    %v3164 = vsel %vm157, %v3110, %v3112
    %v3165 = vsel %vm157, %v3112, %v3114
    %v3166 = vsel %vm157, %v3114, %v3116
    %v3167 = vsel %vm157, %v3118, %v3120
    %v3168 = vsel %vm157, %v3120, %v3122
    %v3169 = vsel %vm157, %v3122, %v3124
    %v3170 = vsel %vm157, %v3124, %v3126
    %v3171 = vsel %vm157, %v3128, %v3130
    %v3172 = vsel %vm157, %v3130, %v3132
    %v3173 = vsel %vm157, %v3132, %v3134
    %v3174 = vsel %vm157, %v3134, %v3136
    %v3175 = vsel %vm157, %v3138, %v3140
    %v3176 = vsel %vm157, %v3140, %v3142
    %v3177 = vsel %vm157, %v3142, %v3144
    %v3178 = vsel %vm157, %v3144, %v3146
    %v3219 = vmax.f32 %v2763, %v3147
    %v3220 = vmax.f32 %v2765, %v3148
    %v3221 = vmax.f32 %v2876, %v3149
    %v3222 = vmax.f32 %v2878, %v3150
    %v3223 = vmax.f32 %v2989, %v3076
    %v3224 = vmax.f32 %v2769, %v3151
    %v3225 = vmax.f32 %v2771, %v3152
    %v3226 = vmax.f32 %v2882, %v3153
    %v3227 = vmax.f32 %v2884, %v3154
    %v3228 = vmax.f32 %v2994, %v3086
    %v3229 = vmax.f32 %v2775, %v3155
    %v3230 = vmax.f32 %v2777, %v3156
    %v3231 = vmax.f32 %v2888, %v3157
    %v3232 = vmax.f32 %v2890, %v3158
    %v3233 = vmax.f32 %v2999, %v3096
    %v3234 = vmax.f32 %v2781, %v3159
    %v3235 = vmax.f32 %v2783, %v3160
    %v3236 = vmax.f32 %v2894, %v3161
    %v3237 = vmax.f32 %v2896, %v3162
    %v3238 = vmax.f32 %v3004, %v3106
    %v3239 = vmax.f32 %v2787, %v3163
    %v3240 = vmax.f32 %v2789, %v3164
    %v3241 = vmax.f32 %v2900, %v3165
    %v3242 = vmax.f32 %v2902, %v3166
    %v3243 = vmax.f32 %v3009, %v3116
    %v3244 = vmax.f32 %v2793, %v3167
    %v3245 = vmax.f32 %v2795, %v3168
    %v3246 = vmax.f32 %v2906, %v3169
    %v3247 = vmax.f32 %v2908, %v3170
    %v3248 = vmax.f32 %v3014, %v3126
    %v3249 = vmax.f32 %v2799, %v3171
    %v3250 = vmax.f32 %v2801, %v3172
    %v3251 = vmax.f32 %v2912, %v3173
    %v3252 = vmax.f32 %v2914, %v3174
    %v3253 = vmax.f32 %v3019, %v3136
    %v3254 = vmax.f32 %v2805, %v3175
    %v3255 = vmax.f32 %v2807, %v3176
    %v3256 = vmax.f32 %v2918, %v3177
    %v3257 = vmax.f32 %v2920, %v3178
    %v3258 = vmax.f32 %v3024, %v3146
    %3259 = vrot.lane.b32.xlu0 %v2763, 126
    %v3260 = vpop.permute.xlu0 %3259
    %3261 = vrot.lane.b32.xlu0 %v2765, 126
    %v3262 = vpop.permute.xlu0 %3261
    %3263 = vrot.lane.b32.xlu0 %v2876, 126
    %v3264 = vpop.permute.xlu0 %3263
    %3265 = vrot.lane.b32.xlu0 %v2878, 126
    %v3266 = vpop.permute.xlu0 %3265
    %3267 = vrot.lane.b32.xlu0 %v2989, 126
    %v3268 = vpop.permute.xlu0 %3267
    %3269 = vrot.lane.b32.xlu0 %v2769, 126
    %v3270 = vpop.permute.xlu0 %3269
    %3271 = vrot.lane.b32.xlu0 %v2771, 126
    %v3272 = vpop.permute.xlu0 %3271
    %3273 = vrot.lane.b32.xlu0 %v2882, 126
    %v3274 = vpop.permute.xlu0 %3273
    %3275 = vrot.lane.b32.xlu0 %v2884, 126
    %v3276 = vpop.permute.xlu0 %3275
    %3277 = vrot.lane.b32.xlu0 %v2994, 126
    %v3278 = vpop.permute.xlu0 %3277
    %3279 = vrot.lane.b32.xlu0 %v2775, 126
    %v3280 = vpop.permute.xlu0 %3279
    %3281 = vrot.lane.b32.xlu0 %v2777, 126
    %v3282 = vpop.permute.xlu0 %3281
    %3283 = vrot.lane.b32.xlu0 %v2888, 126
    %v3284 = vpop.permute.xlu0 %3283
    %3285 = vrot.lane.b32.xlu0 %v2890, 126
    %v3286 = vpop.permute.xlu0 %3285
    %3287 = vrot.lane.b32.xlu0 %v2999, 126
    %v3288 = vpop.permute.xlu0 %3287
    %3289 = vrot.lane.b32.xlu0 %v2781, 126
    %v3290 = vpop.permute.xlu0 %3289
    %3291 = vrot.lane.b32.xlu0 %v2783, 126
    %v3292 = vpop.permute.xlu0 %3291
    %3293 = vrot.lane.b32.xlu0 %v2894, 126
    %v3294 = vpop.permute.xlu0 %3293
    %3295 = vrot.lane.b32.xlu0 %v2896, 126
    %v3296 = vpop.permute.xlu0 %3295
    %3297 = vrot.lane.b32.xlu0 %v3004, 126
    %v3298 = vpop.permute.xlu0 %3297
    %3299 = vrot.lane.b32.xlu0 %v2787, 126
    %v3300 = vpop.permute.xlu0 %3299
    %3301 = vrot.lane.b32.xlu0 %v2789, 126
    %v3302 = vpop.permute.xlu0 %3301
    %3303 = vrot.lane.b32.xlu0 %v2900, 126
    %v3304 = vpop.permute.xlu0 %3303
    %3305 = vrot.lane.b32.xlu0 %v2902, 126
    %v3306 = vpop.permute.xlu0 %3305
    %3307 = vrot.lane.b32.xlu0 %v3009, 126
    %v3308 = vpop.permute.xlu0 %3307
    %3309 = vrot.lane.b32.xlu0 %v2793, 126
    %v3310 = vpop.permute.xlu0 %3309
    %3311 = vrot.lane.b32.xlu0 %v2795, 126
    %v3312 = vpop.permute.xlu0 %3311
    %3313 = vrot.lane.b32.xlu0 %v2906, 126
    %v3314 = vpop.permute.xlu0 %3313
    %3315 = vrot.lane.b32.xlu0 %v2908, 126
    %v3316 = vpop.permute.xlu0 %3315
    %3317 = vrot.lane.b32.xlu0 %v3014, 126
    %v3318 = vpop.permute.xlu0 %3317
    %3319 = vrot.lane.b32.xlu0 %v2799, 126
    %v3320 = vpop.permute.xlu0 %3319
    %3321 = vrot.lane.b32.xlu0 %v2801, 126
    %v3322 = vpop.permute.xlu0 %3321
    %3323 = vrot.lane.b32.xlu0 %v2912, 126
    %v3324 = vpop.permute.xlu0 %3323
    %3325 = vrot.lane.b32.xlu0 %v2914, 126
    %v3326 = vpop.permute.xlu0 %3325
    %3327 = vrot.lane.b32.xlu0 %v3019, 126
    %v3328 = vpop.permute.xlu0 %3327
    %3329 = vrot.lane.b32.xlu0 %v2805, 126
    %v3330 = vpop.permute.xlu0 %3329
    %3331 = vrot.lane.b32.xlu0 %v2807, 126
    %v3332 = vpop.permute.xlu0 %3331
    %3333 = vrot.lane.b32.xlu0 %v2918, 126
    %v3334 = vpop.permute.xlu0 %3333
    %3335 = vrot.lane.b32.xlu0 %v2920, 126
    %v3336 = vpop.permute.xlu0 %3335
    %3337 = vrot.lane.b32.xlu0 %v3024, 126
    %v3338 = vpop.permute.xlu0 %3337
    %v3339 = vsel %vm1216, %v3260, %v3262
    %v3340 = vsel %vm1216, %v3262, %v3264
    %v3341 = vsel %vm1216, %v3264, %v3266
    %v3342 = vsel %vm1216, %v3266, %v3268
    %v3343 = vsel %vm1216, %v3270, %v3272
    %v3344 = vsel %vm1216, %v3272, %v3274
    %v3345 = vsel %vm1216, %v3274, %v3276
    %v3346 = vsel %vm1216, %v3276, %v3278
    %v3347 = vsel %vm1216, %v3280, %v3282
    %v3348 = vsel %vm1216, %v3282, %v3284
    %v3349 = vsel %vm1216, %v3284, %v3286
    %v3350 = vsel %vm1216, %v3286, %v3288
    %v3351 = vsel %vm1216, %v3290, %v3292
    %v3352 = vsel %vm1216, %v3292, %v3294
    %v3353 = vsel %vm1216, %v3294, %v3296
    %v3354 = vsel %vm1216, %v3296, %v3298
    %v3355 = vsel %vm1216, %v3300, %v3302
    %v3356 = vsel %vm1216, %v3302, %v3304
    %v3357 = vsel %vm1216, %v3304, %v3306
    %v3358 = vsel %vm1216, %v3306, %v3308
    %v3359 = vsel %vm1216, %v3310, %v3312
    %v3360 = vsel %vm1216, %v3312, %v3314
    %v3361 = vsel %vm1216, %v3314, %v3316
    %v3362 = vsel %vm1216, %v3316, %v3318
    %v3363 = vsel %vm1216, %v3320, %v3322
    %v3364 = vsel %vm1216, %v3322, %v3324
    %v3365 = vsel %vm1216, %v3324, %v3326
    %v3366 = vsel %vm1216, %v3326, %v3328
    %v3367 = vsel %vm1216, %v3330, %v3332
    %v3368 = vsel %vm1216, %v3332, %v3334
    %v3369 = vsel %vm1216, %v3334, %v3336
    %v3370 = vsel %vm1216, %v3336, %v3338
    %v3411 = vmax.f32 %v3219, %v3339
    %v3412 = vmax.f32 %v3220, %v3340
    %v3413 = vmax.f32 %v3221, %v3341
    %v3414 = vmax.f32 %v3222, %v3342
    %v3415 = vmax.f32 %v3223, %v3268
    %v3416 = vmax.f32 %v3224, %v3343
    %v3417 = vmax.f32 %v3225, %v3344
    %v3418 = vmax.f32 %v3226, %v3345
    %v3419 = vmax.f32 %v3227, %v3346
    %v3420 = vmax.f32 %v3228, %v3278
    %v3421 = vmax.f32 %v3229, %v3347
    %v3422 = vmax.f32 %v3230, %v3348
    %v3423 = vmax.f32 %v3231, %v3349
    %v3424 = vmax.f32 %v3232, %v3350
    %v3425 = vmax.f32 %v3233, %v3288
    %v3426 = vmax.f32 %v3234, %v3351
    %v3427 = vmax.f32 %v3235, %v3352
    %v3428 = vmax.f32 %v3236, %v3353
    %v3429 = vmax.f32 %v3237, %v3354
    %v3430 = vmax.f32 %v3238, %v3298
    %v3431 = vmax.f32 %v3239, %v3355
    %v3432 = vmax.f32 %v3240, %v3356
    %v3433 = vmax.f32 %v3241, %v3357
    %v3434 = vmax.f32 %v3242, %v3358
    %v3435 = vmax.f32 %v3243, %v3308
    %v3436 = vmax.f32 %v3244, %v3359
    %v3437 = vmax.f32 %v3245, %v3360
    %v3438 = vmax.f32 %v3246, %v3361
    %v3439 = vmax.f32 %v3247, %v3362
    %v3440 = vmax.f32 %v3248, %v3318
    %v3441 = vmax.f32 %v3249, %v3363
    %v3442 = vmax.f32 %v3250, %v3364
    %v3443 = vmax.f32 %v3251, %v3365
    %v3444 = vmax.f32 %v3252, %v3366
    %v3445 = vmax.f32 %v3253, %v3328
    %v3446 = vmax.f32 %v3254, %v3367
    %v3447 = vmax.f32 %v3255, %v3368
    %v3448 = vmax.f32 %v3256, %v3369
    %v3449 = vmax.f32 %v3257, %v3370
    %v3450 = vmax.f32 %v3258, %v3338
    %v3451 = vld [vmem:[%s8] sm:$0xff]
    %v3452 = vld [vmem:[%s8 + $0x8] sm:$0xff]
    %v3453 = vld [vmem:[%s8 + $0x10] sm:$0xff]
    %v3454 = vld [vmem:[%s8 + $0x18] sm:$0xff]
    %v3455 = vld [vmem:[%s8 + $0x20] sm:$0xff]
    %v3456 = vld [vmem:[%s8 + $0x28] sm:$0xff]
    %v3457 = vld [vmem:[%s8 + $0x30] sm:$0xff]
    %v3458 = vld [vmem:[%s8 + $0x38] sm:$0xff]
    %v3459 = vld [vmem:[%s8 + $0x40] sm:$0xff]
    %v3460 = vld [vmem:[%s8 + $0x48] sm:$0xff]
    %v3461 = vld [vmem:[%s8 + $0x50] sm:$0xff]
    %v3462 = vld [vmem:[%s8 + $0x58] sm:$0xff]
    %v3463 = vld [vmem:[%s8 + $0x60] sm:$0xff]
    %v3464 = vld [vmem:[%s8 + $0x68] sm:$0xff]
    %v3465 = vld [vmem:[%s8 + $0x70] sm:$0xff]
    %v3466 = vld [vmem:[%s8 + $0x78] sm:$0xff]
    %v3467 = vld [vmem:[%s8 + $0x80] sm:$0xff]
    %v3468 = vld [vmem:[%s8 + $0x88] sm:$0xff]
    %v3469 = vld [vmem:[%s8 + $0x90] sm:$0xff]
    %v3470 = vld [vmem:[%s8 + $0x98] sm:$0xff]
    %v3471 = vld [vmem:[%s8 + $0xa0] sm:$0xff]
    %v3472 = vld [vmem:[%s8 + $0xa8] sm:$0xff]
    %v3473 = vld [vmem:[%s8 + $0xb0] sm:$0xff]
    %v3474 = vld [vmem:[%s8 + $0xb8] sm:$0xff]
    %v3475 = vld [vmem:[%s8 + $0xc0] sm:$0xff]
    %v3476 = vld [vmem:[%s8 + $0xc8] sm:$0xff]
    %v3477 = vld [vmem:[%s8 + $0xd0] sm:$0xff]
    %v3478 = vld [vmem:[%s8 + $0xd8] sm:$0xff]
    %v3479 = vld [vmem:[%s8 + $0xe0] sm:$0xff]
    %v3480 = vld [vmem:[%s8 + $0xe8] sm:$0xff]
    %v3481 = vld [vmem:[%s8 + $0xf0] sm:$0xff]
    %v3482 = vld [vmem:[%s8 + $0xf8] sm:$0xff]
    %v3483 = vld [vmem:[%s8 + $0x100] sm:$0xff]
    %v3484 = vld [vmem:[%s8 + $0x108] sm:$0xff]
    %v3485 = vld [vmem:[%s8 + $0x110] sm:$0xff]
    %v3486 = vld [vmem:[%s8 + $0x118] sm:$0xff]
    %v3487 = vld [vmem:[%s8 + $0x120] sm:$0xff]
    %v3488 = vld [vmem:[%s8 + $0x128] sm:$0xff]
    %v3489 = vld [vmem:[%s8 + $0x130] sm:$0xff]
    %v3490 = vld [vmem:[%s8 + $0x138] sm:$0xff]
    %v3491 = vld [vmem:[%s8 + $0x140] sm:$0xff]
    %v3492 = vld [vmem:[%s8 + $0x148] sm:$0xff]
    %v3493 = vld [vmem:[%s8 + $0x150] sm:$0xff]
    %v3494 = vld [vmem:[%s8 + $0x158] sm:$0xff]
    %v3495 = vld [vmem:[%s8 + $0x160] sm:$0xff]
    %v3496 = vld [vmem:[%s8 + $0x168] sm:$0xff]
    %v3497 = vld [vmem:[%s8 + $0x170] sm:$0xff]
    %v3498 = vld [vmem:[%s8 + $0x178] sm:$0xff]
    %v3499 = vld [vmem:[%s8 + $0x180] sm:$0xff]
    %v3500 = vld [vmem:[%s8 + $0x188] sm:$0xff]
    %v3501 = vld [vmem:[%s8 + $0x190] sm:$0xff]
    %v3502 = vld [vmem:[%s8 + $0x198] sm:$0xff]
    %v3503 = vld [vmem:[%s8 + $0x1a0] sm:$0xff]
    %v3504 = vld [vmem:[%s8 + $0x1a8] sm:$0xff]
    %v3505 = vld [vmem:[%s8 + $0x1b0] sm:$0xff]
    %v3506 = vld [vmem:[%s8 + $0x1b8] sm:$0xff]
    %v3507 = vld [vmem:[%s8 + $0x1c0] sm:$0xff]
    %v3508 = vld [vmem:[%s8 + $0x1c8] sm:$0xff]
    %v3509 = vld [vmem:[%s8 + $0x1d0] sm:$0xff]
    %v3510 = vld [vmem:[%s8 + $0x1d8] sm:$0xff]
    %v3511 = vld [vmem:[%s8 + $0x1e0] sm:$0xff]
    %v3512 = vld [vmem:[%s8 + $0x1e8] sm:$0xff]
    %v3513 = vld [vmem:[%s8 + $0x1f0] sm:$0xff]
    %v3514 = vld [vmem:[%s8 + $0x1f8] sm:$0xff]
    %v3515 = vld [vmem:[%s8 + $0x200] sm:$0xff]
    %v3516 = vld [vmem:[%s8 + $0x208] sm:$0xff]
    %v3517 = vld [vmem:[%s8 + $0x210] sm:$0xff]
    %v3518 = vld [vmem:[%s8 + $0x218] sm:$0xff]
    %v3519 = vld [vmem:[%s8 + $0x220] sm:$0xff]
    %v3520 = vld [vmem:[%s8 + $0x228] sm:$0xff]
    %v3521 = vld [vmem:[%s8 + $0x230] sm:$0xff]
    %v3522 = vld [vmem:[%s8 + $0x238] sm:$0xff]
    %v3523 = vld [vmem:[%s8 + $0x240] sm:$0xff]
    %v3524 = vld [vmem:[%s8 + $0x248] sm:$0xff]
    %v3525 = vld [vmem:[%s8 + $0x250] sm:$0xff]
    %v3526 = vld [vmem:[%s8 + $0x258] sm:$0xff]
    %v3527 = vld [vmem:[%s8 + $0x260] sm:$0xff]
    %v3528 = vld [vmem:[%s8 + $0x268] sm:$0xff]
    %v3529 = vld [vmem:[%s8 + $0x270] sm:$0xff]
    %v3530 = vld [vmem:[%s8 + $0x278] sm:$0xff]
    %v3531 = vld [vmem:[%s8 + $0x280] sm:$0xff]
    %v3532 = vld [vmem:[%s8 + $0x288] sm:$0xff]
    %v3533 = vld [vmem:[%s8 + $0x290] sm:$0xff]
    %v3534 = vld [vmem:[%s8 + $0x298] sm:$0xff]
    %v3535 = vld [vmem:[%s8 + $0x2a0] sm:$0xff]
    %v3536 = vld [vmem:[%s8 + $0x2a8] sm:$0xff]
    %v3537 = vld [vmem:[%s8 + $0x2b0] sm:$0xff]
    %v3538 = vld [vmem:[%s8 + $0x2b8] sm:$0xff]
    %v3539 = vld [vmem:[%s8 + $0x2c0] sm:$0xff]
    %v3540 = vld [vmem:[%s8 + $0x2c8] sm:$0xff]
    %v3541 = vld [vmem:[%s8 + $0x2d0] sm:$0xff]
    %v3542 = vld [vmem:[%s8 + $0x2d8] sm:$0xff]
    %v3543 = vld [vmem:[%s8 + $0x2e0] sm:$0xff]
    %v3544 = vld [vmem:[%s8 + $0x2e8] sm:$0xff]
    %v3545 = vld [vmem:[%s8 + $0x2f0] sm:$0xff]
    %v3546 = vld [vmem:[%s8 + $0x2f8] sm:$0xff]
    %v3547 = vld [vmem:[%s8 + $0x300] sm:$0xff]
    %v3548 = vld [vmem:[%s8 + $0x308] sm:$0xff]
    %v3549 = vld [vmem:[%s8 + $0x310] sm:$0xff]
    %v3550 = vld [vmem:[%s8 + $0x318] sm:$0xff]
    %v3551 = vld [vmem:[%s8 + $0x320] sm:$0xff]
    %v3552 = vld [vmem:[%s8 + $0x328] sm:$0xff]
    %v3553 = vld [vmem:[%s8 + $0x330] sm:$0xff]
    %v3554 = vld [vmem:[%s8 + $0x338] sm:$0xff]
    %v3555 = vld [vmem:[%s8 + $0x340] sm:$0xff]
    %v3556 = vld [vmem:[%s8 + $0x348] sm:$0xff]
    %v3557 = vld [vmem:[%s8 + $0x350] sm:$0xff]
    %v3558 = vld [vmem:[%s8 + $0x358] sm:$0xff]
    %v3559 = vld [vmem:[%s8 + $0x360] sm:$0xff]
    %v3560 = vld [vmem:[%s8 + $0x368] sm:$0xff]
    %v3561 = vld [vmem:[%s8 + $0x370] sm:$0xff]
    %v3562 = vld [vmem:[%s8 + $0x378] sm:$0xff]
    %v3563 = vld [vmem:[%s8 + $0x380] sm:$0xff]
    %v3564 = vld [vmem:[%s8 + $0x388] sm:$0xff]
    %v3565 = vld [vmem:[%s8 + $0x390] sm:$0xff]
    %v3566 = vld [vmem:[%s8 + $0x398] sm:$0xff]
    %v3567 = vld [vmem:[%s8 + $0x3a0] sm:$0xff]
    %v3568 = vld [vmem:[%s8 + $0x3a8] sm:$0xff]
    %v3569 = vld [vmem:[%s8 + $0x3b0] sm:$0xff]
    %v3570 = vld [vmem:[%s8 + $0x3b8] sm:$0xff]
    %v3571 = vld [vmem:[%s8 + $0x3c0] sm:$0xff]
    %v3572 = vld [vmem:[%s8 + $0x3c8] sm:$0xff]
    %v3573 = vld [vmem:[%s8 + $0x3d0] sm:$0xff]
    %v3574 = vld [vmem:[%s8 + $0x3d8] sm:$0xff]
    %v3575 = vld [vmem:[%s8 + $0x3e0] sm:$0xff]
    %v3576 = vld [vmem:[%s8 + $0x3e8] sm:$0xff]
    %v3577 = vld [vmem:[%s8 + $0x3f0] sm:$0xff]
    %v3578 = vld [vmem:[%s8 + $0x3f8] sm:$0xff]
    %v3579 = vld [vmem:[%s8 + $0x400] sm:$0xff]
    %v3580 = vld [vmem:[%s8 + $0x408] sm:$0xff]
    %v3581 = vld [vmem:[%s8 + $0x410] sm:$0xff]
    %v3582 = vld [vmem:[%s8 + $0x418] sm:$0xff]
    %v3583 = vld [vmem:[%s8 + $0x420] sm:$0xff]
    %v3584 = vld [vmem:[%s8 + $0x428] sm:$0xff]
    %v3585 = vld [vmem:[%s8 + $0x430] sm:$0xff]
    %v3586 = vld [vmem:[%s8 + $0x438] sm:$0xff]
    %v3587 = vld [vmem:[%s8 + $0x440] sm:$0xff]
    %v3588 = vld [vmem:[%s8 + $0x448] sm:$0xff]
    %v3589 = vld [vmem:[%s8 + $0x450] sm:$0xff]
    %v3590 = vld [vmem:[%s8 + $0x458] sm:$0xff]
    %v3591 = vld [vmem:[%s8 + $0x460] sm:$0xff]
    %v3592 = vld [vmem:[%s8 + $0x468] sm:$0xff]
    %v3593 = vld [vmem:[%s8 + $0x470] sm:$0xff]
    %v3594 = vld [vmem:[%s8 + $0x478] sm:$0xff]
    %v3595 = vld [vmem:[%s8 + $0x480] sm:$0xff]
    %v3596 = vld [vmem:[%s8 + $0x488] sm:$0xff]
    %v3597 = vld [vmem:[%s8 + $0x490] sm:$0xff]
    %v3598 = vld [vmem:[%s8 + $0x498] sm:$0xff]
    %v3599 = vld [vmem:[%s8 + $0x4a0] sm:$0xff]
    %v3600 = vld [vmem:[%s8 + $0x4a8] sm:$0xff]
    %v3601 = vld [vmem:[%s8 + $0x4b0] sm:$0xff]
    %v3602 = vld [vmem:[%s8 + $0x4b8] sm:$0xff]
    %v3603 = vld [vmem:[%s8 + $0x4c0] sm:$0xff]
    %v3604 = vld [vmem:[%s8 + $0x4c8] sm:$0xff]
    %v3605 = vld [vmem:[%s8 + $0x4d0] sm:$0xff]
    %v3606 = vld [vmem:[%s8 + $0x4d8] sm:$0xff]
    %v3607 = vld [vmem:[%s8 + $0x4e0] sm:$0xff]
    %v3608 = vld [vmem:[%s8 + $0x4e8] sm:$0xff]
    %v3609 = vld [vmem:[%s8 + $0x4f0] sm:$0xff]
    %v3610 = vld [vmem:[%s8 + $0x4f8] sm:$0xff]
    %v3611 = vld [vmem:[%s8 + $0x500] sm:$0xff]
    %v3612 = vld [vmem:[%s8 + $0x508] sm:$0xff]
    %v3613 = vld [vmem:[%s8 + $0x510] sm:$0xff]
    %v3614 = vld [vmem:[%s8 + $0x518] sm:$0xff]
    %v3615 = vld [vmem:[%s8 + $0x520] sm:$0xff]
    %v3616 = vld [vmem:[%s8 + $0x528] sm:$0xff]
    %v3617 = vld [vmem:[%s8 + $0x530] sm:$0xff]
    %v3618 = vld [vmem:[%s8 + $0x538] sm:$0xff]
    %v3619 = vld [vmem:[%s8 + $0x540] sm:$0xff]
    %v3620 = vld [vmem:[%s8 + $0x548] sm:$0xff]
    %v3621 = vld [vmem:[%s8 + $0x550] sm:$0xff]
    %v3622 = vld [vmem:[%s8 + $0x558] sm:$0xff]
    %v3623 = vld [vmem:[%s8 + $0x560] sm:$0xff]
    %v3624 = vld [vmem:[%s8 + $0x568] sm:$0xff]
    %v3625 = vld [vmem:[%s8 + $0x570] sm:$0xff]
    %v3626 = vld [vmem:[%s8 + $0x578] sm:$0xff]
    %v3627 = vld [vmem:[%s8 + $0x580] sm:$0xff]
    %v3628 = vld [vmem:[%s8 + $0x588] sm:$0xff]
    %v3629 = vld [vmem:[%s8 + $0x590] sm:$0xff]
    %v3630 = vld [vmem:[%s8 + $0x598] sm:$0xff]
    %v3631 = vld [vmem:[%s8 + $0x5a0] sm:$0xff]
    %v3632 = vld [vmem:[%s8 + $0x5a8] sm:$0xff]
    %v3633 = vld [vmem:[%s8 + $0x5b0] sm:$0xff]
    %v3634 = vld [vmem:[%s8 + $0x5b8] sm:$0xff]
    %v3635 = vld [vmem:[%s8 + $0x5c0] sm:$0xff]
    %v3636 = vld [vmem:[%s8 + $0x5c8] sm:$0xff]
    %v3637 = vld [vmem:[%s8 + $0x5d0] sm:$0xff]
    %v3638 = vld [vmem:[%s8 + $0x5d8] sm:$0xff]
    %v3639 = vld [vmem:[%s8 + $0x5e0] sm:$0xff]
    %v3640 = vld [vmem:[%s8 + $0x5e8] sm:$0xff]
    %v3641 = vld [vmem:[%s8 + $0x5f0] sm:$0xff]
    %v3642 = vld [vmem:[%s8 + $0x5f8] sm:$0xff]
    %v3643 = vld [vmem:[%s8 + $0x600] sm:$0xff]
    %v3644 = vld [vmem:[%s8 + $0x608] sm:$0xff]
    %v3645 = vld [vmem:[%s8 + $0x610] sm:$0xff]
    %v3646 = vld [vmem:[%s8 + $0x618] sm:$0xff]
    %v3647 = vld [vmem:[%s8 + $0x620] sm:$0xff]
    %v3648 = vld [vmem:[%s8 + $0x628] sm:$0xff]
    %v3649 = vld [vmem:[%s8 + $0x630] sm:$0xff]
    %v3650 = vld [vmem:[%s8 + $0x638] sm:$0xff]
    %v3651 = vld [vmem:[%s8 + $0x640] sm:$0xff]
    %v3652 = vld [vmem:[%s8 + $0x648] sm:$0xff]
    %v3653 = vld [vmem:[%s8 + $0x650] sm:$0xff]
    %v3654 = vld [vmem:[%s8 + $0x658] sm:$0xff]
    %v3655 = vld [vmem:[%s8 + $0x660] sm:$0xff]
    %v3656 = vld [vmem:[%s8 + $0x668] sm:$0xff]
    %v3657 = vld [vmem:[%s8 + $0x670] sm:$0xff]
    %v3658 = vld [vmem:[%s8 + $0x678] sm:$0xff]
    %v3659 = vld [vmem:[%s8 + $0x680] sm:$0xff]
    %v3660 = vld [vmem:[%s8 + $0x688] sm:$0xff]
    %v3661 = vld [vmem:[%s8 + $0x690] sm:$0xff]
    %v3662 = vld [vmem:[%s8 + $0x698] sm:$0xff]
    %v3663 = vld [vmem:[%s8 + $0x6a0] sm:$0xff]
    %v3664 = vld [vmem:[%s8 + $0x6a8] sm:$0xff]
    %v3665 = vld [vmem:[%s8 + $0x6b0] sm:$0xff]
    %v3666 = vld [vmem:[%s8 + $0x6b8] sm:$0xff]
    %v3667 = vld [vmem:[%s8 + $0x6c0] sm:$0xff]
    %v3668 = vld [vmem:[%s8 + $0x6c8] sm:$0xff]
    %v3669 = vld [vmem:[%s8 + $0x6d0] sm:$0xff]
    %v3670 = vld [vmem:[%s8 + $0x6d8] sm:$0xff]
    %v3671 = vld [vmem:[%s8 + $0x6e0] sm:$0xff]
    %v3672 = vld [vmem:[%s8 + $0x6e8] sm:$0xff]
    %v3673 = vld [vmem:[%s8 + $0x6f0] sm:$0xff]
    %v3674 = vld [vmem:[%s8 + $0x6f8] sm:$0xff]
    %v3675 = vld [vmem:[%s8 + $0x700] sm:$0xff]
    %v3676 = vld [vmem:[%s8 + $0x708] sm:$0xf]
    %v3677 = vld [vmem:[%s8 + $0x710] sm:$0xf]
    %v3678 = vld [vmem:[%s8 + $0x718] sm:$0xf]
    %vm3679 = vcmask 752640
    %v3681 = vsel %vm3679, %v3415, 0
    %v3684 = vsel %vm3679, %v3420, 0
    %v3687 = vsel %vm3679, %v3425, 0
    %v3690 = vsel %vm3679, %v3430, 0
    %v3693 = vsel %vm3679, %v3435, 0
    %v3696 = vsel %vm3679, %v3440, 0
    %v3699 = vsel %vm3679, %v3445, 0
    %v3702 = vsel %vm3679, %v3450, 0
    %vm3704 = vcmask 1043456
    %v3706 = vsel %vm3704, %v3676, 0
    %v3709 = vsel %vm3704, %v3677, 0
    %v3712 = vsel %vm3704, %v3678, 0
    %3714 = vmatprep.subr.mxu0 %v3452
    %3715 = vmatpush1.msra.mxu0 %v3451
    %3716 = vmatprep.subr.mxu0 %v3455
    %3717 = vmatpush1.msra.mxu0 %v3454
    %3718 = vmatprep.subr.mxu0 %v3458
    %3719 = vmatpush1.msra.mxu0 %v3457
    %3720 = vmatprep.subr.mxu0 %v3461
    %3721 = vmatpush1.msra.mxu0 %v3460
    %3722 = vmatprep.subr.mxu0 %v3464
    %3723 = vmatpush1.msra.mxu0 %v3463
    %3724 = vmatprep.subr.mxu0 %v3467
    %3725 = vmatpush1.msra.mxu0 %v3466
    %3726 = vmatprep.subr.mxu0 %v3470
    %3727 = vmatpush1.msra.mxu0 %v3469
    %3728 = vmatprep.subr.mxu0 %v3473
    %3729 = vmatpush1.msra.mxu0 %v3472
    %3730 = vmatprep.subr.mxu0 %v3476
    %3731 = vmatpush1.msra.mxu0 %v3475
    %3732 = vmatprep.subr.mxu0 %v3479
    %3733 = vmatpush1.msra.mxu0 %v3478
    %3734 = vmatprep.subr.mxu0 %v3482
    %3735 = vmatpush1.msra.mxu0 %v3481
    %3736 = vmatprep.subr.mxu0 %v3485
    %3737 = vmatpush1.msra.mxu0 %v3484
    %3738 = vmatprep.subr.mxu0 %v3488
    %3739 = vmatpush1.msra.mxu0 %v3487
    %3740 = vmatprep.subr.mxu0 %v3491
    %3741 = vmatpush1.msra.mxu0 %v3490
    %3742 = vmatprep.subr.mxu0 %v3494
    %3743 = vmatpush1.msra.mxu0 %v3493
    %3744 = vmatprep.subr.mxu0 %v3497
    %3745 = vmatpush1.msra.mxu0 %v3496
    %3746 = vmatprep.subr.mxu0 %v3500
    %3747 = vmatpush1.msra.mxu0 %v3499
    %3748 = vmatprep.subr.mxu0 %v3503
    %3749 = vmatpush1.msra.mxu0 %v3502
    %3750 = vmatprep.subr.mxu0 %v3506
    %3751 = vmatpush1.msra.mxu0 %v3505
    %3752 = vmatprep.subr.mxu0 %v3509
    %3753 = vmatpush1.msra.mxu0 %v3508
    %3754 = vmatprep.subr.mxu0 %v3512
    %3755 = vmatpush1.msra.mxu0 %v3511
    %3756 = vmatprep.subr.mxu0 %v3515
    %3757 = vmatpush1.msra.mxu0 %v3514
    %3758 = vmatprep.subr.mxu0 %v3518
    %3759 = vmatpush1.msra.mxu0 %v3517
    %3760 = vmatprep.subr.mxu0 %v3521
    %3761 = vmatpush1.msra.mxu0 %v3520
    %3762 = vmatprep.subr.mxu0 %v3524
    %3763 = vmatpush1.msra.mxu0 %v3523
    %3764 = vmatprep.subr.mxu0 %v3527
    %3765 = vmatpush1.msra.mxu0 %v3526
    %3766 = vmatprep.subr.mxu0 %v3530
    %3767 = vmatpush1.msra.mxu0 %v3529
    %3768 = vmatprep.subr.mxu0 %v3533
    %3769 = vmatpush1.msra.mxu0 %v3532
    %3770 = vmatprep.subr.mxu0 %v3536
    %3771 = vmatpush1.msra.mxu0 %v3535
    %3772 = vmatprep.subr.mxu0 %v3539
    %3773 = vmatpush1.msra.mxu0 %v3538
    %3774 = vmatprep.subr.mxu0 %v3542
    %3775 = vmatpush1.msra.mxu0 %v3541
    %3776 = vmatprep.subr.mxu0 %v3545
    %3777 = vmatpush1.msra.mxu0 %v3544
    %3778 = vmatprep.mubr.f32.mxu0 %v3412
    %3779 = vmatmul.mubr.f32.gmra.mrb[0].mxu0 %v3411
    %v3780 = vpop.f32.mrb[0].mxu0
    %v3781 = vadd.f32 0.0, %v3780
    %v3782 = vpop.f32.mrb[0].mxu0
    %v3783 = vadd.f32 0.0, %v3782
    %3784 = vmatprep.mubr.f32.mxu0 %v3417
    %3785 = vmatmul.mubr.f32.gmra.mrb[0].mxu0 %v3416
    %v3786 = vpop.f32.mrb[0].mxu0
    %v3787 = vadd.f32 0.0, %v3786
    %v3788 = vpop.f32.mrb[0].mxu0
    %v3789 = vadd.f32 0.0, %v3788
    %3790 = vmatprep.mubr.f32.mxu0 %v3422
    %3791 = vmatmul.mubr.f32.gmra.mrb[0].mxu0 %v3421
    %v3792 = vpop.f32.mrb[0].mxu0
    %v3793 = vadd.f32 0.0, %v3792
    %v3794 = vpop.f32.mrb[0].mxu0
    %v3795 = vadd.f32 0.0, %v3794
    %3796 = vmatprep.mubr.f32.mxu0 %v3427
    %3797 = vmatmul.mubr.f32.gmra.mrb[0].mxu0 %v3426
    %v3798 = vpop.f32.mrb[0].mxu0
    %v3799 = vadd.f32 0.0, %v3798
    %v3800 = vpop.f32.mrb[0].mxu0
    %v3801 = vadd.f32 0.0, %v3800
    %3802 = vmatprep.mubr.f32.mxu0 %v3432
    %3803 = vmatmul.mubr.f32.gmra.mrb[0].mxu0 %v3431
    %v3804 = vpop.f32.mrb[0].mxu0
    %v3805 = vadd.f32 0.0, %v3804
    %v3806 = vpop.f32.mrb[0].mxu0
    %v3807 = vadd.f32 0.0, %v3806
    %3808 = vmatprep.mubr.f32.mxu0 %v3437
    %3809 = vmatmul.mubr.f32.gmra.mrb[0].mxu0 %v3436
    %v3810 = vpop.f32.mrb[0].mxu0
    %v3811 = vadd.f32 0.0, %v3810
    %v3812 = vpop.f32.mrb[0].mxu0
    %v3813 = vadd.f32 0.0, %v3812
    %3814 = vmatprep.mubr.f32.mxu0 %v3442
    %3815 = vmatmul.mubr.f32.gmra.mrb[0].mxu0 %v3441
    %v3816 = vpop.f32.mrb[0].mxu0
    %v3817 = vadd.f32 0.0, %v3816
    %v3818 = vpop.f32.mrb[0].mxu0
    %v3819 = vadd.f32 0.0, %v3818
    %3820 = vmatprep.mubr.f32.mxu0 %v3447
    %3821 = vmatmul.mubr.f32.gmra.mrb[0].mxu0 %v3446
    %v3822 = vpop.f32.mrb[0].mxu0
    %v3823 = vadd.f32 0.0, %v3822
    %v3824 = vpop.f32.mrb[0].mxu0
    %v3825 = vadd.f32 0.0, %v3824
    %3826 = vdwg.mxu0
    %3827 = vmatprep.subr.mxu0 %v3548
    %3828 = vmatpush1.msra.mxu0 %v3547
    %3829 = vmatprep.subr.mxu0 %v3551
    %3830 = vmatpush1.msra.mxu0 %v3550
    %3831 = vmatprep.subr.mxu0 %v3554
    %3832 = vmatpush1.msra.mxu0 %v3553
    %3833 = vmatprep.subr.mxu0 %v3557
    %3834 = vmatpush1.msra.mxu0 %v3556
    %3835 = vmatprep.subr.mxu0 %v3560
    %3836 = vmatpush1.msra.mxu0 %v3559
    %3837 = vmatprep.subr.mxu0 %v3563
    %3838 = vmatpush1.msra.mxu0 %v3562
    %3839 = vmatprep.subr.mxu0 %v3566
    %3840 = vmatpush1.msra.mxu0 %v3565
    %3841 = vmatprep.subr.mxu0 %v3569
    %3842 = vmatpush1.msra.mxu0 %v3568
    %3843 = vmatprep.subr.mxu0 %v3572
    %3844 = vmatpush1.msra.mxu0 %v3571
    %3845 = vmatprep.subr.mxu0 %v3575
    %3846 = vmatpush1.msra.mxu0 %v3574
    %3847 = vmatprep.subr.mxu0 %v3578
    %3848 = vmatpush1.msra.mxu0 %v3577
    %3849 = vmatprep.subr.mxu0 %v3581
    %3850 = vmatpush1.msra.mxu0 %v3580
    %3851 = vmatprep.subr.mxu0 %v3584
    %3852 = vmatpush1.msra.mxu0 %v3583
    %3853 = vmatprep.subr.mxu0 %v3587
    %3854 = vmatpush1.msra.mxu0 %v3586
    %3855 = vmatprep.subr.mxu0 %v3590
    %3856 = vmatpush1.msra.mxu0 %v3589
    %3857 = vmatprep.subr.mxu0 %v3593
    %3858 = vmatpush1.msra.mxu0 %v3592
    %3859 = vmatprep.subr.mxu0 %v3596
    %3860 = vmatpush1.msra.mxu0 %v3595
    %3861 = vmatprep.subr.mxu0 %v3599
    %3862 = vmatpush1.msra.mxu0 %v3598
    %3863 = vmatprep.subr.mxu0 %v3602
    %3864 = vmatpush1.msra.mxu0 %v3601
    %3865 = vmatprep.subr.mxu0 %v3605
    %3866 = vmatpush1.msra.mxu0 %v3604
    %3867 = vmatprep.subr.mxu0 %v3608
    %3868 = vmatpush1.msra.mxu0 %v3607
    %3869 = vmatprep.subr.mxu0 %v3611
    %3870 = vmatpush1.msra.mxu0 %v3610
    %3871 = vmatprep.subr.mxu0 %v3614
    %3872 = vmatpush1.msra.mxu0 %v3613
    %3873 = vmatprep.subr.mxu0 %v3617
    %3874 = vmatpush1.msra.mxu0 %v3616
    %3875 = vmatprep.subr.mxu0 %v3620
    %3876 = vmatpush1.msra.mxu0 %v3619
    %3877 = vmatprep.subr.mxu0 %v3623
    %3878 = vmatpush1.msra.mxu0 %v3622
    %3879 = vmatprep.subr.mxu0 %v3626
    %3880 = vmatpush1.msra.mxu0 %v3625
    %3881 = vmatprep.subr.mxu0 %v3629
    %3882 = vmatpush1.msra.mxu0 %v3628
    %3883 = vmatprep.subr.mxu0 %v3632
    %3884 = vmatpush1.msra.mxu0 %v3631
    %3885 = vmatprep.subr.mxu0 %v3635
    %3886 = vmatpush1.msra.mxu0 %v3634
    %3887 = vmatprep.subr.mxu0 %v3638
    %3888 = vmatpush1.msra.mxu0 %v3637
    %3889 = vmatprep.subr.mxu0 %v3641
    %3890 = vmatpush1.msra.mxu0 %v3640
    %3891 = vmatprep.mubr.f32.mxu0 %v3414
    %3892 = vmatmul.mubr.f32.gmra.mrb[0].mxu0 %v3413
    %v3893 = vpop.f32.mrb[0].mxu0
    %v3894 = vadd.f32 %v3781, %v3893
    %v3895 = vpop.f32.mrb[0].mxu0
    %v3896 = vadd.f32 %v3783, %v3895
    %3897 = vmatprep.mubr.f32.mxu0 %v3419
    %3898 = vmatmul.mubr.f32.gmra.mrb[0].mxu0 %v3418
    %v3899 = vpop.f32.mrb[0].mxu0
    %v3900 = vadd.f32 %v3787, %v3899
    %v3901 = vpop.f32.mrb[0].mxu0
    %v3902 = vadd.f32 %v3789, %v3901
    %3903 = vmatprep.mubr.f32.mxu0 %v3424
    %3904 = vmatmul.mubr.f32.gmra.mrb[0].mxu0 %v3423
    %v3905 = vpop.f32.mrb[0].mxu0
    %v3906 = vadd.f32 %v3793, %v3905
    %v3907 = vpop.f32.mrb[0].mxu0
    %v3908 = vadd.f32 %v3795, %v3907
    %3909 = vmatprep.mubr.f32.mxu0 %v3429
    %3910 = vmatmul.mubr.f32.gmra.mrb[0].mxu0 %v3428
    %v3911 = vpop.f32.mrb[0].mxu0
    %v3912 = vadd.f32 %v3799, %v3911
    %v3913 = vpop.f32.mrb[0].mxu0
    %v3914 = vadd.f32 %v3801, %v3913
    %3915 = vmatprep.mubr.f32.mxu0 %v3434
    %3916 = vmatmul.mubr.f32.gmra.mrb[0].mxu0 %v3433
    %v3917 = vpop.f32.mrb[0].mxu0
    %v3918 = vadd.f32 %v3805, %v3917
    %v3919 = vpop.f32.mrb[0].mxu0
    %v3920 = vadd.f32 %v3807, %v3919
    %3921 = vmatprep.mubr.f32.mxu0 %v3439
    %3922 = vmatmul.mubr.f32.gmra.mrb[0].mxu0 %v3438
    %v3923 = vpop.f32.mrb[0].mxu0
    %v3924 = vadd.f32 %v3811, %v3923
    %v3925 = vpop.f32.mrb[0].mxu0
    %v3926 = vadd.f32 %v3813, %v3925
    %3927 = vmatprep.mubr.f32.mxu0 %v3444
    %3928 = vmatmul.mubr.f32.gmra.mrb[0].mxu0 %v3443
    %v3929 = vpop.f32.mrb[0].mxu0
    %v3930 = vadd.f32 %v3817, %v3929
    %v3931 = vpop.f32.mrb[0].mxu0
    %v3932 = vadd.f32 %v3819, %v3931
    %3933 = vmatprep.mubr.f32.mxu0 %v3449
    %3934 = vmatmul.mubr.f32.gmra.mrb[0].mxu0 %v3448
    %v3935 = vpop.f32.mrb[0].mxu0
    %v3936 = vadd.f32 %v3823, %v3935
    %v3937 = vpop.f32.mrb[0].mxu0
    %v3938 = vadd.f32 %v3825, %v3937
    %3939 = vdwg.mxu0
    %3940 = vmatprep.subr.mxu0 %v3644
    %3941 = vmatpush1.msra.mxu0 %v3643
    %3942 = vmatprep.subr.mxu0 %v3647
    %3943 = vmatpush1.msra.mxu0 %v3646
    %3944 = vmatprep.subr.mxu0 %v3650
    %3945 = vmatpush1.msra.mxu0 %v3649
    %3946 = vmatprep.subr.mxu0 %v3653
    %3947 = vmatpush1.msra.mxu0 %v3652
    %3948 = vmatprep.subr.mxu0 %v3656
    %3949 = vmatpush1.msra.mxu0 %v3655
    %3950 = vmatprep.subr.mxu0 %v3659
    %3951 = vmatpush1.msra.mxu0 %v3658
    %3952 = vmatprep.subr.mxu0 %v3662
    %3953 = vmatpush1.msra.mxu0 %v3661
    %3954 = vmatprep.subr.mxu0 %v3665
    %3955 = vmatpush1.msra.mxu0 %v3664
    %3956 = vmatprep.subr.mxu0 %v3668
    %3957 = vmatpush1.msra.mxu0 %v3667
    %3958 = vmatprep.subr.mxu0 %v3671
    %3959 = vmatpush1.msra.mxu0 %v3670
    %3960 = vmatprep.subr.mxu0 %v3674
    %3961 = vmatpush1.msra.mxu0 %v3673
    %3962 = vmatprep.subr.mxu0 %v3709
    %3963 = vmatpush1.msra.mxu0 %v3706
    %3964 = vmatprep.subr.mxu0 0.0
    %3965 = vmatpush1.msra.mxu0 0.0
    %3966 = vmatprep.subr.mxu0 0.0
    %3967 = vmatpush1.msra.mxu0 0.0
    %3968 = vmatprep.subr.mxu0 0.0
    %3969 = vmatpush1.msra.mxu0 0.0
    %3970 = vmatprep.subr.mxu0 0.0
    %3971 = vmatpush1.msra.mxu0 0.0
    %3972 = vmatprep.subr.mxu0 0.0
    %3973 = vmatpush1.msra.mxu0 0.0
    %3974 = vmatprep.subr.mxu0 0.0
    %3975 = vmatpush1.msra.mxu0 0.0
    %3976 = vmatprep.subr.mxu0 0.0
    %3977 = vmatpush1.msra.mxu0 0.0
    %3978 = vmatprep.subr.mxu0 0.0
    %3979 = vmatpush1.msra.mxu0 0.0
    %3980 = vmatprep.subr.mxu0 0.0
    %3981 = vmatpush1.msra.mxu0 0.0
    %3982 = vmatprep.subr.mxu0 0.0
    %3983 = vmatpush1.msra.mxu0 0.0
    %3984 = vmatprep.subr.mxu0 0.0
    %3985 = vmatpush1.msra.mxu0 0.0
    %3986 = vmatprep.subr.mxu0 0.0
    %3987 = vmatpush1.msra.mxu0 0.0
    %3988 = vmatprep.subr.mxu0 0.0
    %3989 = vmatpush1.msra.mxu0 0.0
    %3990 = vmatprep.subr.mxu0 0.0
    %3991 = vmatpush1.msra.mxu0 0.0
    %3992 = vmatprep.subr.mxu0 0.0
    %3993 = vmatpush1.msra.mxu0 0.0
    %3994 = vmatprep.subr.mxu0 0.0
    %3995 = vmatpush1.msra.mxu0 0.0
    %3996 = vmatprep.subr.mxu0 0.0
    %3997 = vmatpush1.msra.mxu0 0.0
    %3998 = vmatprep.subr.mxu0 0.0
    %3999 = vmatpush1.msra.mxu0 0.0
    %4000 = vmatprep.subr.mxu0 0.0
    %4001 = vmatpush1.msra.mxu0 0.0
    %4002 = vmatprep.subr.mxu0 0.0
    %4003 = vmatpush1.msra.mxu0 0.0
    %4004 = vmatprep.mubr.f32.mxu0 0.0
    %4005 = vmatmul.mubr.f32.gmra.mrb[0].mxu0 %v3681
    %v4006 = vpop.f32.mrb[0].mxu0
    %v4007 = vadd.f32 %v3894, %v4006
    %v4008 = vpop.f32.mrb[0].mxu0
    %v4009 = vadd.f32 %v3896, %v4008
    %4010 = vmatprep.mubr.f32.mxu0 0.0
    %4011 = vmatmul.mubr.f32.gmra.mrb[0].mxu0 %v3684
    %v4012 = vpop.f32.mrb[0].mxu0
    %v4013 = vadd.f32 %v3900, %v4012
    %v4014 = vpop.f32.mrb[0].mxu0
    %v4015 = vadd.f32 %v3902, %v4014
    %4016 = vmatprep.mubr.f32.mxu0 0.0
    %4017 = vmatmul.mubr.f32.gmra.mrb[0].mxu0 %v3687
    %v4018 = vpop.f32.mrb[0].mxu0
    %v4019 = vadd.f32 %v3906, %v4018
    %v4020 = vpop.f32.mrb[0].mxu0
    %v4021 = vadd.f32 %v3908, %v4020
    %4022 = vmatprep.mubr.f32.mxu0 0.0
    %4023 = vmatmul.mubr.f32.gmra.mrb[0].mxu0 %v3690
    %v4024 = vpop.f32.mrb[0].mxu0
    %v4025 = vadd.f32 %v3912, %v4024
    %v4026 = vpop.f32.mrb[0].mxu0
    %v4027 = vadd.f32 %v3914, %v4026
    %4028 = vmatprep.mubr.f32.mxu0 0.0
    %4029 = vmatmul.mubr.f32.gmra.mrb[0].mxu0 %v3693
    %v4030 = vpop.f32.mrb[0].mxu0
    %v4031 = vadd.f32 %v3918, %v4030
    %v4032 = vpop.f32.mrb[0].mxu0
    %v4033 = vadd.f32 %v3920, %v4032
    %4034 = vmatprep.mubr.f32.mxu0 0.0
    %4035 = vmatmul.mubr.f32.gmra.mrb[0].mxu0 %v3696
    %v4036 = vpop.f32.mrb[0].mxu0
    %v4037 = vadd.f32 %v3924, %v4036
    %v4038 = vpop.f32.mrb[0].mxu0
    %v4039 = vadd.f32 %v3926, %v4038
    %4040 = vmatprep.mubr.f32.mxu0 0.0
    %4041 = vmatmul.mubr.f32.gmra.mrb[0].mxu0 %v3699
    %v4042 = vpop.f32.mrb[0].mxu0
    %v4043 = vadd.f32 %v3930, %v4042
    %v4044 = vpop.f32.mrb[0].mxu0
    %v4045 = vadd.f32 %v3932, %v4044
    %4046 = vmatprep.mubr.f32.mxu0 0.0
    %4047 = vmatmul.mubr.f32.gmra.mrb[0].mxu0 %v3702
    %v4048 = vpop.f32.mrb[0].mxu0
    %v4049 = vadd.f32 %v3936, %v4048
    %v4050 = vpop.f32.mrb[0].mxu0
    %v4051 = vadd.f32 %v3938, %v4050
    %4052 = vdwg.mxu0
    %4053 = vmatprep.subr.mxu0 0.0
    %4054 = vmatpush1.msra.mxu0 %v3453
    %4055 = vmatprep.subr.mxu0 0.0
    %4056 = vmatpush1.msra.mxu0 %v3456
    %4057 = vmatprep.subr.mxu0 0.0
    %4058 = vmatpush1.msra.mxu0 %v3459
    %4059 = vmatprep.subr.mxu0 0.0
    %4060 = vmatpush1.msra.mxu0 %v3462
    %4061 = vmatprep.subr.mxu0 0.0
    %4062 = vmatpush1.msra.mxu0 %v3465
    %4063 = vmatprep.subr.mxu0 0.0
    %4064 = vmatpush1.msra.mxu0 %v3468
    %4065 = vmatprep.subr.mxu0 0.0
    %4066 = vmatpush1.msra.mxu0 %v3471
    %4067 = vmatprep.subr.mxu0 0.0
    %4068 = vmatpush1.msra.mxu0 %v3474
    %4069 = vmatprep.subr.mxu0 0.0
    %4070 = vmatpush1.msra.mxu0 %v3477
    %4071 = vmatprep.subr.mxu0 0.0
    %4072 = vmatpush1.msra.mxu0 %v3480
    %4073 = vmatprep.subr.mxu0 0.0
    %4074 = vmatpush1.msra.mxu0 %v3483
    %4075 = vmatprep.subr.mxu0 0.0
    %4076 = vmatpush1.msra.mxu0 %v3486
    %4077 = vmatprep.subr.mxu0 0.0
    %4078 = vmatpush1.msra.mxu0 %v3489
    %4079 = vmatprep.subr.mxu0 0.0
    %4080 = vmatpush1.msra.mxu0 %v3492
    %4081 = vmatprep.subr.mxu0 0.0
    %4082 = vmatpush1.msra.mxu0 %v3495
    %4083 = vmatprep.subr.mxu0 0.0
    %4084 = vmatpush1.msra.mxu0 %v3498
    %4085 = vmatprep.subr.mxu0 0.0
    %4086 = vmatpush1.msra.mxu0 %v3501
    %4087 = vmatprep.subr.mxu0 0.0
    %4088 = vmatpush1.msra.mxu0 %v3504
    %4089 = vmatprep.subr.mxu0 0.0
    %4090 = vmatpush1.msra.mxu0 %v3507
    %4091 = vmatprep.subr.mxu0 0.0
    %4092 = vmatpush1.msra.mxu0 %v3510
    %4093 = vmatprep.subr.mxu0 0.0
    %4094 = vmatpush1.msra.mxu0 %v3513
    %4095 = vmatprep.subr.mxu0 0.0
    %4096 = vmatpush1.msra.mxu0 %v3516
    %4097 = vmatprep.subr.mxu0 0.0
    %4098 = vmatpush1.msra.mxu0 %v3519
    %4099 = vmatprep.subr.mxu0 0.0
    %4100 = vmatpush1.msra.mxu0 %v3522
    %4101 = vmatprep.subr.mxu0 0.0
    %4102 = vmatpush1.msra.mxu0 %v3525
    %4103 = vmatprep.subr.mxu0 0.0
    %4104 = vmatpush1.msra.mxu0 %v3528
    %4105 = vmatprep.subr.mxu0 0.0
    %4106 = vmatpush1.msra.mxu0 %v3531
    %4107 = vmatprep.subr.mxu0 0.0
    %4108 = vmatpush1.msra.mxu0 %v3534
    %4109 = vmatprep.subr.mxu0 0.0
    %4110 = vmatpush1.msra.mxu0 %v3537
    %4111 = vmatprep.subr.mxu0 0.0
    %4112 = vmatpush1.msra.mxu0 %v3540
    %4113 = vmatprep.subr.mxu0 0.0
    %4114 = vmatpush1.msra.mxu0 %v3543
    %4115 = vmatprep.subr.mxu0 0.0
    %4116 = vmatpush1.msra.mxu0 %v3546
    %4117 = vmatprep.mubr.f32.mxu0 %v3412
    %4118 = vmatmul.mubr.f32.gmra.mrb[0].mxu0 %v3411
    %v4119 = vpop.f32.mrb[0].mxu0
    %v4120 = vadd.f32 0.0, %v4119
    %v4121 = vpop.f32.mrb[0].mxu0
    %4122 = vmatprep.mubr.f32.mxu0 %v3417
    %4123 = vmatmul.mubr.f32.gmra.mrb[0].mxu0 %v3416
    %v4124 = vpop.f32.mrb[0].mxu0
    %v4125 = vadd.f32 0.0, %v4124
    %v4126 = vpop.f32.mrb[0].mxu0
    %4127 = vmatprep.mubr.f32.mxu0 %v3422
    %4128 = vmatmul.mubr.f32.gmra.mrb[0].mxu0 %v3421
    %v4129 = vpop.f32.mrb[0].mxu0
    %v4130 = vadd.f32 0.0, %v4129
    %v4131 = vpop.f32.mrb[0].mxu0
    %4132 = vmatprep.mubr.f32.mxu0 %v3427
    %4133 = vmatmul.mubr.f32.gmra.mrb[0].mxu0 %v3426
    %v4134 = vpop.f32.mrb[0].mxu0
    %v4135 = vadd.f32 0.0, %v4134
    %v4136 = vpop.f32.mrb[0].mxu0
    %4137 = vmatprep.mubr.f32.mxu0 %v3432
    %4138 = vmatmul.mubr.f32.gmra.mrb[0].mxu0 %v3431
    %v4139 = vpop.f32.mrb[0].mxu0
    %v4140 = vadd.f32 0.0, %v4139
    %v4141 = vpop.f32.mrb[0].mxu0
    %4142 = vmatprep.mubr.f32.mxu0 %v3437
    %4143 = vmatmul.mubr.f32.gmra.mrb[0].mxu0 %v3436
    %v4144 = vpop.f32.mrb[0].mxu0
    %v4145 = vadd.f32 0.0, %v4144
    %v4146 = vpop.f32.mrb[0].mxu0
    %4147 = vmatprep.mubr.f32.mxu0 %v3442
    %4148 = vmatmul.mubr.f32.gmra.mrb[0].mxu0 %v3441
    %v4149 = vpop.f32.mrb[0].mxu0
    %v4150 = vadd.f32 0.0, %v4149
    %v4151 = vpop.f32.mrb[0].mxu0
    %4152 = vmatprep.mubr.f32.mxu0 %v3447
    %4153 = vmatmul.mubr.f32.gmra.mrb[0].mxu0 %v3446
    %v4154 = vpop.f32.mrb[0].mxu0
    %v4155 = vadd.f32 0.0, %v4154
    %v4156 = vpop.f32.mrb[0].mxu0
    %4157 = vdwg.mxu0
    %4158 = vmatprep.subr.mxu0 0.0
    %4159 = vmatpush1.msra.mxu0 %v3549
    %4160 = vmatprep.subr.mxu0 0.0
    %4161 = vmatpush1.msra.mxu0 %v3552
    %4162 = vmatprep.subr.mxu0 0.0
    %4163 = vmatpush1.msra.mxu0 %v3555
    %4164 = vmatprep.subr.mxu0 0.0
    %4165 = vmatpush1.msra.mxu0 %v3558
    %4166 = vmatprep.subr.mxu0 0.0
    %4167 = vmatpush1.msra.mxu0 %v3561
    %4168 = vmatprep.subr.mxu0 0.0
    %4169 = vmatpush1.msra.mxu0 %v3564
    %4170 = vmatprep.subr.mxu0 0.0
    %4171 = vmatpush1.msra.mxu0 %v3567
    %4172 = vmatprep.subr.mxu0 0.0
    %4173 = vmatpush1.msra.mxu0 %v3570
    %4174 = vmatprep.subr.mxu0 0.0
    %4175 = vmatpush1.msra.mxu0 %v3573
    %4176 = vmatprep.subr.mxu0 0.0
    %4177 = vmatpush1.msra.mxu0 %v3576
    %4178 = vmatprep.subr.mxu0 0.0
    %4179 = vmatpush1.msra.mxu0 %v3579
    %4180 = vmatprep.subr.mxu0 0.0
    %4181 = vmatpush1.msra.mxu0 %v3582
    %4182 = vmatprep.subr.mxu0 0.0
    %4183 = vmatpush1.msra.mxu0 %v3585
    %4184 = vmatprep.subr.mxu0 0.0
    %4185 = vmatpush1.msra.mxu0 %v3588
    %4186 = vmatprep.subr.mxu0 0.0
    %4187 = vmatpush1.msra.mxu0 %v3591
    %4188 = vmatprep.subr.mxu0 0.0
    %4189 = vmatpush1.msra.mxu0 %v3594
    %4190 = vmatprep.subr.mxu0 0.0
    %4191 = vmatpush1.msra.mxu0 %v3597
    %4192 = vmatprep.subr.mxu0 0.0
    %4193 = vmatpush1.msra.mxu0 %v3600
    %4194 = vmatprep.subr.mxu0 0.0
    %4195 = vmatpush1.msra.mxu0 %v3603
    %4196 = vmatprep.subr.mxu0 0.0
    %4197 = vmatpush1.msra.mxu0 %v3606
    %4198 = vmatprep.subr.mxu0 0.0
    %4199 = vmatpush1.msra.mxu0 %v3609
    %4200 = vmatprep.subr.mxu0 0.0
    %4201 = vmatpush1.msra.mxu0 %v3612
    %4202 = vmatprep.subr.mxu0 0.0
    %4203 = vmatpush1.msra.mxu0 %v3615
    %4204 = vmatprep.subr.mxu0 0.0
    %4205 = vmatpush1.msra.mxu0 %v3618
    %4206 = vmatprep.subr.mxu0 0.0
    %4207 = vmatpush1.msra.mxu0 %v3621
    %4208 = vmatprep.subr.mxu0 0.0
    %4209 = vmatpush1.msra.mxu0 %v3624
    %4210 = vmatprep.subr.mxu0 0.0
    %4211 = vmatpush1.msra.mxu0 %v3627
    %4212 = vmatprep.subr.mxu0 0.0
    %4213 = vmatpush1.msra.mxu0 %v3630
    %4214 = vmatprep.subr.mxu0 0.0
    %4215 = vmatpush1.msra.mxu0 %v3633
    %4216 = vmatprep.subr.mxu0 0.0
    %4217 = vmatpush1.msra.mxu0 %v3636
    %4218 = vmatprep.subr.mxu0 0.0
    %4219 = vmatpush1.msra.mxu0 %v3639
    %4220 = vmatprep.subr.mxu0 0.0
    %4221 = vmatpush1.msra.mxu0 %v3642
    %4222 = vmatprep.mubr.f32.mxu0 %v3414
    %4223 = vmatmul.mubr.f32.gmra.mrb[0].mxu0 %v3413
    %v4224 = vpop.f32.mrb[0].mxu0
    %v4225 = vadd.f32 %v4120, %v4224
    %v4226 = vpop.f32.mrb[0].mxu0
    %4227 = vmatprep.mubr.f32.mxu0 %v3419
    %4228 = vmatmul.mubr.f32.gmra.mrb[0].mxu0 %v3418
    %v4229 = vpop.f32.mrb[0].mxu0
    %v4230 = vadd.f32 %v4125, %v4229
    %v4231 = vpop.f32.mrb[0].mxu0
    %4232 = vmatprep.mubr.f32.mxu0 %v3424
    %4233 = vmatmul.mubr.f32.gmra.mrb[0].mxu0 %v3423
    %v4234 = vpop.f32.mrb[0].mxu0
    %v4235 = vadd.f32 %v4130, %v4234
    %v4236 = vpop.f32.mrb[0].mxu0
    %4237 = vmatprep.mubr.f32.mxu0 %v3429
    %4238 = vmatmul.mubr.f32.gmra.mrb[0].mxu0 %v3428
    %v4239 = vpop.f32.mrb[0].mxu0
    %v4240 = vadd.f32 %v4135, %v4239
    %v4241 = vpop.f32.mrb[0].mxu0
    %4242 = vmatprep.mubr.f32.mxu0 %v3434
    %4243 = vmatmul.mubr.f32.gmra.mrb[0].mxu0 %v3433
    %v4244 = vpop.f32.mrb[0].mxu0
    %v4245 = vadd.f32 %v4140, %v4244
    %v4246 = vpop.f32.mrb[0].mxu0
    %4247 = vmatprep.mubr.f32.mxu0 %v3439
    %4248 = vmatmul.mubr.f32.gmra.mrb[0].mxu0 %v3438
    %v4249 = vpop.f32.mrb[0].mxu0
    %v4250 = vadd.f32 %v4145, %v4249
    %v4251 = vpop.f32.mrb[0].mxu0
    %4252 = vmatprep.mubr.f32.mxu0 %v3444
    %4253 = vmatmul.mubr.f32.gmra.mrb[0].mxu0 %v3443
    %v4254 = vpop.f32.mrb[0].mxu0
    %v4255 = vadd.f32 %v4150, %v4254
    %v4256 = vpop.f32.mrb[0].mxu0
    %4257 = vmatprep.mubr.f32.mxu0 %v3449
    %4258 = vmatmul.mubr.f32.gmra.mrb[0].mxu0 %v3448
    %v4259 = vpop.f32.mrb[0].mxu0
    %v4260 = vadd.f32 %v4155, %v4259
    %v4261 = vpop.f32.mrb[0].mxu0
    %4262 = vdwg.mxu0
    %4263 = vmatprep.subr.mxu0 0.0
    %4264 = vmatpush1.msra.mxu0 %v3645
    %4265 = vmatprep.subr.mxu0 0.0
    %4266 = vmatpush1.msra.mxu0 %v3648
    %4267 = vmatprep.subr.mxu0 0.0
    %4268 = vmatpush1.msra.mxu0 %v3651
    %4269 = vmatprep.subr.mxu0 0.0
    %4270 = vmatpush1.msra.mxu0 %v3654
    %4271 = vmatprep.subr.mxu0 0.0
    %4272 = vmatpush1.msra.mxu0 %v3657
    %4273 = vmatprep.subr.mxu0 0.0
    %4274 = vmatpush1.msra.mxu0 %v3660
    %4275 = vmatprep.subr.mxu0 0.0
    %4276 = vmatpush1.msra.mxu0 %v3663
    %4277 = vmatprep.subr.mxu0 0.0
    %4278 = vmatpush1.msra.mxu0 %v3666
    %4279 = vmatprep.subr.mxu0 0.0
    %4280 = vmatpush1.msra.mxu0 %v3669
    %4281 = vmatprep.subr.mxu0 0.0
    %4282 = vmatpush1.msra.mxu0 %v3672
    %4283 = vmatprep.subr.mxu0 0.0
    %4284 = vmatpush1.msra.mxu0 %v3675
    %4285 = vmatprep.subr.mxu0 0.0
    %4286 = vmatpush1.msra.mxu0 %v3712
    %4287 = vmatprep.subr.mxu0 0.0
    %4288 = vmatpush1.msra.mxu0 0.0
    %4289 = vmatprep.subr.mxu0 0.0
    %4290 = vmatpush1.msra.mxu0 0.0
    %4291 = vmatprep.subr.mxu0 0.0
    %4292 = vmatpush1.msra.mxu0 0.0
    %4293 = vmatprep.subr.mxu0 0.0
    %4294 = vmatpush1.msra.mxu0 0.0
    %4295 = vmatprep.subr.mxu0 0.0
    %4296 = vmatpush1.msra.mxu0 0.0
    %4297 = vmatprep.subr.mxu0 0.0
    %4298 = vmatpush1.msra.mxu0 0.0
    %4299 = vmatprep.subr.mxu0 0.0
    %4300 = vmatpush1.msra.mxu0 0.0
    %4301 = vmatprep.subr.mxu0 0.0
    %4302 = vmatpush1.msra.mxu0 0.0
    %4303 = vmatprep.subr.mxu0 0.0
    %4304 = vmatpush1.msra.mxu0 0.0
    %4305 = vmatprep.subr.mxu0 0.0
    %4306 = vmatpush1.msra.mxu0 0.0
    %4307 = vmatprep.subr.mxu0 0.0
    %4308 = vmatpush1.msra.mxu0 0.0
    %4309 = vmatprep.subr.mxu0 0.0
    %4310 = vmatpush1.msra.mxu0 0.0
    %4311 = vmatprep.subr.mxu0 0.0
    %4312 = vmatpush1.msra.mxu0 0.0
    %4313 = vmatprep.subr.mxu0 0.0
    %4314 = vmatpush1.msra.mxu0 0.0
    %4315 = vmatprep.subr.mxu0 0.0
    %4316 = vmatpush1.msra.mxu0 0.0
    %4317 = vmatprep.subr.mxu0 0.0
    %4318 = vmatpush1.msra.mxu0 0.0
    %4319 = vmatprep.subr.mxu0 0.0
    %4320 = vmatpush1.msra.mxu0 0.0
    %4321 = vmatprep.subr.mxu0 0.0
    %4322 = vmatpush1.msra.mxu0 0.0
    %4323 = vmatprep.subr.mxu0 0.0
    %4324 = vmatpush1.msra.mxu0 0.0
    %4325 = vmatprep.subr.mxu0 0.0
    %4326 = vmatpush1.msra.mxu0 0.0
    %4327 = vmatprep.mubr.f32.mxu0 0.0
    %4328 = vmatmul.mubr.f32.gmra.mrb[0].mxu0 %v3681
    %v4329 = vpop.f32.mrb[0].mxu0
    %v4330 = vadd.f32 %v4225, %v4329
    %v4331 = vpop.f32.mrb[0].mxu0
    %4332 = vmatprep.mubr.f32.mxu0 0.0
    %4333 = vmatmul.mubr.f32.gmra.mrb[0].mxu0 %v3684
    %v4334 = vpop.f32.mrb[0].mxu0
    %v4335 = vadd.f32 %v4230, %v4334
    %v4336 = vpop.f32.mrb[0].mxu0
    %4337 = vmatprep.mubr.f32.mxu0 0.0
    %4338 = vmatmul.mubr.f32.gmra.mrb[0].mxu0 %v3687
    %v4339 = vpop.f32.mrb[0].mxu0
    %v4340 = vadd.f32 %v4235, %v4339
    %v4341 = vpop.f32.mrb[0].mxu0
    %4342 = vmatprep.mubr.f32.mxu0 0.0
    %4343 = vmatmul.mubr.f32.gmra.mrb[0].mxu0 %v3690
    %v4344 = vpop.f32.mrb[0].mxu0
    %v4345 = vadd.f32 %v4240, %v4344
    %v4346 = vpop.f32.mrb[0].mxu0
    %4347 = vmatprep.mubr.f32.mxu0 0.0
    %4348 = vmatmul.mubr.f32.gmra.mrb[0].mxu0 %v3693
    %v4349 = vpop.f32.mrb[0].mxu0
    %v4350 = vadd.f32 %v4245, %v4349
    %v4351 = vpop.f32.mrb[0].mxu0
    %4352 = vmatprep.mubr.f32.mxu0 0.0
    %4353 = vmatmul.mubr.f32.gmra.mrb[0].mxu0 %v3696
    %v4354 = vpop.f32.mrb[0].mxu0
    %v4355 = vadd.f32 %v4250, %v4354
    %v4356 = vpop.f32.mrb[0].mxu0
    %4357 = vmatprep.mubr.f32.mxu0 0.0
    %4358 = vmatmul.mubr.f32.gmra.mrb[0].mxu0 %v3699
    %v4359 = vpop.f32.mrb[0].mxu0
    %v4360 = vadd.f32 %v4255, %v4359
    %v4361 = vpop.f32.mrb[0].mxu0
    %4362 = vmatprep.mubr.f32.mxu0 0.0
    %4363 = vmatmul.mubr.f32.gmra.mrb[0].mxu0 %v3702
    %v4364 = vpop.f32.mrb[0].mxu0
    %v4365 = vadd.f32 %v4260, %v4364
    %v4366 = vpop.f32.mrb[0].mxu0
    %4367 = vdwg.mxu0
    %v4368 = vld [vmem:[%s3] sm:$0xff]
    %v4369 = vld [vmem:[%s3 + $0x8] sm:$0xff]
    %v4370 = vld [vmem:[%s3 + $0x10] sm:$0xff]
    %v4371 = vld [vmem:[%s3 + $0x18] sm:$0xff]
    %v4372 = vld [vmem:[%s3 + $0x20] sm:$0xff]
    %v4373 = vld [vmem:[%s3 + $0x28] sm:$0xff]
    %v4374 = vld [vmem:[%s3 + $0x30] sm:$0xff]
    %v4375 = vld [vmem:[%s3 + $0x38] sm:$0xff]
    %v4376 = vld [vmem:[%s3 + $0x40] sm:$0xff]
    %v4377 = vld [vmem:[%s3 + $0x48] sm:$0xff]
    %v4378 = vld [vmem:[%s3 + $0x50] sm:$0xff]
    %v4379 = vld [vmem:[%s3 + $0x58] sm:$0xff]
    %v4380 = vld [vmem:[%s3 + $0x60] sm:$0xff]
    %s4381 = scalar_lea.vmem %s3, 104
    %v4382 = vld [vmem:[%s4381] sm:$0xff]
    %v4383 = vld [vmem:[%s4381 + $0x8] sm:$0xff]
    %v4384 = vld [vmem:[%s4381 + $0x10] sm:$0xff]
    %v4385 = vld [vmem:[%s4381 + $0x18] sm:$0xff]
    %v4386 = vld [vmem:[%s4381 + $0x20] sm:$0xff]
    %v4387 = vld [vmem:[%s4381 + $0x28] sm:$0xff]
    %v4388 = vld [vmem:[%s4381 + $0x30] sm:$0xff]
    %v4389 = vld [vmem:[%s4381 + $0x38] sm:$0xff]
    %v4390 = vld [vmem:[%s4381 + $0x40] sm:$0xff]
    %v4391 = vld [vmem:[%s4381 + $0x48] sm:$0xff]
    %v4392 = vld [vmem:[%s4381 + $0x50] sm:$0xff]
    %v4393 = vld [vmem:[%s4381 + $0x58] sm:$0xff]
    %v4394 = vld [vmem:[%s4381 + $0x60] sm:$0xff]
    %4419 = vrot.lane.b32.xlu0 %v4007, 127
    %v4420 = vpop.permute.xlu0 %4419
    %4421 = vrot.lane.b32.xlu0 %v4009, 127
    %v4422 = vpop.permute.xlu0 %4421
    %4423 = vrot.lane.b32.xlu0 %v4330, 127
    %v4424 = vpop.permute.xlu0 %4423
    %4425 = vrot.lane.b32.xlu0 %v4013, 127
    %v4426 = vpop.permute.xlu0 %4425
    %4427 = vrot.lane.b32.xlu0 %v4015, 127
    %v4428 = vpop.permute.xlu0 %4427
    %4429 = vrot.lane.b32.xlu0 %v4335, 127
    %v4430 = vpop.permute.xlu0 %4429
    %4431 = vrot.lane.b32.xlu0 %v4019, 127
    %v4432 = vpop.permute.xlu0 %4431
    %4433 = vrot.lane.b32.xlu0 %v4021, 127
    %v4434 = vpop.permute.xlu0 %4433
    %4435 = vrot.lane.b32.xlu0 %v4340, 127
    %v4436 = vpop.permute.xlu0 %4435
    %4437 = vrot.lane.b32.xlu0 %v4025, 127
    %v4438 = vpop.permute.xlu0 %4437
    %4439 = vrot.lane.b32.xlu0 %v4027, 127
    %v4440 = vpop.permute.xlu0 %4439
    %4441 = vrot.lane.b32.xlu0 %v4345, 127
    %v4442 = vpop.permute.xlu0 %4441
    %4443 = vrot.lane.b32.xlu0 %v4031, 127
    %v4444 = vpop.permute.xlu0 %4443
    %4445 = vrot.lane.b32.xlu0 %v4033, 127
    %v4446 = vpop.permute.xlu0 %4445
    %4447 = vrot.lane.b32.xlu0 %v4350, 127
    %v4448 = vpop.permute.xlu0 %4447
    %4449 = vrot.lane.b32.xlu0 %v4037, 127
    %v4450 = vpop.permute.xlu0 %4449
    %4451 = vrot.lane.b32.xlu0 %v4039, 127
    %v4452 = vpop.permute.xlu0 %4451
    %4453 = vrot.lane.b32.xlu0 %v4355, 127
    %v4454 = vpop.permute.xlu0 %4453
    %4455 = vrot.lane.b32.xlu0 %v4043, 127
    %v4456 = vpop.permute.xlu0 %4455
    %4457 = vrot.lane.b32.xlu0 %v4045, 127
    %v4458 = vpop.permute.xlu0 %4457
    %4459 = vrot.lane.b32.xlu0 %v4360, 127
    %v4460 = vpop.permute.xlu0 %4459
    %4461 = vrot.lane.b32.xlu0 %v4049, 127
    %v4462 = vpop.permute.xlu0 %4461
    %4463 = vrot.lane.b32.xlu0 %v4051, 127
    %v4464 = vpop.permute.xlu0 %4463
    %4465 = vrot.lane.b32.xlu0 %v4365, 127
    %v4466 = vpop.permute.xlu0 %4465
    %v4467 = vsel %vm157, %v4420, %v4422
    %v4468 = vsel %vm157, %v4422, %v4424
    %v4469 = vsel %vm157, %v4426, %v4428
    %v4470 = vsel %vm157, %v4428, %v4430
    %v4471 = vsel %vm157, %v4432, %v4434
    %v4472 = vsel %vm157, %v4434, %v4436
    %v4473 = vsel %vm157, %v4438, %v4440
    %v4474 = vsel %vm157, %v4440, %v4442
    %v4475 = vsel %vm157, %v4444, %v4446
    %v4476 = vsel %vm157, %v4446, %v4448
    %v4477 = vsel %vm157, %v4450, %v4452
    %v4478 = vsel %vm157, %v4452, %v4454
    %v4479 = vsel %vm157, %v4456, %v4458
    %v4480 = vsel %vm157, %v4458, %v4460
    %v4481 = vsel %vm157, %v4462, %v4464
    %v4482 = vsel %vm157, %v4464, %v4466
    %vm4504 = vcmask 490496
    %v4506 = vsel %vm4504, %v4382, 0
    %v4509 = vsel %vm4504, %v4383, 0
    %v4512 = vsel %vm4504, %v4384, 0
    %v4515 = vsel %vm4504, %v4385, 0
    %v4518 = vsel %vm4504, %v4386, 0
    %v4521 = vsel %vm4504, %v4387, 0
    %v4524 = vsel %vm4504, %v4388, 0
    %v4527 = vsel %vm4504, %v4389, 0
    %v4530 = vsel %vm4504, %v4390, 0
    %v4533 = vsel %vm4504, %v4391, 0
    %v4536 = vsel %vm4504, %v4392, 0
    %v4539 = vsel %vm4504, %v4393, 0
    %v4542 = vsel %vm4504, %v4394, 0
    %v4544 = vsel %vm3704, %v4481, 0
    %v4546 = vsel %vm3704, %v4482, 0
    %v4548 = vsel %vm3704, %v4466, 0
    %4550 = vmatprep.subr.mxu0 %v4468
    %4551 = vmatpush1.msra.mxu0 %v4467
    %4552 = vmatprep.subr.mxu0 %v4470
    %4553 = vmatpush1.msra.mxu0 %v4469
    %4554 = vmatprep.subr.mxu0 %v4472
    %4555 = vmatpush1.msra.mxu0 %v4471
    %4556 = vmatprep.subr.mxu0 %v4474
    %4557 = vmatpush1.msra.mxu0 %v4473
    %4558 = vmatprep.subr.mxu0 %v4476
    %4559 = vmatpush1.msra.mxu0 %v4475
    %4560 = vmatprep.subr.mxu0 %v4478
    %4561 = vmatpush1.msra.mxu0 %v4477
    %4562 = vmatprep.subr.mxu0 %v4480
    %4563 = vmatpush1.msra.mxu0 %v4479
    %4564 = vmatprep.subr.mxu0 %v4546
    %4565 = vmatpush1.msra.mxu0 %v4544
    %4566 = vmatprep.subr.mxu0 0.0
    %4567 = vmatpush1.msra.mxu0 0.0
    %4568 = vmatprep.subr.mxu0 0.0
    %4569 = vmatpush1.msra.mxu0 0.0
    %4570 = vmatprep.subr.mxu0 0.0
    %4571 = vmatpush1.msra.mxu0 0.0
    %4572 = vmatprep.subr.mxu0 0.0
    %4573 = vmatpush1.msra.mxu0 0.0
    %4574 = vmatprep.subr.mxu0 0.0
    %4575 = vmatpush1.msra.mxu0 0.0
    %4576 = vmatprep.subr.mxu0 0.0
    %4577 = vmatpush1.msra.mxu0 0.0
    %4578 = vmatprep.subr.mxu0 0.0
    %4579 = vmatpush1.msra.mxu0 0.0
    %4580 = vmatprep.subr.mxu0 0.0
    %4581 = vmatpush1.msra.mxu0 0.0
    %4582 = vmatprep.subr.mxu0 0.0
    %4583 = vmatpush1.msra.mxu0 0.0
    %4584 = vmatprep.subr.mxu0 0.0
    %4585 = vmatpush1.msra.mxu0 0.0
    %4586 = vmatprep.subr.mxu0 0.0
    %4587 = vmatpush1.msra.mxu0 0.0
    %4588 = vmatprep.subr.mxu0 0.0
    %4589 = vmatpush1.msra.mxu0 0.0
    %4590 = vmatprep.subr.mxu0 0.0
    %4591 = vmatpush1.msra.mxu0 0.0
    %4592 = vmatprep.subr.mxu0 0.0
    %4593 = vmatpush1.msra.mxu0 0.0
    %4594 = vmatprep.subr.mxu0 0.0
    %4595 = vmatpush1.msra.mxu0 0.0
    %4596 = vmatprep.subr.mxu0 0.0
    %4597 = vmatpush1.msra.mxu0 0.0
    %4598 = vmatprep.subr.mxu0 0.0
    %4599 = vmatpush1.msra.mxu0 0.0
    %4600 = vmatprep.subr.mxu0 0.0
    %4601 = vmatpush1.msra.mxu0 0.0
    %4602 = vmatprep.subr.mxu0 0.0
    %4603 = vmatpush1.msra.mxu0 0.0
    %4604 = vmatprep.subr.mxu0 0.0
    %4605 = vmatpush1.msra.mxu0 0.0
    %4606 = vmatprep.subr.mxu0 0.0
    %4607 = vmatpush1.msra.mxu0 0.0
    %4608 = vmatprep.subr.mxu0 0.0
    %4609 = vmatpush1.msra.mxu0 0.0
    %4610 = vmatprep.subr.mxu0 0.0
    %4611 = vmatpush1.msra.mxu0 0.0
    %4612 = vmatprep.subr.mxu0 0.0
    %4613 = vmatpush1.msra.mxu0 0.0
    %4614 = vmatprep.mubr.f32.mxu0 0.0
    %4615 = vmatmul.mubr.f32.gmra.mrb[0].mxu0 %v4506
    %v4616 = vpop.f32.mrb[0].mxu0
    %v4617 = vadd.f32 0.0, %v4616
    %v4618 = vpop.f32.mrb[0].mxu0
    %v4619 = vadd.f32 0.0, %v4618
    %4620 = vmatprep.mubr.f32.mxu0 0.0
    %4621 = vmatmul.mubr.f32.gmra.mrb[0].mxu0 %v4509
    %v4622 = vpop.f32.mrb[0].mxu0
    %v4623 = vadd.f32 0.0, %v4622
    %v4624 = vpop.f32.mrb[0].mxu0
    %v4625 = vadd.f32 0.0, %v4624
    %4626 = vmatprep.mubr.f32.mxu0 0.0
    %4627 = vmatmul.mubr.f32.gmra.mrb[0].mxu0 %v4512
    %v4628 = vpop.f32.mrb[0].mxu0
    %v4629 = vadd.f32 0.0, %v4628
    %v4630 = vpop.f32.mrb[0].mxu0
    %v4631 = vadd.f32 0.0, %v4630
    %4632 = vmatprep.mubr.f32.mxu0 0.0
    %4633 = vmatmul.mubr.f32.gmra.mrb[0].mxu0 %v4515
    %v4634 = vpop.f32.mrb[0].mxu0
    %v4635 = vadd.f32 0.0, %v4634
    %v4636 = vpop.f32.mrb[0].mxu0
    %v4637 = vadd.f32 0.0, %v4636
    %4638 = vmatprep.mubr.f32.mxu0 0.0
    %4639 = vmatmul.mubr.f32.gmra.mrb[0].mxu0 %v4518
    %v4640 = vpop.f32.mrb[0].mxu0
    %v4641 = vadd.f32 0.0, %v4640
    %v4642 = vpop.f32.mrb[0].mxu0
    %v4643 = vadd.f32 0.0, %v4642
    %4644 = vmatprep.mubr.f32.mxu0 0.0
    %4645 = vmatmul.mubr.f32.gmra.mrb[0].mxu0 %v4521
    %v4646 = vpop.f32.mrb[0].mxu0
    %v4647 = vadd.f32 0.0, %v4646
    %v4648 = vpop.f32.mrb[0].mxu0
    %v4649 = vadd.f32 0.0, %v4648
    %4650 = vmatprep.mubr.f32.mxu0 0.0
    %4651 = vmatmul.mubr.f32.gmra.mrb[0].mxu0 %v4524
    %v4652 = vpop.f32.mrb[0].mxu0
    %v4653 = vadd.f32 0.0, %v4652
    %v4654 = vpop.f32.mrb[0].mxu0
    %v4655 = vadd.f32 0.0, %v4654
    %4656 = vmatprep.mubr.f32.mxu0 0.0
    %4657 = vmatmul.mubr.f32.gmra.mrb[0].mxu0 %v4527
    %v4658 = vpop.f32.mrb[0].mxu0
    %v4659 = vadd.f32 0.0, %v4658
    %v4660 = vpop.f32.mrb[0].mxu0
    %v4661 = vadd.f32 0.0, %v4660
    %4662 = vmatprep.mubr.f32.mxu0 0.0
    %4663 = vmatmul.mubr.f32.gmra.mrb[0].mxu0 %v4530
    %v4664 = vpop.f32.mrb[0].mxu0
    %v4665 = vadd.f32 0.0, %v4664
    %v4666 = vpop.f32.mrb[0].mxu0
    %v4667 = vadd.f32 0.0, %v4666
    %4668 = vmatprep.mubr.f32.mxu0 0.0
    %4669 = vmatmul.mubr.f32.gmra.mrb[0].mxu0 %v4533
    %v4670 = vpop.f32.mrb[0].mxu0
    %v4671 = vadd.f32 0.0, %v4670
    %v4672 = vpop.f32.mrb[0].mxu0
    %v4673 = vadd.f32 0.0, %v4672
    %4674 = vmatprep.mubr.f32.mxu0 0.0
    %4675 = vmatmul.mubr.f32.gmra.mrb[0].mxu0 %v4536
    %v4676 = vpop.f32.mrb[0].mxu0
    %v4677 = vadd.f32 0.0, %v4676
    %v4678 = vpop.f32.mrb[0].mxu0
    %v4679 = vadd.f32 0.0, %v4678
    %4680 = vmatprep.mubr.f32.mxu0 0.0
    %4681 = vmatmul.mubr.f32.gmra.mrb[0].mxu0 %v4539
    %v4682 = vpop.f32.mrb[0].mxu0
    %v4683 = vadd.f32 0.0, %v4682
    %v4684 = vpop.f32.mrb[0].mxu0
    %v4685 = vadd.f32 0.0, %v4684
    %4686 = vmatprep.mubr.f32.mxu0 0.0
    %4687 = vmatmul.mubr.f32.gmra.mrb[0].mxu0 %v4542
    %v4688 = vpop.f32.mrb[0].mxu0
    %v4689 = vadd.f32 0.0, %v4688
    %v4690 = vpop.f32.mrb[0].mxu0
    %v4691 = vadd.f32 0.0, %v4690
    %4692 = vdwg.mxu0
    %4693 = vmatprep.subr.mxu0 0.0
    %4694 = vmatpush1.msra.mxu0 %v4424
    %4695 = vmatprep.subr.mxu0 0.0
    %4696 = vmatpush1.msra.mxu0 %v4430
    %4697 = vmatprep.subr.mxu0 0.0
    %4698 = vmatpush1.msra.mxu0 %v4436
    %4699 = vmatprep.subr.mxu0 0.0
    %4700 = vmatpush1.msra.mxu0 %v4442
    %4701 = vmatprep.subr.mxu0 0.0
    %4702 = vmatpush1.msra.mxu0 %v4448
    %4703 = vmatprep.subr.mxu0 0.0
    %4704 = vmatpush1.msra.mxu0 %v4454
    %4705 = vmatprep.subr.mxu0 0.0
    %4706 = vmatpush1.msra.mxu0 %v4460
    %4707 = vmatprep.subr.mxu0 0.0
    %4708 = vmatpush1.msra.mxu0 %v4548
    %4709 = vmatprep.subr.mxu0 0.0
    %4710 = vmatpush1.msra.mxu0 0.0
    %4711 = vmatprep.subr.mxu0 0.0
    %4712 = vmatpush1.msra.mxu0 0.0
    %4713 = vmatprep.subr.mxu0 0.0
    %4714 = vmatpush1.msra.mxu0 0.0
    %4715 = vmatprep.subr.mxu0 0.0
    %4716 = vmatpush1.msra.mxu0 0.0
    %4717 = vmatprep.subr.mxu0 0.0
    %4718 = vmatpush1.msra.mxu0 0.0
    %4719 = vmatprep.subr.mxu0 0.0
    %4720 = vmatpush1.msra.mxu0 0.0
    %4721 = vmatprep.subr.mxu0 0.0
    %4722 = vmatpush1.msra.mxu0 0.0
    %4723 = vmatprep.subr.mxu0 0.0
    %4724 = vmatpush1.msra.mxu0 0.0
    %4725 = vmatprep.subr.mxu0 0.0
    %4726 = vmatpush1.msra.mxu0 0.0
    %4727 = vmatprep.subr.mxu0 0.0
    %4728 = vmatpush1.msra.mxu0 0.0
    %4729 = vmatprep.subr.mxu0 0.0
    %4730 = vmatpush1.msra.mxu0 0.0
    %4731 = vmatprep.subr.mxu0 0.0
    %4732 = vmatpush1.msra.mxu0 0.0
    %4733 = vmatprep.subr.mxu0 0.0
    %4734 = vmatpush1.msra.mxu0 0.0
    %4735 = vmatprep.subr.mxu0 0.0
    %4736 = vmatpush1.msra.mxu0 0.0
    %4737 = vmatprep.subr.mxu0 0.0
    %4738 = vmatpush1.msra.mxu0 0.0
    %4739 = vmatprep.subr.mxu0 0.0
    %4740 = vmatpush1.msra.mxu0 0.0
    %4741 = vmatprep.subr.mxu0 0.0
    %4742 = vmatpush1.msra.mxu0 0.0
    %4743 = vmatprep.subr.mxu0 0.0
    %4744 = vmatpush1.msra.mxu0 0.0
    %4745 = vmatprep.subr.mxu0 0.0
    %4746 = vmatpush1.msra.mxu0 0.0
    %4747 = vmatprep.subr.mxu0 0.0
    %4748 = vmatpush1.msra.mxu0 0.0
    %4749 = vmatprep.subr.mxu0 0.0
    %4750 = vmatpush1.msra.mxu0 0.0
    %4751 = vmatprep.subr.mxu0 0.0
    %4752 = vmatpush1.msra.mxu0 0.0
    %4753 = vmatprep.subr.mxu0 0.0
    %4754 = vmatpush1.msra.mxu0 0.0
    %4755 = vmatprep.subr.mxu0 0.0
    %4756 = vmatpush1.msra.mxu0 0.0
    %4757 = vmatprep.mubr.f32.mxu0 0.0
    %4758 = vmatmul.mubr.f32.gmra.mrb[0].mxu0 %v4506
    %v4759 = vpop.f32.mrb[0].mxu0
    %v4760 = vadd.f32 0.0, %v4759
    %v4761 = vpop.f32.mrb[0].mxu0
    %4762 = vmatprep.mubr.f32.mxu0 0.0
    %4763 = vmatmul.mubr.f32.gmra.mrb[0].mxu0 %v4509
    %v4764 = vpop.f32.mrb[0].mxu0
    %v4765 = vadd.f32 0.0, %v4764
    %v4766 = vpop.f32.mrb[0].mxu0
    %4767 = vmatprep.mubr.f32.mxu0 0.0
    %4768 = vmatmul.mubr.f32.gmra.mrb[0].mxu0 %v4512
    %v4769 = vpop.f32.mrb[0].mxu0
    %v4770 = vadd.f32 0.0, %v4769
    %v4771 = vpop.f32.mrb[0].mxu0
    %4772 = vmatprep.mubr.f32.mxu0 0.0
    %4773 = vmatmul.mubr.f32.gmra.mrb[0].mxu0 %v4515
    %v4774 = vpop.f32.mrb[0].mxu0
    %v4775 = vadd.f32 0.0, %v4774
    %v4776 = vpop.f32.mrb[0].mxu0
    %4777 = vmatprep.mubr.f32.mxu0 0.0
    %4778 = vmatmul.mubr.f32.gmra.mrb[0].mxu0 %v4518
    %v4779 = vpop.f32.mrb[0].mxu0
    %v4780 = vadd.f32 0.0, %v4779
    %v4781 = vpop.f32.mrb[0].mxu0
    %4782 = vmatprep.mubr.f32.mxu0 0.0
    %4783 = vmatmul.mubr.f32.gmra.mrb[0].mxu0 %v4521
    %v4784 = vpop.f32.mrb[0].mxu0
    %v4785 = vadd.f32 0.0, %v4784
    %v4786 = vpop.f32.mrb[0].mxu0
    %4787 = vmatprep.mubr.f32.mxu0 0.0
    %4788 = vmatmul.mubr.f32.gmra.mrb[0].mxu0 %v4524
    %v4789 = vpop.f32.mrb[0].mxu0
    %v4790 = vadd.f32 0.0, %v4789
    %v4791 = vpop.f32.mrb[0].mxu0
    %4792 = vmatprep.mubr.f32.mxu0 0.0
    %4793 = vmatmul.mubr.f32.gmra.mrb[0].mxu0 %v4527
    %v4794 = vpop.f32.mrb[0].mxu0
    %v4795 = vadd.f32 0.0, %v4794
    %v4796 = vpop.f32.mrb[0].mxu0
    %4797 = vmatprep.mubr.f32.mxu0 0.0
    %4798 = vmatmul.mubr.f32.gmra.mrb[0].mxu0 %v4530
    %v4799 = vpop.f32.mrb[0].mxu0
    %v4800 = vadd.f32 0.0, %v4799
    %v4801 = vpop.f32.mrb[0].mxu0
    %4802 = vmatprep.mubr.f32.mxu0 0.0
    %4803 = vmatmul.mubr.f32.gmra.mrb[0].mxu0 %v4533
    %v4804 = vpop.f32.mrb[0].mxu0
    %v4805 = vadd.f32 0.0, %v4804
    %v4806 = vpop.f32.mrb[0].mxu0
    %4807 = vmatprep.mubr.f32.mxu0 0.0
    %4808 = vmatmul.mubr.f32.gmra.mrb[0].mxu0 %v4536
    %v4809 = vpop.f32.mrb[0].mxu0
    %v4810 = vadd.f32 0.0, %v4809
    %v4811 = vpop.f32.mrb[0].mxu0
    %4812 = vmatprep.mubr.f32.mxu0 0.0
    %4813 = vmatmul.mubr.f32.gmra.mrb[0].mxu0 %v4539
    %v4814 = vpop.f32.mrb[0].mxu0
    %v4815 = vadd.f32 0.0, %v4814
    %v4816 = vpop.f32.mrb[0].mxu0
    %4817 = vmatprep.mubr.f32.mxu0 0.0
    %4818 = vmatmul.mubr.f32.gmra.mrb[0].mxu0 %v4542
    %v4819 = vpop.f32.mrb[0].mxu0
    %v4820 = vadd.f32 0.0, %v4819
    %v4821 = vpop.f32.mrb[0].mxu0
    %4822 = vdwg.mxu0
    %v4824 = vsel %vm4504, %v4368, 0
    %v4827 = vsel %vm4504, %v4369, 0
    %v4830 = vsel %vm4504, %v4370, 0
    %v4833 = vsel %vm4504, %v4371, 0
    %v4836 = vsel %vm4504, %v4372, 0
    %v4839 = vsel %vm4504, %v4373, 0
    %v4842 = vsel %vm4504, %v4374, 0
    %v4845 = vsel %vm4504, %v4375, 0
    %v4848 = vsel %vm4504, %v4376, 0
    %v4851 = vsel %vm4504, %v4377, 0
    %v4854 = vsel %vm4504, %v4378, 0
    %v4857 = vsel %vm4504, %v4379, 0
    %v4860 = vsel %vm4504, %v4380, 0
    %v4862 = vsel %vm3704, %v4049, 0
    %v4864 = vsel %vm3704, %v4051, 0
    %v4866 = vsel %vm3704, %v4365, 0
    %4868 = vmatprep.subr.mxu0 %v4009
    %4869 = vmatpush1.msra.mxu0 %v4007
    %4870 = vmatprep.subr.mxu0 %v4015
    %4871 = vmatpush1.msra.mxu0 %v4013
    %4872 = vmatprep.subr.mxu0 %v4021
    %4873 = vmatpush1.msra.mxu0 %v4019
    %4874 = vmatprep.subr.mxu0 %v4027
    %4875 = vmatpush1.msra.mxu0 %v4025
    %4876 = vmatprep.subr.mxu0 %v4033
    %4877 = vmatpush1.msra.mxu0 %v4031
    %4878 = vmatprep.subr.mxu0 %v4039
    %4879 = vmatpush1.msra.mxu0 %v4037
    %4880 = vmatprep.subr.mxu0 %v4045
    %4881 = vmatpush1.msra.mxu0 %v4043
    %4882 = vmatprep.subr.mxu0 %v4864
    %4883 = vmatpush1.msra.mxu0 %v4862
    %4884 = vmatprep.subr.mxu0 0.0
    %4885 = vmatpush1.msra.mxu0 0.0
    %4886 = vmatprep.subr.mxu0 0.0
    %4887 = vmatpush1.msra.mxu0 0.0
    %4888 = vmatprep.subr.mxu0 0.0
    %4889 = vmatpush1.msra.mxu0 0.0
    %4890 = vmatprep.subr.mxu0 0.0
    %4891 = vmatpush1.msra.mxu0 0.0
    %4892 = vmatprep.subr.mxu0 0.0
    %4893 = vmatpush1.msra.mxu0 0.0
    %4894 = vmatprep.subr.mxu0 0.0
    %4895 = vmatpush1.msra.mxu0 0.0
    %4896 = vmatprep.subr.mxu0 0.0
    %4897 = vmatpush1.msra.mxu0 0.0
    %4898 = vmatprep.subr.mxu0 0.0
    %4899 = vmatpush1.msra.mxu0 0.0
    %4900 = vmatprep.subr.mxu0 0.0
    %4901 = vmatpush1.msra.mxu0 0.0
    %4902 = vmatprep.subr.mxu0 0.0
    %4903 = vmatpush1.msra.mxu0 0.0
    %4904 = vmatprep.subr.mxu0 0.0
    %4905 = vmatpush1.msra.mxu0 0.0
    %4906 = vmatprep.subr.mxu0 0.0
    %4907 = vmatpush1.msra.mxu0 0.0
    %4908 = vmatprep.subr.mxu0 0.0
    %4909 = vmatpush1.msra.mxu0 0.0
    %4910 = vmatprep.subr.mxu0 0.0
    %4911 = vmatpush1.msra.mxu0 0.0
    %4912 = vmatprep.subr.mxu0 0.0
    %4913 = vmatpush1.msra.mxu0 0.0
    %4914 = vmatprep.subr.mxu0 0.0
    %4915 = vmatpush1.msra.mxu0 0.0
    %4916 = vmatprep.subr.mxu0 0.0
    %4917 = vmatpush1.msra.mxu0 0.0
    %4918 = vmatprep.subr.mxu0 0.0
    %4919 = vmatpush1.msra.mxu0 0.0
    %4920 = vmatprep.subr.mxu0 0.0
    %4921 = vmatpush1.msra.mxu0 0.0
    %4922 = vmatprep.subr.mxu0 0.0
    %4923 = vmatpush1.msra.mxu0 0.0
    %4924 = vmatprep.subr.mxu0 0.0
    %4925 = vmatpush1.msra.mxu0 0.0
    %4926 = vmatprep.subr.mxu0 0.0
    %4927 = vmatpush1.msra.mxu0 0.0
    %4928 = vmatprep.subr.mxu0 0.0
    %4929 = vmatpush1.msra.mxu0 0.0
    %4930 = vmatprep.subr.mxu0 0.0
    %4931 = vmatpush1.msra.mxu0 0.0
    %4932 = vmatprep.mubr.f32.mxu0 0.0
    %4933 = vmatmul.mubr.f32.gmra.mrb[0].mxu0 %v4824
    %v4934 = vpop.f32.mrb[0].mxu0
    %v4935 = vadd.f32 %v4617, %v4934
    %v4936 = vpop.f32.mrb[0].mxu0
    %v4937 = vadd.f32 %v4619, %v4936
    %4938 = vmatprep.mubr.f32.mxu0 0.0
    %4939 = vmatmul.mubr.f32.gmra.mrb[0].mxu0 %v4827
    %v4940 = vpop.f32.mrb[0].mxu0
    %v4941 = vadd.f32 %v4623, %v4940
    %v4942 = vpop.f32.mrb[0].mxu0
    %v4943 = vadd.f32 %v4625, %v4942
    %4944 = vmatprep.mubr.f32.mxu0 0.0
    %4945 = vmatmul.mubr.f32.gmra.mrb[0].mxu0 %v4830
    %v4946 = vpop.f32.mrb[0].mxu0
    %v4947 = vadd.f32 %v4629, %v4946
    %v4948 = vpop.f32.mrb[0].mxu0
    %v4949 = vadd.f32 %v4631, %v4948
    %4950 = vmatprep.mubr.f32.mxu0 0.0
    %4951 = vmatmul.mubr.f32.gmra.mrb[0].mxu0 %v4833
    %v4952 = vpop.f32.mrb[0].mxu0
    %v4953 = vadd.f32 %v4635, %v4952
    %v4954 = vpop.f32.mrb[0].mxu0
    %v4955 = vadd.f32 %v4637, %v4954
    %4956 = vmatprep.mubr.f32.mxu0 0.0
    %4957 = vmatmul.mubr.f32.gmra.mrb[0].mxu0 %v4836
    %v4958 = vpop.f32.mrb[0].mxu0
    %v4959 = vadd.f32 %v4641, %v4958
    %v4960 = vpop.f32.mrb[0].mxu0
    %v4961 = vadd.f32 %v4643, %v4960
    %4962 = vmatprep.mubr.f32.mxu0 0.0
    %4963 = vmatmul.mubr.f32.gmra.mrb[0].mxu0 %v4839
    %v4964 = vpop.f32.mrb[0].mxu0
    %v4965 = vadd.f32 %v4647, %v4964
    %v4966 = vpop.f32.mrb[0].mxu0
    %v4967 = vadd.f32 %v4649, %v4966
    %4968 = vmatprep.mubr.f32.mxu0 0.0
    %4969 = vmatmul.mubr.f32.gmra.mrb[0].mxu0 %v4842
    %v4970 = vpop.f32.mrb[0].mxu0
    %v4971 = vadd.f32 %v4653, %v4970
    %v4972 = vpop.f32.mrb[0].mxu0
    %v4973 = vadd.f32 %v4655, %v4972
    %4974 = vmatprep.mubr.f32.mxu0 0.0
    %4975 = vmatmul.mubr.f32.gmra.mrb[0].mxu0 %v4845
    %v4976 = vpop.f32.mrb[0].mxu0
    %v4977 = vadd.f32 %v4659, %v4976
    %v4978 = vpop.f32.mrb[0].mxu0
    %v4979 = vadd.f32 %v4661, %v4978
    %4980 = vmatprep.mubr.f32.mxu0 0.0
    %4981 = vmatmul.mubr.f32.gmra.mrb[0].mxu0 %v4848
    %v4982 = vpop.f32.mrb[0].mxu0
    %v4983 = vadd.f32 %v4665, %v4982
    %v4984 = vpop.f32.mrb[0].mxu0
    %v4985 = vadd.f32 %v4667, %v4984
    %4986 = vmatprep.mubr.f32.mxu0 0.0
    %4987 = vmatmul.mubr.f32.gmra.mrb[0].mxu0 %v4851
    %v4988 = vpop.f32.mrb[0].mxu0
    %v4989 = vadd.f32 %v4671, %v4988
    %v4990 = vpop.f32.mrb[0].mxu0
    %v4991 = vadd.f32 %v4673, %v4990
    %4992 = vmatprep.mubr.f32.mxu0 0.0
    %4993 = vmatmul.mubr.f32.gmra.mrb[0].mxu0 %v4854
    %v4994 = vpop.f32.mrb[0].mxu0
    %v4995 = vadd.f32 %v4677, %v4994
    %v4996 = vpop.f32.mrb[0].mxu0
    %v4997 = vadd.f32 %v4679, %v4996
    %4998 = vmatprep.mubr.f32.mxu0 0.0
    %4999 = vmatmul.mubr.f32.gmra.mrb[0].mxu0 %v4857
    %v5000 = vpop.f32.mrb[0].mxu0
    %v5001 = vadd.f32 %v4683, %v5000
    %v5002 = vpop.f32.mrb[0].mxu0
    %v5003 = vadd.f32 %v4685, %v5002
    %5004 = vmatprep.mubr.f32.mxu0 0.0
    %5005 = vmatmul.mubr.f32.gmra.mrb[0].mxu0 %v4860
    %v5006 = vpop.f32.mrb[0].mxu0
    %v5007 = vadd.f32 %v4689, %v5006
    %v5008 = vpop.f32.mrb[0].mxu0
    %v5009 = vadd.f32 %v4691, %v5008
    %5010 = vdwg.mxu0
    %5011 = vmatprep.subr.mxu0 0.0
    %5012 = vmatpush1.msra.mxu0 %v4330
    %5013 = vmatprep.subr.mxu0 0.0
    %5014 = vmatpush1.msra.mxu0 %v4335
    %5015 = vmatprep.subr.mxu0 0.0
    %5016 = vmatpush1.msra.mxu0 %v4340
    %5017 = vmatprep.subr.mxu0 0.0
    %5018 = vmatpush1.msra.mxu0 %v4345
    %5019 = vmatprep.subr.mxu0 0.0
    %5020 = vmatpush1.msra.mxu0 %v4350
    %5021 = vmatprep.subr.mxu0 0.0
    %5022 = vmatpush1.msra.mxu0 %v4355
    %5023 = vmatprep.subr.mxu0 0.0
    %5024 = vmatpush1.msra.mxu0 %v4360
    %5025 = vmatprep.subr.mxu0 0.0
    %5026 = vmatpush1.msra.mxu0 %v4866
    %5027 = vmatprep.subr.mxu0 0.0
    %5028 = vmatpush1.msra.mxu0 0.0
    %5029 = vmatprep.subr.mxu0 0.0
    %5030 = vmatpush1.msra.mxu0 0.0
    %5031 = vmatprep.subr.mxu0 0.0
    %5032 = vmatpush1.msra.mxu0 0.0
    %5033 = vmatprep.subr.mxu0 0.0
    %5034 = vmatpush1.msra.mxu0 0.0
    %5035 = vmatprep.subr.mxu0 0.0
    %5036 = vmatpush1.msra.mxu0 0.0
    %5037 = vmatprep.subr.mxu0 0.0
    %5038 = vmatpush1.msra.mxu0 0.0
    %5039 = vmatprep.subr.mxu0 0.0
    %5040 = vmatpush1.msra.mxu0 0.0
    %5041 = vmatprep.subr.mxu0 0.0
    %5042 = vmatpush1.msra.mxu0 0.0
    %5043 = vmatprep.subr.mxu0 0.0
    %5044 = vmatpush1.msra.mxu0 0.0
    %5045 = vmatprep.subr.mxu0 0.0
    %5046 = vmatpush1.msra.mxu0 0.0
    %5047 = vmatprep.subr.mxu0 0.0
    %5048 = vmatpush1.msra.mxu0 0.0
    %5049 = vmatprep.subr.mxu0 0.0
    %5050 = vmatpush1.msra.mxu0 0.0
    %5051 = vmatprep.subr.mxu0 0.0
    %5052 = vmatpush1.msra.mxu0 0.0
    %5053 = vmatprep.subr.mxu0 0.0
    %5054 = vmatpush1.msra.mxu0 0.0
    %5055 = vmatprep.subr.mxu0 0.0
    %5056 = vmatpush1.msra.mxu0 0.0
    %5057 = vmatprep.subr.mxu0 0.0
    %5058 = vmatpush1.msra.mxu0 0.0
    %5059 = vmatprep.subr.mxu0 0.0
    %5060 = vmatpush1.msra.mxu0 0.0
    %5061 = vmatprep.subr.mxu0 0.0
    %5062 = vmatpush1.msra.mxu0 0.0
    %5063 = vmatprep.subr.mxu0 0.0
    %5064 = vmatpush1.msra.mxu0 0.0
    %5065 = vmatprep.subr.mxu0 0.0
    %5066 = vmatpush1.msra.mxu0 0.0
    %5067 = vmatprep.subr.mxu0 0.0
    %5068 = vmatpush1.msra.mxu0 0.0
    %5069 = vmatprep.subr.mxu0 0.0
    %5070 = vmatpush1.msra.mxu0 0.0
    %5071 = vmatprep.subr.mxu0 0.0
    %5072 = vmatpush1.msra.mxu0 0.0
    %5073 = vmatprep.subr.mxu0 0.0
    %5074 = vmatpush1.msra.mxu0 0.0
    %5075 = vmatprep.mubr.f32.mxu0 0.0
    %5076 = vmatmul.mubr.f32.gmra.mrb[0].mxu0 %v4824
    %v5077 = vpop.f32.mrb[0].mxu0
    %v5078 = vadd.f32 %v4760, %v5077
    %v5079 = vpop.f32.mrb[0].mxu0
    %5080 = vmatprep.mubr.f32.mxu0 0.0
    %5081 = vmatmul.mubr.f32.gmra.mrb[0].mxu0 %v4827
    %v5082 = vpop.f32.mrb[0].mxu0
    %v5083 = vadd.f32 %v4765, %v5082
    %v5084 = vpop.f32.mrb[0].mxu0
    %5085 = vmatprep.mubr.f32.mxu0 0.0
    %5086 = vmatmul.mubr.f32.gmra.mrb[0].mxu0 %v4830
    %v5087 = vpop.f32.mrb[0].mxu0
    %v5088 = vadd.f32 %v4770, %v5087
    %v5089 = vpop.f32.mrb[0].mxu0
    %5090 = vmatprep.mubr.f32.mxu0 0.0
    %5091 = vmatmul.mubr.f32.gmra.mrb[0].mxu0 %v4833
    %v5092 = vpop.f32.mrb[0].mxu0
    %v5093 = vadd.f32 %v4775, %v5092
    %v5094 = vpop.f32.mrb[0].mxu0
    %5095 = vmatprep.mubr.f32.mxu0 0.0
    %5096 = vmatmul.mubr.f32.gmra.mrb[0].mxu0 %v4836
    %v5097 = vpop.f32.mrb[0].mxu0
    %v5098 = vadd.f32 %v4780, %v5097
    %v5099 = vpop.f32.mrb[0].mxu0
    %5100 = vmatprep.mubr.f32.mxu0 0.0
    %5101 = vmatmul.mubr.f32.gmra.mrb[0].mxu0 %v4839
    %v5102 = vpop.f32.mrb[0].mxu0
    %v5103 = vadd.f32 %v4785, %v5102
    %v5104 = vpop.f32.mrb[0].mxu0
    %5105 = vmatprep.mubr.f32.mxu0 0.0
    %5106 = vmatmul.mubr.f32.gmra.mrb[0].mxu0 %v4842
    %v5107 = vpop.f32.mrb[0].mxu0
    %v5108 = vadd.f32 %v4790, %v5107
    %v5109 = vpop.f32.mrb[0].mxu0
    %5110 = vmatprep.mubr.f32.mxu0 0.0
    %5111 = vmatmul.mubr.f32.gmra.mrb[0].mxu0 %v4845
    %v5112 = vpop.f32.mrb[0].mxu0
    %v5113 = vadd.f32 %v4795, %v5112
    %v5114 = vpop.f32.mrb[0].mxu0
    %5115 = vmatprep.mubr.f32.mxu0 0.0
    %5116 = vmatmul.mubr.f32.gmra.mrb[0].mxu0 %v4848
    %v5117 = vpop.f32.mrb[0].mxu0
    %v5118 = vadd.f32 %v4800, %v5117
    %v5119 = vpop.f32.mrb[0].mxu0
    %5120 = vmatprep.mubr.f32.mxu0 0.0
    %5121 = vmatmul.mubr.f32.gmra.mrb[0].mxu0 %v4851
    %v5122 = vpop.f32.mrb[0].mxu0
    %v5123 = vadd.f32 %v4805, %v5122
    %v5124 = vpop.f32.mrb[0].mxu0
    %5125 = vmatprep.mubr.f32.mxu0 0.0
    %5126 = vmatmul.mubr.f32.gmra.mrb[0].mxu0 %v4854
    %v5127 = vpop.f32.mrb[0].mxu0
    %v5128 = vadd.f32 %v4810, %v5127
    %v5129 = vpop.f32.mrb[0].mxu0
    %5130 = vmatprep.mubr.f32.mxu0 0.0
    %5131 = vmatmul.mubr.f32.gmra.mrb[0].mxu0 %v4857
    %v5132 = vpop.f32.mrb[0].mxu0
    %v5133 = vadd.f32 %v4815, %v5132
    %v5134 = vpop.f32.mrb[0].mxu0
    %5135 = vmatprep.mubr.f32.mxu0 0.0
    %5136 = vmatmul.mubr.f32.gmra.mrb[0].mxu0 %v4860
    %v5137 = vpop.f32.mrb[0].mxu0
    %v5138 = vadd.f32 %v4820, %v5137
    %v5139 = vpop.f32.mrb[0].mxu0
    %5140 = vdwg.mxu0
    %s5141 = scalar_lea.vmem %s3, 208
    %v5142 = vld [vmem:[%s5141] sm:$0xff]
    %v5143 = vld [vmem:[%s5141 + $0x8] sm:$0xff]
    %v5144 = vld [vmem:[%s5141 + $0x10] sm:$0xff]
    %v5145 = vld [vmem:[%s5141 + $0x18] sm:$0xff]
    %v5146 = vld [vmem:[%s5141 + $0x20] sm:$0xff]
    %v5147 = vld [vmem:[%s5141 + $0x28] sm:$0xff]
    %v5148 = vld [vmem:[%s5141 + $0x30] sm:$0xff]
    %v5149 = vld [vmem:[%s5141 + $0x38] sm:$0xff]
    %v5150 = vld [vmem:[%s5141 + $0x40] sm:$0xff]
    %v5151 = vld [vmem:[%s5141 + $0x48] sm:$0xff]
    %v5152 = vld [vmem:[%s5141 + $0x50] sm:$0xff]
    %v5153 = vld [vmem:[%s5141 + $0x58] sm:$0xff]
    %v5154 = vld [vmem:[%s5141 + $0x60] sm:$0xff]
    %5155 = vrot.lane.b32.xlu0 %v4007, 126
    %v5156 = vpop.permute.xlu0 %5155
    %5157 = vrot.lane.b32.xlu0 %v4009, 126
    %v5158 = vpop.permute.xlu0 %5157
    %5159 = vrot.lane.b32.xlu0 %v4330, 126
    %v5160 = vpop.permute.xlu0 %5159
    %5161 = vrot.lane.b32.xlu0 %v4013, 126
    %v5162 = vpop.permute.xlu0 %5161
    %5163 = vrot.lane.b32.xlu0 %v4015, 126
    %v5164 = vpop.permute.xlu0 %5163
    %5165 = vrot.lane.b32.xlu0 %v4335, 126
    %v5166 = vpop.permute.xlu0 %5165
    %5167 = vrot.lane.b32.xlu0 %v4019, 126
    %v5168 = vpop.permute.xlu0 %5167
    %5169 = vrot.lane.b32.xlu0 %v4021, 126
    %v5170 = vpop.permute.xlu0 %5169
    %5171 = vrot.lane.b32.xlu0 %v4340, 126
    %v5172 = vpop.permute.xlu0 %5171
    %5173 = vrot.lane.b32.xlu0 %v4025, 126
    %v5174 = vpop.permute.xlu0 %5173
    %5175 = vrot.lane.b32.xlu0 %v4027, 126
    %v5176 = vpop.permute.xlu0 %5175
    %5177 = vrot.lane.b32.xlu0 %v4345, 126
    %v5178 = vpop.permute.xlu0 %5177
    %5179 = vrot.lane.b32.xlu0 %v4031, 126
    %v5180 = vpop.permute.xlu0 %5179
    %5181 = vrot.lane.b32.xlu0 %v4033, 126
    %v5182 = vpop.permute.xlu0 %5181
    %5183 = vrot.lane.b32.xlu0 %v4350, 126
    %v5184 = vpop.permute.xlu0 %5183
    %5185 = vrot.lane.b32.xlu0 %v4037, 126
    %v5186 = vpop.permute.xlu0 %5185
    %5187 = vrot.lane.b32.xlu0 %v4039, 126
    %v5188 = vpop.permute.xlu0 %5187
    %5189 = vrot.lane.b32.xlu0 %v4355, 126
    %v5190 = vpop.permute.xlu0 %5189
    %5191 = vrot.lane.b32.xlu0 %v4043, 126
    %v5192 = vpop.permute.xlu0 %5191
    %5193 = vrot.lane.b32.xlu0 %v4045, 126
    %v5194 = vpop.permute.xlu0 %5193
    %5195 = vrot.lane.b32.xlu0 %v4360, 126
    %v5196 = vpop.permute.xlu0 %5195
    %5197 = vrot.lane.b32.xlu0 %v4049, 126
    %v5198 = vpop.permute.xlu0 %5197
    %5199 = vrot.lane.b32.xlu0 %v4051, 126
    %v5200 = vpop.permute.xlu0 %5199
    %5201 = vrot.lane.b32.xlu0 %v4365, 126
    %v5202 = vpop.permute.xlu0 %5201
    %v5203 = vsel %vm1216, %v5156, %v5158
    %v5204 = vsel %vm1216, %v5158, %v5160
    %v5205 = vsel %vm1216, %v5162, %v5164
    %v5206 = vsel %vm1216, %v5164, %v5166
    %v5207 = vsel %vm1216, %v5168, %v5170
    %v5208 = vsel %vm1216, %v5170, %v5172
    %v5209 = vsel %vm1216, %v5174, %v5176
    %v5210 = vsel %vm1216, %v5176, %v5178
    %v5211 = vsel %vm1216, %v5180, %v5182
    %v5212 = vsel %vm1216, %v5182, %v5184
    %v5213 = vsel %vm1216, %v5186, %v5188
    %v5214 = vsel %vm1216, %v5188, %v5190
    %v5215 = vsel %vm1216, %v5192, %v5194
    %v5216 = vsel %vm1216, %v5194, %v5196
    %v5217 = vsel %vm1216, %v5198, %v5200
    %v5218 = vsel %vm1216, %v5200, %v5202
    %v5241 = vsel %vm4504, %v5142, 0
    %v5244 = vsel %vm4504, %v5143, 0
    %v5247 = vsel %vm4504, %v5144, 0
    %v5250 = vsel %vm4504, %v5145, 0
    %v5253 = vsel %vm4504, %v5146, 0
    %v5256 = vsel %vm4504, %v5147, 0
    %v5259 = vsel %vm4504, %v5148, 0
    %v5262 = vsel %vm4504, %v5149, 0
    %v5265 = vsel %vm4504, %v5150, 0
    %v5268 = vsel %vm4504, %v5151, 0
    %v5271 = vsel %vm4504, %v5152, 0
    %v5274 = vsel %vm4504, %v5153, 0
    %v5277 = vsel %vm4504, %v5154, 0
    %v5279 = vsel %vm3704, %v5217, 0
    %v5281 = vsel %vm3704, %v5218, 0
    %v5283 = vsel %vm3704, %v5202, 0
    %5285 = vmatprep.subr.mxu0 %v5204
    %5286 = vmatpush1.msra.mxu0 %v5203
    %5287 = vmatprep.subr.mxu0 %v5206
    %5288 = vmatpush1.msra.mxu0 %v5205
    %5289 = vmatprep.subr.mxu0 %v5208
    %5290 = vmatpush1.msra.mxu0 %v5207
    %5291 = vmatprep.subr.mxu0 %v5210
    %5292 = vmatpush1.msra.mxu0 %v5209
    %5293 = vmatprep.subr.mxu0 %v5212
    %5294 = vmatpush1.msra.mxu0 %v5211
    %5295 = vmatprep.subr.mxu0 %v5214
    %5296 = vmatpush1.msra.mxu0 %v5213
    %5297 = vmatprep.subr.mxu0 %v5216
    %5298 = vmatpush1.msra.mxu0 %v5215
    %5299 = vmatprep.subr.mxu0 %v5281
    %5300 = vmatpush1.msra.mxu0 %v5279
    %5301 = vmatprep.subr.mxu0 0.0
    %5302 = vmatpush1.msra.mxu0 0.0
    %5303 = vmatprep.subr.mxu0 0.0
    %5304 = vmatpush1.msra.mxu0 0.0
    %5305 = vmatprep.subr.mxu0 0.0
    %5306 = vmatpush1.msra.mxu0 0.0
    %5307 = vmatprep.subr.mxu0 0.0
    %5308 = vmatpush1.msra.mxu0 0.0
    %5309 = vmatprep.subr.mxu0 0.0
    %5310 = vmatpush1.msra.mxu0 0.0
    %5311 = vmatprep.subr.mxu0 0.0
    %5312 = vmatpush1.msra.mxu0 0.0
    %5313 = vmatprep.subr.mxu0 0.0
    %5314 = vmatpush1.msra.mxu0 0.0
    %5315 = vmatprep.subr.mxu0 0.0
    %5316 = vmatpush1.msra.mxu0 0.0
    %5317 = vmatprep.subr.mxu0 0.0
    %5318 = vmatpush1.msra.mxu0 0.0
    %5319 = vmatprep.subr.mxu0 0.0
    %5320 = vmatpush1.msra.mxu0 0.0
    %5321 = vmatprep.subr.mxu0 0.0
    %5322 = vmatpush1.msra.mxu0 0.0
    %5323 = vmatprep.subr.mxu0 0.0
    %5324 = vmatpush1.msra.mxu0 0.0
    %5325 = vmatprep.subr.mxu0 0.0
    %5326 = vmatpush1.msra.mxu0 0.0
    %5327 = vmatprep.subr.mxu0 0.0
    %5328 = vmatpush1.msra.mxu0 0.0
    %5329 = vmatprep.subr.mxu0 0.0
    %5330 = vmatpush1.msra.mxu0 0.0
    %5331 = vmatprep.subr.mxu0 0.0
    %5332 = vmatpush1.msra.mxu0 0.0
    %5333 = vmatprep.subr.mxu0 0.0
    %5334 = vmatpush1.msra.mxu0 0.0
    %5335 = vmatprep.subr.mxu0 0.0
    %5336 = vmatpush1.msra.mxu0 0.0
    %5337 = vmatprep.subr.mxu0 0.0
    %5338 = vmatpush1.msra.mxu0 0.0
    %5339 = vmatprep.subr.mxu0 0.0
    %5340 = vmatpush1.msra.mxu0 0.0
    %5341 = vmatprep.subr.mxu0 0.0
    %5342 = vmatpush1.msra.mxu0 0.0
    %5343 = vmatprep.subr.mxu0 0.0
    %5344 = vmatpush1.msra.mxu0 0.0
    %5345 = vmatprep.subr.mxu0 0.0
    %5346 = vmatpush1.msra.mxu0 0.0
    %5347 = vmatprep.subr.mxu0 0.0
    %5348 = vmatpush1.msra.mxu0 0.0
    %5349 = vmatprep.mubr.f32.mxu0 0.0
    %5350 = vmatmul.mubr.f32.gmra.mrb[0].mxu0 %v5241
    %v5351 = vpop.f32.mrb[0].mxu0
    %v5352 = vadd.f32 0.0, %v5351
    %v5353 = vpop.f32.mrb[0].mxu0
    %v5354 = vadd.f32 0.0, %v5353
    %5355 = vmatprep.mubr.f32.mxu0 0.0
    %5356 = vmatmul.mubr.f32.gmra.mrb[0].mxu0 %v5244
    %v5357 = vpop.f32.mrb[0].mxu0
    %v5358 = vadd.f32 0.0, %v5357
    %v5359 = vpop.f32.mrb[0].mxu0
    %v5360 = vadd.f32 0.0, %v5359
    %5361 = vmatprep.mubr.f32.mxu0 0.0
    %5362 = vmatmul.mubr.f32.gmra.mrb[0].mxu0 %v5247
    %v5363 = vpop.f32.mrb[0].mxu0
    %v5364 = vadd.f32 0.0, %v5363
    %v5365 = vpop.f32.mrb[0].mxu0
    %v5366 = vadd.f32 0.0, %v5365
    %5367 = vmatprep.mubr.f32.mxu0 0.0
    %5368 = vmatmul.mubr.f32.gmra.mrb[0].mxu0 %v5250
    %v5369 = vpop.f32.mrb[0].mxu0
    %v5370 = vadd.f32 0.0, %v5369
    %v5371 = vpop.f32.mrb[0].mxu0
    %v5372 = vadd.f32 0.0, %v5371
    %5373 = vmatprep.mubr.f32.mxu0 0.0
    %5374 = vmatmul.mubr.f32.gmra.mrb[0].mxu0 %v5253
    %v5375 = vpop.f32.mrb[0].mxu0
    %v5376 = vadd.f32 0.0, %v5375
    %v5377 = vpop.f32.mrb[0].mxu0
    %v5378 = vadd.f32 0.0, %v5377
    %5379 = vmatprep.mubr.f32.mxu0 0.0
    %5380 = vmatmul.mubr.f32.gmra.mrb[0].mxu0 %v5256
    %v5381 = vpop.f32.mrb[0].mxu0
    %v5382 = vadd.f32 0.0, %v5381
    %v5383 = vpop.f32.mrb[0].mxu0
    %v5384 = vadd.f32 0.0, %v5383
    %5385 = vmatprep.mubr.f32.mxu0 0.0
    %5386 = vmatmul.mubr.f32.gmra.mrb[0].mxu0 %v5259
    %v5387 = vpop.f32.mrb[0].mxu0
    %v5388 = vadd.f32 0.0, %v5387
    %v5389 = vpop.f32.mrb[0].mxu0
    %v5390 = vadd.f32 0.0, %v5389
    %5391 = vmatprep.mubr.f32.mxu0 0.0
    %5392 = vmatmul.mubr.f32.gmra.mrb[0].mxu0 %v5262
    %v5393 = vpop.f32.mrb[0].mxu0
    %v5394 = vadd.f32 0.0, %v5393
    %v5395 = vpop.f32.mrb[0].mxu0
    %v5396 = vadd.f32 0.0, %v5395
    %5397 = vmatprep.mubr.f32.mxu0 0.0
    %5398 = vmatmul.mubr.f32.gmra.mrb[0].mxu0 %v5265
    %v5399 = vpop.f32.mrb[0].mxu0
    %v5400 = vadd.f32 0.0, %v5399
    %v5401 = vpop.f32.mrb[0].mxu0
    %v5402 = vadd.f32 0.0, %v5401
    %5403 = vmatprep.mubr.f32.mxu0 0.0
    %5404 = vmatmul.mubr.f32.gmra.mrb[0].mxu0 %v5268
    %v5405 = vpop.f32.mrb[0].mxu0
    %v5406 = vadd.f32 0.0, %v5405
    %v5407 = vpop.f32.mrb[0].mxu0
    %v5408 = vadd.f32 0.0, %v5407
    %5409 = vmatprep.mubr.f32.mxu0 0.0
    %5410 = vmatmul.mubr.f32.gmra.mrb[0].mxu0 %v5271
    %v5411 = vpop.f32.mrb[0].mxu0
    %v5412 = vadd.f32 0.0, %v5411
    %v5413 = vpop.f32.mrb[0].mxu0
    %v5414 = vadd.f32 0.0, %v5413
    %5415 = vmatprep.mubr.f32.mxu0 0.0
    %5416 = vmatmul.mubr.f32.gmra.mrb[0].mxu0 %v5274
    %v5417 = vpop.f32.mrb[0].mxu0
    %v5418 = vadd.f32 0.0, %v5417
    %v5419 = vpop.f32.mrb[0].mxu0
    %v5420 = vadd.f32 0.0, %v5419
    %5421 = vmatprep.mubr.f32.mxu0 0.0
    %5422 = vmatmul.mubr.f32.gmra.mrb[0].mxu0 %v5277
    %v5423 = vpop.f32.mrb[0].mxu0
    %v5424 = vadd.f32 0.0, %v5423
    %v5425 = vpop.f32.mrb[0].mxu0
    %v5426 = vadd.f32 0.0, %v5425
    %5427 = vdwg.mxu0
    %5428 = vmatprep.subr.mxu0 0.0
    %5429 = vmatpush1.msra.mxu0 %v5160
    %5430 = vmatprep.subr.mxu0 0.0
    %5431 = vmatpush1.msra.mxu0 %v5166
    %5432 = vmatprep.subr.mxu0 0.0
    %5433 = vmatpush1.msra.mxu0 %v5172
    %5434 = vmatprep.subr.mxu0 0.0
    %5435 = vmatpush1.msra.mxu0 %v5178
    %5436 = vmatprep.subr.mxu0 0.0
    %5437 = vmatpush1.msra.mxu0 %v5184
    %5438 = vmatprep.subr.mxu0 0.0
    %5439 = vmatpush1.msra.mxu0 %v5190
    %5440 = vmatprep.subr.mxu0 0.0
    %5441 = vmatpush1.msra.mxu0 %v5196
    %5442 = vmatprep.subr.mxu0 0.0
    %5443 = vmatpush1.msra.mxu0 %v5283
    %5444 = vmatprep.subr.mxu0 0.0
    %5445 = vmatpush1.msra.mxu0 0.0
    %5446 = vmatprep.subr.mxu0 0.0
    %5447 = vmatpush1.msra.mxu0 0.0
    %5448 = vmatprep.subr.mxu0 0.0
    %5449 = vmatpush1.msra.mxu0 0.0
    %5450 = vmatprep.subr.mxu0 0.0
    %5451 = vmatpush1.msra.mxu0 0.0
    %5452 = vmatprep.subr.mxu0 0.0
    %5453 = vmatpush1.msra.mxu0 0.0
    %5454 = vmatprep.subr.mxu0 0.0
    %5455 = vmatpush1.msra.mxu0 0.0
    %5456 = vmatprep.subr.mxu0 0.0
    %5457 = vmatpush1.msra.mxu0 0.0
    %5458 = vmatprep.subr.mxu0 0.0
    %5459 = vmatpush1.msra.mxu0 0.0
    %5460 = vmatprep.subr.mxu0 0.0
    %5461 = vmatpush1.msra.mxu0 0.0
    %5462 = vmatprep.subr.mxu0 0.0
    %5463 = vmatpush1.msra.mxu0 0.0
    %5464 = vmatprep.subr.mxu0 0.0
    %5465 = vmatpush1.msra.mxu0 0.0
    %5466 = vmatprep.subr.mxu0 0.0
    %5467 = vmatpush1.msra.mxu0 0.0
    %5468 = vmatprep.subr.mxu0 0.0
    %5469 = vmatpush1.msra.mxu0 0.0
    %5470 = vmatprep.subr.mxu0 0.0
    %5471 = vmatpush1.msra.mxu0 0.0
    %5472 = vmatprep.subr.mxu0 0.0
    %5473 = vmatpush1.msra.mxu0 0.0
    %5474 = vmatprep.subr.mxu0 0.0
    %5475 = vmatpush1.msra.mxu0 0.0
    %5476 = vmatprep.subr.mxu0 0.0
    %5477 = vmatpush1.msra.mxu0 0.0
    %5478 = vmatprep.subr.mxu0 0.0
    %5479 = vmatpush1.msra.mxu0 0.0
    %5480 = vmatprep.subr.mxu0 0.0
    %5481 = vmatpush1.msra.mxu0 0.0
    %5482 = vmatprep.subr.mxu0 0.0
    %5483 = vmatpush1.msra.mxu0 0.0
    %5484 = vmatprep.subr.mxu0 0.0
    %5485 = vmatpush1.msra.mxu0 0.0
    %5486 = vmatprep.subr.mxu0 0.0
    %5487 = vmatpush1.msra.mxu0 0.0
    %5488 = vmatprep.subr.mxu0 0.0
    %5489 = vmatpush1.msra.mxu0 0.0
    %5490 = vmatprep.subr.mxu0 0.0
    %5491 = vmatpush1.msra.mxu0 0.0
    %5492 = vmatprep.mubr.f32.mxu0 0.0
    %5493 = vmatmul.mubr.f32.gmra.mrb[0].mxu0 %v5241
    %v5494 = vpop.f32.mrb[0].mxu0
    %v5495 = vadd.f32 0.0, %v5494
    %v5496 = vpop.f32.mrb[0].mxu0
    %5497 = vmatprep.mubr.f32.mxu0 0.0
    %5498 = vmatmul.mubr.f32.gmra.mrb[0].mxu0 %v5244
    %v5499 = vpop.f32.mrb[0].mxu0
    %v5500 = vadd.f32 0.0, %v5499
    %v5501 = vpop.f32.mrb[0].mxu0
    %5502 = vmatprep.mubr.f32.mxu0 0.0
    %5503 = vmatmul.mubr.f32.gmra.mrb[0].mxu0 %v5247
    %v5504 = vpop.f32.mrb[0].mxu0
    %v5505 = vadd.f32 0.0, %v5504
    %v5506 = vpop.f32.mrb[0].mxu0
    %5507 = vmatprep.mubr.f32.mxu0 0.0
    %5508 = vmatmul.mubr.f32.gmra.mrb[0].mxu0 %v5250
    %v5509 = vpop.f32.mrb[0].mxu0
    %v5510 = vadd.f32 0.0, %v5509
    %v5511 = vpop.f32.mrb[0].mxu0
    %5512 = vmatprep.mubr.f32.mxu0 0.0
    %5513 = vmatmul.mubr.f32.gmra.mrb[0].mxu0 %v5253
    %v5514 = vpop.f32.mrb[0].mxu0
    %v5515 = vadd.f32 0.0, %v5514
    %v5516 = vpop.f32.mrb[0].mxu0
    %5517 = vmatprep.mubr.f32.mxu0 0.0
    %5518 = vmatmul.mubr.f32.gmra.mrb[0].mxu0 %v5256
    %v5519 = vpop.f32.mrb[0].mxu0
    %v5520 = vadd.f32 0.0, %v5519
    %v5521 = vpop.f32.mrb[0].mxu0
    %5522 = vmatprep.mubr.f32.mxu0 0.0
    %5523 = vmatmul.mubr.f32.gmra.mrb[0].mxu0 %v5259
    %v5524 = vpop.f32.mrb[0].mxu0
    %v5525 = vadd.f32 0.0, %v5524
    %v5526 = vpop.f32.mrb[0].mxu0
    %5527 = vmatprep.mubr.f32.mxu0 0.0
    %5528 = vmatmul.mubr.f32.gmra.mrb[0].mxu0 %v5262
    %v5529 = vpop.f32.mrb[0].mxu0
    %v5530 = vadd.f32 0.0, %v5529
    %v5531 = vpop.f32.mrb[0].mxu0
    %5532 = vmatprep.mubr.f32.mxu0 0.0
    %5533 = vmatmul.mubr.f32.gmra.mrb[0].mxu0 %v5265
    %v5534 = vpop.f32.mrb[0].mxu0
    %v5535 = vadd.f32 0.0, %v5534
    %v5536 = vpop.f32.mrb[0].mxu0
    %5537 = vmatprep.mubr.f32.mxu0 0.0
    %5538 = vmatmul.mubr.f32.gmra.mrb[0].mxu0 %v5268
    %v5539 = vpop.f32.mrb[0].mxu0
    %v5540 = vadd.f32 0.0, %v5539
    %v5541 = vpop.f32.mrb[0].mxu0
    %5542 = vmatprep.mubr.f32.mxu0 0.0
    %5543 = vmatmul.mubr.f32.gmra.mrb[0].mxu0 %v5271
    %v5544 = vpop.f32.mrb[0].mxu0
    %v5545 = vadd.f32 0.0, %v5544
    %v5546 = vpop.f32.mrb[0].mxu0
    %5547 = vmatprep.mubr.f32.mxu0 0.0
    %5548 = vmatmul.mubr.f32.gmra.mrb[0].mxu0 %v5274
    %v5549 = vpop.f32.mrb[0].mxu0
    %v5550 = vadd.f32 0.0, %v5549
    %v5551 = vpop.f32.mrb[0].mxu0
    %5552 = vmatprep.mubr.f32.mxu0 0.0
    %5553 = vmatmul.mubr.f32.gmra.mrb[0].mxu0 %v5277
    %v5554 = vpop.f32.mrb[0].mxu0
    %v5555 = vadd.f32 0.0, %v5554
    %v5556 = vpop.f32.mrb[0].mxu0
    %5557 = vdwg.mxu0
    %v5558 = vadd.f32 %v4935, %v5352
    %v5559 = vadd.f32 %v4937, %v5354
    %v5560 = vadd.f32 %v5078, %v5495
    %v5561 = vadd.f32 %v4941, %v5358
    %v5562 = vadd.f32 %v4943, %v5360
    %v5563 = vadd.f32 %v5083, %v5500
    %v5564 = vadd.f32 %v4947, %v5364
    %v5565 = vadd.f32 %v4949, %v5366
    %v5566 = vadd.f32 %v5088, %v5505
    %v5567 = vadd.f32 %v4953, %v5370
    %v5568 = vadd.f32 %v4955, %v5372
    %v5569 = vadd.f32 %v5093, %v5510
    %v5570 = vadd.f32 %v4959, %v5376
    %v5571 = vadd.f32 %v4961, %v5378
    %v5572 = vadd.f32 %v5098, %v5515
    %v5573 = vadd.f32 %v4965, %v5382
    %v5574 = vadd.f32 %v4967, %v5384
    %v5575 = vadd.f32 %v5103, %v5520
    %v5576 = vadd.f32 %v4971, %v5388
    %v5577 = vadd.f32 %v4973, %v5390
    %v5578 = vadd.f32 %v5108, %v5525
    %v5579 = vadd.f32 %v4977, %v5394
    %v5580 = vadd.f32 %v4979, %v5396
    %v5581 = vadd.f32 %v5113, %v5530
    %v5582 = vadd.f32 %v4983, %v5400
    %v5583 = vadd.f32 %v4985, %v5402
    %v5584 = vadd.f32 %v5118, %v5535
    %v5585 = vadd.f32 %v4989, %v5406
    %v5586 = vadd.f32 %v4991, %v5408
    %v5587 = vadd.f32 %v5123, %v5540
    %v5588 = vadd.f32 %v4995, %v5412
    %v5589 = vadd.f32 %v4997, %v5414
    %v5590 = vadd.f32 %v5128, %v5545
    %v5591 = vadd.f32 %v5001, %v5418
    %v5592 = vadd.f32 %v5003, %v5420
    %v5593 = vadd.f32 %v5133, %v5550
    %v5594 = vadd.f32 %v5007, %v5424
    %v5595 = vadd.f32 %v5009, %v5426
    %v5596 = vadd.f32 %v5138, %v5555
    %v5597 = vld [vmem:[%s4] sm:$0xff]
    %v5598 = vld [vmem:[%s4 + $0x8] sm:$0xff]
    %v5599 = vld [vmem:[%s4 + $0x10] sm:$0xff]
    %v5600 = vld [vmem:[%s4 + $0x18] sm:$0xff]
    %v5601 = vld [vmem:[%s4 + $0x20] sm:$0xff]
    %v5602 = vld [vmem:[%s4 + $0x28] sm:$0xff]
    %v5603 = vld [vmem:[%s4 + $0x30] sm:$0xff]
    %v5604 = vld [vmem:[%s4 + $0x38] sm:$0xff]
    %v5605 = vld [vmem:[%s4 + $0x40] sm:$0xff]
    %v5606 = vld [vmem:[%s4 + $0x48] sm:$0xff]
    %v5607 = vld [vmem:[%s4 + $0x50] sm:$0xff]
    %v5608 = vld [vmem:[%s4 + $0x58] sm:$0xff]
    %v5609 = vld [vmem:[%s4 + $0x60] sm:$0xff]
    %5611 = vset.pattern.permute.xlu0 0
    %5612 = vperm.xlu0 %5611, %v5597
    %v5613 = vpop.permute.xlu0 %5612
    %5616 = vset.pattern.permute.xlu0 0
    %5617 = vperm.xlu0 %5616, %v5598
    %v5618 = vpop.permute.xlu0 %5617
    %5621 = vset.pattern.permute.xlu0 0
    %5622 = vperm.xlu0 %5621, %v5599
    %v5623 = vpop.permute.xlu0 %5622
    %5626 = vset.pattern.permute.xlu0 0
    %5627 = vperm.xlu0 %5626, %v5600
    %v5628 = vpop.permute.xlu0 %5627
    %5631 = vset.pattern.permute.xlu0 0
    %5632 = vperm.xlu0 %5631, %v5601
    %v5633 = vpop.permute.xlu0 %5632
    %5636 = vset.pattern.permute.xlu0 0
    %5637 = vperm.xlu0 %5636, %v5602
    %v5638 = vpop.permute.xlu0 %5637
    %5641 = vset.pattern.permute.xlu0 0
    %5642 = vperm.xlu0 %5641, %v5603
    %v5643 = vpop.permute.xlu0 %5642
    %5646 = vset.pattern.permute.xlu0 0
    %5647 = vperm.xlu0 %5646, %v5604
    %v5648 = vpop.permute.xlu0 %5647
    %5651 = vset.pattern.permute.xlu0 0
    %5652 = vperm.xlu0 %5651, %v5605
    %v5653 = vpop.permute.xlu0 %5652
    %5656 = vset.pattern.permute.xlu0 0
    %5657 = vperm.xlu0 %5656, %v5606
    %v5658 = vpop.permute.xlu0 %5657
    %5661 = vset.pattern.permute.xlu0 0
    %5662 = vperm.xlu0 %5661, %v5607
    %v5663 = vpop.permute.xlu0 %5662
    %5666 = vset.pattern.permute.xlu0 0
    %5667 = vperm.xlu0 %5666, %v5608
    %v5668 = vpop.permute.xlu0 %5667
    %5671 = vset.pattern.permute.xlu0 0
    %5672 = vperm.xlu0 %5671, %v5609
    %v5673 = vpop.permute.xlu0 %5672
    %v5675 = vadd.f32 %v5558, %v5613
    %v5676 = vadd.f32 %v5559, %v5613
    %v5677 = vadd.f32 %v5560, %v5613
    %v5678 = vadd.f32 %v5561, %v5618
    %v5679 = vadd.f32 %v5562, %v5618
    %v5680 = vadd.f32 %v5563, %v5618
    %v5681 = vadd.f32 %v5564, %v5623
    %v5682 = vadd.f32 %v5565, %v5623
    %v5683 = vadd.f32 %v5566, %v5623
    %v5684 = vadd.f32 %v5567, %v5628
    %v5685 = vadd.f32 %v5568, %v5628
    %v5686 = vadd.f32 %v5569, %v5628
    %v5687 = vadd.f32 %v5570, %v5633
    %v5688 = vadd.f32 %v5571, %v5633
    %v5689 = vadd.f32 %v5572, %v5633
    %v5690 = vadd.f32 %v5573, %v5638
    %v5691 = vadd.f32 %v5574, %v5638
    %v5692 = vadd.f32 %v5575, %v5638
    %v5693 = vadd.f32 %v5576, %v5643
    %v5694 = vadd.f32 %v5577, %v5643
    %v5695 = vadd.f32 %v5578, %v5643
    %v5696 = vadd.f32 %v5579, %v5648
    %v5697 = vadd.f32 %v5580, %v5648
    %v5698 = vadd.f32 %v5581, %v5648
    %v5699 = vadd.f32 %v5582, %v5653
    %v5700 = vadd.f32 %v5583, %v5653
    %v5701 = vadd.f32 %v5584, %v5653
    %v5702 = vadd.f32 %v5585, %v5658
    %v5703 = vadd.f32 %v5586, %v5658
    %v5704 = vadd.f32 %v5587, %v5658
    %v5705 = vadd.f32 %v5588, %v5663
    %v5706 = vadd.f32 %v5589, %v5663
    %v5707 = vadd.f32 %v5590, %v5663
    %v5708 = vadd.f32 %v5591, %v5668
    %v5709 = vadd.f32 %v5592, %v5668
    %v5710 = vadd.f32 %v5593, %v5668
    %v5711 = vadd.f32 %v5594, %v5673
    %v5712 = vadd.f32 %v5595, %v5673
    %v5713 = vadd.f32 %v5596, %v5673
    %v5714 = vmax.f32 %v5675, 0.0
    %v5715 = vmax.f32 %v5676, 0.0
    %v5716 = vmax.f32 %v5677, 0.0
    %v5717 = vmax.f32 %v5678, 0.0
    %v5718 = vmax.f32 %v5679, 0.0
    %v5719 = vmax.f32 %v5680, 0.0
    %v5720 = vmax.f32 %v5681, 0.0
    %v5721 = vmax.f32 %v5682, 0.0
    %v5722 = vmax.f32 %v5683, 0.0
    %v5723 = vmax.f32 %v5684, 0.0
    %v5724 = vmax.f32 %v5685, 0.0
    %v5725 = vmax.f32 %v5686, 0.0
    %v5726 = vmax.f32 %v5687, 0.0
    %v5727 = vmax.f32 %v5688, 0.0
    %v5728 = vmax.f32 %v5689, 0.0
    %v5729 = vmax.f32 %v5690, 0.0
    %v5730 = vmax.f32 %v5691, 0.0
    %v5731 = vmax.f32 %v5692, 0.0
    %v5732 = vmax.f32 %v5693, 0.0
    %v5733 = vmax.f32 %v5694, 0.0
    %v5734 = vmax.f32 %v5695, 0.0
    %v5735 = vmax.f32 %v5696, 0.0
    %v5736 = vmax.f32 %v5697, 0.0
    %v5737 = vmax.f32 %v5698, 0.0
    %v5738 = vmax.f32 %v5699, 0.0
    %v5739 = vmax.f32 %v5700, 0.0
    %v5740 = vmax.f32 %v5701, 0.0
    %v5741 = vmax.f32 %v5702, 0.0
    %v5742 = vmax.f32 %v5703, 0.0
    %v5743 = vmax.f32 %v5704, 0.0
    %v5744 = vmax.f32 %v5705, 0.0
    %v5745 = vmax.f32 %v5706, 0.0
    %v5746 = vmax.f32 %v5707, 0.0
    %v5747 = vmax.f32 %v5708, 0.0
    %v5748 = vmax.f32 %v5709, 0.0
    %v5749 = vmax.f32 %v5710, 0.0
    %v5750 = vmax.f32 %v5711, 0.0
    %v5751 = vmax.f32 %v5712, 0.0
    %v5752 = vmax.f32 %v5713, 0.0
    %v5753 = vld [vmem:[%s9] sm:$0xff]
    %v5754 = vld [vmem:[%s9 + $0x8] sm:$0xff]
    %v5755 = vld [vmem:[%s9 + $0x10] sm:$0xff]
    %v5756 = vld [vmem:[%s9 + $0x18] sm:$0xff]
    %v5757 = vld [vmem:[%s9 + $0x20] sm:$0xff]
    %v5758 = vld [vmem:[%s9 + $0x28] sm:$0xff]
    %v5759 = vld [vmem:[%s9 + $0x30] sm:$0xff]
    %v5760 = vld [vmem:[%s9 + $0x38] sm:$0xff]
    %v5800 = vrot.slane %v5714, 1
    %v5801 = vrot.slane %v5717, 1
    %v5802 = vsel %vm2105, %v5800, %v5801
    %v5803 = vrot.slane %v5715, 1
    %v5804 = vrot.slane %v5718, 1
    %v5805 = vsel %vm2105, %v5803, %v5804
    %v5806 = vrot.slane %v5716, 1
    %v5807 = vrot.slane %v5719, 1
    %v5808 = vsel %vm2105, %v5806, %v5807
    %v5809 = vrot.slane %v5720, 1
    %v5810 = vsel %vm2105, %v5801, %v5809
    %v5811 = vrot.slane %v5721, 1
    %v5812 = vsel %vm2105, %v5804, %v5811
    %v5813 = vrot.slane %v5722, 1
    %v5814 = vsel %vm2105, %v5807, %v5813
    %v5815 = vrot.slane %v5723, 1
    %v5816 = vsel %vm2105, %v5809, %v5815
    %v5817 = vrot.slane %v5724, 1
    %v5818 = vsel %vm2105, %v5811, %v5817
    %v5819 = vrot.slane %v5725, 1
    %v5820 = vsel %vm2105, %v5813, %v5819
    %v5821 = vrot.slane %v5726, 1
    %v5822 = vsel %vm2105, %v5815, %v5821
    %v5823 = vrot.slane %v5727, 1
    %v5824 = vsel %vm2105, %v5817, %v5823
    %v5825 = vrot.slane %v5728, 1
    %v5826 = vsel %vm2105, %v5819, %v5825
    %v5827 = vrot.slane %v5729, 1
    %v5828 = vsel %vm2105, %v5821, %v5827
    %v5829 = vrot.slane %v5730, 1
    %v5830 = vsel %vm2105, %v5823, %v5829
    %v5831 = vrot.slane %v5731, 1
    %v5832 = vsel %vm2105, %v5825, %v5831
    %v5833 = vrot.slane %v5732, 1
    %v5834 = vsel %vm2105, %v5827, %v5833
    %v5835 = vrot.slane %v5733, 1
    %v5836 = vsel %vm2105, %v5829, %v5835
    %v5837 = vrot.slane %v5734, 1
    %v5838 = vsel %vm2105, %v5831, %v5837
    %v5839 = vrot.slane %v5735, 1
    %v5840 = vsel %vm2105, %v5833, %v5839
    %v5841 = vrot.slane %v5736, 1
    %v5842 = vsel %vm2105, %v5835, %v5841
    %v5843 = vrot.slane %v5737, 1
    %v5844 = vsel %vm2105, %v5837, %v5843
    %v5845 = vrot.slane %v5738, 1
    %v5846 = vsel %vm2105, %v5839, %v5845
    %v5847 = vrot.slane %v5739, 1
    %v5848 = vsel %vm2105, %v5841, %v5847
    %v5849 = vrot.slane %v5740, 1
    %v5850 = vsel %vm2105, %v5843, %v5849
    %v5851 = vrot.slane %v5741, 1
    %v5852 = vsel %vm2105, %v5845, %v5851
    %v5853 = vrot.slane %v5742, 1
    %v5854 = vsel %vm2105, %v5847, %v5853
    %v5855 = vrot.slane %v5743, 1
    %v5856 = vsel %vm2105, %v5849, %v5855
    %v5857 = vrot.slane %v5744, 1
    %v5858 = vsel %vm2105, %v5851, %v5857
    %v5859 = vrot.slane %v5745, 1
    %v5860 = vsel %vm2105, %v5853, %v5859
    %v5861 = vrot.slane %v5746, 1
    %v5862 = vsel %vm2105, %v5855, %v5861
    %v5863 = vrot.slane %v5747, 1
    %v5864 = vsel %vm2105, %v5857, %v5863
    %v5865 = vrot.slane %v5748, 1
    %v5866 = vsel %vm2105, %v5859, %v5865
    %v5867 = vrot.slane %v5749, 1
    %v5868 = vsel %vm2105, %v5861, %v5867
    %v5869 = vrot.slane %v5750, 1
    %v5870 = vsel %vm2105, %v5863, %v5869
    %v5871 = vrot.slane %v5751, 1
    %v5872 = vsel %vm2105, %v5865, %v5871
    %v5873 = vrot.slane %v5752, 1
    %v5874 = vsel %vm2105, %v5867, %v5873
    %v5914 = vmax.f32 %v5714, %v5802
    %v5915 = vmax.f32 %v5715, %v5805
    %v5916 = vmax.f32 %v5716, %v5808
    %v5917 = vmax.f32 %v5717, %v5810
    %v5918 = vmax.f32 %v5718, %v5812
    %v5919 = vmax.f32 %v5719, %v5814
    %v5920 = vmax.f32 %v5720, %v5816
    %v5921 = vmax.f32 %v5721, %v5818
    %v5922 = vmax.f32 %v5722, %v5820
    %v5923 = vmax.f32 %v5723, %v5822
    %v5924 = vmax.f32 %v5724, %v5824
    %v5925 = vmax.f32 %v5725, %v5826
    %v5926 = vmax.f32 %v5726, %v5828
    %v5927 = vmax.f32 %v5727, %v5830
    %v5928 = vmax.f32 %v5728, %v5832
    %v5929 = vmax.f32 %v5729, %v5834
    %v5930 = vmax.f32 %v5730, %v5836
    %v5931 = vmax.f32 %v5731, %v5838
    %v5932 = vmax.f32 %v5732, %v5840
    %v5933 = vmax.f32 %v5733, %v5842
    %v5934 = vmax.f32 %v5734, %v5844
    %v5935 = vmax.f32 %v5735, %v5846
    %v5936 = vmax.f32 %v5736, %v5848
    %v5937 = vmax.f32 %v5737, %v5850
    %v5938 = vmax.f32 %v5738, %v5852
    %v5939 = vmax.f32 %v5739, %v5854
    %v5940 = vmax.f32 %v5740, %v5856
    %v5941 = vmax.f32 %v5741, %v5858
    %v5942 = vmax.f32 %v5742, %v5860
    %v5943 = vmax.f32 %v5743, %v5862
    %v5944 = vmax.f32 %v5744, %v5864
    %v5945 = vmax.f32 %v5745, %v5866
    %v5946 = vmax.f32 %v5746, %v5868
    %v5947 = vmax.f32 %v5747, %v5870
    %v5948 = vmax.f32 %v5748, %v5872
    %v5949 = vmax.f32 %v5749, %v5874
    %v5950 = vmax.f32 %v5750, %v5869
    %v5951 = vmax.f32 %v5751, %v5871
    %v5952 = vmax.f32 %v5752, %v5873
    %v5953 = vrot.slane %v5714, 2
    %v5954 = vrot.slane %v5717, 2
    %v5955 = vsel %vm232, %v5953, %v5954
    %v5956 = vrot.slane %v5715, 2
    %v5957 = vrot.slane %v5718, 2
    %v5958 = vsel %vm232, %v5956, %v5957
    %v5959 = vrot.slane %v5716, 2
    %v5960 = vrot.slane %v5719, 2
    %v5961 = vsel %vm232, %v5959, %v5960
    %v5962 = vrot.slane %v5720, 2
    %v5963 = vsel %vm232, %v5954, %v5962
    %v5964 = vrot.slane %v5721, 2
    %v5965 = vsel %vm232, %v5957, %v5964
    %v5966 = vrot.slane %v5722, 2
    %v5967 = vsel %vm232, %v5960, %v5966
    %v5968 = vrot.slane %v5723, 2
    %v5969 = vsel %vm232, %v5962, %v5968
    %v5970 = vrot.slane %v5724, 2
    %v5971 = vsel %vm232, %v5964, %v5970
    %v5972 = vrot.slane %v5725, 2
    %v5973 = vsel %vm232, %v5966, %v5972
    %v5974 = vrot.slane %v5726, 2
    %v5975 = vsel %vm232, %v5968, %v5974
    %v5976 = vrot.slane %v5727, 2
    %v5977 = vsel %vm232, %v5970, %v5976
    %v5978 = vrot.slane %v5728, 2
    %v5979 = vsel %vm232, %v5972, %v5978
    %v5980 = vrot.slane %v5729, 2
    %v5981 = vsel %vm232, %v5974, %v5980
    %v5982 = vrot.slane %v5730, 2
    %v5983 = vsel %vm232, %v5976, %v5982
    %v5984 = vrot.slane %v5731, 2
    %v5985 = vsel %vm232, %v5978, %v5984
    %v5986 = vrot.slane %v5732, 2
    %v5987 = vsel %vm232, %v5980, %v5986
    %v5988 = vrot.slane %v5733, 2
    %v5989 = vsel %vm232, %v5982, %v5988
    %v5990 = vrot.slane %v5734, 2
    %v5991 = vsel %vm232, %v5984, %v5990
    %v5992 = vrot.slane %v5735, 2
    %v5993 = vsel %vm232, %v5986, %v5992
    %v5994 = vrot.slane %v5736, 2
    %v5995 = vsel %vm232, %v5988, %v5994
    %v5996 = vrot.slane %v5737, 2
    %v5997 = vsel %vm232, %v5990, %v5996
    %v5998 = vrot.slane %v5738, 2
    %v5999 = vsel %vm232, %v5992, %v5998
    %v6000 = vrot.slane %v5739, 2
    %v6001 = vsel %vm232, %v5994, %v6000
    %v6002 = vrot.slane %v5740, 2
    %v6003 = vsel %vm232, %v5996, %v6002
    %v6004 = vrot.slane %v5741, 2
    %v6005 = vsel %vm232, %v5998, %v6004
    %v6006 = vrot.slane %v5742, 2
    %v6007 = vsel %vm232, %v6000, %v6006
    %v6008 = vrot.slane %v5743, 2
    %v6009 = vsel %vm232, %v6002, %v6008
    %v6010 = vrot.slane %v5744, 2
    %v6011 = vsel %vm232, %v6004, %v6010
    %v6012 = vrot.slane %v5745, 2
    %v6013 = vsel %vm232, %v6006, %v6012
    %v6014 = vrot.slane %v5746, 2
    %v6015 = vsel %vm232, %v6008, %v6014
    %v6016 = vrot.slane %v5747, 2
    %v6017 = vsel %vm232, %v6010, %v6016
    %v6018 = vrot.slane %v5748, 2
    %v6019 = vsel %vm232, %v6012, %v6018
    %v6020 = vrot.slane %v5749, 2
    %v6021 = vsel %vm232, %v6014, %v6020
    %v6022 = vrot.slane %v5750, 2
    %v6023 = vsel %vm232, %v6016, %v6022
    %v6024 = vrot.slane %v5751, 2
    %v6025 = vsel %vm232, %v6018, %v6024
    %v6026 = vrot.slane %v5752, 2
    %v6027 = vsel %vm232, %v6020, %v6026
    %v6067 = vmax.f32 %v5914, %v5955
    %v6068 = vmax.f32 %v5915, %v5958
    %v6069 = vmax.f32 %v5916, %v5961
    %v6070 = vmax.f32 %v5917, %v5963
    %v6071 = vmax.f32 %v5918, %v5965
    %v6072 = vmax.f32 %v5919, %v5967
    %v6073 = vmax.f32 %v5920, %v5969
    %v6074 = vmax.f32 %v5921, %v5971
    %v6075 = vmax.f32 %v5922, %v5973
    %v6076 = vmax.f32 %v5923, %v5975
    %v6077 = vmax.f32 %v5924, %v5977
    %v6078 = vmax.f32 %v5925, %v5979
    %v6079 = vmax.f32 %v5926, %v5981
    %v6080 = vmax.f32 %v5927, %v5983
    %v6081 = vmax.f32 %v5928, %v5985
    %v6082 = vmax.f32 %v5929, %v5987
    %v6083 = vmax.f32 %v5930, %v5989
    %v6084 = vmax.f32 %v5931, %v5991
    %v6085 = vmax.f32 %v5932, %v5993
    %v6086 = vmax.f32 %v5933, %v5995
    %v6087 = vmax.f32 %v5934, %v5997
    %v6088 = vmax.f32 %v5935, %v5999
    %v6089 = vmax.f32 %v5936, %v6001
    %v6090 = vmax.f32 %v5937, %v6003
    %v6091 = vmax.f32 %v5938, %v6005
    %v6092 = vmax.f32 %v5939, %v6007
    %v6093 = vmax.f32 %v5940, %v6009
    %v6094 = vmax.f32 %v5941, %v6011
    %v6095 = vmax.f32 %v5942, %v6013
    %v6096 = vmax.f32 %v5943, %v6015
    %v6097 = vmax.f32 %v5944, %v6017
    %v6098 = vmax.f32 %v5945, %v6019
    %v6099 = vmax.f32 %v5946, %v6021
    %v6100 = vmax.f32 %v5947, %v6023
    %v6101 = vmax.f32 %v5948, %v6025
    %v6102 = vmax.f32 %v5949, %v6027
    %v6103 = vmax.f32 %v5950, %v6022
    %v6104 = vmax.f32 %v5951, %v6024
    %v6105 = vmax.f32 %v5952, %v6026
    %vm6106 = vcmask 834560
    %v6108 = vsel %vm6106, %v5753, 0
    %v6111 = vsel %vm6106, %v5754, 0
    %v6114 = vsel %vm6106, %v5755, 0
    %v6117 = vsel %vm6106, %v5756, 0
    %v6120 = vsel %vm6106, %v5757, 0
    %v6123 = vsel %vm6106, %v5758, 0
    %v6126 = vsel %vm6106, %v5759, 0
    %v6129 = vsel %vm6106, %v5760, 0
    %v6132 = vsel %vm232, %v6103, 0
    %v6135 = vsel %vm232, %v6104, 0
    %v6138 = vsel %vm232, %v6105, 0
    %6140 = vmatprep.subr.mxu0 %v6068
    %6141 = vmatpush1.msra.mxu0 %v6067
    %6142 = vmatprep.subr.mxu0 %v6071
    %6143 = vmatpush1.msra.mxu0 %v6070
    %6144 = vmatprep.subr.mxu0 %v6074
    %6145 = vmatpush1.msra.mxu0 %v6073
    %6146 = vmatprep.subr.mxu0 %v6077
    %6147 = vmatpush1.msra.mxu0 %v6076
    %6148 = vmatprep.subr.mxu0 %v6080
    %6149 = vmatpush1.msra.mxu0 %v6079
    %6150 = vmatprep.subr.mxu0 %v6083
    %6151 = vmatpush1.msra.mxu0 %v6082
    %6152 = vmatprep.subr.mxu0 %v6086
    %6153 = vmatpush1.msra.mxu0 %v6085
    %6154 = vmatprep.subr.mxu0 %v6089
    %6155 = vmatpush1.msra.mxu0 %v6088
    %6156 = vmatprep.subr.mxu0 %v6092
    %6157 = vmatpush1.msra.mxu0 %v6091
    %6158 = vmatprep.subr.mxu0 %v6095
    %6159 = vmatpush1.msra.mxu0 %v6094
    %6160 = vmatprep.subr.mxu0 %v6098
    %6161 = vmatpush1.msra.mxu0 %v6097
    %6162 = vmatprep.subr.mxu0 %v6101
    %6163 = vmatpush1.msra.mxu0 %v6100
    %6164 = vmatprep.subr.mxu0 %v6135
    %6165 = vmatpush1.msra.mxu0 %v6132
    %6166 = vmatprep.subr.mxu0 0.0
    %6167 = vmatpush1.msra.mxu0 0.0
    %6168 = vmatprep.subr.mxu0 0.0
    %6169 = vmatpush1.msra.mxu0 0.0
    %6170 = vmatprep.subr.mxu0 0.0
    %6171 = vmatpush1.msra.mxu0 0.0
    %6172 = vmatprep.subr.mxu0 0.0
    %6173 = vmatpush1.msra.mxu0 0.0
    %6174 = vmatprep.subr.mxu0 0.0
    %6175 = vmatpush1.msra.mxu0 0.0
    %6176 = vmatprep.subr.mxu0 0.0
    %6177 = vmatpush1.msra.mxu0 0.0
    %6178 = vmatprep.subr.mxu0 0.0
    %6179 = vmatpush1.msra.mxu0 0.0
    %6180 = vmatprep.subr.mxu0 0.0
    %6181 = vmatpush1.msra.mxu0 0.0
    %6182 = vmatprep.subr.mxu0 0.0
    %6183 = vmatpush1.msra.mxu0 0.0
    %6184 = vmatprep.subr.mxu0 0.0
    %6185 = vmatpush1.msra.mxu0 0.0
    %6186 = vmatprep.subr.mxu0 0.0
    %6187 = vmatpush1.msra.mxu0 0.0
    %6188 = vmatprep.subr.mxu0 0.0
    %6189 = vmatpush1.msra.mxu0 0.0
    %6190 = vmatprep.subr.mxu0 0.0
    %6191 = vmatpush1.msra.mxu0 0.0
    %6192 = vmatprep.subr.mxu0 0.0
    %6193 = vmatpush1.msra.mxu0 0.0
    %6194 = vmatprep.subr.mxu0 0.0
    %6195 = vmatpush1.msra.mxu0 0.0
    %6196 = vmatprep.subr.mxu0 0.0
    %6197 = vmatpush1.msra.mxu0 0.0
    %6198 = vmatprep.subr.mxu0 0.0
    %6199 = vmatpush1.msra.mxu0 0.0
    %6200 = vmatprep.subr.mxu0 0.0
    %6201 = vmatpush1.msra.mxu0 0.0
    %6202 = vmatprep.subr.mxu0 0.0
    %6203 = vmatpush1.msra.mxu0 0.0
    %6204 = vmatprep.mubr.f32.mxu0 0.0
    %6205 = vmatmul.mubr.f32.gmra.mrb[0].mxu0 %v6108
    %v6206 = vpop.f32.mrb[0].mxu0
    %v6207 = vadd.f32 0.0, %v6206
    %v6208 = vpop.f32.mrb[0].mxu0
    %v6209 = vadd.f32 0.0, %v6208
    %6210 = vmatprep.mubr.f32.mxu0 0.0
    %6211 = vmatmul.mubr.f32.gmra.mrb[0].mxu0 %v6111
    %v6212 = vpop.f32.mrb[0].mxu0
    %v6213 = vadd.f32 0.0, %v6212
    %v6214 = vpop.f32.mrb[0].mxu0
    %v6215 = vadd.f32 0.0, %v6214
    %6216 = vmatprep.mubr.f32.mxu0 0.0
    %6217 = vmatmul.mubr.f32.gmra.mrb[0].mxu0 %v6114
    %v6218 = vpop.f32.mrb[0].mxu0
    %v6219 = vadd.f32 0.0, %v6218
    %v6220 = vpop.f32.mrb[0].mxu0
    %v6221 = vadd.f32 0.0, %v6220
    %6222 = vmatprep.mubr.f32.mxu0 0.0
    %6223 = vmatmul.mubr.f32.gmra.mrb[0].mxu0 %v6117
    %v6224 = vpop.f32.mrb[0].mxu0
    %v6225 = vadd.f32 0.0, %v6224
    %v6226 = vpop.f32.mrb[0].mxu0
    %v6227 = vadd.f32 0.0, %v6226
    %6228 = vmatprep.mubr.f32.mxu0 0.0
    %6229 = vmatmul.mubr.f32.gmra.mrb[0].mxu0 %v6120
    %v6230 = vpop.f32.mrb[0].mxu0
    %v6231 = vadd.f32 0.0, %v6230
    %v6232 = vpop.f32.mrb[0].mxu0
    %v6233 = vadd.f32 0.0, %v6232
    %6234 = vmatprep.mubr.f32.mxu0 0.0
    %6235 = vmatmul.mubr.f32.gmra.mrb[0].mxu0 %v6123
    %v6236 = vpop.f32.mrb[0].mxu0
    %v6237 = vadd.f32 0.0, %v6236
    %v6238 = vpop.f32.mrb[0].mxu0
    %v6239 = vadd.f32 0.0, %v6238
    %6240 = vmatprep.mubr.f32.mxu0 0.0
    %6241 = vmatmul.mubr.f32.gmra.mrb[0].mxu0 %v6126
    %v6242 = vpop.f32.mrb[0].mxu0
    %v6243 = vadd.f32 0.0, %v6242
    %v6244 = vpop.f32.mrb[0].mxu0
    %v6245 = vadd.f32 0.0, %v6244
    %6246 = vmatprep.mubr.f32.mxu0 0.0
    %6247 = vmatmul.mubr.f32.gmra.mrb[0].mxu0 %v6129
    %v6248 = vpop.f32.mrb[0].mxu0
    %v6249 = vadd.f32 0.0, %v6248
    %v6250 = vpop.f32.mrb[0].mxu0
    %v6251 = vadd.f32 0.0, %v6250
    %6252 = vdwg.mxu0
    %6253 = vmatprep.subr.mxu0 0.0
    %6254 = vmatpush1.msra.mxu0 %v6069
    %6255 = vmatprep.subr.mxu0 0.0
    %6256 = vmatpush1.msra.mxu0 %v6072
    %6257 = vmatprep.subr.mxu0 0.0
    %6258 = vmatpush1.msra.mxu0 %v6075
    %6259 = vmatprep.subr.mxu0 0.0
    %6260 = vmatpush1.msra.mxu0 %v6078
    %6261 = vmatprep.subr.mxu0 0.0
    %6262 = vmatpush1.msra.mxu0 %v6081
    %6263 = vmatprep.subr.mxu0 0.0
    %6264 = vmatpush1.msra.mxu0 %v6084
    %6265 = vmatprep.subr.mxu0 0.0
    %6266 = vmatpush1.msra.mxu0 %v6087
    %6267 = vmatprep.subr.mxu0 0.0
    %6268 = vmatpush1.msra.mxu0 %v6090
    %6269 = vmatprep.subr.mxu0 0.0
    %6270 = vmatpush1.msra.mxu0 %v6093
    %6271 = vmatprep.subr.mxu0 0.0
    %6272 = vmatpush1.msra.mxu0 %v6096
    %6273 = vmatprep.subr.mxu0 0.0
    %6274 = vmatpush1.msra.mxu0 %v6099
    %6275 = vmatprep.subr.mxu0 0.0
    %6276 = vmatpush1.msra.mxu0 %v6102
    %6277 = vmatprep.subr.mxu0 0.0
    %6278 = vmatpush1.msra.mxu0 %v6138
    %6279 = vmatprep.subr.mxu0 0.0
    %6280 = vmatpush1.msra.mxu0 0.0
    %6281 = vmatprep.subr.mxu0 0.0
    %6282 = vmatpush1.msra.mxu0 0.0
    %6283 = vmatprep.subr.mxu0 0.0
    %6284 = vmatpush1.msra.mxu0 0.0
    %6285 = vmatprep.subr.mxu0 0.0
    %6286 = vmatpush1.msra.mxu0 0.0
    %6287 = vmatprep.subr.mxu0 0.0
    %6288 = vmatpush1.msra.mxu0 0.0
    %6289 = vmatprep.subr.mxu0 0.0
    %6290 = vmatpush1.msra.mxu0 0.0
    %6291 = vmatprep.subr.mxu0 0.0
    %6292 = vmatpush1.msra.mxu0 0.0
    %6293 = vmatprep.subr.mxu0 0.0
    %6294 = vmatpush1.msra.mxu0 0.0
    %6295 = vmatprep.subr.mxu0 0.0
    %6296 = vmatpush1.msra.mxu0 0.0
    %6297 = vmatprep.subr.mxu0 0.0
    %6298 = vmatpush1.msra.mxu0 0.0
    %6299 = vmatprep.subr.mxu0 0.0
    %6300 = vmatpush1.msra.mxu0 0.0
    %6301 = vmatprep.subr.mxu0 0.0
    %6302 = vmatpush1.msra.mxu0 0.0
    %6303 = vmatprep.subr.mxu0 0.0
    %6304 = vmatpush1.msra.mxu0 0.0
    %6305 = vmatprep.subr.mxu0 0.0
    %6306 = vmatpush1.msra.mxu0 0.0
    %6307 = vmatprep.subr.mxu0 0.0
    %6308 = vmatpush1.msra.mxu0 0.0
    %6309 = vmatprep.subr.mxu0 0.0
    %6310 = vmatpush1.msra.mxu0 0.0
    %6311 = vmatprep.subr.mxu0 0.0
    %6312 = vmatpush1.msra.mxu0 0.0
    %6313 = vmatprep.subr.mxu0 0.0
    %6314 = vmatpush1.msra.mxu0 0.0
    %6315 = vmatprep.subr.mxu0 0.0
    %6316 = vmatpush1.msra.mxu0 0.0
    %6317 = vmatprep.mubr.f32.mxu0 0.0
    %6318 = vmatmul.mubr.f32.gmra.mrb[0].mxu0 %v6108
    %v6319 = vpop.f32.mrb[0].mxu0
    %v6320 = vadd.f32 0.0, %v6319
    %v6321 = vpop.f32.mrb[0].mxu0
    %6322 = vmatprep.mubr.f32.mxu0 0.0
    %6323 = vmatmul.mubr.f32.gmra.mrb[0].mxu0 %v6111
    %v6324 = vpop.f32.mrb[0].mxu0
    %v6325 = vadd.f32 0.0, %v6324
    %v6326 = vpop.f32.mrb[0].mxu0
    %6327 = vmatprep.mubr.f32.mxu0 0.0
    %6328 = vmatmul.mubr.f32.gmra.mrb[0].mxu0 %v6114
    %v6329 = vpop.f32.mrb[0].mxu0
    %v6330 = vadd.f32 0.0, %v6329
    %v6331 = vpop.f32.mrb[0].mxu0
    %6332 = vmatprep.mubr.f32.mxu0 0.0
    %6333 = vmatmul.mubr.f32.gmra.mrb[0].mxu0 %v6117
    %v6334 = vpop.f32.mrb[0].mxu0
    %v6335 = vadd.f32 0.0, %v6334
    %v6336 = vpop.f32.mrb[0].mxu0
    %6337 = vmatprep.mubr.f32.mxu0 0.0
    %6338 = vmatmul.mubr.f32.gmra.mrb[0].mxu0 %v6120
    %v6339 = vpop.f32.mrb[0].mxu0
    %v6340 = vadd.f32 0.0, %v6339
    %v6341 = vpop.f32.mrb[0].mxu0
    %6342 = vmatprep.mubr.f32.mxu0 0.0
    %6343 = vmatmul.mubr.f32.gmra.mrb[0].mxu0 %v6123
    %v6344 = vpop.f32.mrb[0].mxu0
    %v6345 = vadd.f32 0.0, %v6344
    %v6346 = vpop.f32.mrb[0].mxu0
    %6347 = vmatprep.mubr.f32.mxu0 0.0
    %6348 = vmatmul.mubr.f32.gmra.mrb[0].mxu0 %v6126
    %v6349 = vpop.f32.mrb[0].mxu0
    %v6350 = vadd.f32 0.0, %v6349
    %v6351 = vpop.f32.mrb[0].mxu0
    %6352 = vmatprep.mubr.f32.mxu0 0.0
    %6353 = vmatmul.mubr.f32.gmra.mrb[0].mxu0 %v6129
    %v6354 = vpop.f32.mrb[0].mxu0
    %v6355 = vadd.f32 0.0, %v6354
    %v6356 = vpop.f32.mrb[0].mxu0
    %6357 = vdwg.mxu0
    %6382 = vrot.lane.b32.xlu0 %v6207, 127
    %v6383 = vpop.permute.xlu0 %6382
    %6384 = vrot.lane.b32.xlu0 %v6209, 127
    %v6385 = vpop.permute.xlu0 %6384
    %6386 = vrot.lane.b32.xlu0 %v6320, 127
    %v6387 = vpop.permute.xlu0 %6386
    %6388 = vrot.lane.b32.xlu0 %v6213, 127
    %v6389 = vpop.permute.xlu0 %6388
    %6390 = vrot.lane.b32.xlu0 %v6215, 127
    %v6391 = vpop.permute.xlu0 %6390
    %6392 = vrot.lane.b32.xlu0 %v6325, 127
    %v6393 = vpop.permute.xlu0 %6392
    %6394 = vrot.lane.b32.xlu0 %v6219, 127
    %v6395 = vpop.permute.xlu0 %6394
    %6396 = vrot.lane.b32.xlu0 %v6221, 127
    %v6397 = vpop.permute.xlu0 %6396
    %6398 = vrot.lane.b32.xlu0 %v6330, 127
    %v6399 = vpop.permute.xlu0 %6398
    %6400 = vrot.lane.b32.xlu0 %v6225, 127
    %v6401 = vpop.permute.xlu0 %6400
    %6402 = vrot.lane.b32.xlu0 %v6227, 127
    %v6403 = vpop.permute.xlu0 %6402
    %6404 = vrot.lane.b32.xlu0 %v6335, 127
    %v6405 = vpop.permute.xlu0 %6404
    %6406 = vrot.lane.b32.xlu0 %v6231, 127
    %v6407 = vpop.permute.xlu0 %6406
    %6408 = vrot.lane.b32.xlu0 %v6233, 127
    %v6409 = vpop.permute.xlu0 %6408
    %6410 = vrot.lane.b32.xlu0 %v6340, 127
    %v6411 = vpop.permute.xlu0 %6410
    %6412 = vrot.lane.b32.xlu0 %v6237, 127
    %v6413 = vpop.permute.xlu0 %6412
    %6414 = vrot.lane.b32.xlu0 %v6239, 127
    %v6415 = vpop.permute.xlu0 %6414
    %6416 = vrot.lane.b32.xlu0 %v6345, 127
    %v6417 = vpop.permute.xlu0 %6416
    %6418 = vrot.lane.b32.xlu0 %v6243, 127
    %v6419 = vpop.permute.xlu0 %6418
    %6420 = vrot.lane.b32.xlu0 %v6245, 127
    %v6421 = vpop.permute.xlu0 %6420
    %6422 = vrot.lane.b32.xlu0 %v6350, 127
    %v6423 = vpop.permute.xlu0 %6422
    %6424 = vrot.lane.b32.xlu0 %v6249, 127
    %v6425 = vpop.permute.xlu0 %6424
    %6426 = vrot.lane.b32.xlu0 %v6251, 127
    %v6427 = vpop.permute.xlu0 %6426
    %6428 = vrot.lane.b32.xlu0 %v6355, 127
    %v6429 = vpop.permute.xlu0 %6428
    %v6430 = vsel %vm157, %v6383, %v6385
    %v6431 = vsel %vm157, %v6385, %v6387
    %v6432 = vsel %vm157, %v6389, %v6391
    %v6433 = vsel %vm157, %v6391, %v6393
    %v6434 = vsel %vm157, %v6395, %v6397
    %v6435 = vsel %vm157, %v6397, %v6399
    %v6436 = vsel %vm157, %v6401, %v6403
    %v6437 = vsel %vm157, %v6403, %v6405
    %v6438 = vsel %vm157, %v6407, %v6409
    %v6439 = vsel %vm157, %v6409, %v6411
    %v6440 = vsel %vm157, %v6413, %v6415
    %v6441 = vsel %vm157, %v6415, %v6417
    %v6442 = vsel %vm157, %v6419, %v6421
    %v6443 = vsel %vm157, %v6421, %v6423
    %v6444 = vsel %vm157, %v6425, %v6427
    %v6445 = vsel %vm157, %v6427, %v6429
    %v6470 = vmax.f32 %v6207, %v6430
    %v6471 = vmax.f32 %v6209, %v6431
    %v6472 = vmax.f32 %v6320, %v6387
    %v6473 = vmax.f32 %v6213, %v6432
    %v6474 = vmax.f32 %v6215, %v6433
    %v6475 = vmax.f32 %v6325, %v6393
    %v6476 = vmax.f32 %v6219, %v6434
    %v6477 = vmax.f32 %v6221, %v6435
    %v6478 = vmax.f32 %v6330, %v6399
    %v6479 = vmax.f32 %v6225, %v6436
    %v6480 = vmax.f32 %v6227, %v6437
    %v6481 = vmax.f32 %v6335, %v6405
    %v6482 = vmax.f32 %v6231, %v6438
    %v6483 = vmax.f32 %v6233, %v6439
    %v6484 = vmax.f32 %v6340, %v6411
    %v6485 = vmax.f32 %v6237, %v6440
    %v6486 = vmax.f32 %v6239, %v6441
    %v6487 = vmax.f32 %v6345, %v6417
    %v6488 = vmax.f32 %v6243, %v6442
    %v6489 = vmax.f32 %v6245, %v6443
    %v6490 = vmax.f32 %v6350, %v6423
    %v6491 = vmax.f32 %v6249, %v6444
    %v6492 = vmax.f32 %v6251, %v6445
    %v6493 = vmax.f32 %v6355, %v6429
    %6494 = vrot.lane.b32.xlu0 %v6207, 126
    %v6495 = vpop.permute.xlu0 %6494
    %6496 = vrot.lane.b32.xlu0 %v6209, 126
    %v6497 = vpop.permute.xlu0 %6496
    %6498 = vrot.lane.b32.xlu0 %v6320, 126
    %v6499 = vpop.permute.xlu0 %6498
    %6500 = vrot.lane.b32.xlu0 %v6213, 126
    %v6501 = vpop.permute.xlu0 %6500
    %6502 = vrot.lane.b32.xlu0 %v6215, 126
    %v6503 = vpop.permute.xlu0 %6502
    %6504 = vrot.lane.b32.xlu0 %v6325, 126
    %v6505 = vpop.permute.xlu0 %6504
    %6506 = vrot.lane.b32.xlu0 %v6219, 126
    %v6507 = vpop.permute.xlu0 %6506
    %6508 = vrot.lane.b32.xlu0 %v6221, 126
    %v6509 = vpop.permute.xlu0 %6508
    %6510 = vrot.lane.b32.xlu0 %v6330, 126
    %v6511 = vpop.permute.xlu0 %6510
    %6512 = vrot.lane.b32.xlu0 %v6225, 126
    %v6513 = vpop.permute.xlu0 %6512
    %6514 = vrot.lane.b32.xlu0 %v6227, 126
    %v6515 = vpop.permute.xlu0 %6514
    %6516 = vrot.lane.b32.xlu0 %v6335, 126
    %v6517 = vpop.permute.xlu0 %6516
    %6518 = vrot.lane.b32.xlu0 %v6231, 126
    %v6519 = vpop.permute.xlu0 %6518
    %6520 = vrot.lane.b32.xlu0 %v6233, 126
    %v6521 = vpop.permute.xlu0 %6520
    %6522 = vrot.lane.b32.xlu0 %v6340, 126
    %v6523 = vpop.permute.xlu0 %6522
    %6524 = vrot.lane.b32.xlu0 %v6237, 126
    %v6525 = vpop.permute.xlu0 %6524
    %6526 = vrot.lane.b32.xlu0 %v6239, 126
    %v6527 = vpop.permute.xlu0 %6526
    %6528 = vrot.lane.b32.xlu0 %v6345, 126
    %v6529 = vpop.permute.xlu0 %6528
    %6530 = vrot.lane.b32.xlu0 %v6243, 126
    %v6531 = vpop.permute.xlu0 %6530
    %6532 = vrot.lane.b32.xlu0 %v6245, 126
    %v6533 = vpop.permute.xlu0 %6532
    %6534 = vrot.lane.b32.xlu0 %v6350, 126
    %v6535 = vpop.permute.xlu0 %6534
    %6536 = vrot.lane.b32.xlu0 %v6249, 126
    %v6537 = vpop.permute.xlu0 %6536
    %6538 = vrot.lane.b32.xlu0 %v6251, 126
    %v6539 = vpop.permute.xlu0 %6538
    %6540 = vrot.lane.b32.xlu0 %v6355, 126
    %v6541 = vpop.permute.xlu0 %6540
    %v6542 = vsel %vm1216, %v6495, %v6497
    %v6543 = vsel %vm1216, %v6497, %v6499
    %v6544 = vsel %vm1216, %v6501, %v6503
    %v6545 = vsel %vm1216, %v6503, %v6505
    %v6546 = vsel %vm1216, %v6507, %v6509
    %v6547 = vsel %vm1216, %v6509, %v6511
    %v6548 = vsel %vm1216, %v6513, %v6515
    %v6549 = vsel %vm1216, %v6515, %v6517
    %v6550 = vsel %vm1216, %v6519, %v6521
    %v6551 = vsel %vm1216, %v6521, %v6523
    %v6552 = vsel %vm1216, %v6525, %v6527
    %v6553 = vsel %vm1216, %v6527, %v6529
    %v6554 = vsel %vm1216, %v6531, %v6533
    %v6555 = vsel %vm1216, %v6533, %v6535
    %v6556 = vsel %vm1216, %v6537, %v6539
    %v6557 = vsel %vm1216, %v6539, %v6541
    %v6582 = vmax.f32 %v6470, %v6542
    %v6583 = vmax.f32 %v6471, %v6543
    %v6584 = vmax.f32 %v6472, %v6499
    %v6585 = vmax.f32 %v6473, %v6544
    %v6586 = vmax.f32 %v6474, %v6545
    %v6587 = vmax.f32 %v6475, %v6505
    %v6588 = vmax.f32 %v6476, %v6546
    %v6589 = vmax.f32 %v6477, %v6547
    %v6590 = vmax.f32 %v6478, %v6511
    %v6591 = vmax.f32 %v6479, %v6548
    %v6592 = vmax.f32 %v6480, %v6549
    %v6593 = vmax.f32 %v6481, %v6517
    %v6594 = vmax.f32 %v6482, %v6550
    %v6595 = vmax.f32 %v6483, %v6551
    %v6596 = vmax.f32 %v6484, %v6523
    %v6597 = vmax.f32 %v6485, %v6552
    %v6598 = vmax.f32 %v6486, %v6553
    %v6599 = vmax.f32 %v6487, %v6529
    %v6600 = vmax.f32 %v6488, %v6554
    %v6601 = vmax.f32 %v6489, %v6555
    %v6602 = vmax.f32 %v6490, %v6535
    %v6603 = vmax.f32 %v6491, %v6556
    %v6604 = vmax.f32 %v6492, %v6557
    %v6605 = vmax.f32 %v6493, %v6541
    %v6606 = vld [vmem:[%s10] sm:$0xff]
    %v6607 = vld [vmem:[%s10 + $0x8] sm:$0xff]
    %v6608 = vld [vmem:[%s10 + $0x10] sm:$0xff]
    %v6609 = vld [vmem:[%s10 + $0x18] sm:$0xff]
    %v6610 = vld [vmem:[%s10 + $0x20] sm:$0xff]
    %v6611 = vld [vmem:[%s10 + $0x28] sm:$0xff]
    %v6612 = vld [vmem:[%s10 + $0x30] sm:$0xff]
    %v6613 = vld [vmem:[%s10 + $0x38] sm:$0xff]
    %v6614 = vld [vmem:[%s10 + $0x40] sm:$0xff]
    %v6615 = vld [vmem:[%s10 + $0x48] sm:$0xff]
    %v6616 = vld [vmem:[%s10 + $0x50] sm:$0xff]
    %v6617 = vld [vmem:[%s10 + $0x58] sm:$0xff]
    %v6618 = vld [vmem:[%s10 + $0x60] sm:$0xff]
    %v6619 = vld [vmem:[%s10 + $0x68] sm:$0xff]
    %v6620 = vld [vmem:[%s10 + $0x70] sm:$0xff]
    %v6621 = vld [vmem:[%s10 + $0x78] sm:$0xff]
    %v6622 = vld [vmem:[%s10 + $0x80] sm:$0xff]
    %v6623 = vld [vmem:[%s10 + $0x88] sm:$0xff]
    %v6624 = vld [vmem:[%s10 + $0x90] sm:$0xff]
    %v6625 = vld [vmem:[%s10 + $0x98] sm:$0xff]
    %v6626 = vld [vmem:[%s10 + $0xa0] sm:$0xff]
    %v6627 = vld [vmem:[%s10 + $0xa8] sm:$0xff]
    %v6628 = vld [vmem:[%s10 + $0xb0] sm:$0xff]
    %v6629 = vld [vmem:[%s10 + $0xb8] sm:$0xff]
    %v6630 = vld [vmem:[%s10 + $0xc0] sm:$0xff]
    %v6631 = vld [vmem:[%s10 + $0xc8] sm:$0xff]
    %v6632 = vld [vmem:[%s10 + $0xd0] sm:$0xff]
    %v6633 = vld [vmem:[%s10 + $0xd8] sm:$0xff]
    %v6634 = vld [vmem:[%s10 + $0xe0] sm:$0xff]
    %v6635 = vld [vmem:[%s10 + $0xe8] sm:$0xff]
    %v6636 = vld [vmem:[%s10 + $0xf0] sm:$0xff]
    %v6637 = vld [vmem:[%s10 + $0xf8] sm:$0xff]
    %v6638 = vld [vmem:[%s10 + $0x100] sm:$0xff]
    %v6639 = vld [vmem:[%s10 + $0x108] sm:$0xff]
    %v6640 = vld [vmem:[%s10 + $0x110] sm:$0xff]
    %v6641 = vld [vmem:[%s10 + $0x118] sm:$0xff]
    %v6642 = vld [vmem:[%s10 + $0x120] sm:$0xff]
    %v6643 = vld [vmem:[%s10 + $0x128] sm:$0xff]
    %v6644 = vld [vmem:[%s10 + $0x130] sm:$0xff]
    %v6645 = vld [vmem:[%s10 + $0x138] sm:$0xff]
    %v6646 = vld [vmem:[%s10 + $0x140] sm:$0xff]
    %v6647 = vld [vmem:[%s10 + $0x148] sm:$0xff]
    %v6648 = vld [vmem:[%s10 + $0x150] sm:$0xff]
    %v6649 = vld [vmem:[%s10 + $0x158] sm:$0xff]
    %v6650 = vld [vmem:[%s10 + $0x160] sm:$0xff]
    %v6651 = vld [vmem:[%s10 + $0x168] sm:$0xff]
    %v6652 = vld [vmem:[%s10 + $0x170] sm:$0xff]
    %v6653 = vld [vmem:[%s10 + $0x178] sm:$0xff]
    %v6654 = vld [vmem:[%s10 + $0x180] sm:$0xff]
    %v6655 = vld [vmem:[%s10 + $0x188] sm:$0xff]
    %v6656 = vld [vmem:[%s10 + $0x190] sm:$0xff]
    %v6657 = vld [vmem:[%s10 + $0x198] sm:$0xff]
    %v6658 = vld [vmem:[%s10 + $0x1a0] sm:$0xff]
    %v6659 = vld [vmem:[%s10 + $0x1a8] sm:$0xff]
    %v6660 = vld [vmem:[%s10 + $0x1b0] sm:$0xff]
    %v6661 = vld [vmem:[%s10 + $0x1b8] sm:$0xff]
    %v6662 = vld [vmem:[%s10 + $0x1c0] sm:$0xff]
    %v6663 = vld [vmem:[%s10 + $0x1c8] sm:$0xff]
    %v6664 = vld [vmem:[%s10 + $0x1d0] sm:$0xff]
    %v6665 = vld [vmem:[%s10 + $0x1d8] sm:$0xff]
    %v6666 = vld [vmem:[%s10 + $0x1e0] sm:$0xff]
    %v6667 = vld [vmem:[%s10 + $0x1e8] sm:$0xff]
    %v6668 = vld [vmem:[%s10 + $0x1f0] sm:$0xff]
    %v6669 = vld [vmem:[%s10 + $0x1f8] sm:$0xff]
    %v6670 = vld [vmem:[%s10 + $0x200] sm:$0xff]
    %v6671 = vld [vmem:[%s10 + $0x208] sm:$0xff]
    %v6672 = vld [vmem:[%s10 + $0x210] sm:$0xff]
    %v6673 = vld [vmem:[%s10 + $0x218] sm:$0xff]
    %v6674 = vld [vmem:[%s10 + $0x220] sm:$0xff]
    %v6675 = vld [vmem:[%s10 + $0x228] sm:$0xff]
    %v6676 = vld [vmem:[%s10 + $0x230] sm:$0xff]
    %v6677 = vld [vmem:[%s10 + $0x238] sm:$0xff]
    %v6678 = vld [vmem:[%s10 + $0x240] sm:$0xff]
    %v6679 = vld [vmem:[%s10 + $0x248] sm:$0xff]
    %v6680 = vld [vmem:[%s10 + $0x250] sm:$0xf]
    %v6681 = vld [vmem:[%s10 + $0x258] sm:$0xf]
    %vm6682 = vcmask 359424
    %v6684 = vsel %vm6682, %v6584, 0
    %v6687 = vsel %vm6682, %v6587, 0
    %v6690 = vsel %vm6682, %v6590, 0
    %v6693 = vsel %vm6682, %v6593, 0
    %v6696 = vsel %vm6682, %v6596, 0
    %v6699 = vsel %vm6682, %v6599, 0
    %v6702 = vsel %vm6682, %v6602, 0
    %v6705 = vsel %vm6682, %v6605, 0
    %v6708 = vsel %vm3704, %v6680, 0
    %v6711 = vsel %vm3704, %v6681, 0
    %6713 = vmatprep.subr.mxu0 %v6607
    %6714 = vmatpush1.msra.mxu0 %v6606
    %6715 = vmatprep.subr.mxu0 %v6609
    %6716 = vmatpush1.msra.mxu0 %v6608
    %6717 = vmatprep.subr.mxu0 %v6611
    %6718 = vmatpush1.msra.mxu0 %v6610
    %6719 = vmatprep.subr.mxu0 %v6613
    %6720 = vmatpush1.msra.mxu0 %v6612
    %6721 = vmatprep.subr.mxu0 %v6615
    %6722 = vmatpush1.msra.mxu0 %v6614
    %6723 = vmatprep.subr.mxu0 %v6617
    %6724 = vmatpush1.msra.mxu0 %v6616
    %6725 = vmatprep.subr.mxu0 %v6619
    %6726 = vmatpush1.msra.mxu0 %v6618
    %6727 = vmatprep.subr.mxu0 %v6621
    %6728 = vmatpush1.msra.mxu0 %v6620
    %6729 = vmatprep.subr.mxu0 %v6623
    %6730 = vmatpush1.msra.mxu0 %v6622
    %6731 = vmatprep.subr.mxu0 %v6625
    %6732 = vmatpush1.msra.mxu0 %v6624
    %6733 = vmatprep.subr.mxu0 %v6627
    %6734 = vmatpush1.msra.mxu0 %v6626
    %6735 = vmatprep.subr.mxu0 %v6629
    %6736 = vmatpush1.msra.mxu0 %v6628
    %6737 = vmatprep.subr.mxu0 %v6631
    %6738 = vmatpush1.msra.mxu0 %v6630
    %6739 = vmatprep.subr.mxu0 %v6633
    %6740 = vmatpush1.msra.mxu0 %v6632
    %6741 = vmatprep.subr.mxu0 %v6635
    %6742 = vmatpush1.msra.mxu0 %v6634
    %6743 = vmatprep.subr.mxu0 %v6637
    %6744 = vmatpush1.msra.mxu0 %v6636
    %6745 = vmatprep.subr.mxu0 %v6639
    %6746 = vmatpush1.msra.mxu0 %v6638
    %6747 = vmatprep.subr.mxu0 %v6641
    %6748 = vmatpush1.msra.mxu0 %v6640
    %6749 = vmatprep.subr.mxu0 %v6643
    %6750 = vmatpush1.msra.mxu0 %v6642
    %6751 = vmatprep.subr.mxu0 %v6645
    %6752 = vmatpush1.msra.mxu0 %v6644
    %6753 = vmatprep.subr.mxu0 %v6647
    %6754 = vmatpush1.msra.mxu0 %v6646
    %6755 = vmatprep.subr.mxu0 %v6649
    %6756 = vmatpush1.msra.mxu0 %v6648
    %6757 = vmatprep.subr.mxu0 %v6651
    %6758 = vmatpush1.msra.mxu0 %v6650
    %6759 = vmatprep.subr.mxu0 %v6653
    %6760 = vmatpush1.msra.mxu0 %v6652
    %6761 = vmatprep.subr.mxu0 %v6655
    %6762 = vmatpush1.msra.mxu0 %v6654
    %6763 = vmatprep.subr.mxu0 %v6657
    %6764 = vmatpush1.msra.mxu0 %v6656
    %6765 = vmatprep.subr.mxu0 %v6659
    %6766 = vmatpush1.msra.mxu0 %v6658
    %6767 = vmatprep.subr.mxu0 %v6661
    %6768 = vmatpush1.msra.mxu0 %v6660
    %6769 = vmatprep.subr.mxu0 %v6663
    %6770 = vmatpush1.msra.mxu0 %v6662
    %6771 = vmatprep.subr.mxu0 %v6665
    %6772 = vmatpush1.msra.mxu0 %v6664
    %6773 = vmatprep.subr.mxu0 %v6667
    %6774 = vmatpush1.msra.mxu0 %v6666
    %6775 = vmatprep.subr.mxu0 %v6669
    %6776 = vmatpush1.msra.mxu0 %v6668
    %6777 = vmatprep.mubr.f32.mxu0 %v6583
    %6778 = vmatmul.mubr.f32.gmra.mrb[0].mxu0 %v6582
    %v6779 = vpop.f32.mrb[0].mxu0
    %v6780 = vadd.f32 0.0, %v6779
    %v6781 = vpop.f32.mrb[0].mxu0
    %v6782 = vadd.f32 0.0, %v6781
    %6783 = vmatprep.mubr.f32.mxu0 %v6586
    %6784 = vmatmul.mubr.f32.gmra.mrb[0].mxu0 %v6585
    %v6785 = vpop.f32.mrb[0].mxu0
    %v6786 = vadd.f32 0.0, %v6785
    %v6787 = vpop.f32.mrb[0].mxu0
    %v6788 = vadd.f32 0.0, %v6787
    %6789 = vmatprep.mubr.f32.mxu0 %v6589
    %6790 = vmatmul.mubr.f32.gmra.mrb[0].mxu0 %v6588
    %v6791 = vpop.f32.mrb[0].mxu0
    %v6792 = vadd.f32 0.0, %v6791
    %v6793 = vpop.f32.mrb[0].mxu0
    %v6794 = vadd.f32 0.0, %v6793
    %6795 = vmatprep.mubr.f32.mxu0 %v6592
    %6796 = vmatmul.mubr.f32.gmra.mrb[0].mxu0 %v6591
    %v6797 = vpop.f32.mrb[0].mxu0
    %v6798 = vadd.f32 0.0, %v6797
    %v6799 = vpop.f32.mrb[0].mxu0
    %v6800 = vadd.f32 0.0, %v6799
    %6801 = vmatprep.mubr.f32.mxu0 %v6595
    %6802 = vmatmul.mubr.f32.gmra.mrb[0].mxu0 %v6594
    %v6803 = vpop.f32.mrb[0].mxu0
    %v6804 = vadd.f32 0.0, %v6803
    %v6805 = vpop.f32.mrb[0].mxu0
    %v6806 = vadd.f32 0.0, %v6805
    %6807 = vmatprep.mubr.f32.mxu0 %v6598
    %6808 = vmatmul.mubr.f32.gmra.mrb[0].mxu0 %v6597
    %v6809 = vpop.f32.mrb[0].mxu0
    %v6810 = vadd.f32 0.0, %v6809
    %v6811 = vpop.f32.mrb[0].mxu0
    %v6812 = vadd.f32 0.0, %v6811
    %6813 = vmatprep.mubr.f32.mxu0 %v6601
    %6814 = vmatmul.mubr.f32.gmra.mrb[0].mxu0 %v6600
    %v6815 = vpop.f32.mrb[0].mxu0
    %v6816 = vadd.f32 0.0, %v6815
    %v6817 = vpop.f32.mrb[0].mxu0
    %v6818 = vadd.f32 0.0, %v6817
    %6819 = vmatprep.mubr.f32.mxu0 %v6604
    %6820 = vmatmul.mubr.f32.gmra.mrb[0].mxu0 %v6603
    %v6821 = vpop.f32.mrb[0].mxu0
    %v6822 = vadd.f32 0.0, %v6821
    %v6823 = vpop.f32.mrb[0].mxu0
    %v6824 = vadd.f32 0.0, %v6823
    %6825 = vdwg.mxu0
    %6826 = vmatprep.subr.mxu0 %v6671
    %6827 = vmatpush1.msra.mxu0 %v6670
    %6828 = vmatprep.subr.mxu0 %v6673
    %6829 = vmatpush1.msra.mxu0 %v6672
    %6830 = vmatprep.subr.mxu0 %v6675
    %6831 = vmatpush1.msra.mxu0 %v6674
    %6832 = vmatprep.subr.mxu0 %v6677
    %6833 = vmatpush1.msra.mxu0 %v6676
    %6834 = vmatprep.subr.mxu0 %v6679
    %6835 = vmatpush1.msra.mxu0 %v6678
    %6836 = vmatprep.subr.mxu0 %v6711
    %6837 = vmatpush1.msra.mxu0 %v6708
    %6838 = vmatprep.subr.mxu0 0.0
    %6839 = vmatpush1.msra.mxu0 0.0
    %6840 = vmatprep.subr.mxu0 0.0
    %6841 = vmatpush1.msra.mxu0 0.0
    %6842 = vmatprep.subr.mxu0 0.0
    %6843 = vmatpush1.msra.mxu0 0.0
    %6844 = vmatprep.subr.mxu0 0.0
    %6845 = vmatpush1.msra.mxu0 0.0
    %6846 = vmatprep.subr.mxu0 0.0
    %6847 = vmatpush1.msra.mxu0 0.0
    %6848 = vmatprep.subr.mxu0 0.0
    %6849 = vmatpush1.msra.mxu0 0.0
    %6850 = vmatprep.subr.mxu0 0.0
    %6851 = vmatpush1.msra.mxu0 0.0
    %6852 = vmatprep.subr.mxu0 0.0
    %6853 = vmatpush1.msra.mxu0 0.0
    %6854 = vmatprep.subr.mxu0 0.0
    %6855 = vmatpush1.msra.mxu0 0.0
    %6856 = vmatprep.subr.mxu0 0.0
    %6857 = vmatpush1.msra.mxu0 0.0
    %6858 = vmatprep.subr.mxu0 0.0
    %6859 = vmatpush1.msra.mxu0 0.0
    %6860 = vmatprep.subr.mxu0 0.0
    %6861 = vmatpush1.msra.mxu0 0.0
    %6862 = vmatprep.subr.mxu0 0.0
    %6863 = vmatpush1.msra.mxu0 0.0
    %6864 = vmatprep.subr.mxu0 0.0
    %6865 = vmatpush1.msra.mxu0 0.0
    %6866 = vmatprep.subr.mxu0 0.0
    %6867 = vmatpush1.msra.mxu0 0.0
    %6868 = vmatprep.subr.mxu0 0.0
    %6869 = vmatpush1.msra.mxu0 0.0
    %6870 = vmatprep.subr.mxu0 0.0
    %6871 = vmatpush1.msra.mxu0 0.0
    %6872 = vmatprep.subr.mxu0 0.0
    %6873 = vmatpush1.msra.mxu0 0.0
    %6874 = vmatprep.subr.mxu0 0.0
    %6875 = vmatpush1.msra.mxu0 0.0
    %6876 = vmatprep.subr.mxu0 0.0
    %6877 = vmatpush1.msra.mxu0 0.0
    %6878 = vmatprep.subr.mxu0 0.0
    %6879 = vmatpush1.msra.mxu0 0.0
    %6880 = vmatprep.subr.mxu0 0.0
    %6881 = vmatpush1.msra.mxu0 0.0
    %6882 = vmatprep.subr.mxu0 0.0
    %6883 = vmatpush1.msra.mxu0 0.0
    %6884 = vmatprep.subr.mxu0 0.0
    %6885 = vmatpush1.msra.mxu0 0.0
    %6886 = vmatprep.subr.mxu0 0.0
    %6887 = vmatpush1.msra.mxu0 0.0
    %6888 = vmatprep.subr.mxu0 0.0
    %6889 = vmatpush1.msra.mxu0 0.0
    %6890 = vmatprep.mubr.f32.mxu0 0.0
    %6891 = vmatmul.mubr.f32.gmra.mrb[0].mxu0 %v6684
    %v6892 = vpop.f32.mrb[0].mxu0
    %v6893 = vadd.f32 %v6780, %v6892
    %v6894 = vpop.f32.mrb[0].mxu0
    %v6895 = vadd.f32 %v6782, %v6894
    %6896 = vmatprep.mubr.f32.mxu0 0.0
    %6897 = vmatmul.mubr.f32.gmra.mrb[0].mxu0 %v6687
    %v6898 = vpop.f32.mrb[0].mxu0
    %v6899 = vadd.f32 %v6786, %v6898
    %v6900 = vpop.f32.mrb[0].mxu0
    %v6901 = vadd.f32 %v6788, %v6900
    %6902 = vmatprep.mubr.f32.mxu0 0.0
    %6903 = vmatmul.mubr.f32.gmra.mrb[0].mxu0 %v6690
    %v6904 = vpop.f32.mrb[0].mxu0
    %v6905 = vadd.f32 %v6792, %v6904
    %v6906 = vpop.f32.mrb[0].mxu0
    %v6907 = vadd.f32 %v6794, %v6906
    %6908 = vmatprep.mubr.f32.mxu0 0.0
    %6909 = vmatmul.mubr.f32.gmra.mrb[0].mxu0 %v6693
    %v6910 = vpop.f32.mrb[0].mxu0
    %v6911 = vadd.f32 %v6798, %v6910
    %v6912 = vpop.f32.mrb[0].mxu0
    %v6913 = vadd.f32 %v6800, %v6912
    %6914 = vmatprep.mubr.f32.mxu0 0.0
    %6915 = vmatmul.mubr.f32.gmra.mrb[0].mxu0 %v6696
    %v6916 = vpop.f32.mrb[0].mxu0
    %v6917 = vadd.f32 %v6804, %v6916
    %v6918 = vpop.f32.mrb[0].mxu0
    %v6919 = vadd.f32 %v6806, %v6918
    %6920 = vmatprep.mubr.f32.mxu0 0.0
    %6921 = vmatmul.mubr.f32.gmra.mrb[0].mxu0 %v6699
    %v6922 = vpop.f32.mrb[0].mxu0
    %v6923 = vadd.f32 %v6810, %v6922
    %v6924 = vpop.f32.mrb[0].mxu0
    %v6925 = vadd.f32 %v6812, %v6924
    %6926 = vmatprep.mubr.f32.mxu0 0.0
    %6927 = vmatmul.mubr.f32.gmra.mrb[0].mxu0 %v6702
    %v6928 = vpop.f32.mrb[0].mxu0
    %v6929 = vadd.f32 %v6816, %v6928
    %v6930 = vpop.f32.mrb[0].mxu0
    %v6931 = vadd.f32 %v6818, %v6930
    %6932 = vmatprep.mubr.f32.mxu0 0.0
    %6933 = vmatmul.mubr.f32.gmra.mrb[0].mxu0 %v6705
    %v6934 = vpop.f32.mrb[0].mxu0
    %v6935 = vadd.f32 %v6822, %v6934
    %v6936 = vpop.f32.mrb[0].mxu0
    %v6937 = vadd.f32 %v6824, %v6936
    %6938 = vdwg.mxu0
    %v6939 = vld [vmem:[%s5] sm:$0xff]
    %v6940 = vld [vmem:[%s5 + $0x8] sm:$0xff]
    %v6941 = vld [vmem:[%s5 + $0x10] sm:$0xff]
    %s6942 = scalar_lea.vmem %s5, 24
    %v6943 = vld [vmem:[%s6942] sm:$0xff]
    %v6944 = vld [vmem:[%s6942 + $0x8] sm:$0xff]
    %v6945 = vld [vmem:[%s6942 + $0x10] sm:$0xff]
    %6962 = vrot.lane.b32.xlu0 %v6893, 127
    %v6963 = vpop.permute.xlu0 %6962
    %6964 = vrot.lane.b32.xlu0 %v6895, 127
    %v6965 = vpop.permute.xlu0 %6964
    %6966 = vrot.lane.b32.xlu0 %v6899, 127
    %v6967 = vpop.permute.xlu0 %6966
    %6968 = vrot.lane.b32.xlu0 %v6901, 127
    %v6969 = vpop.permute.xlu0 %6968
    %6970 = vrot.lane.b32.xlu0 %v6905, 127
    %v6971 = vpop.permute.xlu0 %6970
    %6972 = vrot.lane.b32.xlu0 %v6907, 127
    %v6973 = vpop.permute.xlu0 %6972
    %6974 = vrot.lane.b32.xlu0 %v6911, 127
    %v6975 = vpop.permute.xlu0 %6974
    %6976 = vrot.lane.b32.xlu0 %v6913, 127
    %v6977 = vpop.permute.xlu0 %6976
    %6978 = vrot.lane.b32.xlu0 %v6917, 127
    %v6979 = vpop.permute.xlu0 %6978
    %6980 = vrot.lane.b32.xlu0 %v6919, 127
    %v6981 = vpop.permute.xlu0 %6980
    %6982 = vrot.lane.b32.xlu0 %v6923, 127
    %v6983 = vpop.permute.xlu0 %6982
    %6984 = vrot.lane.b32.xlu0 %v6925, 127
    %v6985 = vpop.permute.xlu0 %6984
    %6986 = vrot.lane.b32.xlu0 %v6929, 127
    %v6987 = vpop.permute.xlu0 %6986
    %6988 = vrot.lane.b32.xlu0 %v6931, 127
    %v6989 = vpop.permute.xlu0 %6988
    %6990 = vrot.lane.b32.xlu0 %v6935, 127
    %v6991 = vpop.permute.xlu0 %6990
    %6992 = vrot.lane.b32.xlu0 %v6937, 127
    %v6993 = vpop.permute.xlu0 %6992
    %v6994 = vsel %vm157, %v6963, %v6965
    %v6995 = vsel %vm157, %v6967, %v6969
    %v6996 = vsel %vm157, %v6971, %v6973
    %v6997 = vsel %vm157, %v6975, %v6977
    %v6998 = vsel %vm157, %v6979, %v6981
    %v6999 = vsel %vm157, %v6983, %v6985
    %v7000 = vsel %vm157, %v6987, %v6989
    %v7001 = vsel %vm157, %v6991, %v6993
    %vm7018 = vcmask 523264
    %v7020 = vsel %vm7018, %v6943, 0
    %v7023 = vsel %vm7018, %v6944, 0
    %v7026 = vsel %vm7018, %v6945, 0
    %7028 = vmatprep.subr.mxu0 %v6965
    %7029 = vmatpush1.msra.mxu0 %v6994
    %7030 = vmatprep.subr.mxu0 %v6969
    %7031 = vmatpush1.msra.mxu0 %v6995
    %7032 = vmatprep.subr.mxu0 %v6973
    %7033 = vmatpush1.msra.mxu0 %v6996
    %7034 = vmatprep.subr.mxu0 %v6977
    %7035 = vmatpush1.msra.mxu0 %v6997
    %7036 = vmatprep.subr.mxu0 %v6981
    %7037 = vmatpush1.msra.mxu0 %v6998
    %7038 = vmatprep.subr.mxu0 %v6985
    %7039 = vmatpush1.msra.mxu0 %v6999
    %7040 = vmatprep.subr.mxu0 %v6989
    %7041 = vmatpush1.msra.mxu0 %v7000
    %7042 = vmatprep.subr.mxu0 %v6993
    %7043 = vmatpush1.msra.mxu0 %v7001
    %7044 = vmatprep.subr.mxu0 0.0
    %7045 = vmatpush1.msra.mxu0 0.0
    %7046 = vmatprep.subr.mxu0 0.0
    %7047 = vmatpush1.msra.mxu0 0.0
    %7048 = vmatprep.subr.mxu0 0.0
    %7049 = vmatpush1.msra.mxu0 0.0
    %7050 = vmatprep.subr.mxu0 0.0
    %7051 = vmatpush1.msra.mxu0 0.0
    %7052 = vmatprep.subr.mxu0 0.0
    %7053 = vmatpush1.msra.mxu0 0.0
    %7054 = vmatprep.subr.mxu0 0.0
    %7055 = vmatpush1.msra.mxu0 0.0
    %7056 = vmatprep.subr.mxu0 0.0
    %7057 = vmatpush1.msra.mxu0 0.0
    %7058 = vmatprep.subr.mxu0 0.0
    %7059 = vmatpush1.msra.mxu0 0.0
    %7060 = vmatprep.subr.mxu0 0.0
    %7061 = vmatpush1.msra.mxu0 0.0
    %7062 = vmatprep.subr.mxu0 0.0
    %7063 = vmatpush1.msra.mxu0 0.0
    %7064 = vmatprep.subr.mxu0 0.0
    %7065 = vmatpush1.msra.mxu0 0.0
    %7066 = vmatprep.subr.mxu0 0.0
    %7067 = vmatpush1.msra.mxu0 0.0
    %7068 = vmatprep.subr.mxu0 0.0
    %7069 = vmatpush1.msra.mxu0 0.0
    %7070 = vmatprep.subr.mxu0 0.0
    %7071 = vmatpush1.msra.mxu0 0.0
    %7072 = vmatprep.subr.mxu0 0.0
    %7073 = vmatpush1.msra.mxu0 0.0
    %7074 = vmatprep.subr.mxu0 0.0
    %7075 = vmatpush1.msra.mxu0 0.0
    %7076 = vmatprep.subr.mxu0 0.0
    %7077 = vmatpush1.msra.mxu0 0.0
    %7078 = vmatprep.subr.mxu0 0.0
    %7079 = vmatpush1.msra.mxu0 0.0
    %7080 = vmatprep.subr.mxu0 0.0
    %7081 = vmatpush1.msra.mxu0 0.0
    %7082 = vmatprep.subr.mxu0 0.0
    %7083 = vmatpush1.msra.mxu0 0.0
    %7084 = vmatprep.subr.mxu0 0.0
    %7085 = vmatpush1.msra.mxu0 0.0
    %7086 = vmatprep.subr.mxu0 0.0
    %7087 = vmatpush1.msra.mxu0 0.0
    %7088 = vmatprep.subr.mxu0 0.0
    %7089 = vmatpush1.msra.mxu0 0.0
    %7090 = vmatprep.subr.mxu0 0.0
    %7091 = vmatpush1.msra.mxu0 0.0
    %7092 = vmatprep.mubr.f32.mxu0 0.0
    %7093 = vmatmul.mubr.f32.gmra.mrb[0].mxu0 %v7020
    %v7094 = vpop.f32.mrb[0].mxu0
    %v7095 = vadd.f32 0.0, %v7094
    %v7096 = vpop.f32.mrb[0].mxu0
    %v7097 = vadd.f32 0.0, %v7096
    %7098 = vmatprep.mubr.f32.mxu0 0.0
    %7099 = vmatmul.mubr.f32.gmra.mrb[0].mxu0 %v7023
    %v7100 = vpop.f32.mrb[0].mxu0
    %v7101 = vadd.f32 0.0, %v7100
    %v7102 = vpop.f32.mrb[0].mxu0
    %v7103 = vadd.f32 0.0, %v7102
    %7104 = vmatprep.mubr.f32.mxu0 0.0
    %7105 = vmatmul.mubr.f32.gmra.mrb[0].mxu0 %v7026
    %v7106 = vpop.f32.mrb[0].mxu0
    %v7107 = vadd.f32 0.0, %v7106
    %v7108 = vpop.f32.mrb[0].mxu0
    %v7109 = vadd.f32 0.0, %v7108
    %7110 = vdwg.mxu0
    %v7112 = vsel %vm7018, %v6939, 0
    %v7115 = vsel %vm7018, %v6940, 0
    %v7118 = vsel %vm7018, %v6941, 0
    %7120 = vmatprep.subr.mxu0 %v6895
    %7121 = vmatpush1.msra.mxu0 %v6893
    %7122 = vmatprep.subr.mxu0 %v6901
    %7123 = vmatpush1.msra.mxu0 %v6899
    %7124 = vmatprep.subr.mxu0 %v6907
    %7125 = vmatpush1.msra.mxu0 %v6905
    %7126 = vmatprep.subr.mxu0 %v6913
    %7127 = vmatpush1.msra.mxu0 %v6911
    %7128 = vmatprep.subr.mxu0 %v6919
    %7129 = vmatpush1.msra.mxu0 %v6917
    %7130 = vmatprep.subr.mxu0 %v6925
    %7131 = vmatpush1.msra.mxu0 %v6923
    %7132 = vmatprep.subr.mxu0 %v6931
    %7133 = vmatpush1.msra.mxu0 %v6929
    %7134 = vmatprep.subr.mxu0 %v6937
    %7135 = vmatpush1.msra.mxu0 %v6935
    %7136 = vmatprep.subr.mxu0 0.0
    %7137 = vmatpush1.msra.mxu0 0.0
    %7138 = vmatprep.subr.mxu0 0.0
    %7139 = vmatpush1.msra.mxu0 0.0
    %7140 = vmatprep.subr.mxu0 0.0
    %7141 = vmatpush1.msra.mxu0 0.0
    %7142 = vmatprep.subr.mxu0 0.0
    %7143 = vmatpush1.msra.mxu0 0.0
    %7144 = vmatprep.subr.mxu0 0.0
    %7145 = vmatpush1.msra.mxu0 0.0
    %7146 = vmatprep.subr.mxu0 0.0
    %7147 = vmatpush1.msra.mxu0 0.0
    %7148 = vmatprep.subr.mxu0 0.0
    %7149 = vmatpush1.msra.mxu0 0.0
    %7150 = vmatprep.subr.mxu0 0.0
    %7151 = vmatpush1.msra.mxu0 0.0
    %7152 = vmatprep.subr.mxu0 0.0
    %7153 = vmatpush1.msra.mxu0 0.0
    %7154 = vmatprep.subr.mxu0 0.0
    %7155 = vmatpush1.msra.mxu0 0.0
    %7156 = vmatprep.subr.mxu0 0.0
    %7157 = vmatpush1.msra.mxu0 0.0
    %7158 = vmatprep.subr.mxu0 0.0
    %7159 = vmatpush1.msra.mxu0 0.0
    %7160 = vmatprep.subr.mxu0 0.0
    %7161 = vmatpush1.msra.mxu0 0.0
    %7162 = vmatprep.subr.mxu0 0.0
    %7163 = vmatpush1.msra.mxu0 0.0
    %7164 = vmatprep.subr.mxu0 0.0
    %7165 = vmatpush1.msra.mxu0 0.0
    %7166 = vmatprep.subr.mxu0 0.0
    %7167 = vmatpush1.msra.mxu0 0.0
    %7168 = vmatprep.subr.mxu0 0.0
    %7169 = vmatpush1.msra.mxu0 0.0
    %7170 = vmatprep.subr.mxu0 0.0
    %7171 = vmatpush1.msra.mxu0 0.0
    %7172 = vmatprep.subr.mxu0 0.0
    %7173 = vmatpush1.msra.mxu0 0.0
    %7174 = vmatprep.subr.mxu0 0.0
    %7175 = vmatpush1.msra.mxu0 0.0
    %7176 = vmatprep.subr.mxu0 0.0
    %7177 = vmatpush1.msra.mxu0 0.0
    %7178 = vmatprep.subr.mxu0 0.0
    %7179 = vmatpush1.msra.mxu0 0.0
    %7180 = vmatprep.subr.mxu0 0.0
    %7181 = vmatpush1.msra.mxu0 0.0
    %7182 = vmatprep.subr.mxu0 0.0
    %7183 = vmatpush1.msra.mxu0 0.0
    %7184 = vmatprep.mubr.f32.mxu0 0.0
    %7185 = vmatmul.mubr.f32.gmra.mrb[0].mxu0 %v7112
    %v7186 = vpop.f32.mrb[0].mxu0
    %v7187 = vadd.f32 %v7095, %v7186
    %v7188 = vpop.f32.mrb[0].mxu0
    %v7189 = vadd.f32 %v7097, %v7188
    %7190 = vmatprep.mubr.f32.mxu0 0.0
    %7191 = vmatmul.mubr.f32.gmra.mrb[0].mxu0 %v7115
    %v7192 = vpop.f32.mrb[0].mxu0
    %v7193 = vadd.f32 %v7101, %v7192
    %v7194 = vpop.f32.mrb[0].mxu0
    %v7195 = vadd.f32 %v7103, %v7194
    %7196 = vmatprep.mubr.f32.mxu0 0.0
    %7197 = vmatmul.mubr.f32.gmra.mrb[0].mxu0 %v7118
    %v7198 = vpop.f32.mrb[0].mxu0
    %v7199 = vadd.f32 %v7107, %v7198
    %v7200 = vpop.f32.mrb[0].mxu0
    %v7201 = vadd.f32 %v7109, %v7200
    %7202 = vdwg.mxu0
    %s7203 = scalar_lea.vmem %s5, 48
    %v7204 = vld [vmem:[%s7203] sm:$0xff]
    %v7205 = vld [vmem:[%s7203 + $0x8] sm:$0xff]
    %v7206 = vld [vmem:[%s7203 + $0x10] sm:$0xff]
    %7207 = vrot.lane.b32.xlu0 %v6893, 126
    %v7208 = vpop.permute.xlu0 %7207
    %7209 = vrot.lane.b32.xlu0 %v6895, 126
    %v7210 = vpop.permute.xlu0 %7209
    %7211 = vrot.lane.b32.xlu0 %v6899, 126
    %v7212 = vpop.permute.xlu0 %7211
    %7213 = vrot.lane.b32.xlu0 %v6901, 126
    %v7214 = vpop.permute.xlu0 %7213
    %7215 = vrot.lane.b32.xlu0 %v6905, 126
    %v7216 = vpop.permute.xlu0 %7215
    %7217 = vrot.lane.b32.xlu0 %v6907, 126
    %v7218 = vpop.permute.xlu0 %7217
    %7219 = vrot.lane.b32.xlu0 %v6911, 126
    %v7220 = vpop.permute.xlu0 %7219
    %7221 = vrot.lane.b32.xlu0 %v6913, 126
    %v7222 = vpop.permute.xlu0 %7221
    %7223 = vrot.lane.b32.xlu0 %v6917, 126
    %v7224 = vpop.permute.xlu0 %7223
    %7225 = vrot.lane.b32.xlu0 %v6919, 126
    %v7226 = vpop.permute.xlu0 %7225
    %7227 = vrot.lane.b32.xlu0 %v6923, 126
    %v7228 = vpop.permute.xlu0 %7227
    %7229 = vrot.lane.b32.xlu0 %v6925, 126
    %v7230 = vpop.permute.xlu0 %7229
    %7231 = vrot.lane.b32.xlu0 %v6929, 126
    %v7232 = vpop.permute.xlu0 %7231
    %7233 = vrot.lane.b32.xlu0 %v6931, 126
    %v7234 = vpop.permute.xlu0 %7233
    %7235 = vrot.lane.b32.xlu0 %v6935, 126
    %v7236 = vpop.permute.xlu0 %7235
    %7237 = vrot.lane.b32.xlu0 %v6937, 126
    %v7238 = vpop.permute.xlu0 %7237
    %v7239 = vsel %vm1216, %v7208, %v7210
    %v7240 = vsel %vm1216, %v7212, %v7214
    %v7241 = vsel %vm1216, %v7216, %v7218
    %v7242 = vsel %vm1216, %v7220, %v7222
    %v7243 = vsel %vm1216, %v7224, %v7226
    %v7244 = vsel %vm1216, %v7228, %v7230
    %v7245 = vsel %vm1216, %v7232, %v7234
    %v7246 = vsel %vm1216, %v7236, %v7238
    %v7264 = vsel %vm7018, %v7204, 0
    %v7267 = vsel %vm7018, %v7205, 0
    %v7270 = vsel %vm7018, %v7206, 0
    %7272 = vmatprep.subr.mxu0 %v7210
    %7273 = vmatpush1.msra.mxu0 %v7239
    %7274 = vmatprep.subr.mxu0 %v7214
    %7275 = vmatpush1.msra.mxu0 %v7240
    %7276 = vmatprep.subr.mxu0 %v7218
    %7277 = vmatpush1.msra.mxu0 %v7241
    %7278 = vmatprep.subr.mxu0 %v7222
    %7279 = vmatpush1.msra.mxu0 %v7242
    %7280 = vmatprep.subr.mxu0 %v7226
    %7281 = vmatpush1.msra.mxu0 %v7243
    %7282 = vmatprep.subr.mxu0 %v7230
    %7283 = vmatpush1.msra.mxu0 %v7244
    %7284 = vmatprep.subr.mxu0 %v7234
    %7285 = vmatpush1.msra.mxu0 %v7245
    %7286 = vmatprep.subr.mxu0 %v7238
    %7287 = vmatpush1.msra.mxu0 %v7246
    %7288 = vmatprep.subr.mxu0 0.0
    %7289 = vmatpush1.msra.mxu0 0.0
    %7290 = vmatprep.subr.mxu0 0.0
    %7291 = vmatpush1.msra.mxu0 0.0
    %7292 = vmatprep.subr.mxu0 0.0
    %7293 = vmatpush1.msra.mxu0 0.0
    %7294 = vmatprep.subr.mxu0 0.0
    %7295 = vmatpush1.msra.mxu0 0.0
    %7296 = vmatprep.subr.mxu0 0.0
    %7297 = vmatpush1.msra.mxu0 0.0
    %7298 = vmatprep.subr.mxu0 0.0
    %7299 = vmatpush1.msra.mxu0 0.0
    %7300 = vmatprep.subr.mxu0 0.0
    %7301 = vmatpush1.msra.mxu0 0.0
    %7302 = vmatprep.subr.mxu0 0.0
    %7303 = vmatpush1.msra.mxu0 0.0
    %7304 = vmatprep.subr.mxu0 0.0
    %7305 = vmatpush1.msra.mxu0 0.0
    %7306 = vmatprep.subr.mxu0 0.0
    %7307 = vmatpush1.msra.mxu0 0.0
    %7308 = vmatprep.subr.mxu0 0.0
    %7309 = vmatpush1.msra.mxu0 0.0
    %7310 = vmatprep.subr.mxu0 0.0
    %7311 = vmatpush1.msra.mxu0 0.0
    %7312 = vmatprep.subr.mxu0 0.0
    %7313 = vmatpush1.msra.mxu0 0.0
    %7314 = vmatprep.subr.mxu0 0.0
    %7315 = vmatpush1.msra.mxu0 0.0
    %7316 = vmatprep.subr.mxu0 0.0
    %7317 = vmatpush1.msra.mxu0 0.0
    %7318 = vmatprep.subr.mxu0 0.0
    %7319 = vmatpush1.msra.mxu0 0.0
    %7320 = vmatprep.subr.mxu0 0.0
    %7321 = vmatpush1.msra.mxu0 0.0
    %7322 = vmatprep.subr.mxu0 0.0
    %7323 = vmatpush1.msra.mxu0 0.0
    %7324 = vmatprep.subr.mxu0 0.0
    %7325 = vmatpush1.msra.mxu0 0.0
    %7326 = vmatprep.subr.mxu0 0.0
    %7327 = vmatpush1.msra.mxu0 0.0
    %7328 = vmatprep.subr.mxu0 0.0
    %7329 = vmatpush1.msra.mxu0 0.0
    %7330 = vmatprep.subr.mxu0 0.0
    %7331 = vmatpush1.msra.mxu0 0.0
    %7332 = vmatprep.subr.mxu0 0.0
    %7333 = vmatpush1.msra.mxu0 0.0
    %7334 = vmatprep.subr.mxu0 0.0
    %7335 = vmatpush1.msra.mxu0 0.0
    %7336 = vmatprep.mubr.f32.mxu0 0.0
    %7337 = vmatmul.mubr.f32.gmra.mrb[0].mxu0 %v7264
    %v7338 = vpop.f32.mrb[0].mxu0
    %v7339 = vadd.f32 0.0, %v7338
    %v7340 = vpop.f32.mrb[0].mxu0
    %v7341 = vadd.f32 0.0, %v7340
    %7342 = vmatprep.mubr.f32.mxu0 0.0
    %7343 = vmatmul.mubr.f32.gmra.mrb[0].mxu0 %v7267
    %v7344 = vpop.f32.mrb[0].mxu0
    %v7345 = vadd.f32 0.0, %v7344
    %v7346 = vpop.f32.mrb[0].mxu0
    %v7347 = vadd.f32 0.0, %v7346
    %7348 = vmatprep.mubr.f32.mxu0 0.0
    %7349 = vmatmul.mubr.f32.gmra.mrb[0].mxu0 %v7270
    %v7350 = vpop.f32.mrb[0].mxu0
    %v7351 = vadd.f32 0.0, %v7350
    %v7352 = vpop.f32.mrb[0].mxu0
    %v7353 = vadd.f32 0.0, %v7352
    %7354 = vdwg.mxu0
    %v7355 = vadd.f32 %v7187, %v7339
    %v7356 = vadd.f32 %v7189, %v7341
    %v7357 = vadd.f32 %v7193, %v7345
    %v7358 = vadd.f32 %v7195, %v7347
    %v7359 = vadd.f32 %v7199, %v7351
    %v7360 = vadd.f32 %v7201, %v7353
    %v7361 = vld [vmem:[%s6] sm:$0xff]
    %v7362 = vld [vmem:[%s6 + $0x8] sm:$0xff]
    %v7363 = vld [vmem:[%s6 + $0x10] sm:$0xff]
    %7365 = vset.pattern.permute.xlu0 0
    %7366 = vperm.xlu0 %7365, %v7361
    %v7367 = vpop.permute.xlu0 %7366
    %7370 = vset.pattern.permute.xlu0 0
    %7371 = vperm.xlu0 %7370, %v7362
    %v7372 = vpop.permute.xlu0 %7371
    %7375 = vset.pattern.permute.xlu0 0
    %7376 = vperm.xlu0 %7375, %v7363
    %v7377 = vpop.permute.xlu0 %7376
    %v7379 = vadd.f32 %v7355, %v7367
    %v7380 = vadd.f32 %v7356, %v7367
    %v7381 = vadd.f32 %v7357, %v7372
    %v7382 = vadd.f32 %v7358, %v7372
    %v7383 = vadd.f32 %v7359, %v7377
    %v7384 = vadd.f32 %v7360, %v7377
    %v7385 = vmax.f32 %v7379, 0.0
    %v7386 = vmax.f32 %v7380, 0.0
    %v7387 = vmax.f32 %v7381, 0.0
    %v7388 = vmax.f32 %v7382, 0.0
    %v7389 = vmax.f32 %v7383, 0.0
    %v7390 = vmax.f32 %v7384, 0.0
    %v7397 = vrot.slane %v7385, 1
    %v7398 = vrot.slane %v7387, 1
    %v7399 = vsel %vm2105, %v7397, %v7398
    %v7400 = vrot.slane %v7386, 1
    %v7401 = vrot.slane %v7388, 1
    %v7402 = vsel %vm2105, %v7400, %v7401
    %v7403 = vrot.slane %v7389, 1
    %v7404 = vsel %vm2105, %v7398, %v7403
    %v7405 = vrot.slane %v7390, 1
    %v7406 = vsel %vm2105, %v7401, %v7405
    %v7413 = vmax.f32 %v7385, %v7399
    %v7414 = vmax.f32 %v7386, %v7402
    %v7415 = vmax.f32 %v7387, %v7404
    %v7416 = vmax.f32 %v7388, %v7406
    %v7417 = vmax.f32 %v7389, %v7403
    %v7418 = vmax.f32 %v7390, %v7405
    %7425 = vrot.lane.b32.xlu0 %v7413, 127
    %v7426 = vpop.permute.xlu0 %7425
    %7427 = vrot.lane.b32.xlu0 %v7414, 127
    %v7428 = vpop.permute.xlu0 %7427
    %7429 = vrot.lane.b32.xlu0 %v7415, 127
    %v7430 = vpop.permute.xlu0 %7429
    %7431 = vrot.lane.b32.xlu0 %v7416, 127
    %v7432 = vpop.permute.xlu0 %7431
    %7433 = vrot.lane.b32.xlu0 %v7417, 127
    %v7434 = vpop.permute.xlu0 %7433
    %7435 = vrot.lane.b32.xlu0 %v7418, 127
    %v7436 = vpop.permute.xlu0 %7435
    %v7437 = vsel %vm157, %v7426, %v7428
    %v7438 = vsel %vm157, %v7430, %v7432
    %v7439 = vsel %vm157, %v7434, %v7436
    %v7446 = vmax.f32 %v7413, %v7437
    %v7447 = vmax.f32 %v7414, %v7428
    %v7448 = vmax.f32 %v7415, %v7438
    %v7449 = vmax.f32 %v7416, %v7432
    %v7450 = vmax.f32 %v7417, %v7439
    %v7451 = vmax.f32 %v7418, %v7436
    %v7452 = vld [vmem:[%s11] sm:$0xff]
    %v7453 = vld [vmem:[%s11 + $0x8] sm:$0xff]
    %v7454 = vld [vmem:[%s11 + $0x10] sm:$0xff]
    %v7455 = vld [vmem:[%s11 + $0x18] sm:$0xff]
    %v7456 = vld [vmem:[%s11 + $0x20] sm:$0x7f]
    %v7457 = vld [vmem:[%s11 + $0x28] sm:$0x7f]
    %v7458 = vmul.f32 %v7452, %v7446
    %v7459 = vmul.f32 %v7453, %v7447
    %v7460 = vmul.f32 %v7454, %v7448
    %v7461 = vmul.f32 %v7455, %v7449
    %v7462 = vmul.f32 %v7456, %v7450
    %v7463 = vmul.f32 %v7457, %v7451
    %v7464 = vadd.f32 %v7458, %v7460
    %v7465 = vsel %vm2105, %v7462, 0.0
    %v7466 = vadd.f32 %v7464, %v7465
    %v7467 = vrot.slane %v7466, 4
    %v7468 = vadd.f32 %v7466, %v7467
    %v7469 = vrot.slane %v7468, 2
    %v7470 = vadd.f32 %v7468, %v7469
    %v7471 = vrot.slane %v7470, 1
    %v7472 = vadd.f32 %v7470, %v7471
    %vm7473 = vcmask 236544
    %v7474 = vsel %vm7473, %v7459, 0.0
    %v7475 = vsel %vm7473, %v7461, 0.0
    %v7476 = vadd.f32 %v7474, %v7475
    %vm7477 = vcmask 235520
    %v7478 = vsel %vm7477, %v7463, 0.0
    %v7479 = vadd.f32 %v7476, %v7478
    %v7480 = vrot.slane %v7479, 4
    %v7481 = vadd.f32 %v7479, %v7480
    %v7482 = vrot.slane %v7481, 2
    %v7483 = vadd.f32 %v7481, %v7482
    %v7484 = vrot.slane %v7483, 1
    %v7485 = vadd.f32 %v7483, %v7484
    %s7486 = scalar_lea.vmem %s11, 48
    %v7487 = vld [vmem:[%s7486] sm:$0xff]
    %v7488 = vld [vmem:[%s7486 + $0x8] sm:$0xff]
    %v7489 = vld [vmem:[%s7486 + $0x10] sm:$0xff]
    %v7490 = vld [vmem:[%s7486 + $0x18] sm:$0xff]
    %v7491 = vld [vmem:[%s7486 + $0x20] sm:$0x7f]
    %v7492 = vld [vmem:[%s7486 + $0x28] sm:$0x7f]
    %v7493 = vmul.f32 %v7487, %v7446
    %v7494 = vmul.f32 %v7488, %v7447
    %v7495 = vmul.f32 %v7489, %v7448
    %v7496 = vmul.f32 %v7490, %v7449
    %v7497 = vmul.f32 %v7491, %v7450
    %v7498 = vmul.f32 %v7492, %v7451
    %v7499 = vadd.f32 %v7493, %v7495
    %v7500 = vsel %vm2105, %v7497, 0.0
    %v7501 = vadd.f32 %v7499, %v7500
    %v7502 = vrot.slane %v7501, 4
    %v7503 = vadd.f32 %v7501, %v7502
    %v7504 = vrot.slane %v7503, 2
    %v7505 = vadd.f32 %v7503, %v7504
    %v7506 = vrot.slane %v7505, 1
    %v7507 = vadd.f32 %v7505, %v7506
    %v7508 = vsel %vm7473, %v7494, 0.0
    %v7509 = vsel %vm7473, %v7496, 0.0
    %v7510 = vadd.f32 %v7508, %v7509
    %v7511 = vsel %vm7477, %v7498, 0.0
    %v7512 = vadd.f32 %v7510, %v7511
    %v7513 = vrot.slane %v7512, 4
    %v7514 = vadd.f32 %v7512, %v7513
    %v7515 = vrot.slane %v7514, 2
    %v7516 = vadd.f32 %v7514, %v7515
    %v7517 = vrot.slane %v7516, 1
    %v7518 = vadd.f32 %v7516, %v7517
    %vm7519 = vcmask 1040384
    %v7520 = vsel %vm7519, %v7472, %v7507
    %v7521 = vsel %vm7519, %v7485, %v7518
    %v7522 = vld [vmem:[%s12] sm:$0xff]
    %v7523 = vld [vmem:[%s12 + $0x8] sm:$0xff]
    %v7524 = vld [vmem:[%s12 + $0x10] sm:$0xff]
    %v7525 = vld [vmem:[%s12 + $0x18] sm:$0xff]
    %v7526 = vld [vmem:[%s12 + $0x20] sm:$0xff]
    %v7527 = vld [vmem:[%s12 + $0x28] sm:$0xff]
    %v7528 = vld [vmem:[%s12 + $0x30] sm:$0xff]
    %v7529 = vld [vmem:[%s12 + $0x38] sm:$0xff]
    %v7530 = vld [vmem:[%s12 + $0x40] sm:$0xff]
    %v7531 = vld [vmem:[%s12 + $0x48] sm:$0xff]
    %v7532 = vld [vmem:[%s12 + $0x50] sm:$0xff]
    %v7533 = vld [vmem:[%s12 + $0x58] sm:$0xff]
    %v7534 = vld [vmem:[%s12 + $0x60] sm:$0xff]
    %v7535 = vld [vmem:[%s12 + $0x68] sm:$0xff]
    %v7536 = vld [vmem:[%s12 + $0x70] sm:$0xff]
    %v7537 = vld [vmem:[%s12 + $0x78] sm:$0xff]
    %v7538 = vld [vmem:[%s12 + $0x80] sm:$0xff]
    %v7539 = vld [vmem:[%s12 + $0x88] sm:$0xff]
    %v7540 = vld [vmem:[%s12 + $0x90] sm:$0xff]
    %v7541 = vld [vmem:[%s12 + $0x98] sm:$0x1f]
    %v7542 = vld [vmem:[%s13] sm:$0x3]
    %v7544 = vsel %vm7473, %v7521, 0
    %vm7546 = vcmask 1044480
    %v7548 = vsel %vm7546, %v7541, 0
    %7550 = vmatprep.subr.mxu0 0.0
    %7551 = vmatpush1.msra.mxu0 %v7522
    %7552 = vmatprep.subr.mxu0 0.0
    %7553 = vmatpush1.msra.mxu0 %v7523
    %7554 = vmatprep.subr.mxu0 0.0
    %7555 = vmatpush1.msra.mxu0 %v7524
    %7556 = vmatprep.subr.mxu0 0.0
    %7557 = vmatpush1.msra.mxu0 %v7525
    %7558 = vmatprep.subr.mxu0 0.0
    %7559 = vmatpush1.msra.mxu0 %v7526
    %7560 = vmatprep.subr.mxu0 0.0
    %7561 = vmatpush1.msra.mxu0 %v7527
    %7562 = vmatprep.subr.mxu0 0.0
    %7563 = vmatpush1.msra.mxu0 %v7528
    %7564 = vmatprep.subr.mxu0 0.0
    %7565 = vmatpush1.msra.mxu0 %v7529
    %7566 = vmatprep.subr.mxu0 0.0
    %7567 = vmatpush1.msra.mxu0 %v7530
    %7568 = vmatprep.subr.mxu0 0.0
    %7569 = vmatpush1.msra.mxu0 %v7531
    %7570 = vmatprep.subr.mxu0 0.0
    %7571 = vmatpush1.msra.mxu0 %v7532
    %7572 = vmatprep.subr.mxu0 0.0
    %7573 = vmatpush1.msra.mxu0 %v7533
    %7574 = vmatprep.subr.mxu0 0.0
    %7575 = vmatpush1.msra.mxu0 %v7534
    %7576 = vmatprep.subr.mxu0 0.0
    %7577 = vmatpush1.msra.mxu0 %v7535
    %7578 = vmatprep.subr.mxu0 0.0
    %7579 = vmatpush1.msra.mxu0 %v7536
    %7580 = vmatprep.subr.mxu0 0.0
    %7581 = vmatpush1.msra.mxu0 %v7537
    %7582 = vmatprep.subr.mxu0 0.0
    %7583 = vmatpush1.msra.mxu0 %v7538
    %7584 = vmatprep.subr.mxu0 0.0
    %7585 = vmatpush1.msra.mxu0 %v7539
    %7586 = vmatprep.subr.mxu0 0.0
    %7587 = vmatpush1.msra.mxu0 %v7540
    %7588 = vmatprep.subr.mxu0 0.0
    %7589 = vmatpush1.msra.mxu0 %v7548
    %7590 = vmatprep.subr.mxu0 0.0
    %7591 = vmatpush1.msra.mxu0 0.0
    %7592 = vmatprep.subr.mxu0 0.0
    %7593 = vmatpush1.msra.mxu0 0.0
    %7594 = vmatprep.subr.mxu0 0.0
    %7595 = vmatpush1.msra.mxu0 0.0
    %7596 = vmatprep.subr.mxu0 0.0
    %7597 = vmatpush1.msra.mxu0 0.0
    %7598 = vmatprep.subr.mxu0 0.0
    %7599 = vmatpush1.msra.mxu0 0.0
    %7600 = vmatprep.subr.mxu0 0.0
    %7601 = vmatpush1.msra.mxu0 0.0
    %7602 = vmatprep.subr.mxu0 0.0
    %7603 = vmatpush1.msra.mxu0 0.0
    %7604 = vmatprep.subr.mxu0 0.0
    %7605 = vmatpush1.msra.mxu0 0.0
    %7606 = vmatprep.subr.mxu0 0.0
    %7607 = vmatpush1.msra.mxu0 0.0
    %7608 = vmatprep.subr.mxu0 0.0
    %7609 = vmatpush1.msra.mxu0 0.0
    %7610 = vmatprep.subr.mxu0 0.0
    %7611 = vmatpush1.msra.mxu0 0.0
    %7612 = vmatprep.subr.mxu0 0.0
    %7613 = vmatpush1.msra.mxu0 0.0
    %7614 = vmatprep.mubr.f32.mxu0 %v7544
    %7615 = vmatmul.mubr.f32.gmra.mrb[0].mxu0 %v7520
    %v7616 = vpop.f32.mrb[0].mxu0
    %v7617 = vadd.f32 %v7542, %v7616
    %v7618 = vpop.f32.mrb[0].mxu0
    %7619 = vdwg.mxu0
    %vm7620 = vcmask 123904
    %7621 = vst.msk [vmem:[#allocation2] sm:$0x3] %vm7620, %v7617
    // Predicated region
    $region58: #{tpu_custom_call.1} parent=1 // pred_check
      _
    $region59: #{tpu_custom_call.1} parent=1 // pred_check_branch
      %7623 = sbr.rel (0) target = $region61
    $region60: #{tpu_custom_call.1} parent=1 // pred_region
      %s7625 = ssub.s32 32, 32
      %7626 = vsyncadd [#allocation3], %s7625
      %s7628 = sshll.u32 [#allocation2], 4
      %s7629 = int_to_ptr.vmem [resolvable:$true] %s7628
      %7631 = dma.vmem_to_hbm [thread:$0]  %s7629, 32, %s14, [#allocation3]
    $region61: #{tpu_custom_call.1} parent=1 // pred_fallthru
      _
    // Predicated region
    $region62: #{tpu_custom_call.1} parent=1 // pred_check
      _
    $region63: #{tpu_custom_call.1} parent=1 // pred_check_branch
      %7633 = sbr.rel (0) target = $region65
    $region64: #{tpu_custom_call.1} parent=1 // pred_region
      %7634 = dma.done [#allocation3], 32
    $region65: #{tpu_custom_call.1} parent=1 // pred_fallthru
      _
    %7635 = vsyncpa [#allocation3], 1

</llo_original>
